<compile_context>
chip_gen: v6e
topology: v6e:2x2x1
jax: 0.10.0
libtpu: 0.0.40
codegen_flags: <defaults>
</compile_context>

<pallas_src>
import jax
import jax.numpy as jnp
from jax import lax
from jax.experimental import pallas as pl
from jax.experimental.pallas import tpu as pltpu

# ---- model hyper-parameters fixed by the PyTorch module -------------------
HIDDEN = 768          # roberta-base hidden size (conv kernel width)
N_LAYERS = 13         # embeddings + 12 transformer layers
IN_CH = 4             # 4 stacked hidden-state layers
OUT_CH = 256          # conv out_channels
KH = 3                # conv kernel height
POOL = 43             # MaxPool2d kernel height
SEQ = POOL + KH - 1   # = 45, conv output height == pool kernel (squeeze works)
BATCH = 2
T_OUT = SEQ - KH + 1             # 43 valid conv rows per batch element
M_TOTAL = BATCH * SEQ            # 90 rows of the batch-merged activation slab
M_ROWS = M_TOTAL - KH + 1        # 88 conv rows when B is merged into M
N_BRANCH = 2                     # branch 0 = "mid" (layers 5:9), 1 = "last" (9:13)

# Guard the straddle-row exclusion scheme against future shape changes.
assert T_OUT == POOL, (T_OUT, POOL)
assert M_ROWS == BATCH * SEQ - KH + 1
assert (BATCH - 1) * SEQ + T_OUT == M_ROWS   # last batch's max window fits in acc


# ---------------------------------------------------------------------------
# Fused kernel: for one branch g,
#   conv2d + bias + ReLU + MaxPool2d((43,1)) + squeeze  ->  [B, OUT_CH]
# as IN_CH*KH row-shifted MXU matmuls on the batch-merged activation slab.
# ---------------------------------------------------------------------------
def conv_branch_kernel(x_ref, w_ref, b_ref, o_ref):
    # x_ref: (1, IN_CH, B*S, H) f32    w_ref: (1, KH*IN_CH, H, OUT_CH) bf16
    # b_ref: (1, 1, OUT_CH) f32        o_ref: (1, BATCH, OUT_CH) f32
    acc = jnp.zeros((M_ROWS, OUT_CH), jnp.float32)
    for c in range(IN_CH):                       # static unroll: 4 channels
        xc = x_ref[0, c].astype(jnp.bfloat16)    # [90, 768], cast in-kernel
        for kh in range(KH):                     # static unroll: 3 taps
            d = jnp.dot(xc, w_ref[0, kh * IN_CH + c],
                        preferred_element_type=jnp.float32)   # [90, 256] f32
            # Shift on the small f32 result, not on the big bf16 operand.
            acc = acc + d[kh:kh + M_ROWS, :]
    z = jnp.maximum(acc + b_ref[0], 0.0)         # bias + ReLU, [88, 256]

    # MaxPool2d((43,1)) per batch element via a masked full-width reduction:
    # rows crossing the batch boundary (43, 44) are excluded.  Fill value 0 is
    # exact because every valid row is a ReLU output (>= 0).
    row_id = lax.broadcasted_iota(jnp.int32, (M_ROWS, OUT_CH), 0)
    maxes = []
    for b in range(BATCH):
        valid = (row_id >= b * SEQ) & (row_id < b * SEQ + T_OUT)
        maxes.append(jnp.max(jnp.where(valid, z, 0.0), axis=0))
    o_ref[0] = jnp.stack(maxes, axis=0)          # single lane-dense [B, 256] store


def conv_branches(x, w_stack, b_stack):
    """x: [2, IN_CH, B*S, H] f32, w_stack: [2, KH*IN_CH, H, O] bf16,
       b_stack: [2, 1, O] f32  ->  [2, B, O] f32."""
    return pl.pallas_call(
        conv_branch_kernel,
        out_shape=jax.ShapeDtypeStruct((N_BRANCH, BATCH, OUT_CH), jnp.float32),
        grid_spec=pltpu.PrefetchScalarGridSpec(
            num_scalar_prefetch=0,
            grid=(N_BRANCH,),
            in_specs=[
                pl.BlockSpec((1, IN_CH, M_TOTAL, HIDDEN), lambda g: (g, 0, 0, 0)),
                pl.BlockSpec((1, KH * IN_CH, HIDDEN, OUT_CH), lambda g: (g, 0, 0, 0)),
                pl.BlockSpec((1, 1, OUT_CH), lambda g: (g, 0, 0)),
            ],
            out_specs=pl.BlockSpec((1, BATCH, OUT_CH), lambda g: (g, 0, 0)),
        ),
        compiler_params=pltpu.CompilerParams(
            # TODO(synk): pltpu.CORE_PARALLEL on v7x (one branch per TC).
            dimension_semantics=("parallel",),
            vmem_limit_bytes=32 * 1024 * 1024),
    )(x, w_stack, b_stack)


# ---------------------------------------------------------------------------
# Forward pass
# ---------------------------------------------------------------------------
def _branch_inputs(hidden_states):
    """[13, B, S, H] f32 -> [2, IN_CH, B*S, H] f32.  Pure reshape of a
    contiguous slice — no transpose, no cast, no extra HBM traffic."""
    return hidden_states[5:13].reshape(N_BRANCH, IN_CH, BATCH * SEQ, HIDDEN)


@jax.jit
def forward(hidden_states, params):
    x = _branch_inputs(hidden_states)
    feats = conv_branches(x, params["w_stack"], params["b_stack"])   # [2, B, 256]
    # torch.cat((mid, last), dim=1): branch 0 = mid, branch 1 = last.
    feats = jnp.transpose(feats, (1, 0, 2)).reshape(BATCH, 2 * OUT_CH)  # [B, 512]
    # dropout(p=0.3) is identity at inference (eval mode).
    # Linear(512, 1) + Sigmoid: left to XLA (too small for its own pallas_call).
    logits = feats @ params["lin_w"] + params["lin_b"]
    return jax.nn.sigmoid(logits)


def reference_forward(hidden_states, params):
    """Pure-jnp reference (same bf16 operands / f32 accumulation)."""
    hs = hidden_states[5:13].reshape(N_BRANCH, IN_CH, BATCH, SEQ, HIDDEN)
    feats = []
    for g in range(N_BRANCH):
        acc = jnp.zeros((BATCH, T_OUT, OUT_CH), jnp.float32)
        for c in range(IN_CH):
            xc = hs[g, c].astype(jnp.bfloat16)                   # [B, S, H]
            for kh in range(KH):
                w = params["w_stack"][g, kh * IN_CH + c]         # [H, O] bf16
                acc = acc + jnp.einsum(
                    "bsh,ho->bso", xc[:, kh:kh + T_OUT, :], w,
                    preferred_element_type=jnp.float32)
        z = jnp.maximum(acc + params["b_stack"][g][None], 0.0)
        feats.append(jnp.max(z, axis=1))
    f = jnp.concatenate(feats, axis=1)
    return jax.nn.sigmoid(f @ params["lin_w"] + params["lin_b"])


def init_params(key):
    k1, k2, k3, k4, k5, k6 = jax.random.split(key, 6)
    # PyTorch Conv2d weight layout [O, C, KH, KW]
    conv_w = 0.02 * jax.random.normal(k1, (OUT_CH, IN_CH, KH, HIDDEN), jnp.float32)
    convm_w = 0.02 * jax.random.normal(k2, (OUT_CH, IN_CH, KH, HIDDEN), jnp.float32)
    conv_b = 0.01 * jax.random.normal(k3, (OUT_CH,), jnp.float32)
    convm_b = 0.01 * jax.random.normal(k4, (OUT_CH,), jnp.float32)
    lin_w = 0.02 * jax.random.normal(k5, (1, 2 * OUT_CH), jnp.float32)  # torch [out,in]
    lin_b = 0.01 * jax.random.normal(k6, (1,), jnp.float32)

    def to_kernel_layout(w_oihw):
        # [O, C, KH, W] -> [KH, C, W, O] -> [KH*C, W, O]
        return jnp.transpose(w_oihw, (2, 1, 3, 0)).reshape(KH * IN_CH, HIDDEN, OUT_CH)

    # Branch order: 0 = mid (conv2dm, layers 5:9), 1 = last (conv2d, layers 9:13)
    w_stack = jnp.stack([to_kernel_layout(convm_w),
                         to_kernel_layout(conv_w)]).astype(jnp.bfloat16)
    b_stack = jnp.stack([convm_b, conv_b]).reshape(N_BRANCH, 1, OUT_CH)
    return {
        "w_stack": w_stack,                 # [2, 12, 768, 256] bf16
        "b_stack": b_stack,                 # [2, 1, 256] f32
        "lin_w": lin_w.T,                   # [512, 1]
        "lin_b": lin_b.reshape(1, 1),       # [1, 1]
    }


if __name__ == "__main__":
    key = jax.random.PRNGKey(0)
    k_hs, k_par = jax.random.split(key)
    # Synthetic RoBERTa hidden states: [13 layers, B, S, H]
    hidden_states = jax.random.normal(
        k_hs, (N_LAYERS, BATCH, SEQ, HIDDEN), jnp.float32)
    params = init_params(k_par)

    out = jax.block_until_ready(forward(hidden_states, params))
    ref = jax.block_until_ready(reference_forward(hidden_states, params))

    assert out.shape == (BATCH, 1), out.shape
    assert bool(jnp.all(jnp.isfinite(out)))
    assert bool(jnp.allclose(out, ref, atol=2e-3, rtol=2e-3)), (out, ref)
    print("KERNEL_OK")
</pallas_src>

<mosaic_0001>
module attributes {stable_mosaic.version = 11 : i64} {
  func.func @conv_branch_kernel(%arg0: i32, %arg1: memref<1x4x90x768xf32, #tpu.memory_space<vmem>>, %arg2: memref<1x12x768x256xbf16, #tpu.memory_space<vmem>>, %arg3: memref<1x1x256xf32, #tpu.memory_space<vmem>>, %arg4: memref<1x2x256xf32, #tpu.memory_space<vmem>>) attributes {dimension_semantics = [#tpu.dimension_semantics<parallel>], iteration_bounds = array<i64: 2>, scalar_prefetch = 0 : i64, scratch_operands = 0 : i64, tpu.core_type = #tpu.core_type<tc>, window_params = [{transform_indices = @transform_0, window_bounds = array<i64: 1, 4, 90, 768>}, {transform_indices = @transform_1, window_bounds = array<i64: 1, 12, 768, 256>}, {transform_indices = @transform_2, window_bounds = array<i64: 1, 1, 256>}, {transform_indices = @transform_3, window_bounds = array<i64: 1, 2, 256>}]} {
    %cst = arith.constant 0.000000e+00 : f32
    %0 = vector.broadcast %cst : f32 to vector<88x256xf32>
    %c0 = arith.constant 0 : index
    %c0_0 = arith.constant 0 : index
    %c0_1 = arith.constant 0 : index
    %c0_2 = arith.constant 0 : index
    %1 = vector.load %arg1[%c0, %c0_0, %c0_1, %c0_2] : memref<1x4x90x768xf32, #tpu.memory_space<vmem>>, vector<1x1x90x768xf32>
    %2 = vector.shape_cast %1 : vector<1x1x90x768xf32> to vector<90x768xf32>
    %3 = arith.truncf %2 : vector<90x768xf32> to vector<90x768xbf16>
    %c0_3 = arith.constant 0 : index
    %c0_4 = arith.constant 0 : index
    %c0_5 = arith.constant 0 : index
    %c0_6 = arith.constant 0 : index
    %4 = vector.load %arg2[%c0_3, %c0_4, %c0_5, %c0_6] : memref<1x12x768x256xbf16, #tpu.memory_space<vmem>>, vector<1x1x768x256xbf16>
    %5 = vector.shape_cast %4 : vector<1x1x768x256xbf16> to vector<768x256xbf16>
    %cst_7 = arith.constant dense<0.000000e+00> : vector<90x256xf32>
    %6 = tpu.matmul %3, %5, %cst_7 {dimension_numbers = #tpu.dot_dimension_numbers<[1], [0], [0], [1], [0, 0, 1, 1], [], []>} : vector<90x768xbf16>, vector<768x256xbf16>, vector<90x256xf32> -> vector<90x256xf32>
    %7 = vector.extract_strided_slice %6 {offsets = [0, 0], sizes = [88, 256], strides = [1, 1]} : vector<90x256xf32> to vector<88x256xf32>
    %8 = arith.addf %0, %7 : vector<88x256xf32>
    %c0_8 = arith.constant 0 : index
    %c4 = arith.constant 4 : index
    %c0_9 = arith.constant 0 : index
    %c0_10 = arith.constant 0 : index
    %9 = vector.load %arg2[%c0_8, %c4, %c0_9, %c0_10] : memref<1x12x768x256xbf16, #tpu.memory_space<vmem>>, vector<1x1x768x256xbf16>
    %10 = vector.shape_cast %9 : vector<1x1x768x256xbf16> to vector<768x256xbf16>
    %cst_11 = arith.constant dense<0.000000e+00> : vector<90x256xf32>
    %11 = tpu.matmul %3, %10, %cst_11 {dimension_numbers = #tpu.dot_dimension_numbers<[1], [0], [0], [1], [0, 0, 1, 1], [], []>} : vector<90x768xbf16>, vector<768x256xbf16>, vector<90x256xf32> -> vector<90x256xf32>
    %12 = vector.extract_strided_slice %11 {offsets = [1, 0], sizes = [88, 256], strides = [1, 1]} : vector<90x256xf32> to vector<88x256xf32>
    %13 = arith.addf %8, %12 : vector<88x256xf32>
    %c0_12 = arith.constant 0 : index
    %c8 = arith.constant 8 : index
    %c0_13 = arith.constant 0 : index
    %c0_14 = arith.constant 0 : index
    %14 = vector.load %arg2[%c0_12, %c8, %c0_13, %c0_14] : memref<1x12x768x256xbf16, #tpu.memory_space<vmem>>, vector<1x1x768x256xbf16>
    %15 = vector.shape_cast %14 : vector<1x1x768x256xbf16> to vector<768x256xbf16>
    %cst_15 = arith.constant dense<0.000000e+00> : vector<90x256xf32>
    %16 = tpu.matmul %3, %15, %cst_15 {dimension_numbers = #tpu.dot_dimension_numbers<[1], [0], [0], [1], [0, 0, 1, 1], [], []>} : vector<90x768xbf16>, vector<768x256xbf16>, vector<90x256xf32> -> vector<90x256xf32>
    %17 = vector.extract_strided_slice %16 {offsets = [2, 0], sizes = [88, 256], strides = [1, 1]} : vector<90x256xf32> to vector<88x256xf32>
    %18 = arith.addf %13, %17 : vector<88x256xf32>
    %c0_16 = arith.constant 0 : index
    %c1 = arith.constant 1 : index
    %c0_17 = arith.constant 0 : index
    %c0_18 = arith.constant 0 : index
    %19 = vector.load %arg1[%c0_16, %c1, %c0_17, %c0_18] : memref<1x4x90x768xf32, #tpu.memory_space<vmem>>, vector<1x1x90x768xf32>
    %20 = vector.shape_cast %19 : vector<1x1x90x768xf32> to vector<90x768xf32>
    %21 = arith.truncf %20 : vector<90x768xf32> to vector<90x768xbf16>
    %c0_19 = arith.constant 0 : index
    %c1_20 = arith.constant 1 : index
    %c0_21 = arith.constant 0 : index
    %c0_22 = arith.constant 0 : index
    %22 = vector.load %arg2[%c0_19, %c1_20, %c0_21, %c0_22] : memref<1x12x768x256xbf16, #tpu.memory_space<vmem>>, vector<1x1x768x256xbf16>
    %23 = vector.shape_cast %22 : vector<1x1x768x256xbf16> to vector<768x256xbf16>
    %cst_23 = arith.constant dense<0.000000e+00> : vector<90x256xf32>
    %24 = tpu.matmul %21, %23, %cst_23 {dimension_numbers = #tpu.dot_dimension_numbers<[1], [0], [0], [1], [0, 0, 1, 1], [], []>} : vector<90x768xbf16>, vector<768x256xbf16>, vector<90x256xf32> -> vector<90x256xf32>
    %25 = vector.extract_strided_slice %24 {offsets = [0, 0], sizes = [88, 256], strides = [1, 1]} : vector<90x256xf32> to vector<88x256xf32>
    %26 = arith.addf %18, %25 : vector<88x256xf32>
    %c0_24 = arith.constant 0 : index
    %c5 = arith.constant 5 : index
    %c0_25 = arith.constant 0 : index
    %c0_26 = arith.constant 0 : index
    %27 = vector.load %arg2[%c0_24, %c5, %c0_25, %c0_26] : memref<1x12x768x256xbf16, #tpu.memory_space<vmem>>, vector<1x1x768x256xbf16>
    %28 = vector.shape_cast %27 : vector<1x1x768x256xbf16> to vector<768x256xbf16>
    %cst_27 = arith.constant dense<0.000000e+00> : vector<90x256xf32>
    %29 = tpu.matmul %21, %28, %cst_27 {dimension_numbers = #tpu.dot_dimension_numbers<[1], [0], [0], [1], [0, 0, 1, 1], [], []>} : vector<90x768xbf16>, vector<768x256xbf16>, vector<90x256xf32> -> vector<90x256xf32>
    %30 = vector.extract_strided_slice %29 {offsets = [1, 0], sizes = [88, 256], strides = [1, 1]} : vector<90x256xf32> to vector<88x256xf32>
    %31 = arith.addf %26, %30 : vector<88x256xf32>
    %c0_28 = arith.constant 0 : index
    %c9 = arith.constant 9 : index
    %c0_29 = arith.constant 0 : index
    %c0_30 = arith.constant 0 : index
    %32 = vector.load %arg2[%c0_28, %c9, %c0_29, %c0_30] : memref<1x12x768x256xbf16, #tpu.memory_space<vmem>>, vector<1x1x768x256xbf16>
    %33 = vector.shape_cast %32 : vector<1x1x768x256xbf16> to vector<768x256xbf16>
    %cst_31 = arith.constant dense<0.000000e+00> : vector<90x256xf32>
    %34 = tpu.matmul %21, %33, %cst_31 {dimension_numbers = #tpu.dot_dimension_numbers<[1], [0], [0], [1], [0, 0, 1, 1], [], []>} : vector<90x768xbf16>, vector<768x256xbf16>, vector<90x256xf32> -> vector<90x256xf32>
    %35 = vector.extract_strided_slice %34 {offsets = [2, 0], sizes = [88, 256], strides = [1, 1]} : vector<90x256xf32> to vector<88x256xf32>
    %36 = arith.addf %31, %35 : vector<88x256xf32>
    %c0_32 = arith.constant 0 : index
    %c2 = arith.constant 2 : index
    %c0_33 = arith.constant 0 : index
    %c0_34 = arith.constant 0 : index
    %37 = vector.load %arg1[%c0_32, %c2, %c0_33, %c0_34] : memref<1x4x90x768xf32, #tpu.memory_space<vmem>>, vector<1x1x90x768xf32>
    %38 = vector.shape_cast %37 : vector<1x1x90x768xf32> to vector<90x768xf32>
    %39 = arith.truncf %38 : vector<90x768xf32> to vector<90x768xbf16>
    %c0_35 = arith.constant 0 : index
    %c2_36 = arith.constant 2 : index
    %c0_37 = arith.constant 0 : index
    %c0_38 = arith.constant 0 : index
    %40 = vector.load %arg2[%c0_35, %c2_36, %c0_37, %c0_38] : memref<1x12x768x256xbf16, #tpu.memory_space<vmem>>, vector<1x1x768x256xbf16>
    %41 = vector.shape_cast %40 : vector<1x1x768x256xbf16> to vector<768x256xbf16>
    %cst_39 = arith.constant dense<0.000000e+00> : vector<90x256xf32>
    %42 = tpu.matmul %39, %41, %cst_39 {dimension_numbers = #tpu.dot_dimension_numbers<[1], [0], [0], [1], [0, 0, 1, 1], [], []>} : vector<90x768xbf16>, vector<768x256xbf16>, vector<90x256xf32> -> vector<90x256xf32>
    %43 = vector.extract_strided_slice %42 {offsets = [0, 0], sizes = [88, 256], strides = [1, 1]} : vector<90x256xf32> to vector<88x256xf32>
    %44 = arith.addf %36, %43 : vector<88x256xf32>
    %c0_40 = arith.constant 0 : index
    %c6 = arith.constant 6 : index
    %c0_41 = arith.constant 0 : index
    %c0_42 = arith.constant 0 : index
    %45 = vector.load %arg2[%c0_40, %c6, %c0_41, %c0_42] : memref<1x12x768x256xbf16, #tpu.memory_space<vmem>>, vector<1x1x768x256xbf16>
    %46 = vector.shape_cast %45 : vector<1x1x768x256xbf16> to vector<768x256xbf16>
    %cst_43 = arith.constant dense<0.000000e+00> : vector<90x256xf32>
    %47 = tpu.matmul %39, %46, %cst_43 {dimension_numbers = #tpu.dot_dimension_numbers<[1], [0], [0], [1], [0, 0, 1, 1], [], []>} : vector<90x768xbf16>, vector<768x256xbf16>, vector<90x256xf32> -> vector<90x256xf32>
    %48 = vector.extract_strided_slice %47 {offsets = [1, 0], sizes = [88, 256], strides = [1, 1]} : vector<90x256xf32> to vector<88x256xf32>
    %49 = arith.addf %44, %48 : vector<88x256xf32>
    %c0_44 = arith.constant 0 : index
    %c10 = arith.constant 10 : index
    %c0_45 = arith.constant 0 : index
    %c0_46 = arith.constant 0 : index
    %50 = vector.load %arg2[%c0_44, %c10, %c0_45, %c0_46] : memref<1x12x768x256xbf16, #tpu.memory_space<vmem>>, vector<1x1x768x256xbf16>
    %51 = vector.shape_cast %50 : vector<1x1x768x256xbf16> to vector<768x256xbf16>
    %cst_47 = arith.constant dense<0.000000e+00> : vector<90x256xf32>
    %52 = tpu.matmul %39, %51, %cst_47 {dimension_numbers = #tpu.dot_dimension_numbers<[1], [0], [0], [1], [0, 0, 1, 1], [], []>} : vector<90x768xbf16>, vector<768x256xbf16>, vector<90x256xf32> -> vector<90x256xf32>
    %53 = vector.extract_strided_slice %52 {offsets = [2, 0], sizes = [88, 256], strides = [1, 1]} : vector<90x256xf32> to vector<88x256xf32>
    %54 = arith.addf %49, %53 : vector<88x256xf32>
    %c0_48 = arith.constant 0 : index
    %c3 = arith.constant 3 : index
    %c0_49 = arith.constant 0 : index
    %c0_50 = arith.constant 0 : index
    %55 = vector.load %arg1[%c0_48, %c3, %c0_49, %c0_50] : memref<1x4x90x768xf32, #tpu.memory_space<vmem>>, vector<1x1x90x768xf32>
    %56 = vector.shape_cast %55 : vector<1x1x90x768xf32> to vector<90x768xf32>
    %57 = arith.truncf %56 : vector<90x768xf32> to vector<90x768xbf16>
    %c0_51 = arith.constant 0 : index
    %c3_52 = arith.constant 3 : index
    %c0_53 = arith.constant 0 : index
    %c0_54 = arith.constant 0 : index
    %58 = vector.load %arg2[%c0_51, %c3_52, %c0_53, %c0_54] : memref<1x12x768x256xbf16, #tpu.memory_space<vmem>>, vector<1x1x768x256xbf16>
    %59 = vector.shape_cast %58 : vector<1x1x768x256xbf16> to vector<768x256xbf16>
    %cst_55 = arith.constant dense<0.000000e+00> : vector<90x256xf32>
    %60 = tpu.matmul %57, %59, %cst_55 {dimension_numbers = #tpu.dot_dimension_numbers<[1], [0], [0], [1], [0, 0, 1, 1], [], []>} : vector<90x768xbf16>, vector<768x256xbf16>, vector<90x256xf32> -> vector<90x256xf32>
    %61 = vector.extract_strided_slice %60 {offsets = [0, 0], sizes = [88, 256], strides = [1, 1]} : vector<90x256xf32> to vector<88x256xf32>
    %62 = arith.addf %54, %61 : vector<88x256xf32>
    %c0_56 = arith.constant 0 : index
    %c7 = arith.constant 7 : index
    %c0_57 = arith.constant 0 : index
    %c0_58 = arith.constant 0 : index
    %63 = vector.load %arg2[%c0_56, %c7, %c0_57, %c0_58] : memref<1x12x768x256xbf16, #tpu.memory_space<vmem>>, vector<1x1x768x256xbf16>
    %64 = vector.shape_cast %63 : vector<1x1x768x256xbf16> to vector<768x256xbf16>
    %cst_59 = arith.constant dense<0.000000e+00> : vector<90x256xf32>
    %65 = tpu.matmul %57, %64, %cst_59 {dimension_numbers = #tpu.dot_dimension_numbers<[1], [0], [0], [1], [0, 0, 1, 1], [], []>} : vector<90x768xbf16>, vector<768x256xbf16>, vector<90x256xf32> -> vector<90x256xf32>
    %66 = vector.extract_strided_slice %65 {offsets = [1, 0], sizes = [88, 256], strides = [1, 1]} : vector<90x256xf32> to vector<88x256xf32>
    %67 = arith.addf %62, %66 : vector<88x256xf32>
    %c0_60 = arith.constant 0 : index
    %c11 = arith.constant 11 : index
    %c0_61 = arith.constant 0 : index
    %c0_62 = arith.constant 0 : index
    %68 = vector.load %arg2[%c0_60, %c11, %c0_61, %c0_62] : memref<1x12x768x256xbf16, #tpu.memory_space<vmem>>, vector<1x1x768x256xbf16>
    %69 = vector.shape_cast %68 : vector<1x1x768x256xbf16> to vector<768x256xbf16>
    %cst_63 = arith.constant dense<0.000000e+00> : vector<90x256xf32>
    %70 = tpu.matmul %57, %69, %cst_63 {dimension_numbers = #tpu.dot_dimension_numbers<[1], [0], [0], [1], [0, 0, 1, 1], [], []>} : vector<90x768xbf16>, vector<768x256xbf16>, vector<90x256xf32> -> vector<90x256xf32>
    %71 = vector.extract_strided_slice %70 {offsets = [2, 0], sizes = [88, 256], strides = [1, 1]} : vector<90x256xf32> to vector<88x256xf32>
    %72 = arith.addf %67, %71 : vector<88x256xf32>
    %c0_64 = arith.constant 0 : index
    %c0_65 = arith.constant 0 : index
    %c0_66 = arith.constant 0 : index
    %73 = vector.load %arg3[%c0_64, %c0_65, %c0_66] : memref<1x1x256xf32, #tpu.memory_space<vmem>>, vector<1x1x256xf32>
    %74 = vector.shape_cast %73 : vector<1x1x256xf32> to vector<1x256xf32>
    %75 = vector.broadcast %74 : vector<1x256xf32> to vector<88x256xf32>
    %76 = arith.addf %72, %75 : vector<88x256xf32>
    %cst_67 = arith.constant 0.000000e+00 : f32
    %77 = vector.broadcast %cst_67 : f32 to vector<88x256xf32>
    %78 = arith.maximumf %76, %77 : vector<88x256xf32>
    %79 = tpu.iota {dimensions = array<i32: 0>} : vector<88x256xi32>
    %c0_i32 = arith.constant 0 : i32
    %80 = vector.broadcast %c0_i32 : i32 to vector<88x256xi32>
    %81 = arith.cmpi sge, %79, %80 : vector<88x256xi32>
    %c43_i32 = arith.constant 43 : i32
    %82 = vector.broadcast %c43_i32 : i32 to vector<88x256xi32>
    %83 = arith.cmpi slt, %79, %82 : vector<88x256xi32>
    %84 = arith.andi %81, %83 : vector<88x256xi1>
    %cst_68 = arith.constant 0.000000e+00 : f32
    %85 = vector.broadcast %cst_68 : f32 to vector<88x256xf32>
    %86 = arith.select %84, %78, %85 : vector<88x256xi1>, vector<88x256xf32>
    %cst_69 = arith.constant dense<0xFF800000> : vector<256xf32>
    %87 = vector.multi_reduction <maximumf>, %86, %cst_69 [0] : vector<88x256xf32> to vector<256xf32>
    %c45_i32 = arith.constant 45 : i32
    %88 = vector.broadcast %c45_i32 : i32 to vector<88x256xi32>
    %89 = arith.cmpi sge, %79, %88 : vector<88x256xi32>
    %c88_i32 = arith.constant 88 : i32
    %90 = vector.broadcast %c88_i32 : i32 to vector<88x256xi32>
    %91 = arith.cmpi slt, %79, %90 : vector<88x256xi32>
    %92 = arith.andi %89, %91 : vector<88x256xi1>
    %cst_70 = arith.constant 0.000000e+00 : f32
    %93 = vector.broadcast %cst_70 : f32 to vector<88x256xf32>
    %94 = arith.select %92, %78, %93 : vector<88x256xi1>, vector<88x256xf32>
    %cst_71 = arith.constant dense<0xFF800000> : vector<256xf32>
    %95 = vector.multi_reduction <maximumf>, %94, %cst_71 [0] : vector<88x256xf32> to vector<256xf32>
    %96 = vector.shape_cast %87 : vector<256xf32> to vector<1x256xf32>
    %97 = vector.shape_cast %95 : vector<256xf32> to vector<1x256xf32>
    %98 = tpu.concatenate %96, %97 in 0 : vector<1x256xf32>, vector<1x256xf32> -> vector<2x256xf32>
    %c0_72 = arith.constant 0 : index
    %c0_73 = arith.constant 0 : index
    %c0_74 = arith.constant 0 : index
    %99 = vector.load %arg4[%c0_72, %c0_73, %c0_74] : memref<1x2x256xf32, #tpu.memory_space<vmem>>, vector<1x2x256xf32>
    %100 = vector.shape_cast %99 : vector<1x2x256xf32> to vector<2x256xf32>
    %101 = vector.shape_cast %98 : vector<2x256xf32> to vector<1x2x256xf32>
    tpu.vector_store %arg4[%c0_72, %c0_73, %c0_74], %101 {strides = array<i32>} : memref<1x2x256xf32, #tpu.memory_space<vmem>>, vector<1x2x256xf32>,
    return
  }
  func.func @transform_0(%arg0: i32) -> (i32, i32, i32, i32) {
    %c0_i32 = arith.constant 0 : i32
    %c0_i32_0 = arith.constant 0 : i32
    %c0_i32_1 = arith.constant 0 : i32
    %c0_i32_2 = arith.constant 0 : i32
    return %arg0, %c0_i32, %c0_i32_0, %c0_i32_1 : i32, i32, i32, i32
  }
  func.func @transform_1(%arg0: i32) -> (i32, i32, i32, i32) {
    %c0_i32 = arith.constant 0 : i32
    %c0_i32_0 = arith.constant 0 : i32
    %c0_i32_1 = arith.constant 0 : i32
    %c0_i32_2 = arith.constant 0 : i32
    return %arg0, %c0_i32, %c0_i32_0, %c0_i32_1 : i32, i32, i32, i32
  }
  func.func @transform_2(%arg0: i32) -> (i32, i32, i32) {
    %c0_i32 = arith.constant 0 : i32
    %c0_i32_0 = arith.constant 0 : i32
    %c0_i32_1 = arith.constant 0 : i32
    return %arg0, %c0_i32, %c0_i32_0 : i32, i32, i32
  }
  func.func @transform_3(%arg0: i32) -> (i32, i32, i32) {
    %c0_i32 = arith.constant 0 : i32
    %c0_i32_0 = arith.constant 0 : i32
    %c0_i32_1 = arith.constant 0 : i32
    return %arg0, %c0_i32, %c0_i32_0 : i32, i32, i32
  }
}

</mosaic_0001>

<llo_original>
// kernel: forward.1
$region0: #{forward.1}
  #allocation0 [shape = 'u32[]', space=smem, size = 0x4, offset = 0x4, fixed_abs, tag = 'smem constant byte address 0x4 - core index']
  #allocation1 [shape = 'u32[144,128]{1,0:T(1,128)}', space=vmem, size = 0x12000, scoped, tag = 'internal scratch']
  %s0 = inlined_call_operand.vmem [shape: f32[2,4,90,768], index: 0, kind: input, shape index: {}]
  %s1 = inlined_call_operand.vmem [shape: bf16[2,12,768,256], index: 1, kind: input, shape index: {}]
  %s2 = inlined_call_operand.vmem [shape: f32[2,1,256], index: 2, kind: input, shape index: {}]
  %s3 = inlined_call_operand.vmem [shape: f32[2,2,256], index: 3, kind: output, shape index: {}]
  %s4 = sld [smem:[#allocation0]]
  $region45: #{forward.1} parent=0
    _
  %s6 = ssub.s32 1, %s4
  %s7 = scalar_select 0, %s6, %s4
  loop: start=0, step=1, limit=4
  $region2: #{forward.1} parent=0 // loop_pre_header
    _
  $region3: #{forward.1} parent=0 // loop_header
    %s9 = sphi 0, %s13
    %p10 = scmp.ge.s32.totalorder %s9, 4
    %s19 = sphi 0, %s21
    %s22 = sphi 0, %s19
    %s23 = sphi 0, %s22
    %s39 = sphi 0, %s23
    %s45 = sphi 0, %s47
    %s48 = sphi 0, %s45
    %s49 = sphi 0, %s48
    %s65 = sphi 0, %s49
    %s71 = sphi 0, %s73
    %s74 = sphi 0, %s71
    %s75 = sphi 0, %s74
    %s91 = sphi 0, %s75
    %s97 = sphi 0, %s99
    %s100 = sphi 0, %s97
    %s101 = sphi 0, %s100
    %s117 = sphi 0, %s101
  $region4: #{forward.1} parent=0 // loop_header_branch
    %12 = sbr.rel (%p10) target = $region8
  $region5: #{forward.1} parent=0 // loop_body
    %s14 = ssub.s32 %s9, 1
    %s15 = ssub.s32 %s9, 2
    %s16 = sadd.s32 %s9, 1
    %s17 = ssub.s32 %s9, %s16
    %p18 = scmp.eq.s32.totalorder %s17, 0
    %s20 = sadd.s32 %s19, 1
    %s21 = scalar_select %p18, %s19, %s20
    %p24 = pneg %p18
    %p25 = scmp.eq.s32.totalorder %s9, 1
    %p26 = por %p24, %p25
    %p27 = scmp.ne.s32.totalorder %s19, %s22
    %p28 = scmp.eq.s32.totalorder %s9, 0
    %p29 = por %p27, %p28
    %p30 = scmp.ne.s32.totalorder %s19, %s22
    %p31 = scmp.eq.s32.totalorder %s14, 1
    %p32 = por %p30, %p31
    %p33 = scmp.ne.s32.totalorder %s22, %s23
    %p34 = scmp.eq.s32.totalorder %s14, 0
    %p35 = por %p33, %p34
    %p36 = scmp.ne.s32.totalorder %s22, %s23
    %p37 = scmp.eq.s32.totalorder %s15, 1
    %p38 = por %p36, %p37
    %p40 = scmp.ne.s32.totalorder %s23, %s39
    %p41 = scmp.eq.s32.totalorder %s15, 0
    %p42 = por %p40, %p41
    %s43 = ssub.s32 %s9, %s16
    %p44 = scmp.eq.s32.totalorder %s43, 0
    %s46 = sadd.s32 %s45, 1
    %s47 = scalar_select %p44, %s45, %s46
    %p50 = pneg %p44
    %p51 = scmp.eq.s32.totalorder %s9, 1
    %p52 = por %p50, %p51
    %p53 = scmp.ne.s32.totalorder %s45, %s48
    %p54 = scmp.eq.s32.totalorder %s9, 0
    %p55 = por %p53, %p54
    %p56 = scmp.ne.s32.totalorder %s45, %s48
    %p57 = scmp.eq.s32.totalorder %s14, 1
    %p58 = por %p56, %p57
    %p59 = scmp.ne.s32.totalorder %s48, %s49
    %p60 = scmp.eq.s32.totalorder %s14, 0
    %p61 = por %p59, %p60
    %p62 = scmp.ne.s32.totalorder %s48, %s49
    %p63 = scmp.eq.s32.totalorder %s15, 1
    %p64 = por %p62, %p63
    %p66 = scmp.ne.s32.totalorder %s49, %s65
    %p67 = scmp.eq.s32.totalorder %s15, 0
    %p68 = por %p66, %p67
    %s69 = ssub.s32 %s9, %s16
    %p70 = scmp.eq.s32.totalorder %s69, 0
    %s72 = sadd.s32 %s71, 1
    %s73 = scalar_select %p70, %s71, %s72
    %p76 = pneg %p70
    %p77 = scmp.eq.s32.totalorder %s9, 1
    %p78 = por %p76, %p77
    %p79 = scmp.ne.s32.totalorder %s71, %s74
    %p80 = scmp.eq.s32.totalorder %s9, 0
    %p81 = por %p79, %p80
    %p82 = scmp.ne.s32.totalorder %s71, %s74
    %p83 = scmp.eq.s32.totalorder %s14, 1
    %p84 = por %p82, %p83
    %p85 = scmp.ne.s32.totalorder %s74, %s75
    %p86 = scmp.eq.s32.totalorder %s14, 0
    %p87 = por %p85, %p86
    %p88 = scmp.ne.s32.totalorder %s74, %s75
    %p89 = scmp.eq.s32.totalorder %s15, 1
    %p90 = por %p88, %p89
    %p92 = scmp.ne.s32.totalorder %s75, %s91
    %p93 = scmp.eq.s32.totalorder %s15, 0
    %p94 = por %p92, %p93
    %s95 = ssub.s32 %s9, %s16
    %p96 = scmp.eq.s32.totalorder %s95, 0
    %s98 = sadd.s32 %s97, 1
    %s99 = scalar_select %p96, %s97, %s98
    %p102 = pneg %p96
    %p103 = scmp.eq.s32.totalorder %s9, 1
    %p104 = por %p102, %p103
    %p105 = scmp.ne.s32.totalorder %s97, %s100
    %p106 = scmp.eq.s32.totalorder %s9, 0
    %p107 = por %p105, %p106
    %p108 = scmp.ne.s32.totalorder %s97, %s100
    %p109 = scmp.eq.s32.totalorder %s14, 1
    %p110 = por %p108, %p109
    %p111 = scmp.ne.s32.totalorder %s100, %s101
    %p112 = scmp.eq.s32.totalorder %s14, 0
    %p113 = por %p111, %p112
    %p114 = scmp.ne.s32.totalorder %s100, %s101
    %p115 = scmp.eq.s32.totalorder %s15, 1
    %p116 = por %p114, %p115
    %p118 = scmp.ne.s32.totalorder %s101, %s117
    %p119 = scmp.eq.s32.totalorder %s15, 0
    %p120 = por %p118, %p119
    %p121 = scmp.le.s32.totalorder 1, %s9
    %p122 = scmp.lt.s32.totalorder %s9, 3
    %p123 = pnand %p121, %p122
    %p124 = pneg %p123
    // Predicated region
    $region9: #{forward.1} parent=5 // pred_check
      _
    $region10: #{forward.1} parent=5 // pred_check_branch
      %126 = sbr.rel (%p123) target = $region12
    $region11: #{forward.1} parent=5 // pred_region
      %s127 = ssub.s32 %s9, 1
    $region12: #{forward.1} parent=5 // pred_fallthru
      _
    %p128 = scmp.lt.s32.totalorder %s9, 2
    // Predicated region
    $region13: #{forward.1} parent=5 // pred_check
      %p129 = pneg %p128
    $region14: #{forward.1} parent=5 // pred_check_branch
      %131 = sbr.rel (%p129) target = $region16
    $region15: #{forward.1} parent=5 // pred_region
      // Predicated region
      $region17: #{forward.1} parent=15 // pred_check
        %p132 = pneg %p29
      $region18: #{forward.1} parent=15 // pred_check_branch
        %134 = sbr.rel (%p132) target = $region20
      $region19: #{forward.1} parent=15 // pred_region
        %p135 = scmp.lt.s32.totalorder %s9, 1
        %s136 = scalar_select %p135, %s9, 1
        %s137 = smul.addr %s136, 288
        %s138 = smul.addr %s137, 8
        %s139 = scalar_lea.vmem %s0, %s138
      $region20: #{forward.1} parent=15 // pred_fallthru
        _
      // Predicated region
      $region21: #{forward.1} parent=15 // pred_check
        %p140 = pneg %p55
      $region22: #{forward.1} parent=15 // pred_check_branch
        %142 = sbr.rel (%p140) target = $region24
      $region23: #{forward.1} parent=15 // pred_region
        %p143 = scmp.lt.s32.totalorder %s9, 1
        %s144 = scalar_select %p143, %s9, 1
        %s145 = smul.addr %s144, 2304
        %s146 = smul.addr %s145, 4
        %s147 = scalar_lea.vmem %s1, %s146
      $region24: #{forward.1} parent=15 // pred_fallthru
        _
      // Predicated region
      $region25: #{forward.1} parent=15 // pred_check
        %p148 = pneg %p81
      $region26: #{forward.1} parent=15 // pred_check_branch
        %150 = sbr.rel (%p148) target = $region28
      $region27: #{forward.1} parent=15 // pred_region
        %p151 = scmp.lt.s32.totalorder %s9, 1
        %s152 = scalar_select %p151, %s9, 1
        %s153 = smul.addr %s152, 2
        %s154 = scalar_lea.vmem %s2, %s153
      $region28: #{forward.1} parent=15 // pred_fallthru
        _
    $region16: #{forward.1} parent=5 // pred_fallthru
      _
    %p155 = scmp.le.s32.totalorder 1, %s9
    %p156 = scmp.lt.s32.totalorder %s9, 3
    %p157 = pnand %p155, %p156
    %p158 = pneg %p157
    // Predicated region
    $region29: #{forward.1} parent=5 // pred_check
      _
    $region30: #{forward.1} parent=5 // pred_check_branch
      %160 = sbr.rel (%p157) target = $region32
    $region31: #{forward.1} parent=5 // pred_region
      %s161 = ssub.s32 %s9, 1
      %p162 = scmp.lt.s32.totalorder %s14, 1
      %s163 = scalar_select %p162, %s14, 1
      %s164 = smul.addr %s163, 288
      %s165 = smul.addr %s164, 8
      %s166 = scalar_lea.vmem %s0, %s165
      %p167 = pneg %p35
      %p168 = pneg %p32
      %p169 = scmp.lt.s32.totalorder %s14, 1
      %s170 = scalar_select %p169, %s14, 1
      %s171 = smul.addr %s170, 2304
      %s172 = smul.addr %s171, 4
      %s173 = scalar_lea.vmem %s1, %s172
      %p174 = pneg %p61
      %p175 = pneg %p58
      %p176 = scmp.lt.s32.totalorder %s14, 1
      %s177 = scalar_select %p176, %s14, 1
      %s178 = smul.addr %s177, 2
      %s179 = scalar_lea.vmem %s2, %s178
      %p180 = pneg %p87
      %p181 = pneg %p84
      %p182 = pneg %p113
      %p183 = pneg %p110
      %p184 = scmp.lt.s32.totalorder %s14, 1
      %s185 = scalar_select %p184, %s14, 1
      %s186 = smul.addr %s185, 2
      %s187 = smul.addr %s186, 2
      %s188 = scalar_lea.vmem %s3, %s187
      %p189 = scmp.lt.s32.totalorder %s14, 1
      %s190 = scalar_select %p189, %s14, 1
      %s191 = smul.addr %s190, 288
      %s192 = smul.addr %s191, 8
      %s193 = scalar_lea.vmem %s0, %s192
      %p194 = scmp.lt.s32.totalorder %s14, 1
      %s195 = scalar_select %p194, %s14, 1
      %s196 = smul.addr %s195, 2304
      %s197 = smul.addr %s196, 4
      %s198 = scalar_lea.vmem %s1, %s197
      %p199 = scmp.lt.s32.totalorder %s14, 1
      %s200 = scalar_select %p199, %s14, 1
      %s201 = smul.addr %s200, 2
      %s202 = scalar_lea.vmem %s2, %s201
      %p203 = scmp.lt.s32.totalorder %s14, 1
      %s204 = scalar_select %p203, %s14, 1
      %s205 = smul.addr %s204, 2
      %s206 = smul.addr %s205, 2
      %s207 = scalar_lea.vmem %s3, %s206
      %v208 = vld [vmem:[%s193] sm:$0xff]
      %v209 = vld [vmem:[%s193 + $0x8] sm:$0xff]
      %v210 = vld [vmem:[%s193 + $0x10] sm:$0xff]
      %v211 = vld [vmem:[%s193 + $0x18] sm:$0xff]
      %v212 = vld [vmem:[%s193 + $0x20] sm:$0xff]
      %v213 = vld [vmem:[%s193 + $0x28] sm:$0xff]
      %v214 = vld [vmem:[%s193 + $0x30] sm:$0xff]
      %v215 = vld [vmem:[%s193 + $0x38] sm:$0xff]
      %v216 = vld [vmem:[%s193 + $0x40] sm:$0xff]
      %v217 = vld [vmem:[%s193 + $0x48] sm:$0xff]
      %v218 = vld [vmem:[%s193 + $0x50] sm:$0xff]
      %v219 = vld [vmem:[%s193 + $0x58] sm:$0xff]
      %v220 = vld [vmem:[%s193 + $0x60] sm:$0xff]
      %v221 = vld [vmem:[%s193 + $0x68] sm:$0xff]
      %v222 = vld [vmem:[%s193 + $0x70] sm:$0xff]
      %v223 = vld [vmem:[%s193 + $0x78] sm:$0xff]
      %v224 = vld [vmem:[%s193 + $0x80] sm:$0xff]
      %v225 = vld [vmem:[%s193 + $0x88] sm:$0xff]
      %v226 = vld [vmem:[%s193 + $0x90] sm:$0xff]
      %v227 = vld [vmem:[%s193 + $0x98] sm:$0xff]
      %v228 = vld [vmem:[%s193 + $0xa0] sm:$0xff]
      %v229 = vld [vmem:[%s193 + $0xa8] sm:$0xff]
      %v230 = vld [vmem:[%s193 + $0xb0] sm:$0xff]
      %v231 = vld [vmem:[%s193 + $0xb8] sm:$0xff]
      %v232 = vld [vmem:[%s193 + $0xc0] sm:$0xff]
      %v233 = vld [vmem:[%s193 + $0xc8] sm:$0xff]
      %v234 = vld [vmem:[%s193 + $0xd0] sm:$0xff]
      %v235 = vld [vmem:[%s193 + $0xd8] sm:$0xff]
      %v236 = vld [vmem:[%s193 + $0xe0] sm:$0xff]
      %v237 = vld [vmem:[%s193 + $0xe8] sm:$0xff]
      %v238 = vld [vmem:[%s193 + $0xf0] sm:$0xff]
      %v239 = vld [vmem:[%s193 + $0xf8] sm:$0xff]
      %v240 = vld [vmem:[%s193 + $0x100] sm:$0xff]
      %v241 = vld [vmem:[%s193 + $0x108] sm:$0xff]
      %v242 = vld [vmem:[%s193 + $0x110] sm:$0xff]
      %v243 = vld [vmem:[%s193 + $0x118] sm:$0xff]
      %v244 = vld [vmem:[%s193 + $0x120] sm:$0xff]
      %v245 = vld [vmem:[%s193 + $0x128] sm:$0xff]
      %v246 = vld [vmem:[%s193 + $0x130] sm:$0xff]
      %v247 = vld [vmem:[%s193 + $0x138] sm:$0xff]
      %v248 = vld [vmem:[%s193 + $0x140] sm:$0xff]
      %v249 = vld [vmem:[%s193 + $0x148] sm:$0xff]
      %v250 = vld [vmem:[%s193 + $0x150] sm:$0xff]
      %v251 = vld [vmem:[%s193 + $0x158] sm:$0xff]
      %v252 = vld [vmem:[%s193 + $0x160] sm:$0xff]
      %v253 = vld [vmem:[%s193 + $0x168] sm:$0xff]
      %v254 = vld [vmem:[%s193 + $0x170] sm:$0xff]
      %v255 = vld [vmem:[%s193 + $0x178] sm:$0xff]
      %v256 = vld [vmem:[%s193 + $0x180] sm:$0xff]
      %v257 = vld [vmem:[%s193 + $0x188] sm:$0xff]
      %v258 = vld [vmem:[%s193 + $0x190] sm:$0xff]
      %v259 = vld [vmem:[%s193 + $0x198] sm:$0xff]
      %v260 = vld [vmem:[%s193 + $0x1a0] sm:$0xff]
      %v261 = vld [vmem:[%s193 + $0x1a8] sm:$0xff]
      %v262 = vld [vmem:[%s193 + $0x1b0] sm:$0xff]
      %v263 = vld [vmem:[%s193 + $0x1b8] sm:$0xff]
      %v264 = vld [vmem:[%s193 + $0x1c0] sm:$0xff]
      %v265 = vld [vmem:[%s193 + $0x1c8] sm:$0xff]
      %v266 = vld [vmem:[%s193 + $0x1d0] sm:$0xff]
      %v267 = vld [vmem:[%s193 + $0x1d8] sm:$0xff]
      %v268 = vld [vmem:[%s193 + $0x1e0] sm:$0xff]
      %v269 = vld [vmem:[%s193 + $0x1e8] sm:$0xff]
      %v270 = vld [vmem:[%s193 + $0x1f0] sm:$0xff]
      %v271 = vld [vmem:[%s193 + $0x1f8] sm:$0xff]
      %v272 = vld [vmem:[%s193 + $0x200] sm:$0xff]
      %v273 = vld [vmem:[%s193 + $0x208] sm:$0xff]
      %v274 = vld [vmem:[%s193 + $0x210] sm:$0x3]
      %v275 = vld [vmem:[%s193 + $0x218] sm:$0x3]
      %v276 = vld [vmem:[%s193 + $0x220] sm:$0x3]
      %v277 = vld [vmem:[%s193 + $0x228] sm:$0x3]
      %v278 = vld [vmem:[%s193 + $0x230] sm:$0x3]
      %v279 = vld [vmem:[%s193 + $0x238] sm:$0x3]
      %v280 = vpack.c.bf16 %v214, %v208
      %v281 = vpack.c.bf16 %v215, %v209
      %v282 = vpack.c.bf16 %v216, %v210
      %v283 = vpack.c.bf16 %v217, %v211
      %v284 = vpack.c.bf16 %v218, %v212
      %v285 = vpack.c.bf16 %v219, %v213
      %v286 = vpack.c.bf16 %v226, %v220
      %v287 = vpack.c.bf16 %v227, %v221
      %v288 = vpack.c.bf16 %v228, %v222
      %v289 = vpack.c.bf16 %v229, %v223
      %v290 = vpack.c.bf16 %v230, %v224
      %v291 = vpack.c.bf16 %v231, %v225
      %v292 = vpack.c.bf16 %v238, %v232
      %v293 = vpack.c.bf16 %v239, %v233
      %v294 = vpack.c.bf16 %v240, %v234
      %v295 = vpack.c.bf16 %v241, %v235
      %v296 = vpack.c.bf16 %v242, %v236
      %v297 = vpack.c.bf16 %v243, %v237
      %v298 = vpack.c.bf16 %v250, %v244
      %v299 = vpack.c.bf16 %v251, %v245
      %v300 = vpack.c.bf16 %v252, %v246
      %v301 = vpack.c.bf16 %v253, %v247
      %v302 = vpack.c.bf16 %v254, %v248
      %v303 = vpack.c.bf16 %v255, %v249
      %v304 = vpack.c.bf16 %v262, %v256
      %v305 = vpack.c.bf16 %v263, %v257
      %v306 = vpack.c.bf16 %v264, %v258
      %v307 = vpack.c.bf16 %v265, %v259
      %v308 = vpack.c.bf16 %v266, %v260
      %v309 = vpack.c.bf16 %v267, %v261
      %v310 = vpack.c.bf16 %v274, %v268
      %v311 = vpack.c.bf16 %v275, %v269
      %v312 = vpack.c.bf16 %v276, %v270
      %v313 = vpack.c.bf16 %v277, %v271
      %v314 = vpack.c.bf16 %v278, %v272
      %v315 = vpack.c.bf16 %v279, %v273
      %v316 = vld [vmem:[%s198] sm:$0xff]
      %v317 = vld [vmem:[%s198 + $0x8] sm:$0xff]
      %v318 = vld [vmem:[%s198 + $0x10] sm:$0xff]
      %v319 = vld [vmem:[%s198 + $0x18] sm:$0xff]
      %v320 = vld [vmem:[%s198 + $0x20] sm:$0xff]
      %v321 = vld [vmem:[%s198 + $0x28] sm:$0xff]
      %v322 = vld [vmem:[%s198 + $0x30] sm:$0xff]
      %v323 = vld [vmem:[%s198 + $0x38] sm:$0xff]
      %v324 = vld [vmem:[%s198 + $0x40] sm:$0xff]
      %v325 = vld [vmem:[%s198 + $0x48] sm:$0xff]
      %v326 = vld [vmem:[%s198 + $0x50] sm:$0xff]
      %v327 = vld [vmem:[%s198 + $0x58] sm:$0xff]
      %v328 = vld [vmem:[%s198 + $0x60] sm:$0xff]
      %v329 = vld [vmem:[%s198 + $0x68] sm:$0xff]
      %v330 = vld [vmem:[%s198 + $0x70] sm:$0xff]
      %v331 = vld [vmem:[%s198 + $0x78] sm:$0xff]
      %v332 = vld [vmem:[%s198 + $0x80] sm:$0xff]
      %v333 = vld [vmem:[%s198 + $0x88] sm:$0xff]
      %v334 = vld [vmem:[%s198 + $0x90] sm:$0xff]
      %v335 = vld [vmem:[%s198 + $0x98] sm:$0xff]
      %v336 = vld [vmem:[%s198 + $0xa0] sm:$0xff]
      %v337 = vld [vmem:[%s198 + $0xa8] sm:$0xff]
      %v338 = vld [vmem:[%s198 + $0xb0] sm:$0xff]
      %v339 = vld [vmem:[%s198 + $0xb8] sm:$0xff]
      %v340 = vld [vmem:[%s198 + $0xc0] sm:$0xff]
      %v341 = vld [vmem:[%s198 + $0xc8] sm:$0xff]
      %v342 = vld [vmem:[%s198 + $0xd0] sm:$0xff]
      %v343 = vld [vmem:[%s198 + $0xd8] sm:$0xff]
      %v344 = vld [vmem:[%s198 + $0xe0] sm:$0xff]
      %v345 = vld [vmem:[%s198 + $0xe8] sm:$0xff]
      %v346 = vld [vmem:[%s198 + $0xf0] sm:$0xff]
      %v347 = vld [vmem:[%s198 + $0xf8] sm:$0xff]
      %v348 = vld [vmem:[%s198 + $0x100] sm:$0xff]
      %v349 = vld [vmem:[%s198 + $0x108] sm:$0xff]
      %v350 = vld [vmem:[%s198 + $0x110] sm:$0xff]
      %v351 = vld [vmem:[%s198 + $0x118] sm:$0xff]
      %v352 = vld [vmem:[%s198 + $0x120] sm:$0xff]
      %v353 = vld [vmem:[%s198 + $0x128] sm:$0xff]
      %v354 = vld [vmem:[%s198 + $0x130] sm:$0xff]
      %v355 = vld [vmem:[%s198 + $0x138] sm:$0xff]
      %v356 = vld [vmem:[%s198 + $0x140] sm:$0xff]
      %v357 = vld [vmem:[%s198 + $0x148] sm:$0xff]
      %v358 = vld [vmem:[%s198 + $0x150] sm:$0xff]
      %v359 = vld [vmem:[%s198 + $0x158] sm:$0xff]
      %v360 = vld [vmem:[%s198 + $0x160] sm:$0xff]
      %v361 = vld [vmem:[%s198 + $0x168] sm:$0xff]
      %v362 = vld [vmem:[%s198 + $0x170] sm:$0xff]
      %v363 = vld [vmem:[%s198 + $0x178] sm:$0xff]
      %v364 = vld [vmem:[%s198 + $0x180] sm:$0xff]
      %v365 = vld [vmem:[%s198 + $0x188] sm:$0xff]
      %v366 = vld [vmem:[%s198 + $0x190] sm:$0xff]
      %v367 = vld [vmem:[%s198 + $0x198] sm:$0xff]
      %v368 = vld [vmem:[%s198 + $0x1a0] sm:$0xff]
      %v369 = vld [vmem:[%s198 + $0x1a8] sm:$0xff]
      %v370 = vld [vmem:[%s198 + $0x1b0] sm:$0xff]
      %v371 = vld [vmem:[%s198 + $0x1b8] sm:$0xff]
      %v372 = vld [vmem:[%s198 + $0x1c0] sm:$0xff]
      %v373 = vld [vmem:[%s198 + $0x1c8] sm:$0xff]
      %v374 = vld [vmem:[%s198 + $0x1d0] sm:$0xff]
      %v375 = vld [vmem:[%s198 + $0x1d8] sm:$0xff]
      %v376 = vld [vmem:[%s198 + $0x1e0] sm:$0xff]
      %v377 = vld [vmem:[%s198 + $0x1e8] sm:$0xff]
      %v378 = vld [vmem:[%s198 + $0x1f0] sm:$0xff]
      %v379 = vld [vmem:[%s198 + $0x1f8] sm:$0xff]
      %v380 = vld [vmem:[%s198 + $0x200] sm:$0xff]
      %v381 = vld [vmem:[%s198 + $0x208] sm:$0xff]
      %v382 = vld [vmem:[%s198 + $0x210] sm:$0xff]
      %v383 = vld [vmem:[%s198 + $0x218] sm:$0xff]
      %v384 = vld [vmem:[%s198 + $0x220] sm:$0xff]
      %v385 = vld [vmem:[%s198 + $0x228] sm:$0xff]
      %v386 = vld [vmem:[%s198 + $0x230] sm:$0xff]
      %v387 = vld [vmem:[%s198 + $0x238] sm:$0xff]
      %v388 = vld [vmem:[%s198 + $0x240] sm:$0xff]
      %v389 = vld [vmem:[%s198 + $0x248] sm:$0xff]
      %v390 = vld [vmem:[%s198 + $0x250] sm:$0xff]
      %v391 = vld [vmem:[%s198 + $0x258] sm:$0xff]
      %v392 = vld [vmem:[%s198 + $0x260] sm:$0xff]
      %v393 = vld [vmem:[%s198 + $0x268] sm:$0xff]
      %v394 = vld [vmem:[%s198 + $0x270] sm:$0xff]
      %v395 = vld [vmem:[%s198 + $0x278] sm:$0xff]
      %v396 = vld [vmem:[%s198 + $0x280] sm:$0xff]
      %v397 = vld [vmem:[%s198 + $0x288] sm:$0xff]
      %v398 = vld [vmem:[%s198 + $0x290] sm:$0xff]
      %v399 = vld [vmem:[%s198 + $0x298] sm:$0xff]
      %v400 = vld [vmem:[%s198 + $0x2a0] sm:$0xff]
      %v401 = vld [vmem:[%s198 + $0x2a8] sm:$0xff]
      %v402 = vld [vmem:[%s198 + $0x2b0] sm:$0xff]
      %v403 = vld [vmem:[%s198 + $0x2b8] sm:$0xff]
      %v404 = vld [vmem:[%s198 + $0x2c0] sm:$0xff]
      %v405 = vld [vmem:[%s198 + $0x2c8] sm:$0xff]
      %v406 = vld [vmem:[%s198 + $0x2d0] sm:$0xff]
      %v407 = vld [vmem:[%s198 + $0x2d8] sm:$0xff]
      %v408 = vld [vmem:[%s198 + $0x2e0] sm:$0xff]
      %v409 = vld [vmem:[%s198 + $0x2e8] sm:$0xff]
      %v410 = vld [vmem:[%s198 + $0x2f0] sm:$0xff]
      %v411 = vld [vmem:[%s198 + $0x2f8] sm:$0xff]
      %v508 = vunpack.c.l.b16 %v316
      %v509 = vunpack.c.h.b16 %v316
      %v510 = vunpack.c.l.b16 %v317
      %v511 = vunpack.c.h.b16 %v317
      %v512 = vunpack.c.l.b16 %v318
      %v513 = vunpack.c.h.b16 %v318
      %v514 = vunpack.c.l.b16 %v319
      %v515 = vunpack.c.h.b16 %v319
      %v516 = vunpack.c.l.b16 %v320
      %v517 = vunpack.c.h.b16 %v320
      %v518 = vunpack.c.l.b16 %v321
      %v519 = vunpack.c.h.b16 %v321
      %v520 = vunpack.c.l.b16 %v322
      %v521 = vunpack.c.h.b16 %v322
      %v522 = vunpack.c.l.b16 %v323
      %v523 = vunpack.c.h.b16 %v323
      %v524 = vunpack.c.l.b16 %v324
      %v525 = vunpack.c.h.b16 %v324
      %v526 = vunpack.c.l.b16 %v325
      %v527 = vunpack.c.h.b16 %v325
      %v528 = vunpack.c.l.b16 %v326
      %v529 = vunpack.c.h.b16 %v326
      %v530 = vunpack.c.l.b16 %v327
      %v531 = vunpack.c.h.b16 %v327
      %v532 = vunpack.c.l.b16 %v328
      %v533 = vunpack.c.h.b16 %v328
      %v534 = vunpack.c.l.b16 %v329
      %v535 = vunpack.c.h.b16 %v329
      %v536 = vunpack.c.l.b16 %v330
      %v537 = vunpack.c.h.b16 %v330
      %v538 = vunpack.c.l.b16 %v331
      %v539 = vunpack.c.h.b16 %v331
      %v540 = vunpack.c.l.b16 %v332
      %v541 = vunpack.c.h.b16 %v332
      %v542 = vunpack.c.l.b16 %v333
      %v543 = vunpack.c.h.b16 %v333
      %v544 = vunpack.c.l.b16 %v334
      %v545 = vunpack.c.h.b16 %v334
      %v546 = vunpack.c.l.b16 %v335
      %v547 = vunpack.c.h.b16 %v335
      %v548 = vunpack.c.l.b16 %v336
      %v549 = vunpack.c.h.b16 %v336
      %v550 = vunpack.c.l.b16 %v337
      %v551 = vunpack.c.h.b16 %v337
      %v552 = vunpack.c.l.b16 %v338
      %v553 = vunpack.c.h.b16 %v338
      %v554 = vunpack.c.l.b16 %v339
      %v555 = vunpack.c.h.b16 %v339
      %v556 = vunpack.c.l.b16 %v340
      %v557 = vunpack.c.h.b16 %v340
      %v558 = vunpack.c.l.b16 %v341
      %v559 = vunpack.c.h.b16 %v341
      %v560 = vunpack.c.l.b16 %v342
      %v561 = vunpack.c.h.b16 %v342
      %v562 = vunpack.c.l.b16 %v343
      %v563 = vunpack.c.h.b16 %v343
      %v564 = vunpack.c.l.b16 %v344
      %v565 = vunpack.c.h.b16 %v344
      %v566 = vunpack.c.l.b16 %v345
      %v567 = vunpack.c.h.b16 %v345
      %v568 = vunpack.c.l.b16 %v346
      %v569 = vunpack.c.h.b16 %v346
      %v570 = vunpack.c.l.b16 %v347
      %v571 = vunpack.c.h.b16 %v347
      %v572 = vunpack.c.l.b16 %v348
      %v573 = vunpack.c.h.b16 %v348
      %v574 = vunpack.c.l.b16 %v349
      %v575 = vunpack.c.h.b16 %v349
      %v576 = vunpack.c.l.b16 %v350
      %v577 = vunpack.c.h.b16 %v350
      %v578 = vunpack.c.l.b16 %v351
      %v579 = vunpack.c.h.b16 %v351
      %v580 = vunpack.c.l.b16 %v352
      %v581 = vunpack.c.h.b16 %v352
      %v582 = vunpack.c.l.b16 %v353
      %v583 = vunpack.c.h.b16 %v353
      %v584 = vunpack.c.l.b16 %v354
      %v585 = vunpack.c.h.b16 %v354
      %v586 = vunpack.c.l.b16 %v355
      %v587 = vunpack.c.h.b16 %v355
      %v588 = vunpack.c.l.b16 %v356
      %v589 = vunpack.c.h.b16 %v356
      %v590 = vunpack.c.l.b16 %v357
      %v591 = vunpack.c.h.b16 %v357
      %v592 = vunpack.c.l.b16 %v358
      %v593 = vunpack.c.h.b16 %v358
      %v594 = vunpack.c.l.b16 %v359
      %v595 = vunpack.c.h.b16 %v359
      %v596 = vunpack.c.l.b16 %v360
      %v597 = vunpack.c.h.b16 %v360
      %v598 = vunpack.c.l.b16 %v361
      %v599 = vunpack.c.h.b16 %v361
      %v600 = vunpack.c.l.b16 %v362
      %v601 = vunpack.c.h.b16 %v362
      %v602 = vunpack.c.l.b16 %v363
      %v603 = vunpack.c.h.b16 %v363
      %v604 = vunpack.c.l.b16 %v364
      %v605 = vunpack.c.h.b16 %v364
      %v606 = vunpack.c.l.b16 %v365
      %v607 = vunpack.c.h.b16 %v365
      %v608 = vunpack.c.l.b16 %v366
      %v609 = vunpack.c.h.b16 %v366
      %v610 = vunpack.c.l.b16 %v367
      %v611 = vunpack.c.h.b16 %v367
      %v612 = vunpack.c.l.b16 %v368
      %v613 = vunpack.c.h.b16 %v368
      %v614 = vunpack.c.l.b16 %v369
      %v615 = vunpack.c.h.b16 %v369
      %v616 = vunpack.c.l.b16 %v370
      %v617 = vunpack.c.h.b16 %v370
      %v618 = vunpack.c.l.b16 %v371
      %v619 = vunpack.c.h.b16 %v371
      %v620 = vunpack.c.l.b16 %v372
      %v621 = vunpack.c.h.b16 %v372
      %v622 = vunpack.c.l.b16 %v373
      %v623 = vunpack.c.h.b16 %v373
      %v624 = vunpack.c.l.b16 %v374
      %v625 = vunpack.c.h.b16 %v374
      %v626 = vunpack.c.l.b16 %v375
      %v627 = vunpack.c.h.b16 %v375
      %v628 = vunpack.c.l.b16 %v376
      %v629 = vunpack.c.h.b16 %v376
      %v630 = vunpack.c.l.b16 %v377
      %v631 = vunpack.c.h.b16 %v377
      %v632 = vunpack.c.l.b16 %v378
      %v633 = vunpack.c.h.b16 %v378
      %v634 = vunpack.c.l.b16 %v379
      %v635 = vunpack.c.h.b16 %v379
      %v636 = vunpack.c.l.b16 %v380
      %v637 = vunpack.c.h.b16 %v380
      %v638 = vunpack.c.l.b16 %v381
      %v639 = vunpack.c.h.b16 %v381
      %v640 = vunpack.c.l.b16 %v382
      %v641 = vunpack.c.h.b16 %v382
      %v642 = vunpack.c.l.b16 %v383
      %v643 = vunpack.c.h.b16 %v383
      %v644 = vunpack.c.l.b16 %v384
      %v645 = vunpack.c.h.b16 %v384
      %v646 = vunpack.c.l.b16 %v385
      %v647 = vunpack.c.h.b16 %v385
      %v648 = vunpack.c.l.b16 %v386
      %v649 = vunpack.c.h.b16 %v386
      %v650 = vunpack.c.l.b16 %v387
      %v651 = vunpack.c.h.b16 %v387
      %v652 = vunpack.c.l.b16 %v388
      %v653 = vunpack.c.h.b16 %v388
      %v654 = vunpack.c.l.b16 %v389
      %v655 = vunpack.c.h.b16 %v389
      %v656 = vunpack.c.l.b16 %v390
      %v657 = vunpack.c.h.b16 %v390
      %v658 = vunpack.c.l.b16 %v391
      %v659 = vunpack.c.h.b16 %v391
      %v660 = vunpack.c.l.b16 %v392
      %v661 = vunpack.c.h.b16 %v392
      %v662 = vunpack.c.l.b16 %v393
      %v663 = vunpack.c.h.b16 %v393
      %v664 = vunpack.c.l.b16 %v394
      %v665 = vunpack.c.h.b16 %v394
      %v666 = vunpack.c.l.b16 %v395
      %v667 = vunpack.c.h.b16 %v395
      %v668 = vunpack.c.l.b16 %v396
      %v669 = vunpack.c.h.b16 %v396
      %v670 = vunpack.c.l.b16 %v397
      %v671 = vunpack.c.h.b16 %v397
      %v672 = vunpack.c.l.b16 %v398
      %v673 = vunpack.c.h.b16 %v398
      %v674 = vunpack.c.l.b16 %v399
      %v675 = vunpack.c.h.b16 %v399
      %v676 = vunpack.c.l.b16 %v400
      %v677 = vunpack.c.h.b16 %v400
      %v678 = vunpack.c.l.b16 %v401
      %v679 = vunpack.c.h.b16 %v401
      %v680 = vunpack.c.l.b16 %v402
      %v681 = vunpack.c.h.b16 %v402
      %v682 = vunpack.c.l.b16 %v403
      %v683 = vunpack.c.h.b16 %v403
      %v684 = vunpack.c.l.b16 %v404
      %v685 = vunpack.c.h.b16 %v404
      %v686 = vunpack.c.l.b16 %v405
      %v687 = vunpack.c.h.b16 %v405
      %v688 = vunpack.c.l.b16 %v406
      %v689 = vunpack.c.h.b16 %v406
      %v690 = vunpack.c.l.b16 %v407
      %v691 = vunpack.c.h.b16 %v407
      %v692 = vunpack.c.l.b16 %v408
      %v693 = vunpack.c.h.b16 %v408
      %v694 = vunpack.c.l.b16 %v409
      %v695 = vunpack.c.h.b16 %v409
      %v696 = vunpack.c.l.b16 %v410
      %v697 = vunpack.c.h.b16 %v410
      %v698 = vunpack.c.l.b16 %v411
      %v699 = vunpack.c.h.b16 %v411
      %v700 = vpack.c.b16 %v510, %v508
      %v701 = vpack.c.b16 %v511, %v509
      %v702 = vpack.c.b16 %v514, %v512
      %v703 = vpack.c.b16 %v515, %v513
      %v704 = vpack.c.b16 %v518, %v516
      %v705 = vpack.c.b16 %v519, %v517
      %v706 = vpack.c.b16 %v522, %v520
      %v707 = vpack.c.b16 %v523, %v521
      %v708 = vpack.c.b16 %v526, %v524
      %v709 = vpack.c.b16 %v527, %v525
      %v710 = vpack.c.b16 %v530, %v528
      %v711 = vpack.c.b16 %v531, %v529
      %v712 = vpack.c.b16 %v534, %v532
      %v713 = vpack.c.b16 %v535, %v533
      %v714 = vpack.c.b16 %v538, %v536
      %v715 = vpack.c.b16 %v539, %v537
      %v716 = vpack.c.b16 %v542, %v540
      %v717 = vpack.c.b16 %v543, %v541
      %v718 = vpack.c.b16 %v546, %v544
      %v719 = vpack.c.b16 %v547, %v545
      %v720 = vpack.c.b16 %v550, %v548
      %v721 = vpack.c.b16 %v551, %v549
      %v722 = vpack.c.b16 %v554, %v552
      %v723 = vpack.c.b16 %v555, %v553
      %v724 = vpack.c.b16 %v558, %v556
      %v725 = vpack.c.b16 %v559, %v557
      %v726 = vpack.c.b16 %v562, %v560
      %v727 = vpack.c.b16 %v563, %v561
      %v728 = vpack.c.b16 %v566, %v564
      %v729 = vpack.c.b16 %v567, %v565
      %v730 = vpack.c.b16 %v570, %v568
      %v731 = vpack.c.b16 %v571, %v569
      %v732 = vpack.c.b16 %v574, %v572
      %v733 = vpack.c.b16 %v575, %v573
      %v734 = vpack.c.b16 %v578, %v576
      %v735 = vpack.c.b16 %v579, %v577
      %v736 = vpack.c.b16 %v582, %v580
      %v737 = vpack.c.b16 %v583, %v581
      %v738 = vpack.c.b16 %v586, %v584
      %v739 = vpack.c.b16 %v587, %v585
      %v740 = vpack.c.b16 %v590, %v588
      %v741 = vpack.c.b16 %v591, %v589
      %v742 = vpack.c.b16 %v594, %v592
      %v743 = vpack.c.b16 %v595, %v593
      %v744 = vpack.c.b16 %v598, %v596
      %v745 = vpack.c.b16 %v599, %v597
      %v746 = vpack.c.b16 %v602, %v600
      %v747 = vpack.c.b16 %v603, %v601
      %v748 = vpack.c.b16 %v606, %v604
      %v749 = vpack.c.b16 %v607, %v605
      %v750 = vpack.c.b16 %v610, %v608
      %v751 = vpack.c.b16 %v611, %v609
      %v752 = vpack.c.b16 %v614, %v612
      %v753 = vpack.c.b16 %v615, %v613
      %v754 = vpack.c.b16 %v618, %v616
      %v755 = vpack.c.b16 %v619, %v617
      %v756 = vpack.c.b16 %v622, %v620
      %v757 = vpack.c.b16 %v623, %v621
      %v758 = vpack.c.b16 %v626, %v624
      %v759 = vpack.c.b16 %v627, %v625
      %v760 = vpack.c.b16 %v630, %v628
      %v761 = vpack.c.b16 %v631, %v629
      %v762 = vpack.c.b16 %v634, %v632
      %v763 = vpack.c.b16 %v635, %v633
      %v764 = vpack.c.b16 %v638, %v636
      %v765 = vpack.c.b16 %v639, %v637
      %v766 = vpack.c.b16 %v642, %v640
      %v767 = vpack.c.b16 %v643, %v641
      %v768 = vpack.c.b16 %v646, %v644
      %v769 = vpack.c.b16 %v647, %v645
      %v770 = vpack.c.b16 %v650, %v648
      %v771 = vpack.c.b16 %v651, %v649
      %v772 = vpack.c.b16 %v654, %v652
      %v773 = vpack.c.b16 %v655, %v653
      %v774 = vpack.c.b16 %v658, %v656
      %v775 = vpack.c.b16 %v659, %v657
      %v776 = vpack.c.b16 %v662, %v660
      %v777 = vpack.c.b16 %v663, %v661
      %v778 = vpack.c.b16 %v666, %v664
      %v779 = vpack.c.b16 %v667, %v665
      %v780 = vpack.c.b16 %v670, %v668
      %v781 = vpack.c.b16 %v671, %v669
      %v782 = vpack.c.b16 %v674, %v672
      %v783 = vpack.c.b16 %v675, %v673
      %v784 = vpack.c.b16 %v678, %v676
      %v785 = vpack.c.b16 %v679, %v677
      %v786 = vpack.c.b16 %v682, %v680
      %v787 = vpack.c.b16 %v683, %v681
      %v788 = vpack.c.b16 %v686, %v684
      %v789 = vpack.c.b16 %v687, %v685
      %v790 = vpack.c.b16 %v690, %v688
      %v791 = vpack.c.b16 %v691, %v689
      %v792 = vpack.c.b16 %v694, %v692
      %v793 = vpack.c.b16 %v695, %v693
      %v794 = vpack.c.b16 %v698, %v696
      %v795 = vpack.c.b16 %v699, %v697
      %892 = vmatprep.subr.bf16.mxu0 %v715
      %893 = vmatpush1.bf16.msra.mxu0 %v714
      %894 = vmatprep.subr.bf16.mxu0 %v713
      %895 = vmatpush1.bf16.msra.mxu0 %v712
      %896 = vmatprep.subr.bf16.mxu0 %v711
      %897 = vmatpush1.bf16.msra.mxu0 %v710
      %898 = vmatprep.subr.bf16.mxu0 %v709
      %899 = vmatpush1.bf16.msra.mxu0 %v708
      %900 = vmatprep.subr.bf16.mxu0 %v707
      %901 = vmatpush1.bf16.msra.mxu0 %v706
      %902 = vmatprep.subr.bf16.mxu0 %v705
      %903 = vmatpush1.bf16.msra.mxu0 %v704
      %904 = vmatprep.subr.bf16.mxu0 %v703
      %905 = vmatpush1.bf16.msra.mxu0 %v702
      %906 = vmatprep.subr.bf16.mxu0 %v701
      %907 = vmatpush1.bf16.msra.mxu0 %v700
      %908 = vmatprep.subr.bf16.mxu0 %v731
      %909 = vmatpush2.bf16.msra.mxu0 %v730
      %910 = vmatprep.subr.bf16.mxu0 %v729
      %911 = vmatpush2.bf16.msra.mxu0 %v728
      %912 = vmatprep.subr.bf16.mxu0 %v727
      %913 = vmatpush2.bf16.msra.mxu0 %v726
      %914 = vmatprep.subr.bf16.mxu0 %v725
      %915 = vmatpush2.bf16.msra.mxu0 %v724
      %916 = vmatprep.subr.bf16.mxu0 %v723
      %917 = vmatpush2.bf16.msra.mxu0 %v722
      %918 = vmatprep.subr.bf16.mxu0 %v721
      %919 = vmatpush2.bf16.msra.mxu0 %v720
      %920 = vmatprep.subr.bf16.mxu0 %v719
      %921 = vmatpush2.bf16.msra.mxu0 %v718
      %922 = vmatprep.subr.bf16.mxu0 %v717
      %923 = vmatpush2.bf16.msra.mxu0 %v716
      %924 = vmatprep.mubr.bf16.mxu0 %v281
      %925 = vmatmul.mubr.bf16.gmra.mxu0 %v280
      %v926 = vpop.f32.mrf.mxu0
      %v927 = vadd.f32 0.0, %v926
      %v928 = vpop.f32.mrf.mxu0
      %v929 = vadd.f32 0.0, %v928
      %v930 = vpop.f32.mrf.mxu0
      %v931 = vadd.f32 0.0, %v930
      %v932 = vpop.f32.mrf.mxu0
      %v933 = vadd.f32 0.0, %v932
      %934 = vmatprep.mubr.bf16.mxu0 %v287
      %935 = vmatmul.mubr.bf16.gmra.mxu0 %v286
      %v936 = vpop.f32.mrf.mxu0
      %v937 = vadd.f32 0.0, %v936
      %v938 = vpop.f32.mrf.mxu0
      %v939 = vadd.f32 0.0, %v938
      %v940 = vpop.f32.mrf.mxu0
      %v941 = vadd.f32 0.0, %v940
      %v942 = vpop.f32.mrf.mxu0
      %v943 = vadd.f32 0.0, %v942
      %944 = vmatprep.mubr.bf16.mxu0 %v293
      %945 = vmatmul.mubr.bf16.gmra.mxu0 %v292
      %v946 = vpop.f32.mrf.mxu0
      %v947 = vadd.f32 0.0, %v946
      %v948 = vpop.f32.mrf.mxu0
      %v949 = vadd.f32 0.0, %v948
      %v950 = vpop.f32.mrf.mxu0
      %v951 = vadd.f32 0.0, %v950
      %v952 = vpop.f32.mrf.mxu0
      %v953 = vadd.f32 0.0, %v952
      %954 = vmatprep.mubr.bf16.mxu0 %v299
      %955 = vmatmul.mubr.bf16.gmra.mxu0 %v298
      %v956 = vpop.f32.mrf.mxu0
      %v957 = vadd.f32 0.0, %v956
      %v958 = vpop.f32.mrf.mxu0
      %v959 = vadd.f32 0.0, %v958
      %v960 = vpop.f32.mrf.mxu0
      %v961 = vadd.f32 0.0, %v960
      %v962 = vpop.f32.mrf.mxu0
      %v963 = vadd.f32 0.0, %v962
      %964 = vmatprep.mubr.bf16.mxu0 %v305
      %965 = vmatmul.mubr.bf16.gmra.mxu0 %v304
      %v966 = vpop.f32.mrf.mxu0
      %v967 = vadd.f32 0.0, %v966
      %v968 = vpop.f32.mrf.mxu0
      %v969 = vadd.f32 0.0, %v968
      %v970 = vpop.f32.mrf.mxu0
      %v971 = vadd.f32 0.0, %v970
      %v972 = vpop.f32.mrf.mxu0
      %v973 = vadd.f32 0.0, %v972
      %974 = vmatprep.mubr.bf16.mxu0 %v311
      %975 = vmatmul.mubr.bf16.gmra.mxu0 %v310
      %v976 = vpop.f32.mrf.mxu0
      %v977 = vadd.f32 0.0, %v976
      %v978 = vpop.f32.mrf.mxu0
      %v979 = vadd.f32 0.0, %v978
      %v980 = vpop.f32.mrf.mxu0
      %v981 = vpop.f32.mrf.mxu0
      %982 = vdwg.mxu0
      %983 = vmatprep.subr.bf16.mxu0 %v747
      %984 = vmatpush1.bf16.msra.mxu0 %v746
      %985 = vmatprep.subr.bf16.mxu0 %v745
      %986 = vmatpush1.bf16.msra.mxu0 %v744
      %987 = vmatprep.subr.bf16.mxu0 %v743
      %988 = vmatpush1.bf16.msra.mxu0 %v742
      %989 = vmatprep.subr.bf16.mxu0 %v741
      %990 = vmatpush1.bf16.msra.mxu0 %v740
      %991 = vmatprep.subr.bf16.mxu0 %v739
      %992 = vmatpush1.bf16.msra.mxu0 %v738
      %993 = vmatprep.subr.bf16.mxu0 %v737
      %994 = vmatpush1.bf16.msra.mxu0 %v736
      %995 = vmatprep.subr.bf16.mxu0 %v735
      %996 = vmatpush1.bf16.msra.mxu0 %v734
      %997 = vmatprep.subr.bf16.mxu0 %v733
      %998 = vmatpush1.bf16.msra.mxu0 %v732
      %999 = vmatprep.subr.bf16.mxu0 %v763
      %1000 = vmatpush2.bf16.msra.mxu0 %v762
      %1001 = vmatprep.subr.bf16.mxu0 %v761
      %1002 = vmatpush2.bf16.msra.mxu0 %v760
      %1003 = vmatprep.subr.bf16.mxu0 %v759
      %1004 = vmatpush2.bf16.msra.mxu0 %v758
      %1005 = vmatprep.subr.bf16.mxu0 %v757
      %1006 = vmatpush2.bf16.msra.mxu0 %v756
      %1007 = vmatprep.subr.bf16.mxu0 %v755
      %1008 = vmatpush2.bf16.msra.mxu0 %v754
      %1009 = vmatprep.subr.bf16.mxu0 %v753
      %1010 = vmatpush2.bf16.msra.mxu0 %v752
      %1011 = vmatprep.subr.bf16.mxu0 %v751
      %1012 = vmatpush2.bf16.msra.mxu0 %v750
      %1013 = vmatprep.subr.bf16.mxu0 %v749
      %1014 = vmatpush2.bf16.msra.mxu0 %v748
      %1015 = vmatprep.mubr.bf16.mxu0 %v283
      %1016 = vmatmul.mubr.bf16.gmra.mxu0 %v282
      %v1017 = vpop.f32.mrf.mxu0
      %v1018 = vadd.f32 %v927, %v1017
      %v1019 = vpop.f32.mrf.mxu0
      %v1020 = vadd.f32 %v929, %v1019
      %v1021 = vpop.f32.mrf.mxu0
      %v1022 = vadd.f32 %v931, %v1021
      %v1023 = vpop.f32.mrf.mxu0
      %v1024 = vadd.f32 %v933, %v1023
      %1025 = vmatprep.mubr.bf16.mxu0 %v289
      %1026 = vmatmul.mubr.bf16.gmra.mxu0 %v288
      %v1027 = vpop.f32.mrf.mxu0
      %v1028 = vadd.f32 %v937, %v1027
      %v1029 = vpop.f32.mrf.mxu0
      %v1030 = vadd.f32 %v939, %v1029
      %v1031 = vpop.f32.mrf.mxu0
      %v1032 = vadd.f32 %v941, %v1031
      %v1033 = vpop.f32.mrf.mxu0
      %v1034 = vadd.f32 %v943, %v1033
      %1035 = vmatprep.mubr.bf16.mxu0 %v295
      %1036 = vmatmul.mubr.bf16.gmra.mxu0 %v294
      %v1037 = vpop.f32.mrf.mxu0
      %v1038 = vadd.f32 %v947, %v1037
      %v1039 = vpop.f32.mrf.mxu0
      %v1040 = vadd.f32 %v949, %v1039
      %v1041 = vpop.f32.mrf.mxu0
      %v1042 = vadd.f32 %v951, %v1041
      %v1043 = vpop.f32.mrf.mxu0
      %v1044 = vadd.f32 %v953, %v1043
      %1045 = vmatprep.mubr.bf16.mxu0 %v301
      %1046 = vmatmul.mubr.bf16.gmra.mxu0 %v300
      %v1047 = vpop.f32.mrf.mxu0
      %v1048 = vadd.f32 %v957, %v1047
      %v1049 = vpop.f32.mrf.mxu0
      %v1050 = vadd.f32 %v959, %v1049
      %v1051 = vpop.f32.mrf.mxu0
      %v1052 = vadd.f32 %v961, %v1051
      %v1053 = vpop.f32.mrf.mxu0
      %v1054 = vadd.f32 %v963, %v1053
      %1055 = vmatprep.mubr.bf16.mxu0 %v307
      %1056 = vmatmul.mubr.bf16.gmra.mxu0 %v306
      %v1057 = vpop.f32.mrf.mxu0
      %v1058 = vadd.f32 %v967, %v1057
      %v1059 = vpop.f32.mrf.mxu0
      %v1060 = vadd.f32 %v969, %v1059
      %v1061 = vpop.f32.mrf.mxu0
      %v1062 = vadd.f32 %v971, %v1061
      %v1063 = vpop.f32.mrf.mxu0
      %v1064 = vadd.f32 %v973, %v1063
      %1065 = vmatprep.mubr.bf16.mxu0 %v313
      %1066 = vmatmul.mubr.bf16.gmra.mxu0 %v312
      %v1067 = vpop.f32.mrf.mxu0
      %v1068 = vadd.f32 %v977, %v1067
      %v1069 = vpop.f32.mrf.mxu0
      %v1070 = vadd.f32 %v979, %v1069
      %v1071 = vpop.f32.mrf.mxu0
      %v1072 = vpop.f32.mrf.mxu0
      %1073 = vdwg.mxu0
      %1074 = vmatprep.subr.bf16.mxu0 %v779
      %1075 = vmatpush1.bf16.msra.mxu0 %v778
      %1076 = vmatprep.subr.bf16.mxu0 %v777
      %1077 = vmatpush1.bf16.msra.mxu0 %v776
      %1078 = vmatprep.subr.bf16.mxu0 %v775
      %1079 = vmatpush1.bf16.msra.mxu0 %v774
      %1080 = vmatprep.subr.bf16.mxu0 %v773
      %1081 = vmatpush1.bf16.msra.mxu0 %v772
      %1082 = vmatprep.subr.bf16.mxu0 %v771
      %1083 = vmatpush1.bf16.msra.mxu0 %v770
      %1084 = vmatprep.subr.bf16.mxu0 %v769
      %1085 = vmatpush1.bf16.msra.mxu0 %v768
      %1086 = vmatprep.subr.bf16.mxu0 %v767
      %1087 = vmatpush1.bf16.msra.mxu0 %v766
      %1088 = vmatprep.subr.bf16.mxu0 %v765
      %1089 = vmatpush1.bf16.msra.mxu0 %v764
      %1090 = vmatprep.subr.bf16.mxu0 %v795
      %1091 = vmatpush2.bf16.msra.mxu0 %v794
      %1092 = vmatprep.subr.bf16.mxu0 %v793
      %1093 = vmatpush2.bf16.msra.mxu0 %v792
      %1094 = vmatprep.subr.bf16.mxu0 %v791
      %1095 = vmatpush2.bf16.msra.mxu0 %v790
      %1096 = vmatprep.subr.bf16.mxu0 %v789
      %1097 = vmatpush2.bf16.msra.mxu0 %v788
      %1098 = vmatprep.subr.bf16.mxu0 %v787
      %1099 = vmatpush2.bf16.msra.mxu0 %v786
      %1100 = vmatprep.subr.bf16.mxu0 %v785
      %1101 = vmatpush2.bf16.msra.mxu0 %v784
      %1102 = vmatprep.subr.bf16.mxu0 %v783
      %1103 = vmatpush2.bf16.msra.mxu0 %v782
      %1104 = vmatprep.subr.bf16.mxu0 %v781
      %1105 = vmatpush2.bf16.msra.mxu0 %v780
      %1106 = vmatprep.mubr.bf16.mxu0 %v285
      %1107 = vmatmul.mubr.bf16.gmra.mxu0 %v284
      %v1108 = vpop.f32.mrf.mxu0
      %v1109 = vadd.f32 %v1018, %v1108
      %v1110 = vpop.f32.mrf.mxu0
      %v1111 = vadd.f32 %v1020, %v1110
      %v1112 = vpop.f32.mrf.mxu0
      %v1113 = vadd.f32 %v1022, %v1112
      %v1114 = vpop.f32.mrf.mxu0
      %v1115 = vadd.f32 %v1024, %v1114
      %1116 = vmatprep.mubr.bf16.mxu0 %v291
      %1117 = vmatmul.mubr.bf16.gmra.mxu0 %v290
      %v1118 = vpop.f32.mrf.mxu0
      %v1119 = vadd.f32 %v1028, %v1118
      %v1120 = vpop.f32.mrf.mxu0
      %v1121 = vadd.f32 %v1030, %v1120
      %v1122 = vpop.f32.mrf.mxu0
      %v1123 = vadd.f32 %v1032, %v1122
      %v1124 = vpop.f32.mrf.mxu0
      %v1125 = vadd.f32 %v1034, %v1124
      %1126 = vmatprep.mubr.bf16.mxu0 %v297
      %1127 = vmatmul.mubr.bf16.gmra.mxu0 %v296
      %v1128 = vpop.f32.mrf.mxu0
      %v1129 = vadd.f32 %v1038, %v1128
      %v1130 = vpop.f32.mrf.mxu0
      %v1131 = vadd.f32 %v1040, %v1130
      %v1132 = vpop.f32.mrf.mxu0
      %v1133 = vadd.f32 %v1042, %v1132
      %v1134 = vpop.f32.mrf.mxu0
      %v1135 = vadd.f32 %v1044, %v1134
      %1136 = vmatprep.mubr.bf16.mxu0 %v303
      %1137 = vmatmul.mubr.bf16.gmra.mxu0 %v302
      %v1138 = vpop.f32.mrf.mxu0
      %v1139 = vadd.f32 %v1048, %v1138
      %v1140 = vpop.f32.mrf.mxu0
      %v1141 = vadd.f32 %v1050, %v1140
      %v1142 = vpop.f32.mrf.mxu0
      %v1143 = vadd.f32 %v1052, %v1142
      %v1144 = vpop.f32.mrf.mxu0
      %v1145 = vadd.f32 %v1054, %v1144
      %1146 = vmatprep.mubr.bf16.mxu0 %v309
      %1147 = vmatmul.mubr.bf16.gmra.mxu0 %v308
      %v1148 = vpop.f32.mrf.mxu0
      %v1149 = vadd.f32 %v1058, %v1148
      %v1150 = vpop.f32.mrf.mxu0
      %v1151 = vadd.f32 %v1060, %v1150
      %v1152 = vpop.f32.mrf.mxu0
      %v1153 = vadd.f32 %v1062, %v1152
      %v1154 = vpop.f32.mrf.mxu0
      %v1155 = vadd.f32 %v1064, %v1154
      %1156 = vmatprep.mubr.bf16.mxu0 %v315
      %1157 = vmatmul.mubr.bf16.gmra.mxu0 %v314
      %v1158 = vpop.f32.mrf.mxu0
      %v1159 = vadd.f32 %v1068, %v1158
      %v1160 = vpop.f32.mrf.mxu0
      %v1161 = vadd.f32 %v1070, %v1160
      %v1162 = vpop.f32.mrf.mxu0
      %v1163 = vpop.f32.mrf.mxu0
      %1164 = vdwg.mxu0
      %v1165 = vadd.f32 %v1109, 0.0
      %v1166 = vadd.f32 %v1111, 0.0
      %v1167 = vadd.f32 %v1113, 0.0
      %v1168 = vadd.f32 %v1115, 0.0
      %v1169 = vadd.f32 %v1119, 0.0
      %v1170 = vadd.f32 %v1121, 0.0
      %v1171 = vadd.f32 %v1123, 0.0
      %v1172 = vadd.f32 %v1125, 0.0
      %v1173 = vadd.f32 %v1129, 0.0
      %v1174 = vadd.f32 %v1131, 0.0
      %v1175 = vadd.f32 %v1133, 0.0
      %v1176 = vadd.f32 %v1135, 0.0
      %v1177 = vadd.f32 %v1139, 0.0
      %v1178 = vadd.f32 %v1141, 0.0
      %v1179 = vadd.f32 %v1143, 0.0
      %v1180 = vadd.f32 %v1145, 0.0
      %v1181 = vadd.f32 %v1149, 0.0
      %v1182 = vadd.f32 %v1151, 0.0
      %v1183 = vadd.f32 %v1153, 0.0
      %v1184 = vadd.f32 %v1155, 0.0
      %v1185 = vadd.f32 %v1159, 0.0
      %v1186 = vadd.f32 %v1161, 0.0
      %s1187 = scalar_lea.vmem %s198, 3072
      %v1188 = vld [vmem:[%s1187] sm:$0xff]
      %v1189 = vld [vmem:[%s1187 + $0x8] sm:$0xff]
      %v1190 = vld [vmem:[%s1187 + $0x10] sm:$0xff]
      %v1191 = vld [vmem:[%s1187 + $0x18] sm:$0xff]
      %v1192 = vld [vmem:[%s1187 + $0x20] sm:$0xff]
      %v1193 = vld [vmem:[%s1187 + $0x28] sm:$0xff]
      %v1194 = vld [vmem:[%s1187 + $0x30] sm:$0xff]
      %v1195 = vld [vmem:[%s1187 + $0x38] sm:$0xff]
      %v1196 = vld [vmem:[%s1187 + $0x40] sm:$0xff]
      %v1197 = vld [vmem:[%s1187 + $0x48] sm:$0xff]
      %v1198 = vld [vmem:[%s1187 + $0x50] sm:$0xff]
      %v1199 = vld [vmem:[%s1187 + $0x58] sm:$0xff]
      %v1200 = vld [vmem:[%s1187 + $0x60] sm:$0xff]
      %v1201 = vld [vmem:[%s1187 + $0x68] sm:$0xff]
      %v1202 = vld [vmem:[%s1187 + $0x70] sm:$0xff]
      %v1203 = vld [vmem:[%s1187 + $0x78] sm:$0xff]
      %v1204 = vld [vmem:[%s1187 + $0x80] sm:$0xff]
      %v1205 = vld [vmem:[%s1187 + $0x88] sm:$0xff]
      %v1206 = vld [vmem:[%s1187 + $0x90] sm:$0xff]
      %v1207 = vld [vmem:[%s1187 + $0x98] sm:$0xff]
      %v1208 = vld [vmem:[%s1187 + $0xa0] sm:$0xff]
      %v1209 = vld [vmem:[%s1187 + $0xa8] sm:$0xff]
      %v1210 = vld [vmem:[%s1187 + $0xb0] sm:$0xff]
      %v1211 = vld [vmem:[%s1187 + $0xb8] sm:$0xff]
      %v1212 = vld [vmem:[%s1187 + $0xc0] sm:$0xff]
      %v1213 = vld [vmem:[%s1187 + $0xc8] sm:$0xff]
      %v1214 = vld [vmem:[%s1187 + $0xd0] sm:$0xff]
      %v1215 = vld [vmem:[%s1187 + $0xd8] sm:$0xff]
      %v1216 = vld [vmem:[%s1187 + $0xe0] sm:$0xff]
      %v1217 = vld [vmem:[%s1187 + $0xe8] sm:$0xff]
      %v1218 = vld [vmem:[%s1187 + $0xf0] sm:$0xff]
      %v1219 = vld [vmem:[%s1187 + $0xf8] sm:$0xff]
      %v1220 = vld [vmem:[%s1187 + $0x100] sm:$0xff]
      %v1221 = vld [vmem:[%s1187 + $0x108] sm:$0xff]
      %v1222 = vld [vmem:[%s1187 + $0x110] sm:$0xff]
      %v1223 = vld [vmem:[%s1187 + $0x118] sm:$0xff]
      %v1224 = vld [vmem:[%s1187 + $0x120] sm:$0xff]
      %v1225 = vld [vmem:[%s1187 + $0x128] sm:$0xff]
      %v1226 = vld [vmem:[%s1187 + $0x130] sm:$0xff]
      %v1227 = vld [vmem:[%s1187 + $0x138] sm:$0xff]
      %v1228 = vld [vmem:[%s1187 + $0x140] sm:$0xff]
      %v1229 = vld [vmem:[%s1187 + $0x148] sm:$0xff]
      %v1230 = vld [vmem:[%s1187 + $0x150] sm:$0xff]
      %v1231 = vld [vmem:[%s1187 + $0x158] sm:$0xff]
      %v1232 = vld [vmem:[%s1187 + $0x160] sm:$0xff]
      %v1233 = vld [vmem:[%s1187 + $0x168] sm:$0xff]
      %v1234 = vld [vmem:[%s1187 + $0x170] sm:$0xff]
      %v1235 = vld [vmem:[%s1187 + $0x178] sm:$0xff]
      %v1236 = vld [vmem:[%s1187 + $0x180] sm:$0xff]
      %v1237 = vld [vmem:[%s1187 + $0x188] sm:$0xff]
      %v1238 = vld [vmem:[%s1187 + $0x190] sm:$0xff]
      %v1239 = vld [vmem:[%s1187 + $0x198] sm:$0xff]
      %v1240 = vld [vmem:[%s1187 + $0x1a0] sm:$0xff]
      %v1241 = vld [vmem:[%s1187 + $0x1a8] sm:$0xff]
      %v1242 = vld [vmem:[%s1187 + $0x1b0] sm:$0xff]
      %v1243 = vld [vmem:[%s1187 + $0x1b8] sm:$0xff]
      %v1244 = vld [vmem:[%s1187 + $0x1c0] sm:$0xff]
      %v1245 = vld [vmem:[%s1187 + $0x1c8] sm:$0xff]
      %v1246 = vld [vmem:[%s1187 + $0x1d0] sm:$0xff]
      %v1247 = vld [vmem:[%s1187 + $0x1d8] sm:$0xff]
      %v1248 = vld [vmem:[%s1187 + $0x1e0] sm:$0xff]
      %v1249 = vld [vmem:[%s1187 + $0x1e8] sm:$0xff]
      %v1250 = vld [vmem:[%s1187 + $0x1f0] sm:$0xff]
      %v1251 = vld [vmem:[%s1187 + $0x1f8] sm:$0xff]
      %v1252 = vld [vmem:[%s1187 + $0x200] sm:$0xff]
      %v1253 = vld [vmem:[%s1187 + $0x208] sm:$0xff]
      %v1254 = vld [vmem:[%s1187 + $0x210] sm:$0xff]
      %v1255 = vld [vmem:[%s1187 + $0x218] sm:$0xff]
      %v1256 = vld [vmem:[%s1187 + $0x220] sm:$0xff]
      %v1257 = vld [vmem:[%s1187 + $0x228] sm:$0xff]
      %v1258 = vld [vmem:[%s1187 + $0x230] sm:$0xff]
      %v1259 = vld [vmem:[%s1187 + $0x238] sm:$0xff]
      %v1260 = vld [vmem:[%s1187 + $0x240] sm:$0xff]
      %v1261 = vld [vmem:[%s1187 + $0x248] sm:$0xff]
      %v1262 = vld [vmem:[%s1187 + $0x250] sm:$0xff]
      %v1263 = vld [vmem:[%s1187 + $0x258] sm:$0xff]
      %v1264 = vld [vmem:[%s1187 + $0x260] sm:$0xff]
      %v1265 = vld [vmem:[%s1187 + $0x268] sm:$0xff]
      %v1266 = vld [vmem:[%s1187 + $0x270] sm:$0xff]
      %v1267 = vld [vmem:[%s1187 + $0x278] sm:$0xff]
      %v1268 = vld [vmem:[%s1187 + $0x280] sm:$0xff]
      %v1269 = vld [vmem:[%s1187 + $0x288] sm:$0xff]
      %v1270 = vld [vmem:[%s1187 + $0x290] sm:$0xff]
      %v1271 = vld [vmem:[%s1187 + $0x298] sm:$0xff]
      %v1272 = vld [vmem:[%s1187 + $0x2a0] sm:$0xff]
      %v1273 = vld [vmem:[%s1187 + $0x2a8] sm:$0xff]
      %v1274 = vld [vmem:[%s1187 + $0x2b0] sm:$0xff]
      %v1275 = vld [vmem:[%s1187 + $0x2b8] sm:$0xff]
      %v1276 = vld [vmem:[%s1187 + $0x2c0] sm:$0xff]
      %v1277 = vld [vmem:[%s1187 + $0x2c8] sm:$0xff]
      %v1278 = vld [vmem:[%s1187 + $0x2d0] sm:$0xff]
      %v1279 = vld [vmem:[%s1187 + $0x2d8] sm:$0xff]
      %v1280 = vld [vmem:[%s1187 + $0x2e0] sm:$0xff]
      %v1281 = vld [vmem:[%s1187 + $0x2e8] sm:$0xff]
      %v1282 = vld [vmem:[%s1187 + $0x2f0] sm:$0xff]
      %v1283 = vld [vmem:[%s1187 + $0x2f8] sm:$0xff]
      %v1380 = vunpack.c.l.b16 %v1188
      %v1381 = vunpack.c.h.b16 %v1188
      %v1382 = vunpack.c.l.b16 %v1189
      %v1383 = vunpack.c.h.b16 %v1189
      %v1384 = vunpack.c.l.b16 %v1190
      %v1385 = vunpack.c.h.b16 %v1190
      %v1386 = vunpack.c.l.b16 %v1191
      %v1387 = vunpack.c.h.b16 %v1191
      %v1388 = vunpack.c.l.b16 %v1192
      %v1389 = vunpack.c.h.b16 %v1192
      %v1390 = vunpack.c.l.b16 %v1193
      %v1391 = vunpack.c.h.b16 %v1193
      %v1392 = vunpack.c.l.b16 %v1194
      %v1393 = vunpack.c.h.b16 %v1194
      %v1394 = vunpack.c.l.b16 %v1195
      %v1395 = vunpack.c.h.b16 %v1195
      %v1396 = vunpack.c.l.b16 %v1196
      %v1397 = vunpack.c.h.b16 %v1196
      %v1398 = vunpack.c.l.b16 %v1197
      %v1399 = vunpack.c.h.b16 %v1197
      %v1400 = vunpack.c.l.b16 %v1198
      %v1401 = vunpack.c.h.b16 %v1198
      %v1402 = vunpack.c.l.b16 %v1199
      %v1403 = vunpack.c.h.b16 %v1199
      %v1404 = vunpack.c.l.b16 %v1200
      %v1405 = vunpack.c.h.b16 %v1200
      %v1406 = vunpack.c.l.b16 %v1201
      %v1407 = vunpack.c.h.b16 %v1201
      %v1408 = vunpack.c.l.b16 %v1202
      %v1409 = vunpack.c.h.b16 %v1202
      %v1410 = vunpack.c.l.b16 %v1203
      %v1411 = vunpack.c.h.b16 %v1203
      %v1412 = vunpack.c.l.b16 %v1204
      %v1413 = vunpack.c.h.b16 %v1204
      %v1414 = vunpack.c.l.b16 %v1205
      %v1415 = vunpack.c.h.b16 %v1205
      %v1416 = vunpack.c.l.b16 %v1206
      %v1417 = vunpack.c.h.b16 %v1206
      %v1418 = vunpack.c.l.b16 %v1207
      %v1419 = vunpack.c.h.b16 %v1207
      %v1420 = vunpack.c.l.b16 %v1208
      %v1421 = vunpack.c.h.b16 %v1208
      %v1422 = vunpack.c.l.b16 %v1209
      %v1423 = vunpack.c.h.b16 %v1209
      %v1424 = vunpack.c.l.b16 %v1210
      %v1425 = vunpack.c.h.b16 %v1210
      %v1426 = vunpack.c.l.b16 %v1211
      %v1427 = vunpack.c.h.b16 %v1211
      %v1428 = vunpack.c.l.b16 %v1212
      %v1429 = vunpack.c.h.b16 %v1212
      %v1430 = vunpack.c.l.b16 %v1213
      %v1431 = vunpack.c.h.b16 %v1213
      %v1432 = vunpack.c.l.b16 %v1214
      %v1433 = vunpack.c.h.b16 %v1214
      %v1434 = vunpack.c.l.b16 %v1215
      %v1435 = vunpack.c.h.b16 %v1215
      %v1436 = vunpack.c.l.b16 %v1216
      %v1437 = vunpack.c.h.b16 %v1216
      %v1438 = vunpack.c.l.b16 %v1217
      %v1439 = vunpack.c.h.b16 %v1217
      %v1440 = vunpack.c.l.b16 %v1218
      %v1441 = vunpack.c.h.b16 %v1218
      %v1442 = vunpack.c.l.b16 %v1219
      %v1443 = vunpack.c.h.b16 %v1219
      %v1444 = vunpack.c.l.b16 %v1220
      %v1445 = vunpack.c.h.b16 %v1220
      %v1446 = vunpack.c.l.b16 %v1221
      %v1447 = vunpack.c.h.b16 %v1221
      %v1448 = vunpack.c.l.b16 %v1222
      %v1449 = vunpack.c.h.b16 %v1222
      %v1450 = vunpack.c.l.b16 %v1223
      %v1451 = vunpack.c.h.b16 %v1223
      %v1452 = vunpack.c.l.b16 %v1224
      %v1453 = vunpack.c.h.b16 %v1224
      %v1454 = vunpack.c.l.b16 %v1225
      %v1455 = vunpack.c.h.b16 %v1225
      %v1456 = vunpack.c.l.b16 %v1226
      %v1457 = vunpack.c.h.b16 %v1226
      %v1458 = vunpack.c.l.b16 %v1227
      %v1459 = vunpack.c.h.b16 %v1227
      %v1460 = vunpack.c.l.b16 %v1228
      %v1461 = vunpack.c.h.b16 %v1228
      %v1462 = vunpack.c.l.b16 %v1229
      %v1463 = vunpack.c.h.b16 %v1229
      %v1464 = vunpack.c.l.b16 %v1230
      %v1465 = vunpack.c.h.b16 %v1230
      %v1466 = vunpack.c.l.b16 %v1231
      %v1467 = vunpack.c.h.b16 %v1231
      %v1468 = vunpack.c.l.b16 %v1232
      %v1469 = vunpack.c.h.b16 %v1232
      %v1470 = vunpack.c.l.b16 %v1233
      %v1471 = vunpack.c.h.b16 %v1233
      %v1472 = vunpack.c.l.b16 %v1234
      %v1473 = vunpack.c.h.b16 %v1234
      %v1474 = vunpack.c.l.b16 %v1235
      %v1475 = vunpack.c.h.b16 %v1235
      %v1476 = vunpack.c.l.b16 %v1236
      %v1477 = vunpack.c.h.b16 %v1236
      %v1478 = vunpack.c.l.b16 %v1237
      %v1479 = vunpack.c.h.b16 %v1237
      %v1480 = vunpack.c.l.b16 %v1238
      %v1481 = vunpack.c.h.b16 %v1238
      %v1482 = vunpack.c.l.b16 %v1239
      %v1483 = vunpack.c.h.b16 %v1239
      %v1484 = vunpack.c.l.b16 %v1240
      %v1485 = vunpack.c.h.b16 %v1240
      %v1486 = vunpack.c.l.b16 %v1241
      %v1487 = vunpack.c.h.b16 %v1241
      %v1488 = vunpack.c.l.b16 %v1242
      %v1489 = vunpack.c.h.b16 %v1242
      %v1490 = vunpack.c.l.b16 %v1243
      %v1491 = vunpack.c.h.b16 %v1243
      %v1492 = vunpack.c.l.b16 %v1244
      %v1493 = vunpack.c.h.b16 %v1244
      %v1494 = vunpack.c.l.b16 %v1245
      %v1495 = vunpack.c.h.b16 %v1245
      %v1496 = vunpack.c.l.b16 %v1246
      %v1497 = vunpack.c.h.b16 %v1246
      %v1498 = vunpack.c.l.b16 %v1247
      %v1499 = vunpack.c.h.b16 %v1247
      %v1500 = vunpack.c.l.b16 %v1248
      %v1501 = vunpack.c.h.b16 %v1248
      %v1502 = vunpack.c.l.b16 %v1249
      %v1503 = vunpack.c.h.b16 %v1249
      %v1504 = vunpack.c.l.b16 %v1250
      %v1505 = vunpack.c.h.b16 %v1250
      %v1506 = vunpack.c.l.b16 %v1251
      %v1507 = vunpack.c.h.b16 %v1251
      %v1508 = vunpack.c.l.b16 %v1252
      %v1509 = vunpack.c.h.b16 %v1252
      %v1510 = vunpack.c.l.b16 %v1253
      %v1511 = vunpack.c.h.b16 %v1253
      %v1512 = vunpack.c.l.b16 %v1254
      %v1513 = vunpack.c.h.b16 %v1254
      %v1514 = vunpack.c.l.b16 %v1255
      %v1515 = vunpack.c.h.b16 %v1255
      %v1516 = vunpack.c.l.b16 %v1256
      %v1517 = vunpack.c.h.b16 %v1256
      %v1518 = vunpack.c.l.b16 %v1257
      %v1519 = vunpack.c.h.b16 %v1257
      %v1520 = vunpack.c.l.b16 %v1258
      %v1521 = vunpack.c.h.b16 %v1258
      %v1522 = vunpack.c.l.b16 %v1259
      %v1523 = vunpack.c.h.b16 %v1259
      %v1524 = vunpack.c.l.b16 %v1260
      %v1525 = vunpack.c.h.b16 %v1260
      %v1526 = vunpack.c.l.b16 %v1261
      %v1527 = vunpack.c.h.b16 %v1261
      %v1528 = vunpack.c.l.b16 %v1262
      %v1529 = vunpack.c.h.b16 %v1262
      %v1530 = vunpack.c.l.b16 %v1263
      %v1531 = vunpack.c.h.b16 %v1263
      %v1532 = vunpack.c.l.b16 %v1264
      %v1533 = vunpack.c.h.b16 %v1264
      %v1534 = vunpack.c.l.b16 %v1265
      %v1535 = vunpack.c.h.b16 %v1265
      %v1536 = vunpack.c.l.b16 %v1266
      %v1537 = vunpack.c.h.b16 %v1266
      %v1538 = vunpack.c.l.b16 %v1267
      %v1539 = vunpack.c.h.b16 %v1267
      %v1540 = vunpack.c.l.b16 %v1268
      %v1541 = vunpack.c.h.b16 %v1268
      %v1542 = vunpack.c.l.b16 %v1269
      %v1543 = vunpack.c.h.b16 %v1269
      %v1544 = vunpack.c.l.b16 %v1270
      %v1545 = vunpack.c.h.b16 %v1270
      %v1546 = vunpack.c.l.b16 %v1271
      %v1547 = vunpack.c.h.b16 %v1271
      %v1548 = vunpack.c.l.b16 %v1272
      %v1549 = vunpack.c.h.b16 %v1272
      %v1550 = vunpack.c.l.b16 %v1273
      %v1551 = vunpack.c.h.b16 %v1273
      %v1552 = vunpack.c.l.b16 %v1274
      %v1553 = vunpack.c.h.b16 %v1274
      %v1554 = vunpack.c.l.b16 %v1275
      %v1555 = vunpack.c.h.b16 %v1275
      %v1556 = vunpack.c.l.b16 %v1276
      %v1557 = vunpack.c.h.b16 %v1276
      %v1558 = vunpack.c.l.b16 %v1277
      %v1559 = vunpack.c.h.b16 %v1277
      %v1560 = vunpack.c.l.b16 %v1278
      %v1561 = vunpack.c.h.b16 %v1278
      %v1562 = vunpack.c.l.b16 %v1279
      %v1563 = vunpack.c.h.b16 %v1279
      %v1564 = vunpack.c.l.b16 %v1280
      %v1565 = vunpack.c.h.b16 %v1280
      %v1566 = vunpack.c.l.b16 %v1281
      %v1567 = vunpack.c.h.b16 %v1281
      %v1568 = vunpack.c.l.b16 %v1282
      %v1569 = vunpack.c.h.b16 %v1282
      %v1570 = vunpack.c.l.b16 %v1283
      %v1571 = vunpack.c.h.b16 %v1283
      %v1572 = vpack.c.b16 %v1382, %v1380
      %v1573 = vpack.c.b16 %v1383, %v1381
      %v1574 = vpack.c.b16 %v1386, %v1384
      %v1575 = vpack.c.b16 %v1387, %v1385
      %v1576 = vpack.c.b16 %v1390, %v1388
      %v1577 = vpack.c.b16 %v1391, %v1389
      %v1578 = vpack.c.b16 %v1394, %v1392
      %v1579 = vpack.c.b16 %v1395, %v1393
      %v1580 = vpack.c.b16 %v1398, %v1396
      %v1581 = vpack.c.b16 %v1399, %v1397
      %v1582 = vpack.c.b16 %v1402, %v1400
      %v1583 = vpack.c.b16 %v1403, %v1401
      %v1584 = vpack.c.b16 %v1406, %v1404
      %v1585 = vpack.c.b16 %v1407, %v1405
      %v1586 = vpack.c.b16 %v1410, %v1408
      %v1587 = vpack.c.b16 %v1411, %v1409
      %v1588 = vpack.c.b16 %v1414, %v1412
      %v1589 = vpack.c.b16 %v1415, %v1413
      %v1590 = vpack.c.b16 %v1418, %v1416
      %v1591 = vpack.c.b16 %v1419, %v1417
      %v1592 = vpack.c.b16 %v1422, %v1420
      %v1593 = vpack.c.b16 %v1423, %v1421
      %v1594 = vpack.c.b16 %v1426, %v1424
      %v1595 = vpack.c.b16 %v1427, %v1425
      %v1596 = vpack.c.b16 %v1430, %v1428
      %v1597 = vpack.c.b16 %v1431, %v1429
      %v1598 = vpack.c.b16 %v1434, %v1432
      %v1599 = vpack.c.b16 %v1435, %v1433
      %v1600 = vpack.c.b16 %v1438, %v1436
      %v1601 = vpack.c.b16 %v1439, %v1437
      %v1602 = vpack.c.b16 %v1442, %v1440
      %v1603 = vpack.c.b16 %v1443, %v1441
      %v1604 = vpack.c.b16 %v1446, %v1444
      %v1605 = vpack.c.b16 %v1447, %v1445
      %v1606 = vpack.c.b16 %v1450, %v1448
      %v1607 = vpack.c.b16 %v1451, %v1449
      %v1608 = vpack.c.b16 %v1454, %v1452
      %v1609 = vpack.c.b16 %v1455, %v1453
      %v1610 = vpack.c.b16 %v1458, %v1456
      %v1611 = vpack.c.b16 %v1459, %v1457
      %v1612 = vpack.c.b16 %v1462, %v1460
      %v1613 = vpack.c.b16 %v1463, %v1461
      %v1614 = vpack.c.b16 %v1466, %v1464
      %v1615 = vpack.c.b16 %v1467, %v1465
      %v1616 = vpack.c.b16 %v1470, %v1468
      %v1617 = vpack.c.b16 %v1471, %v1469
      %v1618 = vpack.c.b16 %v1474, %v1472
      %v1619 = vpack.c.b16 %v1475, %v1473
      %v1620 = vpack.c.b16 %v1478, %v1476
      %v1621 = vpack.c.b16 %v1479, %v1477
      %v1622 = vpack.c.b16 %v1482, %v1480
      %v1623 = vpack.c.b16 %v1483, %v1481
      %v1624 = vpack.c.b16 %v1486, %v1484
      %v1625 = vpack.c.b16 %v1487, %v1485
      %v1626 = vpack.c.b16 %v1490, %v1488
      %v1627 = vpack.c.b16 %v1491, %v1489
      %v1628 = vpack.c.b16 %v1494, %v1492
      %v1629 = vpack.c.b16 %v1495, %v1493
      %v1630 = vpack.c.b16 %v1498, %v1496
      %v1631 = vpack.c.b16 %v1499, %v1497
      %v1632 = vpack.c.b16 %v1502, %v1500
      %v1633 = vpack.c.b16 %v1503, %v1501
      %v1634 = vpack.c.b16 %v1506, %v1504
      %v1635 = vpack.c.b16 %v1507, %v1505
      %v1636 = vpack.c.b16 %v1510, %v1508
      %v1637 = vpack.c.b16 %v1511, %v1509
      %v1638 = vpack.c.b16 %v1514, %v1512
      %v1639 = vpack.c.b16 %v1515, %v1513
      %v1640 = vpack.c.b16 %v1518, %v1516
      %v1641 = vpack.c.b16 %v1519, %v1517
      %v1642 = vpack.c.b16 %v1522, %v1520
      %v1643 = vpack.c.b16 %v1523, %v1521
      %v1644 = vpack.c.b16 %v1526, %v1524
      %v1645 = vpack.c.b16 %v1527, %v1525
      %v1646 = vpack.c.b16 %v1530, %v1528
      %v1647 = vpack.c.b16 %v1531, %v1529
      %v1648 = vpack.c.b16 %v1534, %v1532
      %v1649 = vpack.c.b16 %v1535, %v1533
      %v1650 = vpack.c.b16 %v1538, %v1536
      %v1651 = vpack.c.b16 %v1539, %v1537
      %v1652 = vpack.c.b16 %v1542, %v1540
      %v1653 = vpack.c.b16 %v1543, %v1541
      %v1654 = vpack.c.b16 %v1546, %v1544
      %v1655 = vpack.c.b16 %v1547, %v1545
      %v1656 = vpack.c.b16 %v1550, %v1548
      %v1657 = vpack.c.b16 %v1551, %v1549
      %v1658 = vpack.c.b16 %v1554, %v1552
      %v1659 = vpack.c.b16 %v1555, %v1553
      %v1660 = vpack.c.b16 %v1558, %v1556
      %v1661 = vpack.c.b16 %v1559, %v1557
      %v1662 = vpack.c.b16 %v1562, %v1560
      %v1663 = vpack.c.b16 %v1563, %v1561
      %v1664 = vpack.c.b16 %v1566, %v1564
      %v1665 = vpack.c.b16 %v1567, %v1565
      %v1666 = vpack.c.b16 %v1570, %v1568
      %v1667 = vpack.c.b16 %v1571, %v1569
      %1764 = vmatprep.subr.bf16.mxu0 %v1587
      %1765 = vmatpush1.bf16.msra.mxu0 %v1586
      %1766 = vmatprep.subr.bf16.mxu0 %v1585
      %1767 = vmatpush1.bf16.msra.mxu0 %v1584
      %1768 = vmatprep.subr.bf16.mxu0 %v1583
      %1769 = vmatpush1.bf16.msra.mxu0 %v1582
      %1770 = vmatprep.subr.bf16.mxu0 %v1581
      %1771 = vmatpush1.bf16.msra.mxu0 %v1580
      %1772 = vmatprep.subr.bf16.mxu0 %v1579
      %1773 = vmatpush1.bf16.msra.mxu0 %v1578
      %1774 = vmatprep.subr.bf16.mxu0 %v1577
      %1775 = vmatpush1.bf16.msra.mxu0 %v1576
      %1776 = vmatprep.subr.bf16.mxu0 %v1575
      %1777 = vmatpush1.bf16.msra.mxu0 %v1574
      %1778 = vmatprep.subr.bf16.mxu0 %v1573
      %1779 = vmatpush1.bf16.msra.mxu0 %v1572
      %1780 = vmatprep.subr.bf16.mxu0 %v1603
      %1781 = vmatpush2.bf16.msra.mxu0 %v1602
      %1782 = vmatprep.subr.bf16.mxu0 %v1601
      %1783 = vmatpush2.bf16.msra.mxu0 %v1600
      %1784 = vmatprep.subr.bf16.mxu0 %v1599
      %1785 = vmatpush2.bf16.msra.mxu0 %v1598
      %1786 = vmatprep.subr.bf16.mxu0 %v1597
      %1787 = vmatpush2.bf16.msra.mxu0 %v1596
      %1788 = vmatprep.subr.bf16.mxu0 %v1595
      %1789 = vmatpush2.bf16.msra.mxu0 %v1594
      %1790 = vmatprep.subr.bf16.mxu0 %v1593
      %1791 = vmatpush2.bf16.msra.mxu0 %v1592
      %1792 = vmatprep.subr.bf16.mxu0 %v1591
      %1793 = vmatpush2.bf16.msra.mxu0 %v1590
      %1794 = vmatprep.subr.bf16.mxu0 %v1589
      %1795 = vmatpush2.bf16.msra.mxu0 %v1588
      %1796 = vmatprep.mubr.bf16.mxu0 %v281
      %1797 = vmatmul.mubr.bf16.gmra.mxu0 %v280
      %v1798 = vpop.f32.mrf.mxu0
      %v1799 = vadd.f32 0.0, %v1798
      %v1800 = vpop.f32.mrf.mxu0
      %v1801 = vadd.f32 0.0, %v1800
      %v1802 = vpop.f32.mrf.mxu0
      %v1803 = vadd.f32 0.0, %v1802
      %v1804 = vpop.f32.mrf.mxu0
      %v1805 = vadd.f32 0.0, %v1804
      %1806 = vmatprep.mubr.bf16.mxu0 %v287
      %1807 = vmatmul.mubr.bf16.gmra.mxu0 %v286
      %v1808 = vpop.f32.mrf.mxu0
      %v1809 = vadd.f32 0.0, %v1808
      %v1810 = vpop.f32.mrf.mxu0
      %v1811 = vadd.f32 0.0, %v1810
      %v1812 = vpop.f32.mrf.mxu0
      %v1813 = vadd.f32 0.0, %v1812
      %v1814 = vpop.f32.mrf.mxu0
      %v1815 = vadd.f32 0.0, %v1814
      %1816 = vmatprep.mubr.bf16.mxu0 %v293
      %1817 = vmatmul.mubr.bf16.gmra.mxu0 %v292
      %v1818 = vpop.f32.mrf.mxu0
      %v1819 = vadd.f32 0.0, %v1818
      %v1820 = vpop.f32.mrf.mxu0
      %v1821 = vadd.f32 0.0, %v1820
      %v1822 = vpop.f32.mrf.mxu0
      %v1823 = vadd.f32 0.0, %v1822
      %v1824 = vpop.f32.mrf.mxu0
      %v1825 = vadd.f32 0.0, %v1824
      %1826 = vmatprep.mubr.bf16.mxu0 %v299
      %1827 = vmatmul.mubr.bf16.gmra.mxu0 %v298
      %v1828 = vpop.f32.mrf.mxu0
      %v1829 = vadd.f32 0.0, %v1828
      %v1830 = vpop.f32.mrf.mxu0
      %v1831 = vadd.f32 0.0, %v1830
      %v1832 = vpop.f32.mrf.mxu0
      %v1833 = vadd.f32 0.0, %v1832
      %v1834 = vpop.f32.mrf.mxu0
      %v1835 = vadd.f32 0.0, %v1834
      %1836 = vmatprep.mubr.bf16.mxu0 %v305
      %1837 = vmatmul.mubr.bf16.gmra.mxu0 %v304
      %v1838 = vpop.f32.mrf.mxu0
      %v1839 = vadd.f32 0.0, %v1838
      %v1840 = vpop.f32.mrf.mxu0
      %v1841 = vadd.f32 0.0, %v1840
      %v1842 = vpop.f32.mrf.mxu0
      %v1843 = vadd.f32 0.0, %v1842
      %v1844 = vpop.f32.mrf.mxu0
      %v1845 = vadd.f32 0.0, %v1844
      %1846 = vmatprep.mubr.bf16.mxu0 %v311
      %1847 = vmatmul.mubr.bf16.gmra.mxu0 %v310
      %v1848 = vpop.f32.mrf.mxu0
      %v1849 = vadd.f32 0.0, %v1848
      %v1850 = vpop.f32.mrf.mxu0
      %v1851 = vadd.f32 0.0, %v1850
      %v1852 = vpop.f32.mrf.mxu0
      %v1853 = vadd.f32 0.0, %v1852
      %v1854 = vpop.f32.mrf.mxu0
      %v1855 = vadd.f32 0.0, %v1854
      %1856 = vdwg.mxu0
      %1857 = vmatprep.subr.bf16.mxu0 %v1619
      %1858 = vmatpush1.bf16.msra.mxu0 %v1618
      %1859 = vmatprep.subr.bf16.mxu0 %v1617
      %1860 = vmatpush1.bf16.msra.mxu0 %v1616
      %1861 = vmatprep.subr.bf16.mxu0 %v1615
      %1862 = vmatpush1.bf16.msra.mxu0 %v1614
      %1863 = vmatprep.subr.bf16.mxu0 %v1613
      %1864 = vmatpush1.bf16.msra.mxu0 %v1612
      %1865 = vmatprep.subr.bf16.mxu0 %v1611
      %1866 = vmatpush1.bf16.msra.mxu0 %v1610
      %1867 = vmatprep.subr.bf16.mxu0 %v1609
      %1868 = vmatpush1.bf16.msra.mxu0 %v1608
      %1869 = vmatprep.subr.bf16.mxu0 %v1607
      %1870 = vmatpush1.bf16.msra.mxu0 %v1606
      %1871 = vmatprep.subr.bf16.mxu0 %v1605
      %1872 = vmatpush1.bf16.msra.mxu0 %v1604
      %1873 = vmatprep.subr.bf16.mxu0 %v1635
      %1874 = vmatpush2.bf16.msra.mxu0 %v1634
      %1875 = vmatprep.subr.bf16.mxu0 %v1633
      %1876 = vmatpush2.bf16.msra.mxu0 %v1632
      %1877 = vmatprep.subr.bf16.mxu0 %v1631
      %1878 = vmatpush2.bf16.msra.mxu0 %v1630
      %1879 = vmatprep.subr.bf16.mxu0 %v1629
      %1880 = vmatpush2.bf16.msra.mxu0 %v1628
      %1881 = vmatprep.subr.bf16.mxu0 %v1627
      %1882 = vmatpush2.bf16.msra.mxu0 %v1626
      %1883 = vmatprep.subr.bf16.mxu0 %v1625
      %1884 = vmatpush2.bf16.msra.mxu0 %v1624
      %1885 = vmatprep.subr.bf16.mxu0 %v1623
      %1886 = vmatpush2.bf16.msra.mxu0 %v1622
      %1887 = vmatprep.subr.bf16.mxu0 %v1621
      %1888 = vmatpush2.bf16.msra.mxu0 %v1620
      %1889 = vmatprep.mubr.bf16.mxu0 %v283
      %1890 = vmatmul.mubr.bf16.gmra.mxu0 %v282
      %v1891 = vpop.f32.mrf.mxu0
      %v1892 = vadd.f32 %v1799, %v1891
      %v1893 = vpop.f32.mrf.mxu0
      %v1894 = vadd.f32 %v1801, %v1893
      %v1895 = vpop.f32.mrf.mxu0
      %v1896 = vadd.f32 %v1803, %v1895
      %v1897 = vpop.f32.mrf.mxu0
      %v1898 = vadd.f32 %v1805, %v1897
      %1899 = vmatprep.mubr.bf16.mxu0 %v289
      %1900 = vmatmul.mubr.bf16.gmra.mxu0 %v288
      %v1901 = vpop.f32.mrf.mxu0
      %v1902 = vadd.f32 %v1809, %v1901
      %v1903 = vpop.f32.mrf.mxu0
      %v1904 = vadd.f32 %v1811, %v1903
      %v1905 = vpop.f32.mrf.mxu0
      %v1906 = vadd.f32 %v1813, %v1905
      %v1907 = vpop.f32.mrf.mxu0
      %v1908 = vadd.f32 %v1815, %v1907
      %1909 = vmatprep.mubr.bf16.mxu0 %v295
      %1910 = vmatmul.mubr.bf16.gmra.mxu0 %v294
      %v1911 = vpop.f32.mrf.mxu0
      %v1912 = vadd.f32 %v1819, %v1911
      %v1913 = vpop.f32.mrf.mxu0
      %v1914 = vadd.f32 %v1821, %v1913
      %v1915 = vpop.f32.mrf.mxu0
      %v1916 = vadd.f32 %v1823, %v1915
      %v1917 = vpop.f32.mrf.mxu0
      %v1918 = vadd.f32 %v1825, %v1917
      %1919 = vmatprep.mubr.bf16.mxu0 %v301
      %1920 = vmatmul.mubr.bf16.gmra.mxu0 %v300
      %v1921 = vpop.f32.mrf.mxu0
      %v1922 = vadd.f32 %v1829, %v1921
      %v1923 = vpop.f32.mrf.mxu0
      %v1924 = vadd.f32 %v1831, %v1923
      %v1925 = vpop.f32.mrf.mxu0
      %v1926 = vadd.f32 %v1833, %v1925
      %v1927 = vpop.f32.mrf.mxu0
      %v1928 = vadd.f32 %v1835, %v1927
      %1929 = vmatprep.mubr.bf16.mxu0 %v307
      %1930 = vmatmul.mubr.bf16.gmra.mxu0 %v306
      %v1931 = vpop.f32.mrf.mxu0
      %v1932 = vadd.f32 %v1839, %v1931
      %v1933 = vpop.f32.mrf.mxu0
      %v1934 = vadd.f32 %v1841, %v1933
      %v1935 = vpop.f32.mrf.mxu0
      %v1936 = vadd.f32 %v1843, %v1935
      %v1937 = vpop.f32.mrf.mxu0
      %v1938 = vadd.f32 %v1845, %v1937
      %1939 = vmatprep.mubr.bf16.mxu0 %v313
      %1940 = vmatmul.mubr.bf16.gmra.mxu0 %v312
      %v1941 = vpop.f32.mrf.mxu0
      %v1942 = vadd.f32 %v1849, %v1941
      %v1943 = vpop.f32.mrf.mxu0
      %v1944 = vadd.f32 %v1851, %v1943
      %v1945 = vpop.f32.mrf.mxu0
      %v1946 = vadd.f32 %v1853, %v1945
      %v1947 = vpop.f32.mrf.mxu0
      %v1948 = vadd.f32 %v1855, %v1947
      %1949 = vdwg.mxu0
      %1950 = vmatprep.subr.bf16.mxu0 %v1651
      %1951 = vmatpush1.bf16.msra.mxu0 %v1650
      %1952 = vmatprep.subr.bf16.mxu0 %v1649
      %1953 = vmatpush1.bf16.msra.mxu0 %v1648
      %1954 = vmatprep.subr.bf16.mxu0 %v1647
      %1955 = vmatpush1.bf16.msra.mxu0 %v1646
      %1956 = vmatprep.subr.bf16.mxu0 %v1645
      %1957 = vmatpush1.bf16.msra.mxu0 %v1644
      %1958 = vmatprep.subr.bf16.mxu0 %v1643
      %1959 = vmatpush1.bf16.msra.mxu0 %v1642
      %1960 = vmatprep.subr.bf16.mxu0 %v1641
      %1961 = vmatpush1.bf16.msra.mxu0 %v1640
      %1962 = vmatprep.subr.bf16.mxu0 %v1639
      %1963 = vmatpush1.bf16.msra.mxu0 %v1638
      %1964 = vmatprep.subr.bf16.mxu0 %v1637
      %1965 = vmatpush1.bf16.msra.mxu0 %v1636
      %1966 = vmatprep.subr.bf16.mxu0 %v1667
      %1967 = vmatpush2.bf16.msra.mxu0 %v1666
      %1968 = vmatprep.subr.bf16.mxu0 %v1665
      %1969 = vmatpush2.bf16.msra.mxu0 %v1664
      %1970 = vmatprep.subr.bf16.mxu0 %v1663
      %1971 = vmatpush2.bf16.msra.mxu0 %v1662
      %1972 = vmatprep.subr.bf16.mxu0 %v1661
      %1973 = vmatpush2.bf16.msra.mxu0 %v1660
      %1974 = vmatprep.subr.bf16.mxu0 %v1659
      %1975 = vmatpush2.bf16.msra.mxu0 %v1658
      %1976 = vmatprep.subr.bf16.mxu0 %v1657
      %1977 = vmatpush2.bf16.msra.mxu0 %v1656
      %1978 = vmatprep.subr.bf16.mxu0 %v1655
      %1979 = vmatpush2.bf16.msra.mxu0 %v1654
      %1980 = vmatprep.subr.bf16.mxu0 %v1653
      %1981 = vmatpush2.bf16.msra.mxu0 %v1652
      %1982 = vmatprep.mubr.bf16.mxu0 %v285
      %1983 = vmatmul.mubr.bf16.gmra.mxu0 %v284
      %v1984 = vpop.f32.mrf.mxu0
      %v1985 = vadd.f32 %v1892, %v1984
      %v1986 = vpop.f32.mrf.mxu0
      %v1987 = vadd.f32 %v1894, %v1986
      %v1988 = vpop.f32.mrf.mxu0
      %v1989 = vadd.f32 %v1896, %v1988
      %v1990 = vpop.f32.mrf.mxu0
      %v1991 = vadd.f32 %v1898, %v1990
      %1992 = vmatprep.mubr.bf16.mxu0 %v291
      %1993 = vmatmul.mubr.bf16.gmra.mxu0 %v290
      %v1994 = vpop.f32.mrf.mxu0
      %v1995 = vadd.f32 %v1902, %v1994
      %v1996 = vpop.f32.mrf.mxu0
      %v1997 = vadd.f32 %v1904, %v1996
      %v1998 = vpop.f32.mrf.mxu0
      %v1999 = vadd.f32 %v1906, %v1998
      %v2000 = vpop.f32.mrf.mxu0
      %v2001 = vadd.f32 %v1908, %v2000
      %2002 = vmatprep.mubr.bf16.mxu0 %v297
      %2003 = vmatmul.mubr.bf16.gmra.mxu0 %v296
      %v2004 = vpop.f32.mrf.mxu0
      %v2005 = vadd.f32 %v1912, %v2004
      %v2006 = vpop.f32.mrf.mxu0
      %v2007 = vadd.f32 %v1914, %v2006
      %v2008 = vpop.f32.mrf.mxu0
      %v2009 = vadd.f32 %v1916, %v2008
      %v2010 = vpop.f32.mrf.mxu0
      %v2011 = vadd.f32 %v1918, %v2010
      %2012 = vmatprep.mubr.bf16.mxu0 %v303
      %2013 = vmatmul.mubr.bf16.gmra.mxu0 %v302
      %v2014 = vpop.f32.mrf.mxu0
      %v2015 = vadd.f32 %v1922, %v2014
      %v2016 = vpop.f32.mrf.mxu0
      %v2017 = vadd.f32 %v1924, %v2016
      %v2018 = vpop.f32.mrf.mxu0
      %v2019 = vadd.f32 %v1926, %v2018
      %v2020 = vpop.f32.mrf.mxu0
      %v2021 = vadd.f32 %v1928, %v2020
      %2022 = vmatprep.mubr.bf16.mxu0 %v309
      %2023 = vmatmul.mubr.bf16.gmra.mxu0 %v308
      %v2024 = vpop.f32.mrf.mxu0
      %v2025 = vadd.f32 %v1932, %v2024
      %v2026 = vpop.f32.mrf.mxu0
      %v2027 = vadd.f32 %v1934, %v2026
      %v2028 = vpop.f32.mrf.mxu0
      %v2029 = vadd.f32 %v1936, %v2028
      %v2030 = vpop.f32.mrf.mxu0
      %v2031 = vadd.f32 %v1938, %v2030
      %2032 = vmatprep.mubr.bf16.mxu0 %v315
      %2033 = vmatmul.mubr.bf16.gmra.mxu0 %v314
      %v2034 = vpop.f32.mrf.mxu0
      %v2035 = vadd.f32 %v1942, %v2034
      %v2036 = vpop.f32.mrf.mxu0
      %v2037 = vadd.f32 %v1944, %v2036
      %v2038 = vpop.f32.mrf.mxu0
      %v2039 = vadd.f32 %v1946, %v2038
      %v2040 = vpop.f32.mrf.mxu0
      %v2041 = vadd.f32 %v1948, %v2040
      %2042 = vdwg.mxu0
      %vm2067 = vcmask 1046528
      %v2068 = vrot.slane %v1985, 1
      %v2069 = vrot.slane %v1989, 1
      %v2070 = vsel %vm2067, %v2068, %v2069
      %v2071 = vrot.slane %v1987, 1
      %v2072 = vrot.slane %v1991, 1
      %v2073 = vsel %vm2067, %v2071, %v2072
      %v2074 = vrot.slane %v1995, 1
      %v2075 = vsel %vm2067, %v2069, %v2074
      %v2076 = vrot.slane %v1997, 1
      %v2077 = vsel %vm2067, %v2072, %v2076
      %v2078 = vrot.slane %v1999, 1
      %v2079 = vsel %vm2067, %v2074, %v2078
      %v2080 = vrot.slane %v2001, 1
      %v2081 = vsel %vm2067, %v2076, %v2080
      %v2082 = vrot.slane %v2005, 1
      %v2083 = vsel %vm2067, %v2078, %v2082
      %v2084 = vrot.slane %v2007, 1
      %v2085 = vsel %vm2067, %v2080, %v2084
      %v2086 = vrot.slane %v2009, 1
      %v2087 = vsel %vm2067, %v2082, %v2086
      %v2088 = vrot.slane %v2011, 1
      %v2089 = vsel %vm2067, %v2084, %v2088
      %v2090 = vrot.slane %v2015, 1
      %v2091 = vsel %vm2067, %v2086, %v2090
      %v2092 = vrot.slane %v2017, 1
      %v2093 = vsel %vm2067, %v2088, %v2092
      %v2094 = vrot.slane %v2019, 1
      %v2095 = vsel %vm2067, %v2090, %v2094
      %v2096 = vrot.slane %v2021, 1
      %v2097 = vsel %vm2067, %v2092, %v2096
      %v2098 = vrot.slane %v2025, 1
      %v2099 = vsel %vm2067, %v2094, %v2098
      %v2100 = vrot.slane %v2027, 1
      %v2101 = vsel %vm2067, %v2096, %v2100
      %v2102 = vrot.slane %v2029, 1
      %v2103 = vsel %vm2067, %v2098, %v2102
      %v2104 = vrot.slane %v2031, 1
      %v2105 = vsel %vm2067, %v2100, %v2104
      %v2106 = vrot.slane %v2035, 1
      %v2107 = vsel %vm2067, %v2102, %v2106
      %v2108 = vrot.slane %v2037, 1
      %v2109 = vsel %vm2067, %v2104, %v2108
      %v2110 = vrot.slane %v2039, 1
      %v2111 = vsel %vm2067, %v2106, %v2110
      %v2112 = vrot.slane %v2041, 1
      %v2113 = vsel %vm2067, %v2108, %v2112
      %v2136 = vadd.f32 %v1165, %v2070
      %v2137 = vadd.f32 %v1166, %v2073
      %v2138 = vadd.f32 %v1167, %v2075
      %v2139 = vadd.f32 %v1168, %v2077
      %v2140 = vadd.f32 %v1169, %v2079
      %v2141 = vadd.f32 %v1170, %v2081
      %v2142 = vadd.f32 %v1171, %v2083
      %v2143 = vadd.f32 %v1172, %v2085
      %v2144 = vadd.f32 %v1173, %v2087
      %v2145 = vadd.f32 %v1174, %v2089
      %v2146 = vadd.f32 %v1175, %v2091
      %v2147 = vadd.f32 %v1176, %v2093
      %v2148 = vadd.f32 %v1177, %v2095
      %v2149 = vadd.f32 %v1178, %v2097
      %v2150 = vadd.f32 %v1179, %v2099
      %v2151 = vadd.f32 %v1180, %v2101
      %v2152 = vadd.f32 %v1181, %v2103
      %v2153 = vadd.f32 %v1182, %v2105
      %v2154 = vadd.f32 %v1183, %v2107
      %v2155 = vadd.f32 %v1184, %v2109
      %v2156 = vadd.f32 %v1185, %v2111
      %v2157 = vadd.f32 %v1186, %v2113
      %s2158 = scalar_lea.vmem %s198, 6144
      %v2159 = vld [vmem:[%s2158] sm:$0xff]
      %v2160 = vld [vmem:[%s2158 + $0x8] sm:$0xff]
      %v2161 = vld [vmem:[%s2158 + $0x10] sm:$0xff]
      %v2162 = vld [vmem:[%s2158 + $0x18] sm:$0xff]
      %v2163 = vld [vmem:[%s2158 + $0x20] sm:$0xff]
      %v2164 = vld [vmem:[%s2158 + $0x28] sm:$0xff]
      %v2165 = vld [vmem:[%s2158 + $0x30] sm:$0xff]
      %v2166 = vld [vmem:[%s2158 + $0x38] sm:$0xff]
      %v2167 = vld [vmem:[%s2158 + $0x40] sm:$0xff]
      %v2168 = vld [vmem:[%s2158 + $0x48] sm:$0xff]
      %v2169 = vld [vmem:[%s2158 + $0x50] sm:$0xff]
      %v2170 = vld [vmem:[%s2158 + $0x58] sm:$0xff]
      %v2171 = vld [vmem:[%s2158 + $0x60] sm:$0xff]
      %v2172 = vld [vmem:[%s2158 + $0x68] sm:$0xff]
      %v2173 = vld [vmem:[%s2158 + $0x70] sm:$0xff]
      %v2174 = vld [vmem:[%s2158 + $0x78] sm:$0xff]
      %v2175 = vld [vmem:[%s2158 + $0x80] sm:$0xff]
      %v2176 = vld [vmem:[%s2158 + $0x88] sm:$0xff]
      %v2177 = vld [vmem:[%s2158 + $0x90] sm:$0xff]
      %v2178 = vld [vmem:[%s2158 + $0x98] sm:$0xff]
      %v2179 = vld [vmem:[%s2158 + $0xa0] sm:$0xff]
      %v2180 = vld [vmem:[%s2158 + $0xa8] sm:$0xff]
      %v2181 = vld [vmem:[%s2158 + $0xb0] sm:$0xff]
      %v2182 = vld [vmem:[%s2158 + $0xb8] sm:$0xff]
      %v2183 = vld [vmem:[%s2158 + $0xc0] sm:$0xff]
      %v2184 = vld [vmem:[%s2158 + $0xc8] sm:$0xff]
      %v2185 = vld [vmem:[%s2158 + $0xd0] sm:$0xff]
      %v2186 = vld [vmem:[%s2158 + $0xd8] sm:$0xff]
      %v2187 = vld [vmem:[%s2158 + $0xe0] sm:$0xff]
      %v2188 = vld [vmem:[%s2158 + $0xe8] sm:$0xff]
      %v2189 = vld [vmem:[%s2158 + $0xf0] sm:$0xff]
      %v2190 = vld [vmem:[%s2158 + $0xf8] sm:$0xff]
      %v2191 = vld [vmem:[%s2158 + $0x100] sm:$0xff]
      %v2192 = vld [vmem:[%s2158 + $0x108] sm:$0xff]
      %v2193 = vld [vmem:[%s2158 + $0x110] sm:$0xff]
      %v2194 = vld [vmem:[%s2158 + $0x118] sm:$0xff]
      %v2195 = vld [vmem:[%s2158 + $0x120] sm:$0xff]
      %v2196 = vld [vmem:[%s2158 + $0x128] sm:$0xff]
      %v2197 = vld [vmem:[%s2158 + $0x130] sm:$0xff]
      %v2198 = vld [vmem:[%s2158 + $0x138] sm:$0xff]
      %v2199 = vld [vmem:[%s2158 + $0x140] sm:$0xff]
      %v2200 = vld [vmem:[%s2158 + $0x148] sm:$0xff]
      %v2201 = vld [vmem:[%s2158 + $0x150] sm:$0xff]
      %v2202 = vld [vmem:[%s2158 + $0x158] sm:$0xff]
      %v2203 = vld [vmem:[%s2158 + $0x160] sm:$0xff]
      %v2204 = vld [vmem:[%s2158 + $0x168] sm:$0xff]
      %v2205 = vld [vmem:[%s2158 + $0x170] sm:$0xff]
      %v2206 = vld [vmem:[%s2158 + $0x178] sm:$0xff]
      %v2207 = vld [vmem:[%s2158 + $0x180] sm:$0xff]
      %v2208 = vld [vmem:[%s2158 + $0x188] sm:$0xff]
      %v2209 = vld [vmem:[%s2158 + $0x190] sm:$0xff]
      %v2210 = vld [vmem:[%s2158 + $0x198] sm:$0xff]
      %v2211 = vld [vmem:[%s2158 + $0x1a0] sm:$0xff]
      %v2212 = vld [vmem:[%s2158 + $0x1a8] sm:$0xff]
      %v2213 = vld [vmem:[%s2158 + $0x1b0] sm:$0xff]
      %v2214 = vld [vmem:[%s2158 + $0x1b8] sm:$0xff]
      %v2215 = vld [vmem:[%s2158 + $0x1c0] sm:$0xff]
      %v2216 = vld [vmem:[%s2158 + $0x1c8] sm:$0xff]
      %v2217 = vld [vmem:[%s2158 + $0x1d0] sm:$0xff]
      %v2218 = vld [vmem:[%s2158 + $0x1d8] sm:$0xff]
      %v2219 = vld [vmem:[%s2158 + $0x1e0] sm:$0xff]
      %v2220 = vld [vmem:[%s2158 + $0x1e8] sm:$0xff]
      %v2221 = vld [vmem:[%s2158 + $0x1f0] sm:$0xff]
      %v2222 = vld [vmem:[%s2158 + $0x1f8] sm:$0xff]
      %v2223 = vld [vmem:[%s2158 + $0x200] sm:$0xff]
      %v2224 = vld [vmem:[%s2158 + $0x208] sm:$0xff]
      %v2225 = vld [vmem:[%s2158 + $0x210] sm:$0xff]
      %v2226 = vld [vmem:[%s2158 + $0x218] sm:$0xff]
      %v2227 = vld [vmem:[%s2158 + $0x220] sm:$0xff]
      %v2228 = vld [vmem:[%s2158 + $0x228] sm:$0xff]
      %v2229 = vld [vmem:[%s2158 + $0x230] sm:$0xff]
      %v2230 = vld [vmem:[%s2158 + $0x238] sm:$0xff]
      %v2231 = vld [vmem:[%s2158 + $0x240] sm:$0xff]
      %v2232 = vld [vmem:[%s2158 + $0x248] sm:$0xff]
      %v2233 = vld [vmem:[%s2158 + $0x250] sm:$0xff]
      %v2234 = vld [vmem:[%s2158 + $0x258] sm:$0xff]
      %v2235 = vld [vmem:[%s2158 + $0x260] sm:$0xff]
      %v2236 = vld [vmem:[%s2158 + $0x268] sm:$0xff]
      %v2237 = vld [vmem:[%s2158 + $0x270] sm:$0xff]
      %v2238 = vld [vmem:[%s2158 + $0x278] sm:$0xff]
      %v2239 = vld [vmem:[%s2158 + $0x280] sm:$0xff]
      %v2240 = vld [vmem:[%s2158 + $0x288] sm:$0xff]
      %v2241 = vld [vmem:[%s2158 + $0x290] sm:$0xff]
      %v2242 = vld [vmem:[%s2158 + $0x298] sm:$0xff]
      %v2243 = vld [vmem:[%s2158 + $0x2a0] sm:$0xff]
      %v2244 = vld [vmem:[%s2158 + $0x2a8] sm:$0xff]
      %v2245 = vld [vmem:[%s2158 + $0x2b0] sm:$0xff]
      %v2246 = vld [vmem:[%s2158 + $0x2b8] sm:$0xff]
      %v2247 = vld [vmem:[%s2158 + $0x2c0] sm:$0xff]
      %v2248 = vld [vmem:[%s2158 + $0x2c8] sm:$0xff]
      %v2249 = vld [vmem:[%s2158 + $0x2d0] sm:$0xff]
      %v2250 = vld [vmem:[%s2158 + $0x2d8] sm:$0xff]
      %v2251 = vld [vmem:[%s2158 + $0x2e0] sm:$0xff]
      %v2252 = vld [vmem:[%s2158 + $0x2e8] sm:$0xff]
      %v2253 = vld [vmem:[%s2158 + $0x2f0] sm:$0xff]
      %v2254 = vld [vmem:[%s2158 + $0x2f8] sm:$0xff]
      %v2351 = vunpack.c.l.b16 %v2159
      %v2352 = vunpack.c.h.b16 %v2159
      %v2353 = vunpack.c.l.b16 %v2160
      %v2354 = vunpack.c.h.b16 %v2160
      %v2355 = vunpack.c.l.b16 %v2161
      %v2356 = vunpack.c.h.b16 %v2161
      %v2357 = vunpack.c.l.b16 %v2162
      %v2358 = vunpack.c.h.b16 %v2162
      %v2359 = vunpack.c.l.b16 %v2163
      %v2360 = vunpack.c.h.b16 %v2163
      %v2361 = vunpack.c.l.b16 %v2164
      %v2362 = vunpack.c.h.b16 %v2164
      %v2363 = vunpack.c.l.b16 %v2165
      %v2364 = vunpack.c.h.b16 %v2165
      %v2365 = vunpack.c.l.b16 %v2166
      %v2366 = vunpack.c.h.b16 %v2166
      %v2367 = vunpack.c.l.b16 %v2167
      %v2368 = vunpack.c.h.b16 %v2167
      %v2369 = vunpack.c.l.b16 %v2168
      %v2370 = vunpack.c.h.b16 %v2168
      %v2371 = vunpack.c.l.b16 %v2169
      %v2372 = vunpack.c.h.b16 %v2169
      %v2373 = vunpack.c.l.b16 %v2170
      %v2374 = vunpack.c.h.b16 %v2170
      %v2375 = vunpack.c.l.b16 %v2171
      %v2376 = vunpack.c.h.b16 %v2171
      %v2377 = vunpack.c.l.b16 %v2172
      %v2378 = vunpack.c.h.b16 %v2172
      %v2379 = vunpack.c.l.b16 %v2173
      %v2380 = vunpack.c.h.b16 %v2173
      %v2381 = vunpack.c.l.b16 %v2174
      %v2382 = vunpack.c.h.b16 %v2174
      %v2383 = vunpack.c.l.b16 %v2175
      %v2384 = vunpack.c.h.b16 %v2175
      %v2385 = vunpack.c.l.b16 %v2176
      %v2386 = vunpack.c.h.b16 %v2176
      %v2387 = vunpack.c.l.b16 %v2177
      %v2388 = vunpack.c.h.b16 %v2177
      %v2389 = vunpack.c.l.b16 %v2178
      %v2390 = vunpack.c.h.b16 %v2178
      %v2391 = vunpack.c.l.b16 %v2179
      %v2392 = vunpack.c.h.b16 %v2179
      %v2393 = vunpack.c.l.b16 %v2180
      %v2394 = vunpack.c.h.b16 %v2180
      %v2395 = vunpack.c.l.b16 %v2181
      %v2396 = vunpack.c.h.b16 %v2181
      %v2397 = vunpack.c.l.b16 %v2182
      %v2398 = vunpack.c.h.b16 %v2182
      %v2399 = vunpack.c.l.b16 %v2183
      %v2400 = vunpack.c.h.b16 %v2183
      %v2401 = vunpack.c.l.b16 %v2184
      %v2402 = vunpack.c.h.b16 %v2184
      %v2403 = vunpack.c.l.b16 %v2185
      %v2404 = vunpack.c.h.b16 %v2185
      %v2405 = vunpack.c.l.b16 %v2186
      %v2406 = vunpack.c.h.b16 %v2186
      %v2407 = vunpack.c.l.b16 %v2187
      %v2408 = vunpack.c.h.b16 %v2187
      %v2409 = vunpack.c.l.b16 %v2188
      %v2410 = vunpack.c.h.b16 %v2188
      %v2411 = vunpack.c.l.b16 %v2189
      %v2412 = vunpack.c.h.b16 %v2189
      %v2413 = vunpack.c.l.b16 %v2190
      %v2414 = vunpack.c.h.b16 %v2190
      %v2415 = vunpack.c.l.b16 %v2191
      %v2416 = vunpack.c.h.b16 %v2191
      %v2417 = vunpack.c.l.b16 %v2192
      %v2418 = vunpack.c.h.b16 %v2192
      %v2419 = vunpack.c.l.b16 %v2193
      %v2420 = vunpack.c.h.b16 %v2193
      %v2421 = vunpack.c.l.b16 %v2194
      %v2422 = vunpack.c.h.b16 %v2194
      %v2423 = vunpack.c.l.b16 %v2195
      %v2424 = vunpack.c.h.b16 %v2195
      %v2425 = vunpack.c.l.b16 %v2196
      %v2426 = vunpack.c.h.b16 %v2196
      %v2427 = vunpack.c.l.b16 %v2197
      %v2428 = vunpack.c.h.b16 %v2197
      %v2429 = vunpack.c.l.b16 %v2198
      %v2430 = vunpack.c.h.b16 %v2198
      %v2431 = vunpack.c.l.b16 %v2199
      %v2432 = vunpack.c.h.b16 %v2199
      %v2433 = vunpack.c.l.b16 %v2200
      %v2434 = vunpack.c.h.b16 %v2200
      %v2435 = vunpack.c.l.b16 %v2201
      %v2436 = vunpack.c.h.b16 %v2201
      %v2437 = vunpack.c.l.b16 %v2202
      %v2438 = vunpack.c.h.b16 %v2202
      %v2439 = vunpack.c.l.b16 %v2203
      %v2440 = vunpack.c.h.b16 %v2203
      %v2441 = vunpack.c.l.b16 %v2204
      %v2442 = vunpack.c.h.b16 %v2204
      %v2443 = vunpack.c.l.b16 %v2205
      %v2444 = vunpack.c.h.b16 %v2205
      %v2445 = vunpack.c.l.b16 %v2206
      %v2446 = vunpack.c.h.b16 %v2206
      %v2447 = vunpack.c.l.b16 %v2207
      %v2448 = vunpack.c.h.b16 %v2207
      %v2449 = vunpack.c.l.b16 %v2208
      %v2450 = vunpack.c.h.b16 %v2208
      %v2451 = vunpack.c.l.b16 %v2209
      %v2452 = vunpack.c.h.b16 %v2209
      %v2453 = vunpack.c.l.b16 %v2210
      %v2454 = vunpack.c.h.b16 %v2210
      %v2455 = vunpack.c.l.b16 %v2211
      %v2456 = vunpack.c.h.b16 %v2211
      %v2457 = vunpack.c.l.b16 %v2212
      %v2458 = vunpack.c.h.b16 %v2212
      %v2459 = vunpack.c.l.b16 %v2213
      %v2460 = vunpack.c.h.b16 %v2213
      %v2461 = vunpack.c.l.b16 %v2214
      %v2462 = vunpack.c.h.b16 %v2214
      %v2463 = vunpack.c.l.b16 %v2215
      %v2464 = vunpack.c.h.b16 %v2215
      %v2465 = vunpack.c.l.b16 %v2216
      %v2466 = vunpack.c.h.b16 %v2216
      %v2467 = vunpack.c.l.b16 %v2217
      %v2468 = vunpack.c.h.b16 %v2217
      %v2469 = vunpack.c.l.b16 %v2218
      %v2470 = vunpack.c.h.b16 %v2218
      %v2471 = vunpack.c.l.b16 %v2219
      %v2472 = vunpack.c.h.b16 %v2219
      %v2473 = vunpack.c.l.b16 %v2220
      %v2474 = vunpack.c.h.b16 %v2220
      %v2475 = vunpack.c.l.b16 %v2221
      %v2476 = vunpack.c.h.b16 %v2221
      %v2477 = vunpack.c.l.b16 %v2222
      %v2478 = vunpack.c.h.b16 %v2222
      %v2479 = vunpack.c.l.b16 %v2223
      %v2480 = vunpack.c.h.b16 %v2223
      %v2481 = vunpack.c.l.b16 %v2224
      %v2482 = vunpack.c.h.b16 %v2224
      %v2483 = vunpack.c.l.b16 %v2225
      %v2484 = vunpack.c.h.b16 %v2225
      %v2485 = vunpack.c.l.b16 %v2226
      %v2486 = vunpack.c.h.b16 %v2226
      %v2487 = vunpack.c.l.b16 %v2227
      %v2488 = vunpack.c.h.b16 %v2227
      %v2489 = vunpack.c.l.b16 %v2228
      %v2490 = vunpack.c.h.b16 %v2228
      %v2491 = vunpack.c.l.b16 %v2229
      %v2492 = vunpack.c.h.b16 %v2229
      %v2493 = vunpack.c.l.b16 %v2230
      %v2494 = vunpack.c.h.b16 %v2230
      %v2495 = vunpack.c.l.b16 %v2231
      %v2496 = vunpack.c.h.b16 %v2231
      %v2497 = vunpack.c.l.b16 %v2232
      %v2498 = vunpack.c.h.b16 %v2232
      %v2499 = vunpack.c.l.b16 %v2233
      %v2500 = vunpack.c.h.b16 %v2233
      %v2501 = vunpack.c.l.b16 %v2234
      %v2502 = vunpack.c.h.b16 %v2234
      %v2503 = vunpack.c.l.b16 %v2235
      %v2504 = vunpack.c.h.b16 %v2235
      %v2505 = vunpack.c.l.b16 %v2236
      %v2506 = vunpack.c.h.b16 %v2236
      %v2507 = vunpack.c.l.b16 %v2237
      %v2508 = vunpack.c.h.b16 %v2237
      %v2509 = vunpack.c.l.b16 %v2238
      %v2510 = vunpack.c.h.b16 %v2238
      %v2511 = vunpack.c.l.b16 %v2239
      %v2512 = vunpack.c.h.b16 %v2239
      %v2513 = vunpack.c.l.b16 %v2240
      %v2514 = vunpack.c.h.b16 %v2240
      %v2515 = vunpack.c.l.b16 %v2241
      %v2516 = vunpack.c.h.b16 %v2241
      %v2517 = vunpack.c.l.b16 %v2242
      %v2518 = vunpack.c.h.b16 %v2242
      %v2519 = vunpack.c.l.b16 %v2243
      %v2520 = vunpack.c.h.b16 %v2243
      %v2521 = vunpack.c.l.b16 %v2244
      %v2522 = vunpack.c.h.b16 %v2244
      %v2523 = vunpack.c.l.b16 %v2245
      %v2524 = vunpack.c.h.b16 %v2245
      %v2525 = vunpack.c.l.b16 %v2246
      %v2526 = vunpack.c.h.b16 %v2246
      %v2527 = vunpack.c.l.b16 %v2247
      %v2528 = vunpack.c.h.b16 %v2247
      %v2529 = vunpack.c.l.b16 %v2248
      %v2530 = vunpack.c.h.b16 %v2248
      %v2531 = vunpack.c.l.b16 %v2249
      %v2532 = vunpack.c.h.b16 %v2249
      %v2533 = vunpack.c.l.b16 %v2250
      %v2534 = vunpack.c.h.b16 %v2250
      %v2535 = vunpack.c.l.b16 %v2251
      %v2536 = vunpack.c.h.b16 %v2251
      %v2537 = vunpack.c.l.b16 %v2252
      %v2538 = vunpack.c.h.b16 %v2252
      %v2539 = vunpack.c.l.b16 %v2253
      %v2540 = vunpack.c.h.b16 %v2253
      %v2541 = vunpack.c.l.b16 %v2254
      %v2542 = vunpack.c.h.b16 %v2254
      %v2543 = vpack.c.b16 %v2353, %v2351
      %v2544 = vpack.c.b16 %v2354, %v2352
      %v2545 = vpack.c.b16 %v2357, %v2355
      %v2546 = vpack.c.b16 %v2358, %v2356
      %v2547 = vpack.c.b16 %v2361, %v2359
      %v2548 = vpack.c.b16 %v2362, %v2360
      %v2549 = vpack.c.b16 %v2365, %v2363
      %v2550 = vpack.c.b16 %v2366, %v2364
      %v2551 = vpack.c.b16 %v2369, %v2367
      %v2552 = vpack.c.b16 %v2370, %v2368
      %v2553 = vpack.c.b16 %v2373, %v2371
      %v2554 = vpack.c.b16 %v2374, %v2372
      %v2555 = vpack.c.b16 %v2377, %v2375
      %v2556 = vpack.c.b16 %v2378, %v2376
      %v2557 = vpack.c.b16 %v2381, %v2379
      %v2558 = vpack.c.b16 %v2382, %v2380
      %v2559 = vpack.c.b16 %v2385, %v2383
      %v2560 = vpack.c.b16 %v2386, %v2384
      %v2561 = vpack.c.b16 %v2389, %v2387
      %v2562 = vpack.c.b16 %v2390, %v2388
      %v2563 = vpack.c.b16 %v2393, %v2391
      %v2564 = vpack.c.b16 %v2394, %v2392
      %v2565 = vpack.c.b16 %v2397, %v2395
      %v2566 = vpack.c.b16 %v2398, %v2396
      %v2567 = vpack.c.b16 %v2401, %v2399
      %v2568 = vpack.c.b16 %v2402, %v2400
      %v2569 = vpack.c.b16 %v2405, %v2403
      %v2570 = vpack.c.b16 %v2406, %v2404
      %v2571 = vpack.c.b16 %v2409, %v2407
      %v2572 = vpack.c.b16 %v2410, %v2408
      %v2573 = vpack.c.b16 %v2413, %v2411
      %v2574 = vpack.c.b16 %v2414, %v2412
      %v2575 = vpack.c.b16 %v2417, %v2415
      %v2576 = vpack.c.b16 %v2418, %v2416
      %v2577 = vpack.c.b16 %v2421, %v2419
      %v2578 = vpack.c.b16 %v2422, %v2420
      %v2579 = vpack.c.b16 %v2425, %v2423
      %v2580 = vpack.c.b16 %v2426, %v2424
      %v2581 = vpack.c.b16 %v2429, %v2427
      %v2582 = vpack.c.b16 %v2430, %v2428
      %v2583 = vpack.c.b16 %v2433, %v2431
      %v2584 = vpack.c.b16 %v2434, %v2432
      %v2585 = vpack.c.b16 %v2437, %v2435
      %v2586 = vpack.c.b16 %v2438, %v2436
      %v2587 = vpack.c.b16 %v2441, %v2439
      %v2588 = vpack.c.b16 %v2442, %v2440
      %v2589 = vpack.c.b16 %v2445, %v2443
      %v2590 = vpack.c.b16 %v2446, %v2444
      %v2591 = vpack.c.b16 %v2449, %v2447
      %v2592 = vpack.c.b16 %v2450, %v2448
      %v2593 = vpack.c.b16 %v2453, %v2451
      %v2594 = vpack.c.b16 %v2454, %v2452
      %v2595 = vpack.c.b16 %v2457, %v2455
      %v2596 = vpack.c.b16 %v2458, %v2456
      %v2597 = vpack.c.b16 %v2461, %v2459
      %v2598 = vpack.c.b16 %v2462, %v2460
      %v2599 = vpack.c.b16 %v2465, %v2463
      %v2600 = vpack.c.b16 %v2466, %v2464
      %v2601 = vpack.c.b16 %v2469, %v2467
      %v2602 = vpack.c.b16 %v2470, %v2468
      %v2603 = vpack.c.b16 %v2473, %v2471
      %v2604 = vpack.c.b16 %v2474, %v2472
      %v2605 = vpack.c.b16 %v2477, %v2475
      %v2606 = vpack.c.b16 %v2478, %v2476
      %v2607 = vpack.c.b16 %v2481, %v2479
      %v2608 = vpack.c.b16 %v2482, %v2480
      %v2609 = vpack.c.b16 %v2485, %v2483
      %v2610 = vpack.c.b16 %v2486, %v2484
      %v2611 = vpack.c.b16 %v2489, %v2487
      %v2612 = vpack.c.b16 %v2490, %v2488
      %v2613 = vpack.c.b16 %v2493, %v2491
      %v2614 = vpack.c.b16 %v2494, %v2492
      %v2615 = vpack.c.b16 %v2497, %v2495
      %v2616 = vpack.c.b16 %v2498, %v2496
      %v2617 = vpack.c.b16 %v2501, %v2499
      %v2618 = vpack.c.b16 %v2502, %v2500
      %v2619 = vpack.c.b16 %v2505, %v2503
      %v2620 = vpack.c.b16 %v2506, %v2504
      %v2621 = vpack.c.b16 %v2509, %v2507
      %v2622 = vpack.c.b16 %v2510, %v2508
      %v2623 = vpack.c.b16 %v2513, %v2511
      %v2624 = vpack.c.b16 %v2514, %v2512
      %v2625 = vpack.c.b16 %v2517, %v2515
      %v2626 = vpack.c.b16 %v2518, %v2516
      %v2627 = vpack.c.b16 %v2521, %v2519
      %v2628 = vpack.c.b16 %v2522, %v2520
      %v2629 = vpack.c.b16 %v2525, %v2523
      %v2630 = vpack.c.b16 %v2526, %v2524
      %v2631 = vpack.c.b16 %v2529, %v2527
      %v2632 = vpack.c.b16 %v2530, %v2528
      %v2633 = vpack.c.b16 %v2533, %v2531
      %v2634 = vpack.c.b16 %v2534, %v2532
      %v2635 = vpack.c.b16 %v2537, %v2535
      %v2636 = vpack.c.b16 %v2538, %v2536
      %v2637 = vpack.c.b16 %v2541, %v2539
      %v2638 = vpack.c.b16 %v2542, %v2540
      %2735 = vmatprep.subr.bf16.mxu0 %v2558
      %2736 = vmatpush1.bf16.msra.mxu0 %v2557
      %2737 = vmatprep.subr.bf16.mxu0 %v2556
      %2738 = vmatpush1.bf16.msra.mxu0 %v2555
      %2739 = vmatprep.subr.bf16.mxu0 %v2554
      %2740 = vmatpush1.bf16.msra.mxu0 %v2553
      %2741 = vmatprep.subr.bf16.mxu0 %v2552
      %2742 = vmatpush1.bf16.msra.mxu0 %v2551
      %2743 = vmatprep.subr.bf16.mxu0 %v2550
      %2744 = vmatpush1.bf16.msra.mxu0 %v2549
      %2745 = vmatprep.subr.bf16.mxu0 %v2548
      %2746 = vmatpush1.bf16.msra.mxu0 %v2547
      %2747 = vmatprep.subr.bf16.mxu0 %v2546
      %2748 = vmatpush1.bf16.msra.mxu0 %v2545
      %2749 = vmatprep.subr.bf16.mxu0 %v2544
      %2750 = vmatpush1.bf16.msra.mxu0 %v2543
      %2751 = vmatprep.subr.bf16.mxu0 %v2574
      %2752 = vmatpush2.bf16.msra.mxu0 %v2573
      %2753 = vmatprep.subr.bf16.mxu0 %v2572
      %2754 = vmatpush2.bf16.msra.mxu0 %v2571
      %2755 = vmatprep.subr.bf16.mxu0 %v2570
      %2756 = vmatpush2.bf16.msra.mxu0 %v2569
      %2757 = vmatprep.subr.bf16.mxu0 %v2568
      %2758 = vmatpush2.bf16.msra.mxu0 %v2567
      %2759 = vmatprep.subr.bf16.mxu0 %v2566
      %2760 = vmatpush2.bf16.msra.mxu0 %v2565
      %2761 = vmatprep.subr.bf16.mxu0 %v2564
      %2762 = vmatpush2.bf16.msra.mxu0 %v2563
      %2763 = vmatprep.subr.bf16.mxu0 %v2562
      %2764 = vmatpush2.bf16.msra.mxu0 %v2561
      %2765 = vmatprep.subr.bf16.mxu0 %v2560
      %2766 = vmatpush2.bf16.msra.mxu0 %v2559
      %2767 = vmatprep.mubr.bf16.mxu0 %v281
      %2768 = vmatmul.mubr.bf16.gmra.mxu0 %v280
      %v2769 = vpop.f32.mrf.mxu0
      %v2770 = vadd.f32 0.0, %v2769
      %v2771 = vpop.f32.mrf.mxu0
      %v2772 = vadd.f32 0.0, %v2771
      %v2773 = vpop.f32.mrf.mxu0
      %v2774 = vadd.f32 0.0, %v2773
      %v2775 = vpop.f32.mrf.mxu0
      %v2776 = vadd.f32 0.0, %v2775
      %2777 = vmatprep.mubr.bf16.mxu0 %v287
      %2778 = vmatmul.mubr.bf16.gmra.mxu0 %v286
      %v2779 = vpop.f32.mrf.mxu0
      %v2780 = vadd.f32 0.0, %v2779
      %v2781 = vpop.f32.mrf.mxu0
      %v2782 = vadd.f32 0.0, %v2781
      %v2783 = vpop.f32.mrf.mxu0
      %v2784 = vadd.f32 0.0, %v2783
      %v2785 = vpop.f32.mrf.mxu0
      %v2786 = vadd.f32 0.0, %v2785
      %2787 = vmatprep.mubr.bf16.mxu0 %v293
      %2788 = vmatmul.mubr.bf16.gmra.mxu0 %v292
      %v2789 = vpop.f32.mrf.mxu0
      %v2790 = vadd.f32 0.0, %v2789
      %v2791 = vpop.f32.mrf.mxu0
      %v2792 = vadd.f32 0.0, %v2791
      %v2793 = vpop.f32.mrf.mxu0
      %v2794 = vadd.f32 0.0, %v2793
      %v2795 = vpop.f32.mrf.mxu0
      %v2796 = vadd.f32 0.0, %v2795
      %2797 = vmatprep.mubr.bf16.mxu0 %v299
      %2798 = vmatmul.mubr.bf16.gmra.mxu0 %v298
      %v2799 = vpop.f32.mrf.mxu0
      %v2800 = vadd.f32 0.0, %v2799
      %v2801 = vpop.f32.mrf.mxu0
      %v2802 = vadd.f32 0.0, %v2801
      %v2803 = vpop.f32.mrf.mxu0
      %v2804 = vadd.f32 0.0, %v2803
      %v2805 = vpop.f32.mrf.mxu0
      %v2806 = vadd.f32 0.0, %v2805
      %2807 = vmatprep.mubr.bf16.mxu0 %v305
      %2808 = vmatmul.mubr.bf16.gmra.mxu0 %v304
      %v2809 = vpop.f32.mrf.mxu0
      %v2810 = vadd.f32 0.0, %v2809
      %v2811 = vpop.f32.mrf.mxu0
      %v2812 = vadd.f32 0.0, %v2811
      %v2813 = vpop.f32.mrf.mxu0
      %v2814 = vadd.f32 0.0, %v2813
      %v2815 = vpop.f32.mrf.mxu0
      %v2816 = vadd.f32 0.0, %v2815
      %2817 = vmatprep.mubr.bf16.mxu0 %v311
      %2818 = vmatmul.mubr.bf16.gmra.mxu0 %v310
      %v2819 = vpop.f32.mrf.mxu0
      %v2820 = vadd.f32 0.0, %v2819
      %v2821 = vpop.f32.mrf.mxu0
      %v2822 = vadd.f32 0.0, %v2821
      %v2823 = vpop.f32.mrf.mxu0
      %v2824 = vadd.f32 0.0, %v2823
      %v2825 = vpop.f32.mrf.mxu0
      %v2826 = vadd.f32 0.0, %v2825
      %2827 = vdwg.mxu0
      %2828 = vmatprep.subr.bf16.mxu0 %v2590
      %2829 = vmatpush1.bf16.msra.mxu0 %v2589
      %2830 = vmatprep.subr.bf16.mxu0 %v2588
      %2831 = vmatpush1.bf16.msra.mxu0 %v2587
      %2832 = vmatprep.subr.bf16.mxu0 %v2586
      %2833 = vmatpush1.bf16.msra.mxu0 %v2585
      %2834 = vmatprep.subr.bf16.mxu0 %v2584
      %2835 = vmatpush1.bf16.msra.mxu0 %v2583
      %2836 = vmatprep.subr.bf16.mxu0 %v2582
      %2837 = vmatpush1.bf16.msra.mxu0 %v2581
      %2838 = vmatprep.subr.bf16.mxu0 %v2580
      %2839 = vmatpush1.bf16.msra.mxu0 %v2579
      %2840 = vmatprep.subr.bf16.mxu0 %v2578
      %2841 = vmatpush1.bf16.msra.mxu0 %v2577
      %2842 = vmatprep.subr.bf16.mxu0 %v2576
      %2843 = vmatpush1.bf16.msra.mxu0 %v2575
      %2844 = vmatprep.subr.bf16.mxu0 %v2606
      %2845 = vmatpush2.bf16.msra.mxu0 %v2605
      %2846 = vmatprep.subr.bf16.mxu0 %v2604
      %2847 = vmatpush2.bf16.msra.mxu0 %v2603
      %2848 = vmatprep.subr.bf16.mxu0 %v2602
      %2849 = vmatpush2.bf16.msra.mxu0 %v2601
      %2850 = vmatprep.subr.bf16.mxu0 %v2600
      %2851 = vmatpush2.bf16.msra.mxu0 %v2599
      %2852 = vmatprep.subr.bf16.mxu0 %v2598
      %2853 = vmatpush2.bf16.msra.mxu0 %v2597
      %2854 = vmatprep.subr.bf16.mxu0 %v2596
      %2855 = vmatpush2.bf16.msra.mxu0 %v2595
      %2856 = vmatprep.subr.bf16.mxu0 %v2594
      %2857 = vmatpush2.bf16.msra.mxu0 %v2593
      %2858 = vmatprep.subr.bf16.mxu0 %v2592
      %2859 = vmatpush2.bf16.msra.mxu0 %v2591
      %2860 = vmatprep.mubr.bf16.mxu0 %v283
      %2861 = vmatmul.mubr.bf16.gmra.mxu0 %v282
      %v2862 = vpop.f32.mrf.mxu0
      %v2863 = vadd.f32 %v2770, %v2862
      %v2864 = vpop.f32.mrf.mxu0
      %v2865 = vadd.f32 %v2772, %v2864
      %v2866 = vpop.f32.mrf.mxu0
      %v2867 = vadd.f32 %v2774, %v2866
      %v2868 = vpop.f32.mrf.mxu0
      %v2869 = vadd.f32 %v2776, %v2868
      %2870 = vmatprep.mubr.bf16.mxu0 %v289
      %2871 = vmatmul.mubr.bf16.gmra.mxu0 %v288
      %v2872 = vpop.f32.mrf.mxu0
      %v2873 = vadd.f32 %v2780, %v2872
      %v2874 = vpop.f32.mrf.mxu0
      %v2875 = vadd.f32 %v2782, %v2874
      %v2876 = vpop.f32.mrf.mxu0
      %v2877 = vadd.f32 %v2784, %v2876
      %v2878 = vpop.f32.mrf.mxu0
      %v2879 = vadd.f32 %v2786, %v2878
      %2880 = vmatprep.mubr.bf16.mxu0 %v295
      %2881 = vmatmul.mubr.bf16.gmra.mxu0 %v294
      %v2882 = vpop.f32.mrf.mxu0
      %v2883 = vadd.f32 %v2790, %v2882
      %v2884 = vpop.f32.mrf.mxu0
      %v2885 = vadd.f32 %v2792, %v2884
      %v2886 = vpop.f32.mrf.mxu0
      %v2887 = vadd.f32 %v2794, %v2886
      %v2888 = vpop.f32.mrf.mxu0
      %v2889 = vadd.f32 %v2796, %v2888
      %2890 = vmatprep.mubr.bf16.mxu0 %v301
      %2891 = vmatmul.mubr.bf16.gmra.mxu0 %v300
      %v2892 = vpop.f32.mrf.mxu0
      %v2893 = vadd.f32 %v2800, %v2892
      %v2894 = vpop.f32.mrf.mxu0
      %v2895 = vadd.f32 %v2802, %v2894
      %v2896 = vpop.f32.mrf.mxu0
      %v2897 = vadd.f32 %v2804, %v2896
      %v2898 = vpop.f32.mrf.mxu0
      %v2899 = vadd.f32 %v2806, %v2898
      %2900 = vmatprep.mubr.bf16.mxu0 %v307
      %2901 = vmatmul.mubr.bf16.gmra.mxu0 %v306
      %v2902 = vpop.f32.mrf.mxu0
      %v2903 = vadd.f32 %v2810, %v2902
      %v2904 = vpop.f32.mrf.mxu0
      %v2905 = vadd.f32 %v2812, %v2904
      %v2906 = vpop.f32.mrf.mxu0
      %v2907 = vadd.f32 %v2814, %v2906
      %v2908 = vpop.f32.mrf.mxu0
      %v2909 = vadd.f32 %v2816, %v2908
      %2910 = vmatprep.mubr.bf16.mxu0 %v313
      %2911 = vmatmul.mubr.bf16.gmra.mxu0 %v312
      %v2912 = vpop.f32.mrf.mxu0
      %v2913 = vadd.f32 %v2820, %v2912
      %v2914 = vpop.f32.mrf.mxu0
      %v2915 = vadd.f32 %v2822, %v2914
      %v2916 = vpop.f32.mrf.mxu0
      %v2917 = vadd.f32 %v2824, %v2916
      %v2918 = vpop.f32.mrf.mxu0
      %v2919 = vadd.f32 %v2826, %v2918
      %2920 = vdwg.mxu0
      %2921 = vmatprep.subr.bf16.mxu0 %v2622
      %2922 = vmatpush1.bf16.msra.mxu0 %v2621
      %2923 = vmatprep.subr.bf16.mxu0 %v2620
      %2924 = vmatpush1.bf16.msra.mxu0 %v2619
      %2925 = vmatprep.subr.bf16.mxu0 %v2618
      %2926 = vmatpush1.bf16.msra.mxu0 %v2617
      %2927 = vmatprep.subr.bf16.mxu0 %v2616
      %2928 = vmatpush1.bf16.msra.mxu0 %v2615
      %2929 = vmatprep.subr.bf16.mxu0 %v2614
      %2930 = vmatpush1.bf16.msra.mxu0 %v2613
      %2931 = vmatprep.subr.bf16.mxu0 %v2612
      %2932 = vmatpush1.bf16.msra.mxu0 %v2611
      %2933 = vmatprep.subr.bf16.mxu0 %v2610
      %2934 = vmatpush1.bf16.msra.mxu0 %v2609
      %2935 = vmatprep.subr.bf16.mxu0 %v2608
      %2936 = vmatpush1.bf16.msra.mxu0 %v2607
      %2937 = vmatprep.subr.bf16.mxu0 %v2638
      %2938 = vmatpush2.bf16.msra.mxu0 %v2637
      %2939 = vmatprep.subr.bf16.mxu0 %v2636
      %2940 = vmatpush2.bf16.msra.mxu0 %v2635
      %2941 = vmatprep.subr.bf16.mxu0 %v2634
      %2942 = vmatpush2.bf16.msra.mxu0 %v2633
      %2943 = vmatprep.subr.bf16.mxu0 %v2632
      %2944 = vmatpush2.bf16.msra.mxu0 %v2631
      %2945 = vmatprep.subr.bf16.mxu0 %v2630
      %2946 = vmatpush2.bf16.msra.mxu0 %v2629
      %2947 = vmatprep.subr.bf16.mxu0 %v2628
      %2948 = vmatpush2.bf16.msra.mxu0 %v2627
      %2949 = vmatprep.subr.bf16.mxu0 %v2626
      %2950 = vmatpush2.bf16.msra.mxu0 %v2625
      %2951 = vmatprep.subr.bf16.mxu0 %v2624
      %2952 = vmatpush2.bf16.msra.mxu0 %v2623
      %2953 = vmatprep.mubr.bf16.mxu0 %v285
      %2954 = vmatmul.mubr.bf16.gmra.mxu0 %v284
      %v2955 = vpop.f32.mrf.mxu0
      %v2956 = vadd.f32 %v2863, %v2955
      %v2957 = vpop.f32.mrf.mxu0
      %v2958 = vadd.f32 %v2865, %v2957
      %v2959 = vpop.f32.mrf.mxu0
      %v2960 = vadd.f32 %v2867, %v2959
      %v2961 = vpop.f32.mrf.mxu0
      %v2962 = vadd.f32 %v2869, %v2961
      %2963 = vmatprep.mubr.bf16.mxu0 %v291
      %2964 = vmatmul.mubr.bf16.gmra.mxu0 %v290
      %v2965 = vpop.f32.mrf.mxu0
      %v2966 = vadd.f32 %v2873, %v2965
      %v2967 = vpop.f32.mrf.mxu0
      %v2968 = vadd.f32 %v2875, %v2967
      %v2969 = vpop.f32.mrf.mxu0
      %v2970 = vadd.f32 %v2877, %v2969
      %v2971 = vpop.f32.mrf.mxu0
      %v2972 = vadd.f32 %v2879, %v2971
      %2973 = vmatprep.mubr.bf16.mxu0 %v297
      %2974 = vmatmul.mubr.bf16.gmra.mxu0 %v296
      %v2975 = vpop.f32.mrf.mxu0
      %v2976 = vadd.f32 %v2883, %v2975
      %v2977 = vpop.f32.mrf.mxu0
      %v2978 = vadd.f32 %v2885, %v2977
      %v2979 = vpop.f32.mrf.mxu0
      %v2980 = vadd.f32 %v2887, %v2979
      %v2981 = vpop.f32.mrf.mxu0
      %v2982 = vadd.f32 %v2889, %v2981
      %2983 = vmatprep.mubr.bf16.mxu0 %v303
      %2984 = vmatmul.mubr.bf16.gmra.mxu0 %v302
      %v2985 = vpop.f32.mrf.mxu0
      %v2986 = vadd.f32 %v2893, %v2985
      %v2987 = vpop.f32.mrf.mxu0
      %v2988 = vadd.f32 %v2895, %v2987
      %v2989 = vpop.f32.mrf.mxu0
      %v2990 = vadd.f32 %v2897, %v2989
      %v2991 = vpop.f32.mrf.mxu0
      %v2992 = vadd.f32 %v2899, %v2991
      %2993 = vmatprep.mubr.bf16.mxu0 %v309
      %2994 = vmatmul.mubr.bf16.gmra.mxu0 %v308
      %v2995 = vpop.f32.mrf.mxu0
      %v2996 = vadd.f32 %v2903, %v2995
      %v2997 = vpop.f32.mrf.mxu0
      %v2998 = vadd.f32 %v2905, %v2997
      %v2999 = vpop.f32.mrf.mxu0
      %v3000 = vadd.f32 %v2907, %v2999
      %v3001 = vpop.f32.mrf.mxu0
      %v3002 = vadd.f32 %v2909, %v3001
      %3003 = vmatprep.mubr.bf16.mxu0 %v315
      %3004 = vmatmul.mubr.bf16.gmra.mxu0 %v314
      %v3005 = vpop.f32.mrf.mxu0
      %v3006 = vadd.f32 %v2913, %v3005
      %v3007 = vpop.f32.mrf.mxu0
      %v3008 = vadd.f32 %v2915, %v3007
      %v3009 = vpop.f32.mrf.mxu0
      %v3010 = vadd.f32 %v2917, %v3009
      %v3011 = vpop.f32.mrf.mxu0
      %v3012 = vadd.f32 %v2919, %v3011
      %3013 = vdwg.mxu0
      %vm3038 = vcmask 1045504
      %v3039 = vrot.slane %v2956, 2
      %v3040 = vrot.slane %v2960, 2
      %v3041 = vsel %vm3038, %v3039, %v3040
      %v3042 = vrot.slane %v2958, 2
      %v3043 = vrot.slane %v2962, 2
      %v3044 = vsel %vm3038, %v3042, %v3043
      %v3045 = vrot.slane %v2966, 2
      %v3046 = vsel %vm3038, %v3040, %v3045
      %v3047 = vrot.slane %v2968, 2
      %v3048 = vsel %vm3038, %v3043, %v3047
      %v3049 = vrot.slane %v2970, 2
      %v3050 = vsel %vm3038, %v3045, %v3049
      %v3051 = vrot.slane %v2972, 2
      %v3052 = vsel %vm3038, %v3047, %v3051
      %v3053 = vrot.slane %v2976, 2
      %v3054 = vsel %vm3038, %v3049, %v3053
      %v3055 = vrot.slane %v2978, 2
      %v3056 = vsel %vm3038, %v3051, %v3055
      %v3057 = vrot.slane %v2980, 2
      %v3058 = vsel %vm3038, %v3053, %v3057
      %v3059 = vrot.slane %v2982, 2
      %v3060 = vsel %vm3038, %v3055, %v3059
      %v3061 = vrot.slane %v2986, 2
      %v3062 = vsel %vm3038, %v3057, %v3061
      %v3063 = vrot.slane %v2988, 2
      %v3064 = vsel %vm3038, %v3059, %v3063
      %v3065 = vrot.slane %v2990, 2
      %v3066 = vsel %vm3038, %v3061, %v3065
      %v3067 = vrot.slane %v2992, 2
      %v3068 = vsel %vm3038, %v3063, %v3067
      %v3069 = vrot.slane %v2996, 2
      %v3070 = vsel %vm3038, %v3065, %v3069
      %v3071 = vrot.slane %v2998, 2
      %v3072 = vsel %vm3038, %v3067, %v3071
      %v3073 = vrot.slane %v3000, 2
      %v3074 = vsel %vm3038, %v3069, %v3073
      %v3075 = vrot.slane %v3002, 2
      %v3076 = vsel %vm3038, %v3071, %v3075
      %v3077 = vrot.slane %v3006, 2
      %v3078 = vsel %vm3038, %v3073, %v3077
      %v3079 = vrot.slane %v3008, 2
      %v3080 = vsel %vm3038, %v3075, %v3079
      %v3081 = vrot.slane %v3010, 2
      %v3082 = vsel %vm3038, %v3077, %v3081
      %v3083 = vrot.slane %v3012, 2
      %v3084 = vsel %vm3038, %v3079, %v3083
      %v3107 = vadd.f32 %v2136, %v3041
      %v3108 = vadd.f32 %v2137, %v3044
      %v3109 = vadd.f32 %v2138, %v3046
      %v3110 = vadd.f32 %v2139, %v3048
      %v3111 = vadd.f32 %v2140, %v3050
      %v3112 = vadd.f32 %v2141, %v3052
      %v3113 = vadd.f32 %v2142, %v3054
      %v3114 = vadd.f32 %v2143, %v3056
      %v3115 = vadd.f32 %v2144, %v3058
      %v3116 = vadd.f32 %v2145, %v3060
      %v3117 = vadd.f32 %v2146, %v3062
      %v3118 = vadd.f32 %v2147, %v3064
      %v3119 = vadd.f32 %v2148, %v3066
      %v3120 = vadd.f32 %v2149, %v3068
      %v3121 = vadd.f32 %v2150, %v3070
      %v3122 = vadd.f32 %v2151, %v3072
      %v3123 = vadd.f32 %v2152, %v3074
      %v3124 = vadd.f32 %v2153, %v3076
      %v3125 = vadd.f32 %v2154, %v3078
      %v3126 = vadd.f32 %v2155, %v3080
      %v3127 = vadd.f32 %v2156, %v3082
      %v3128 = vadd.f32 %v2157, %v3084
      %s3129 = scalar_lea.vmem %s193, 576
      %v3130 = vld [vmem:[%s3129] sm:$0xff]
      %v3131 = vld [vmem:[%s3129 + $0x8] sm:$0xff]
      %v3132 = vld [vmem:[%s3129 + $0x10] sm:$0xff]
      %v3133 = vld [vmem:[%s3129 + $0x18] sm:$0xff]
      %v3134 = vld [vmem:[%s3129 + $0x20] sm:$0xff]
      %v3135 = vld [vmem:[%s3129 + $0x28] sm:$0xff]
      %v3136 = vld [vmem:[%s3129 + $0x30] sm:$0xff]
      %v3137 = vld [vmem:[%s3129 + $0x38] sm:$0xff]
      %v3138 = vld [vmem:[%s3129 + $0x40] sm:$0xff]
      %v3139 = vld [vmem:[%s3129 + $0x48] sm:$0xff]
      %v3140 = vld [vmem:[%s3129 + $0x50] sm:$0xff]
      %v3141 = vld [vmem:[%s3129 + $0x58] sm:$0xff]
      %v3142 = vld [vmem:[%s3129 + $0x60] sm:$0xff]
      %v3143 = vld [vmem:[%s3129 + $0x68] sm:$0xff]
      %v3144 = vld [vmem:[%s3129 + $0x70] sm:$0xff]
      %v3145 = vld [vmem:[%s3129 + $0x78] sm:$0xff]
      %v3146 = vld [vmem:[%s3129 + $0x80] sm:$0xff]
      %v3147 = vld [vmem:[%s3129 + $0x88] sm:$0xff]
      %v3148 = vld [vmem:[%s3129 + $0x90] sm:$0xff]
      %v3149 = vld [vmem:[%s3129 + $0x98] sm:$0xff]
      %v3150 = vld [vmem:[%s3129 + $0xa0] sm:$0xff]
      %v3151 = vld [vmem:[%s3129 + $0xa8] sm:$0xff]
      %v3152 = vld [vmem:[%s3129 + $0xb0] sm:$0xff]
      %v3153 = vld [vmem:[%s3129 + $0xb8] sm:$0xff]
      %v3154 = vld [vmem:[%s3129 + $0xc0] sm:$0xff]
      %v3155 = vld [vmem:[%s3129 + $0xc8] sm:$0xff]
      %v3156 = vld [vmem:[%s3129 + $0xd0] sm:$0xff]
      %v3157 = vld [vmem:[%s3129 + $0xd8] sm:$0xff]
      %v3158 = vld [vmem:[%s3129 + $0xe0] sm:$0xff]
      %v3159 = vld [vmem:[%s3129 + $0xe8] sm:$0xff]
      %v3160 = vld [vmem:[%s3129 + $0xf0] sm:$0xff]
      %v3161 = vld [vmem:[%s3129 + $0xf8] sm:$0xff]
      %v3162 = vld [vmem:[%s3129 + $0x100] sm:$0xff]
      %v3163 = vld [vmem:[%s3129 + $0x108] sm:$0xff]
      %v3164 = vld [vmem:[%s3129 + $0x110] sm:$0xff]
      %v3165 = vld [vmem:[%s3129 + $0x118] sm:$0xff]
      %v3166 = vld [vmem:[%s3129 + $0x120] sm:$0xff]
      %v3167 = vld [vmem:[%s3129 + $0x128] sm:$0xff]
      %v3168 = vld [vmem:[%s3129 + $0x130] sm:$0xff]
      %v3169 = vld [vmem:[%s3129 + $0x138] sm:$0xff]
      %v3170 = vld [vmem:[%s3129 + $0x140] sm:$0xff]
      %v3171 = vld [vmem:[%s3129 + $0x148] sm:$0xff]
      %v3172 = vld [vmem:[%s3129 + $0x150] sm:$0xff]
      %v3173 = vld [vmem:[%s3129 + $0x158] sm:$0xff]
      %v3174 = vld [vmem:[%s3129 + $0x160] sm:$0xff]
      %v3175 = vld [vmem:[%s3129 + $0x168] sm:$0xff]
      %v3176 = vld [vmem:[%s3129 + $0x170] sm:$0xff]
      %v3177 = vld [vmem:[%s3129 + $0x178] sm:$0xff]
      %v3178 = vld [vmem:[%s3129 + $0x180] sm:$0xff]
      %v3179 = vld [vmem:[%s3129 + $0x188] sm:$0xff]
      %v3180 = vld [vmem:[%s3129 + $0x190] sm:$0xff]
      %v3181 = vld [vmem:[%s3129 + $0x198] sm:$0xff]
      %v3182 = vld [vmem:[%s3129 + $0x1a0] sm:$0xff]
      %v3183 = vld [vmem:[%s3129 + $0x1a8] sm:$0xff]
      %v3184 = vld [vmem:[%s3129 + $0x1b0] sm:$0xff]
      %v3185 = vld [vmem:[%s3129 + $0x1b8] sm:$0xff]
      %v3186 = vld [vmem:[%s3129 + $0x1c0] sm:$0xff]
      %v3187 = vld [vmem:[%s3129 + $0x1c8] sm:$0xff]
      %v3188 = vld [vmem:[%s3129 + $0x1d0] sm:$0xff]
      %v3189 = vld [vmem:[%s3129 + $0x1d8] sm:$0xff]
      %v3190 = vld [vmem:[%s3129 + $0x1e0] sm:$0xff]
      %v3191 = vld [vmem:[%s3129 + $0x1e8] sm:$0xff]
      %v3192 = vld [vmem:[%s3129 + $0x1f0] sm:$0xff]
      %v3193 = vld [vmem:[%s3129 + $0x1f8] sm:$0xff]
      %v3194 = vld [vmem:[%s3129 + $0x200] sm:$0xff]
      %v3195 = vld [vmem:[%s3129 + $0x208] sm:$0xff]
      %v3196 = vld [vmem:[%s3129 + $0x210] sm:$0x3]
      %v3197 = vld [vmem:[%s3129 + $0x218] sm:$0x3]
      %v3198 = vld [vmem:[%s3129 + $0x220] sm:$0x3]
      %v3199 = vld [vmem:[%s3129 + $0x228] sm:$0x3]
      %v3200 = vld [vmem:[%s3129 + $0x230] sm:$0x3]
      %v3201 = vld [vmem:[%s3129 + $0x238] sm:$0x3]
      %v3202 = vpack.c.bf16 %v3136, %v3130
      %v3203 = vpack.c.bf16 %v3137, %v3131
      %v3204 = vpack.c.bf16 %v3138, %v3132
      %v3205 = vpack.c.bf16 %v3139, %v3133
      %v3206 = vpack.c.bf16 %v3140, %v3134
      %v3207 = vpack.c.bf16 %v3141, %v3135
      %v3208 = vpack.c.bf16 %v3148, %v3142
      %v3209 = vpack.c.bf16 %v3149, %v3143
      %v3210 = vpack.c.bf16 %v3150, %v3144
      %v3211 = vpack.c.bf16 %v3151, %v3145
      %v3212 = vpack.c.bf16 %v3152, %v3146
      %v3213 = vpack.c.bf16 %v3153, %v3147
      %v3214 = vpack.c.bf16 %v3160, %v3154
      %v3215 = vpack.c.bf16 %v3161, %v3155
      %v3216 = vpack.c.bf16 %v3162, %v3156
      %v3217 = vpack.c.bf16 %v3163, %v3157
      %v3218 = vpack.c.bf16 %v3164, %v3158
      %v3219 = vpack.c.bf16 %v3165, %v3159
      %v3220 = vpack.c.bf16 %v3172, %v3166
      %v3221 = vpack.c.bf16 %v3173, %v3167
      %v3222 = vpack.c.bf16 %v3174, %v3168
      %v3223 = vpack.c.bf16 %v3175, %v3169
      %v3224 = vpack.c.bf16 %v3176, %v3170
      %v3225 = vpack.c.bf16 %v3177, %v3171
      %v3226 = vpack.c.bf16 %v3184, %v3178
      %v3227 = vpack.c.bf16 %v3185, %v3179
      %v3228 = vpack.c.bf16 %v3186, %v3180
      %v3229 = vpack.c.bf16 %v3187, %v3181
      %v3230 = vpack.c.bf16 %v3188, %v3182
      %v3231 = vpack.c.bf16 %v3189, %v3183
      %v3232 = vpack.c.bf16 %v3196, %v3190
      %v3233 = vpack.c.bf16 %v3197, %v3191
      %v3234 = vpack.c.bf16 %v3198, %v3192
      %v3235 = vpack.c.bf16 %v3199, %v3193
      %v3236 = vpack.c.bf16 %v3200, %v3194
      %v3237 = vpack.c.bf16 %v3201, %v3195
      %s3238 = scalar_lea.vmem %s198, 768
      %v3239 = vld [vmem:[%s3238] sm:$0xff]
      %v3240 = vld [vmem:[%s3238 + $0x8] sm:$0xff]
      %v3241 = vld [vmem:[%s3238 + $0x10] sm:$0xff]
      %v3242 = vld [vmem:[%s3238 + $0x18] sm:$0xff]
      %v3243 = vld [vmem:[%s3238 + $0x20] sm:$0xff]
      %v3244 = vld [vmem:[%s3238 + $0x28] sm:$0xff]
      %v3245 = vld [vmem:[%s3238 + $0x30] sm:$0xff]
      %v3246 = vld [vmem:[%s3238 + $0x38] sm:$0xff]
      %v3247 = vld [vmem:[%s3238 + $0x40] sm:$0xff]
      %v3248 = vld [vmem:[%s3238 + $0x48] sm:$0xff]
      %v3249 = vld [vmem:[%s3238 + $0x50] sm:$0xff]
      %v3250 = vld [vmem:[%s3238 + $0x58] sm:$0xff]
      %v3251 = vld [vmem:[%s3238 + $0x60] sm:$0xff]
      %v3252 = vld [vmem:[%s3238 + $0x68] sm:$0xff]
      %v3253 = vld [vmem:[%s3238 + $0x70] sm:$0xff]
      %v3254 = vld [vmem:[%s3238 + $0x78] sm:$0xff]
      %v3255 = vld [vmem:[%s3238 + $0x80] sm:$0xff]
      %v3256 = vld [vmem:[%s3238 + $0x88] sm:$0xff]
      %v3257 = vld [vmem:[%s3238 + $0x90] sm:$0xff]
      %v3258 = vld [vmem:[%s3238 + $0x98] sm:$0xff]
      %v3259 = vld [vmem:[%s3238 + $0xa0] sm:$0xff]
      %v3260 = vld [vmem:[%s3238 + $0xa8] sm:$0xff]
      %v3261 = vld [vmem:[%s3238 + $0xb0] sm:$0xff]
      %v3262 = vld [vmem:[%s3238 + $0xb8] sm:$0xff]
      %v3263 = vld [vmem:[%s3238 + $0xc0] sm:$0xff]
      %v3264 = vld [vmem:[%s3238 + $0xc8] sm:$0xff]
      %v3265 = vld [vmem:[%s3238 + $0xd0] sm:$0xff]
      %v3266 = vld [vmem:[%s3238 + $0xd8] sm:$0xff]
      %v3267 = vld [vmem:[%s3238 + $0xe0] sm:$0xff]
      %v3268 = vld [vmem:[%s3238 + $0xe8] sm:$0xff]
      %v3269 = vld [vmem:[%s3238 + $0xf0] sm:$0xff]
      %v3270 = vld [vmem:[%s3238 + $0xf8] sm:$0xff]
      %v3271 = vld [vmem:[%s3238 + $0x100] sm:$0xff]
      %v3272 = vld [vmem:[%s3238 + $0x108] sm:$0xff]
      %v3273 = vld [vmem:[%s3238 + $0x110] sm:$0xff]
      %v3274 = vld [vmem:[%s3238 + $0x118] sm:$0xff]
      %v3275 = vld [vmem:[%s3238 + $0x120] sm:$0xff]
      %v3276 = vld [vmem:[%s3238 + $0x128] sm:$0xff]
      %v3277 = vld [vmem:[%s3238 + $0x130] sm:$0xff]
      %v3278 = vld [vmem:[%s3238 + $0x138] sm:$0xff]
      %v3279 = vld [vmem:[%s3238 + $0x140] sm:$0xff]
      %v3280 = vld [vmem:[%s3238 + $0x148] sm:$0xff]
      %v3281 = vld [vmem:[%s3238 + $0x150] sm:$0xff]
      %v3282 = vld [vmem:[%s3238 + $0x158] sm:$0xff]
      %v3283 = vld [vmem:[%s3238 + $0x160] sm:$0xff]
      %v3284 = vld [vmem:[%s3238 + $0x168] sm:$0xff]
      %v3285 = vld [vmem:[%s3238 + $0x170] sm:$0xff]
      %v3286 = vld [vmem:[%s3238 + $0x178] sm:$0xff]
      %v3287 = vld [vmem:[%s3238 + $0x180] sm:$0xff]
      %v3288 = vld [vmem:[%s3238 + $0x188] sm:$0xff]
      %v3289 = vld [vmem:[%s3238 + $0x190] sm:$0xff]
      %v3290 = vld [vmem:[%s3238 + $0x198] sm:$0xff]
      %v3291 = vld [vmem:[%s3238 + $0x1a0] sm:$0xff]
      %v3292 = vld [vmem:[%s3238 + $0x1a8] sm:$0xff]
      %v3293 = vld [vmem:[%s3238 + $0x1b0] sm:$0xff]
      %v3294 = vld [vmem:[%s3238 + $0x1b8] sm:$0xff]
      %v3295 = vld [vmem:[%s3238 + $0x1c0] sm:$0xff]
      %v3296 = vld [vmem:[%s3238 + $0x1c8] sm:$0xff]
      %v3297 = vld [vmem:[%s3238 + $0x1d0] sm:$0xff]
      %v3298 = vld [vmem:[%s3238 + $0x1d8] sm:$0xff]
      %v3299 = vld [vmem:[%s3238 + $0x1e0] sm:$0xff]
      %v3300 = vld [vmem:[%s3238 + $0x1e8] sm:$0xff]
      %v3301 = vld [vmem:[%s3238 + $0x1f0] sm:$0xff]
      %v3302 = vld [vmem:[%s3238 + $0x1f8] sm:$0xff]
      %v3303 = vld [vmem:[%s3238 + $0x200] sm:$0xff]
      %v3304 = vld [vmem:[%s3238 + $0x208] sm:$0xff]
      %v3305 = vld [vmem:[%s3238 + $0x210] sm:$0xff]
      %v3306 = vld [vmem:[%s3238 + $0x218] sm:$0xff]
      %v3307 = vld [vmem:[%s3238 + $0x220] sm:$0xff]
      %v3308 = vld [vmem:[%s3238 + $0x228] sm:$0xff]
      %v3309 = vld [vmem:[%s3238 + $0x230] sm:$0xff]
      %v3310 = vld [vmem:[%s3238 + $0x238] sm:$0xff]
      %v3311 = vld [vmem:[%s3238 + $0x240] sm:$0xff]
      %v3312 = vld [vmem:[%s3238 + $0x248] sm:$0xff]
      %v3313 = vld [vmem:[%s3238 + $0x250] sm:$0xff]
      %v3314 = vld [vmem:[%s3238 + $0x258] sm:$0xff]
      %v3315 = vld [vmem:[%s3238 + $0x260] sm:$0xff]
      %v3316 = vld [vmem:[%s3238 + $0x268] sm:$0xff]
      %v3317 = vld [vmem:[%s3238 + $0x270] sm:$0xff]
      %v3318 = vld [vmem:[%s3238 + $0x278] sm:$0xff]
      %v3319 = vld [vmem:[%s3238 + $0x280] sm:$0xff]
      %v3320 = vld [vmem:[%s3238 + $0x288] sm:$0xff]
      %v3321 = vld [vmem:[%s3238 + $0x290] sm:$0xff]
      %v3322 = vld [vmem:[%s3238 + $0x298] sm:$0xff]
      %v3323 = vld [vmem:[%s3238 + $0x2a0] sm:$0xff]
      %v3324 = vld [vmem:[%s3238 + $0x2a8] sm:$0xff]
      %v3325 = vld [vmem:[%s3238 + $0x2b0] sm:$0xff]
      %v3326 = vld [vmem:[%s3238 + $0x2b8] sm:$0xff]
      %v3327 = vld [vmem:[%s3238 + $0x2c0] sm:$0xff]
      %v3328 = vld [vmem:[%s3238 + $0x2c8] sm:$0xff]
      %v3329 = vld [vmem:[%s3238 + $0x2d0] sm:$0xff]
      %v3330 = vld [vmem:[%s3238 + $0x2d8] sm:$0xff]
      %v3331 = vld [vmem:[%s3238 + $0x2e0] sm:$0xff]
      %v3332 = vld [vmem:[%s3238 + $0x2e8] sm:$0xff]
      %v3333 = vld [vmem:[%s3238 + $0x2f0] sm:$0xff]
      %v3334 = vld [vmem:[%s3238 + $0x2f8] sm:$0xff]
      %v3431 = vunpack.c.l.b16 %v3239
      %v3432 = vunpack.c.h.b16 %v3239
      %v3433 = vunpack.c.l.b16 %v3240
      %v3434 = vunpack.c.h.b16 %v3240
      %v3435 = vunpack.c.l.b16 %v3241
      %v3436 = vunpack.c.h.b16 %v3241
      %v3437 = vunpack.c.l.b16 %v3242
      %v3438 = vunpack.c.h.b16 %v3242
      %v3439 = vunpack.c.l.b16 %v3243
      %v3440 = vunpack.c.h.b16 %v3243
      %v3441 = vunpack.c.l.b16 %v3244
      %v3442 = vunpack.c.h.b16 %v3244
      %v3443 = vunpack.c.l.b16 %v3245
      %v3444 = vunpack.c.h.b16 %v3245
      %v3445 = vunpack.c.l.b16 %v3246
      %v3446 = vunpack.c.h.b16 %v3246
      %v3447 = vunpack.c.l.b16 %v3247
      %v3448 = vunpack.c.h.b16 %v3247
      %v3449 = vunpack.c.l.b16 %v3248
      %v3450 = vunpack.c.h.b16 %v3248
      %v3451 = vunpack.c.l.b16 %v3249
      %v3452 = vunpack.c.h.b16 %v3249
      %v3453 = vunpack.c.l.b16 %v3250
      %v3454 = vunpack.c.h.b16 %v3250
      %v3455 = vunpack.c.l.b16 %v3251
      %v3456 = vunpack.c.h.b16 %v3251
      %v3457 = vunpack.c.l.b16 %v3252
      %v3458 = vunpack.c.h.b16 %v3252
      %v3459 = vunpack.c.l.b16 %v3253
      %v3460 = vunpack.c.h.b16 %v3253
      %v3461 = vunpack.c.l.b16 %v3254
      %v3462 = vunpack.c.h.b16 %v3254
      %v3463 = vunpack.c.l.b16 %v3255
      %v3464 = vunpack.c.h.b16 %v3255
      %v3465 = vunpack.c.l.b16 %v3256
      %v3466 = vunpack.c.h.b16 %v3256
      %v3467 = vunpack.c.l.b16 %v3257
      %v3468 = vunpack.c.h.b16 %v3257
      %v3469 = vunpack.c.l.b16 %v3258
      %v3470 = vunpack.c.h.b16 %v3258
      %v3471 = vunpack.c.l.b16 %v3259
      %v3472 = vunpack.c.h.b16 %v3259
      %v3473 = vunpack.c.l.b16 %v3260
      %v3474 = vunpack.c.h.b16 %v3260
      %v3475 = vunpack.c.l.b16 %v3261
      %v3476 = vunpack.c.h.b16 %v3261
      %v3477 = vunpack.c.l.b16 %v3262
      %v3478 = vunpack.c.h.b16 %v3262
      %v3479 = vunpack.c.l.b16 %v3263
      %v3480 = vunpack.c.h.b16 %v3263
      %v3481 = vunpack.c.l.b16 %v3264
      %v3482 = vunpack.c.h.b16 %v3264
      %v3483 = vunpack.c.l.b16 %v3265
      %v3484 = vunpack.c.h.b16 %v3265
      %v3485 = vunpack.c.l.b16 %v3266
      %v3486 = vunpack.c.h.b16 %v3266
      %v3487 = vunpack.c.l.b16 %v3267
      %v3488 = vunpack.c.h.b16 %v3267
      %v3489 = vunpack.c.l.b16 %v3268
      %v3490 = vunpack.c.h.b16 %v3268
      %v3491 = vunpack.c.l.b16 %v3269
      %v3492 = vunpack.c.h.b16 %v3269
      %v3493 = vunpack.c.l.b16 %v3270
      %v3494 = vunpack.c.h.b16 %v3270
      %v3495 = vunpack.c.l.b16 %v3271
      %v3496 = vunpack.c.h.b16 %v3271
      %v3497 = vunpack.c.l.b16 %v3272
      %v3498 = vunpack.c.h.b16 %v3272
      %v3499 = vunpack.c.l.b16 %v3273
      %v3500 = vunpack.c.h.b16 %v3273
      %v3501 = vunpack.c.l.b16 %v3274
      %v3502 = vunpack.c.h.b16 %v3274
      %v3503 = vunpack.c.l.b16 %v3275
      %v3504 = vunpack.c.h.b16 %v3275
      %v3505 = vunpack.c.l.b16 %v3276
      %v3506 = vunpack.c.h.b16 %v3276
      %v3507 = vunpack.c.l.b16 %v3277
      %v3508 = vunpack.c.h.b16 %v3277
      %v3509 = vunpack.c.l.b16 %v3278
      %v3510 = vunpack.c.h.b16 %v3278
      %v3511 = vunpack.c.l.b16 %v3279
      %v3512 = vunpack.c.h.b16 %v3279
      %v3513 = vunpack.c.l.b16 %v3280
      %v3514 = vunpack.c.h.b16 %v3280
      %v3515 = vunpack.c.l.b16 %v3281
      %v3516 = vunpack.c.h.b16 %v3281
      %v3517 = vunpack.c.l.b16 %v3282
      %v3518 = vunpack.c.h.b16 %v3282
      %v3519 = vunpack.c.l.b16 %v3283
      %v3520 = vunpack.c.h.b16 %v3283
      %v3521 = vunpack.c.l.b16 %v3284
      %v3522 = vunpack.c.h.b16 %v3284
      %v3523 = vunpack.c.l.b16 %v3285
      %v3524 = vunpack.c.h.b16 %v3285
      %v3525 = vunpack.c.l.b16 %v3286
      %v3526 = vunpack.c.h.b16 %v3286
      %v3527 = vunpack.c.l.b16 %v3287
      %v3528 = vunpack.c.h.b16 %v3287
      %v3529 = vunpack.c.l.b16 %v3288
      %v3530 = vunpack.c.h.b16 %v3288
      %v3531 = vunpack.c.l.b16 %v3289
      %v3532 = vunpack.c.h.b16 %v3289
      %v3533 = vunpack.c.l.b16 %v3290
      %v3534 = vunpack.c.h.b16 %v3290
      %v3535 = vunpack.c.l.b16 %v3291
      %v3536 = vunpack.c.h.b16 %v3291
      %v3537 = vunpack.c.l.b16 %v3292
      %v3538 = vunpack.c.h.b16 %v3292
      %v3539 = vunpack.c.l.b16 %v3293
      %v3540 = vunpack.c.h.b16 %v3293
      %v3541 = vunpack.c.l.b16 %v3294
      %v3542 = vunpack.c.h.b16 %v3294
      %v3543 = vunpack.c.l.b16 %v3295
      %v3544 = vunpack.c.h.b16 %v3295
      %v3545 = vunpack.c.l.b16 %v3296
      %v3546 = vunpack.c.h.b16 %v3296
      %v3547 = vunpack.c.l.b16 %v3297
      %v3548 = vunpack.c.h.b16 %v3297
      %v3549 = vunpack.c.l.b16 %v3298
      %v3550 = vunpack.c.h.b16 %v3298
      %v3551 = vunpack.c.l.b16 %v3299
      %v3552 = vunpack.c.h.b16 %v3299
      %v3553 = vunpack.c.l.b16 %v3300
      %v3554 = vunpack.c.h.b16 %v3300
      %v3555 = vunpack.c.l.b16 %v3301
      %v3556 = vunpack.c.h.b16 %v3301
      %v3557 = vunpack.c.l.b16 %v3302
      %v3558 = vunpack.c.h.b16 %v3302
      %v3559 = vunpack.c.l.b16 %v3303
      %v3560 = vunpack.c.h.b16 %v3303
      %v3561 = vunpack.c.l.b16 %v3304
      %v3562 = vunpack.c.h.b16 %v3304
      %v3563 = vunpack.c.l.b16 %v3305
      %v3564 = vunpack.c.h.b16 %v3305
      %v3565 = vunpack.c.l.b16 %v3306
      %v3566 = vunpack.c.h.b16 %v3306
      %v3567 = vunpack.c.l.b16 %v3307
      %v3568 = vunpack.c.h.b16 %v3307
      %v3569 = vunpack.c.l.b16 %v3308
      %v3570 = vunpack.c.h.b16 %v3308
      %v3571 = vunpack.c.l.b16 %v3309
      %v3572 = vunpack.c.h.b16 %v3309
      %v3573 = vunpack.c.l.b16 %v3310
      %v3574 = vunpack.c.h.b16 %v3310
      %v3575 = vunpack.c.l.b16 %v3311
      %v3576 = vunpack.c.h.b16 %v3311
      %v3577 = vunpack.c.l.b16 %v3312
      %v3578 = vunpack.c.h.b16 %v3312
      %v3579 = vunpack.c.l.b16 %v3313
      %v3580 = vunpack.c.h.b16 %v3313
      %v3581 = vunpack.c.l.b16 %v3314
      %v3582 = vunpack.c.h.b16 %v3314
      %v3583 = vunpack.c.l.b16 %v3315
      %v3584 = vunpack.c.h.b16 %v3315
      %v3585 = vunpack.c.l.b16 %v3316
      %v3586 = vunpack.c.h.b16 %v3316
      %v3587 = vunpack.c.l.b16 %v3317
      %v3588 = vunpack.c.h.b16 %v3317
      %v3589 = vunpack.c.l.b16 %v3318
      %v3590 = vunpack.c.h.b16 %v3318
      %v3591 = vunpack.c.l.b16 %v3319
      %v3592 = vunpack.c.h.b16 %v3319
      %v3593 = vunpack.c.l.b16 %v3320
      %v3594 = vunpack.c.h.b16 %v3320
      %v3595 = vunpack.c.l.b16 %v3321
      %v3596 = vunpack.c.h.b16 %v3321
      %v3597 = vunpack.c.l.b16 %v3322
      %v3598 = vunpack.c.h.b16 %v3322
      %v3599 = vunpack.c.l.b16 %v3323
      %v3600 = vunpack.c.h.b16 %v3323
      %v3601 = vunpack.c.l.b16 %v3324
      %v3602 = vunpack.c.h.b16 %v3324
      %v3603 = vunpack.c.l.b16 %v3325
      %v3604 = vunpack.c.h.b16 %v3325
      %v3605 = vunpack.c.l.b16 %v3326
      %v3606 = vunpack.c.h.b16 %v3326
      %v3607 = vunpack.c.l.b16 %v3327
      %v3608 = vunpack.c.h.b16 %v3327
      %v3609 = vunpack.c.l.b16 %v3328
      %v3610 = vunpack.c.h.b16 %v3328
      %v3611 = vunpack.c.l.b16 %v3329
      %v3612 = vunpack.c.h.b16 %v3329
      %v3613 = vunpack.c.l.b16 %v3330
      %v3614 = vunpack.c.h.b16 %v3330
      %v3615 = vunpack.c.l.b16 %v3331
      %v3616 = vunpack.c.h.b16 %v3331
      %v3617 = vunpack.c.l.b16 %v3332
      %v3618 = vunpack.c.h.b16 %v3332
      %v3619 = vunpack.c.l.b16 %v3333
      %v3620 = vunpack.c.h.b16 %v3333
      %v3621 = vunpack.c.l.b16 %v3334
      %v3622 = vunpack.c.h.b16 %v3334
      %v3623 = vpack.c.b16 %v3433, %v3431
      %v3624 = vpack.c.b16 %v3434, %v3432
      %v3625 = vpack.c.b16 %v3437, %v3435
      %v3626 = vpack.c.b16 %v3438, %v3436
      %v3627 = vpack.c.b16 %v3441, %v3439
      %v3628 = vpack.c.b16 %v3442, %v3440
      %v3629 = vpack.c.b16 %v3445, %v3443
      %v3630 = vpack.c.b16 %v3446, %v3444
      %v3631 = vpack.c.b16 %v3449, %v3447
      %v3632 = vpack.c.b16 %v3450, %v3448
      %v3633 = vpack.c.b16 %v3453, %v3451
      %v3634 = vpack.c.b16 %v3454, %v3452
      %v3635 = vpack.c.b16 %v3457, %v3455
      %v3636 = vpack.c.b16 %v3458, %v3456
      %v3637 = vpack.c.b16 %v3461, %v3459
      %v3638 = vpack.c.b16 %v3462, %v3460
      %v3639 = vpack.c.b16 %v3465, %v3463
      %v3640 = vpack.c.b16 %v3466, %v3464
      %v3641 = vpack.c.b16 %v3469, %v3467
      %v3642 = vpack.c.b16 %v3470, %v3468
      %v3643 = vpack.c.b16 %v3473, %v3471
      %v3644 = vpack.c.b16 %v3474, %v3472
      %v3645 = vpack.c.b16 %v3477, %v3475
      %v3646 = vpack.c.b16 %v3478, %v3476
      %v3647 = vpack.c.b16 %v3481, %v3479
      %v3648 = vpack.c.b16 %v3482, %v3480
      %v3649 = vpack.c.b16 %v3485, %v3483
      %v3650 = vpack.c.b16 %v3486, %v3484
      %v3651 = vpack.c.b16 %v3489, %v3487
      %v3652 = vpack.c.b16 %v3490, %v3488
      %v3653 = vpack.c.b16 %v3493, %v3491
      %v3654 = vpack.c.b16 %v3494, %v3492
      %v3655 = vpack.c.b16 %v3497, %v3495
      %v3656 = vpack.c.b16 %v3498, %v3496
      %v3657 = vpack.c.b16 %v3501, %v3499
      %v3658 = vpack.c.b16 %v3502, %v3500
      %v3659 = vpack.c.b16 %v3505, %v3503
      %v3660 = vpack.c.b16 %v3506, %v3504
      %v3661 = vpack.c.b16 %v3509, %v3507
      %v3662 = vpack.c.b16 %v3510, %v3508
      %v3663 = vpack.c.b16 %v3513, %v3511
      %v3664 = vpack.c.b16 %v3514, %v3512
      %v3665 = vpack.c.b16 %v3517, %v3515
      %v3666 = vpack.c.b16 %v3518, %v3516
      %v3667 = vpack.c.b16 %v3521, %v3519
      %v3668 = vpack.c.b16 %v3522, %v3520
      %v3669 = vpack.c.b16 %v3525, %v3523
      %v3670 = vpack.c.b16 %v3526, %v3524
      %v3671 = vpack.c.b16 %v3529, %v3527
      %v3672 = vpack.c.b16 %v3530, %v3528
      %v3673 = vpack.c.b16 %v3533, %v3531
      %v3674 = vpack.c.b16 %v3534, %v3532
      %v3675 = vpack.c.b16 %v3537, %v3535
      %v3676 = vpack.c.b16 %v3538, %v3536
      %v3677 = vpack.c.b16 %v3541, %v3539
      %v3678 = vpack.c.b16 %v3542, %v3540
      %v3679 = vpack.c.b16 %v3545, %v3543
      %v3680 = vpack.c.b16 %v3546, %v3544
      %v3681 = vpack.c.b16 %v3549, %v3547
      %v3682 = vpack.c.b16 %v3550, %v3548
      %v3683 = vpack.c.b16 %v3553, %v3551
      %v3684 = vpack.c.b16 %v3554, %v3552
      %v3685 = vpack.c.b16 %v3557, %v3555
      %v3686 = vpack.c.b16 %v3558, %v3556
      %v3687 = vpack.c.b16 %v3561, %v3559
      %v3688 = vpack.c.b16 %v3562, %v3560
      %v3689 = vpack.c.b16 %v3565, %v3563
      %v3690 = vpack.c.b16 %v3566, %v3564
      %v3691 = vpack.c.b16 %v3569, %v3567
      %v3692 = vpack.c.b16 %v3570, %v3568
      %v3693 = vpack.c.b16 %v3573, %v3571
      %v3694 = vpack.c.b16 %v3574, %v3572
      %v3695 = vpack.c.b16 %v3577, %v3575
      %v3696 = vpack.c.b16 %v3578, %v3576
      %v3697 = vpack.c.b16 %v3581, %v3579
      %v3698 = vpack.c.b16 %v3582, %v3580
      %v3699 = vpack.c.b16 %v3585, %v3583
      %v3700 = vpack.c.b16 %v3586, %v3584
      %v3701 = vpack.c.b16 %v3589, %v3587
      %v3702 = vpack.c.b16 %v3590, %v3588
      %v3703 = vpack.c.b16 %v3593, %v3591
      %v3704 = vpack.c.b16 %v3594, %v3592
      %v3705 = vpack.c.b16 %v3597, %v3595
      %v3706 = vpack.c.b16 %v3598, %v3596
      %v3707 = vpack.c.b16 %v3601, %v3599
      %v3708 = vpack.c.b16 %v3602, %v3600
      %v3709 = vpack.c.b16 %v3605, %v3603
      %v3710 = vpack.c.b16 %v3606, %v3604
      %v3711 = vpack.c.b16 %v3609, %v3607
      %v3712 = vpack.c.b16 %v3610, %v3608
      %v3713 = vpack.c.b16 %v3613, %v3611
      %v3714 = vpack.c.b16 %v3614, %v3612
      %v3715 = vpack.c.b16 %v3617, %v3615
      %v3716 = vpack.c.b16 %v3618, %v3616
      %v3717 = vpack.c.b16 %v3621, %v3619
      %v3718 = vpack.c.b16 %v3622, %v3620
      %3815 = vmatprep.subr.bf16.mxu0 %v3638
      %3816 = vmatpush1.bf16.msra.mxu0 %v3637
      %3817 = vmatprep.subr.bf16.mxu0 %v3636
      %3818 = vmatpush1.bf16.msra.mxu0 %v3635
      %3819 = vmatprep.subr.bf16.mxu0 %v3634
      %3820 = vmatpush1.bf16.msra.mxu0 %v3633
      %3821 = vmatprep.subr.bf16.mxu0 %v3632
      %3822 = vmatpush1.bf16.msra.mxu0 %v3631
      %3823 = vmatprep.subr.bf16.mxu0 %v3630
      %3824 = vmatpush1.bf16.msra.mxu0 %v3629
      %3825 = vmatprep.subr.bf16.mxu0 %v3628
      %3826 = vmatpush1.bf16.msra.mxu0 %v3627
      %3827 = vmatprep.subr.bf16.mxu0 %v3626
      %3828 = vmatpush1.bf16.msra.mxu0 %v3625
      %3829 = vmatprep.subr.bf16.mxu0 %v3624
      %3830 = vmatpush1.bf16.msra.mxu0 %v3623
      %3831 = vmatprep.subr.bf16.mxu0 %v3654
      %3832 = vmatpush2.bf16.msra.mxu0 %v3653
      %3833 = vmatprep.subr.bf16.mxu0 %v3652
      %3834 = vmatpush2.bf16.msra.mxu0 %v3651
      %3835 = vmatprep.subr.bf16.mxu0 %v3650
      %3836 = vmatpush2.bf16.msra.mxu0 %v3649
      %3837 = vmatprep.subr.bf16.mxu0 %v3648
      %3838 = vmatpush2.bf16.msra.mxu0 %v3647
      %3839 = vmatprep.subr.bf16.mxu0 %v3646
      %3840 = vmatpush2.bf16.msra.mxu0 %v3645
      %3841 = vmatprep.subr.bf16.mxu0 %v3644
      %3842 = vmatpush2.bf16.msra.mxu0 %v3643
      %3843 = vmatprep.subr.bf16.mxu0 %v3642
      %3844 = vmatpush2.bf16.msra.mxu0 %v3641
      %3845 = vmatprep.subr.bf16.mxu0 %v3640
      %3846 = vmatpush2.bf16.msra.mxu0 %v3639
      %3847 = vmatprep.mubr.bf16.mxu0 %v3203
      %3848 = vmatmul.mubr.bf16.gmra.mxu0 %v3202
      %v3849 = vpop.f32.mrf.mxu0
      %v3850 = vadd.f32 0.0, %v3849
      %v3851 = vpop.f32.mrf.mxu0
      %v3852 = vadd.f32 0.0, %v3851
      %v3853 = vpop.f32.mrf.mxu0
      %v3854 = vadd.f32 0.0, %v3853
      %v3855 = vpop.f32.mrf.mxu0
      %v3856 = vadd.f32 0.0, %v3855
      %3857 = vmatprep.mubr.bf16.mxu0 %v3209
      %3858 = vmatmul.mubr.bf16.gmra.mxu0 %v3208
      %v3859 = vpop.f32.mrf.mxu0
      %v3860 = vadd.f32 0.0, %v3859
      %v3861 = vpop.f32.mrf.mxu0
      %v3862 = vadd.f32 0.0, %v3861
      %v3863 = vpop.f32.mrf.mxu0
      %v3864 = vadd.f32 0.0, %v3863
      %v3865 = vpop.f32.mrf.mxu0
      %v3866 = vadd.f32 0.0, %v3865
      %3867 = vmatprep.mubr.bf16.mxu0 %v3215
      %3868 = vmatmul.mubr.bf16.gmra.mxu0 %v3214
      %v3869 = vpop.f32.mrf.mxu0
      %v3870 = vadd.f32 0.0, %v3869
      %v3871 = vpop.f32.mrf.mxu0
      %v3872 = vadd.f32 0.0, %v3871
      %v3873 = vpop.f32.mrf.mxu0
      %v3874 = vadd.f32 0.0, %v3873
      %v3875 = vpop.f32.mrf.mxu0
      %v3876 = vadd.f32 0.0, %v3875
      %3877 = vmatprep.mubr.bf16.mxu0 %v3221
      %3878 = vmatmul.mubr.bf16.gmra.mxu0 %v3220
      %v3879 = vpop.f32.mrf.mxu0
      %v3880 = vadd.f32 0.0, %v3879
      %v3881 = vpop.f32.mrf.mxu0
      %v3882 = vadd.f32 0.0, %v3881
      %v3883 = vpop.f32.mrf.mxu0
      %v3884 = vadd.f32 0.0, %v3883
      %v3885 = vpop.f32.mrf.mxu0
      %v3886 = vadd.f32 0.0, %v3885
      %3887 = vmatprep.mubr.bf16.mxu0 %v3227
      %3888 = vmatmul.mubr.bf16.gmra.mxu0 %v3226
      %v3889 = vpop.f32.mrf.mxu0
      %v3890 = vadd.f32 0.0, %v3889
      %v3891 = vpop.f32.mrf.mxu0
      %v3892 = vadd.f32 0.0, %v3891
      %v3893 = vpop.f32.mrf.mxu0
      %v3894 = vadd.f32 0.0, %v3893
      %v3895 = vpop.f32.mrf.mxu0
      %v3896 = vadd.f32 0.0, %v3895
      %3897 = vmatprep.mubr.bf16.mxu0 %v3233
      %3898 = vmatmul.mubr.bf16.gmra.mxu0 %v3232
      %v3899 = vpop.f32.mrf.mxu0
      %v3900 = vadd.f32 0.0, %v3899
      %v3901 = vpop.f32.mrf.mxu0
      %v3902 = vadd.f32 0.0, %v3901
      %v3903 = vpop.f32.mrf.mxu0
      %v3904 = vpop.f32.mrf.mxu0
      %3905 = vdwg.mxu0
      %3906 = vmatprep.subr.bf16.mxu0 %v3670
      %3907 = vmatpush1.bf16.msra.mxu0 %v3669
      %3908 = vmatprep.subr.bf16.mxu0 %v3668
      %3909 = vmatpush1.bf16.msra.mxu0 %v3667
      %3910 = vmatprep.subr.bf16.mxu0 %v3666
      %3911 = vmatpush1.bf16.msra.mxu0 %v3665
      %3912 = vmatprep.subr.bf16.mxu0 %v3664
      %3913 = vmatpush1.bf16.msra.mxu0 %v3663
      %3914 = vmatprep.subr.bf16.mxu0 %v3662
      %3915 = vmatpush1.bf16.msra.mxu0 %v3661
      %3916 = vmatprep.subr.bf16.mxu0 %v3660
      %3917 = vmatpush1.bf16.msra.mxu0 %v3659
      %3918 = vmatprep.subr.bf16.mxu0 %v3658
      %3919 = vmatpush1.bf16.msra.mxu0 %v3657
      %3920 = vmatprep.subr.bf16.mxu0 %v3656
      %3921 = vmatpush1.bf16.msra.mxu0 %v3655
      %3922 = vmatprep.subr.bf16.mxu0 %v3686
      %3923 = vmatpush2.bf16.msra.mxu0 %v3685
      %3924 = vmatprep.subr.bf16.mxu0 %v3684
      %3925 = vmatpush2.bf16.msra.mxu0 %v3683
      %3926 = vmatprep.subr.bf16.mxu0 %v3682
      %3927 = vmatpush2.bf16.msra.mxu0 %v3681
      %3928 = vmatprep.subr.bf16.mxu0 %v3680
      %3929 = vmatpush2.bf16.msra.mxu0 %v3679
      %3930 = vmatprep.subr.bf16.mxu0 %v3678
      %3931 = vmatpush2.bf16.msra.mxu0 %v3677
      %3932 = vmatprep.subr.bf16.mxu0 %v3676
      %3933 = vmatpush2.bf16.msra.mxu0 %v3675
      %3934 = vmatprep.subr.bf16.mxu0 %v3674
      %3935 = vmatpush2.bf16.msra.mxu0 %v3673
      %3936 = vmatprep.subr.bf16.mxu0 %v3672
      %3937 = vmatpush2.bf16.msra.mxu0 %v3671
      %3938 = vmatprep.mubr.bf16.mxu0 %v3205
      %3939 = vmatmul.mubr.bf16.gmra.mxu0 %v3204
      %v3940 = vpop.f32.mrf.mxu0
      %v3941 = vadd.f32 %v3850, %v3940
      %v3942 = vpop.f32.mrf.mxu0
      %v3943 = vadd.f32 %v3852, %v3942
      %v3944 = vpop.f32.mrf.mxu0
      %v3945 = vadd.f32 %v3854, %v3944
      %v3946 = vpop.f32.mrf.mxu0
      %v3947 = vadd.f32 %v3856, %v3946
      %3948 = vmatprep.mubr.bf16.mxu0 %v3211
      %3949 = vmatmul.mubr.bf16.gmra.mxu0 %v3210
      %v3950 = vpop.f32.mrf.mxu0
      %v3951 = vadd.f32 %v3860, %v3950
      %v3952 = vpop.f32.mrf.mxu0
      %v3953 = vadd.f32 %v3862, %v3952
      %v3954 = vpop.f32.mrf.mxu0
      %v3955 = vadd.f32 %v3864, %v3954
      %v3956 = vpop.f32.mrf.mxu0
      %v3957 = vadd.f32 %v3866, %v3956
      %3958 = vmatprep.mubr.bf16.mxu0 %v3217
      %3959 = vmatmul.mubr.bf16.gmra.mxu0 %v3216
      %v3960 = vpop.f32.mrf.mxu0
      %v3961 = vadd.f32 %v3870, %v3960
      %v3962 = vpop.f32.mrf.mxu0
      %v3963 = vadd.f32 %v3872, %v3962
      %v3964 = vpop.f32.mrf.mxu0
      %v3965 = vadd.f32 %v3874, %v3964
      %v3966 = vpop.f32.mrf.mxu0
      %v3967 = vadd.f32 %v3876, %v3966
      %3968 = vmatprep.mubr.bf16.mxu0 %v3223
      %3969 = vmatmul.mubr.bf16.gmra.mxu0 %v3222
      %v3970 = vpop.f32.mrf.mxu0
      %v3971 = vadd.f32 %v3880, %v3970
      %v3972 = vpop.f32.mrf.mxu0
      %v3973 = vadd.f32 %v3882, %v3972
      %v3974 = vpop.f32.mrf.mxu0
      %v3975 = vadd.f32 %v3884, %v3974
      %v3976 = vpop.f32.mrf.mxu0
      %v3977 = vadd.f32 %v3886, %v3976
      %3978 = vmatprep.mubr.bf16.mxu0 %v3229
      %3979 = vmatmul.mubr.bf16.gmra.mxu0 %v3228
      %v3980 = vpop.f32.mrf.mxu0
      %v3981 = vadd.f32 %v3890, %v3980
      %v3982 = vpop.f32.mrf.mxu0
      %v3983 = vadd.f32 %v3892, %v3982
      %v3984 = vpop.f32.mrf.mxu0
      %v3985 = vadd.f32 %v3894, %v3984
      %v3986 = vpop.f32.mrf.mxu0
      %v3987 = vadd.f32 %v3896, %v3986
      %3988 = vmatprep.mubr.bf16.mxu0 %v3235
      %3989 = vmatmul.mubr.bf16.gmra.mxu0 %v3234
      %v3990 = vpop.f32.mrf.mxu0
      %v3991 = vadd.f32 %v3900, %v3990
      %v3992 = vpop.f32.mrf.mxu0
      %v3993 = vadd.f32 %v3902, %v3992
      %v3994 = vpop.f32.mrf.mxu0
      %v3995 = vpop.f32.mrf.mxu0
      %3996 = vdwg.mxu0
      %3997 = vmatprep.subr.bf16.mxu0 %v3702
      %3998 = vmatpush1.bf16.msra.mxu0 %v3701
      %3999 = vmatprep.subr.bf16.mxu0 %v3700
      %4000 = vmatpush1.bf16.msra.mxu0 %v3699
      %4001 = vmatprep.subr.bf16.mxu0 %v3698
      %4002 = vmatpush1.bf16.msra.mxu0 %v3697
      %4003 = vmatprep.subr.bf16.mxu0 %v3696
      %4004 = vmatpush1.bf16.msra.mxu0 %v3695
      %4005 = vmatprep.subr.bf16.mxu0 %v3694
      %4006 = vmatpush1.bf16.msra.mxu0 %v3693
      %4007 = vmatprep.subr.bf16.mxu0 %v3692
      %4008 = vmatpush1.bf16.msra.mxu0 %v3691
      %4009 = vmatprep.subr.bf16.mxu0 %v3690
      %4010 = vmatpush1.bf16.msra.mxu0 %v3689
      %4011 = vmatprep.subr.bf16.mxu0 %v3688
      %4012 = vmatpush1.bf16.msra.mxu0 %v3687
      %4013 = vmatprep.subr.bf16.mxu0 %v3718
      %4014 = vmatpush2.bf16.msra.mxu0 %v3717
      %4015 = vmatprep.subr.bf16.mxu0 %v3716
      %4016 = vmatpush2.bf16.msra.mxu0 %v3715
      %4017 = vmatprep.subr.bf16.mxu0 %v3714
      %4018 = vmatpush2.bf16.msra.mxu0 %v3713
      %4019 = vmatprep.subr.bf16.mxu0 %v3712
      %4020 = vmatpush2.bf16.msra.mxu0 %v3711
      %4021 = vmatprep.subr.bf16.mxu0 %v3710
      %4022 = vmatpush2.bf16.msra.mxu0 %v3709
      %4023 = vmatprep.subr.bf16.mxu0 %v3708
      %4024 = vmatpush2.bf16.msra.mxu0 %v3707
      %4025 = vmatprep.subr.bf16.mxu0 %v3706
      %4026 = vmatpush2.bf16.msra.mxu0 %v3705
      %4027 = vmatprep.subr.bf16.mxu0 %v3704
      %4028 = vmatpush2.bf16.msra.mxu0 %v3703
      %4029 = vmatprep.mubr.bf16.mxu0 %v3207
      %4030 = vmatmul.mubr.bf16.gmra.mxu0 %v3206
      %v4031 = vpop.f32.mrf.mxu0
      %v4032 = vadd.f32 %v3941, %v4031
      %v4033 = vpop.f32.mrf.mxu0
      %v4034 = vadd.f32 %v3943, %v4033
      %v4035 = vpop.f32.mrf.mxu0
      %v4036 = vadd.f32 %v3945, %v4035
      %v4037 = vpop.f32.mrf.mxu0
      %v4038 = vadd.f32 %v3947, %v4037
      %4039 = vmatprep.mubr.bf16.mxu0 %v3213
      %4040 = vmatmul.mubr.bf16.gmra.mxu0 %v3212
      %v4041 = vpop.f32.mrf.mxu0
      %v4042 = vadd.f32 %v3951, %v4041
      %v4043 = vpop.f32.mrf.mxu0
      %v4044 = vadd.f32 %v3953, %v4043
      %v4045 = vpop.f32.mrf.mxu0
      %v4046 = vadd.f32 %v3955, %v4045
      %v4047 = vpop.f32.mrf.mxu0
      %v4048 = vadd.f32 %v3957, %v4047
      %4049 = vmatprep.mubr.bf16.mxu0 %v3219
      %4050 = vmatmul.mubr.bf16.gmra.mxu0 %v3218
      %v4051 = vpop.f32.mrf.mxu0
      %v4052 = vadd.f32 %v3961, %v4051
      %v4053 = vpop.f32.mrf.mxu0
      %v4054 = vadd.f32 %v3963, %v4053
      %v4055 = vpop.f32.mrf.mxu0
      %v4056 = vadd.f32 %v3965, %v4055
      %v4057 = vpop.f32.mrf.mxu0
      %v4058 = vadd.f32 %v3967, %v4057
      %4059 = vmatprep.mubr.bf16.mxu0 %v3225
      %4060 = vmatmul.mubr.bf16.gmra.mxu0 %v3224
      %v4061 = vpop.f32.mrf.mxu0
      %v4062 = vadd.f32 %v3971, %v4061
      %v4063 = vpop.f32.mrf.mxu0
      %v4064 = vadd.f32 %v3973, %v4063
      %v4065 = vpop.f32.mrf.mxu0
      %v4066 = vadd.f32 %v3975, %v4065
      %v4067 = vpop.f32.mrf.mxu0
      %v4068 = vadd.f32 %v3977, %v4067
      %4069 = vmatprep.mubr.bf16.mxu0 %v3231
      %4070 = vmatmul.mubr.bf16.gmra.mxu0 %v3230
      %v4071 = vpop.f32.mrf.mxu0
      %v4072 = vadd.f32 %v3981, %v4071
      %v4073 = vpop.f32.mrf.mxu0
      %v4074 = vadd.f32 %v3983, %v4073
      %v4075 = vpop.f32.mrf.mxu0
      %v4076 = vadd.f32 %v3985, %v4075
      %v4077 = vpop.f32.mrf.mxu0
      %v4078 = vadd.f32 %v3987, %v4077
      %4079 = vmatprep.mubr.bf16.mxu0 %v3237
      %4080 = vmatmul.mubr.bf16.gmra.mxu0 %v3236
      %v4081 = vpop.f32.mrf.mxu0
      %v4082 = vadd.f32 %v3991, %v4081
      %v4083 = vpop.f32.mrf.mxu0
      %v4084 = vadd.f32 %v3993, %v4083
      %v4085 = vpop.f32.mrf.mxu0
      %v4086 = vpop.f32.mrf.mxu0
      %4087 = vdwg.mxu0
      %v4088 = vadd.f32 %v3107, %v4032
      %v4089 = vadd.f32 %v3108, %v4034
      %v4090 = vadd.f32 %v3109, %v4036
      %v4091 = vadd.f32 %v3110, %v4038
      %v4092 = vadd.f32 %v3111, %v4042
      %v4093 = vadd.f32 %v3112, %v4044
      %v4094 = vadd.f32 %v3113, %v4046
      %v4095 = vadd.f32 %v3114, %v4048
      %v4096 = vadd.f32 %v3115, %v4052
      %v4097 = vadd.f32 %v3116, %v4054
      %v4098 = vadd.f32 %v3117, %v4056
      %v4099 = vadd.f32 %v3118, %v4058
      %v4100 = vadd.f32 %v3119, %v4062
      %v4101 = vadd.f32 %v3120, %v4064
      %v4102 = vadd.f32 %v3121, %v4066
      %v4103 = vadd.f32 %v3122, %v4068
      %v4104 = vadd.f32 %v3123, %v4072
      %v4105 = vadd.f32 %v3124, %v4074
      %v4106 = vadd.f32 %v3125, %v4076
      %v4107 = vadd.f32 %v3126, %v4078
      %v4108 = vadd.f32 %v3127, %v4082
      %v4109 = vadd.f32 %v3128, %v4084
      %s4110 = scalar_lea.vmem %s198, 3840
      %v4111 = vld [vmem:[%s4110] sm:$0xff]
      %v4112 = vld [vmem:[%s4110 + $0x8] sm:$0xff]
      %v4113 = vld [vmem:[%s4110 + $0x10] sm:$0xff]
      %v4114 = vld [vmem:[%s4110 + $0x18] sm:$0xff]
      %v4115 = vld [vmem:[%s4110 + $0x20] sm:$0xff]
      %v4116 = vld [vmem:[%s4110 + $0x28] sm:$0xff]
      %v4117 = vld [vmem:[%s4110 + $0x30] sm:$0xff]
      %v4118 = vld [vmem:[%s4110 + $0x38] sm:$0xff]
      %v4119 = vld [vmem:[%s4110 + $0x40] sm:$0xff]
      %v4120 = vld [vmem:[%s4110 + $0x48] sm:$0xff]
      %v4121 = vld [vmem:[%s4110 + $0x50] sm:$0xff]
      %v4122 = vld [vmem:[%s4110 + $0x58] sm:$0xff]
      %v4123 = vld [vmem:[%s4110 + $0x60] sm:$0xff]
      %v4124 = vld [vmem:[%s4110 + $0x68] sm:$0xff]
      %v4125 = vld [vmem:[%s4110 + $0x70] sm:$0xff]
      %v4126 = vld [vmem:[%s4110 + $0x78] sm:$0xff]
      %v4127 = vld [vmem:[%s4110 + $0x80] sm:$0xff]
      %v4128 = vld [vmem:[%s4110 + $0x88] sm:$0xff]
      %v4129 = vld [vmem:[%s4110 + $0x90] sm:$0xff]
      %v4130 = vld [vmem:[%s4110 + $0x98] sm:$0xff]
      %v4131 = vld [vmem:[%s4110 + $0xa0] sm:$0xff]
      %v4132 = vld [vmem:[%s4110 + $0xa8] sm:$0xff]
      %v4133 = vld [vmem:[%s4110 + $0xb0] sm:$0xff]
      %v4134 = vld [vmem:[%s4110 + $0xb8] sm:$0xff]
      %v4135 = vld [vmem:[%s4110 + $0xc0] sm:$0xff]
      %v4136 = vld [vmem:[%s4110 + $0xc8] sm:$0xff]
      %v4137 = vld [vmem:[%s4110 + $0xd0] sm:$0xff]
      %v4138 = vld [vmem:[%s4110 + $0xd8] sm:$0xff]
      %v4139 = vld [vmem:[%s4110 + $0xe0] sm:$0xff]
      %v4140 = vld [vmem:[%s4110 + $0xe8] sm:$0xff]
      %v4141 = vld [vmem:[%s4110 + $0xf0] sm:$0xff]
      %v4142 = vld [vmem:[%s4110 + $0xf8] sm:$0xff]
      %v4143 = vld [vmem:[%s4110 + $0x100] sm:$0xff]
      %v4144 = vld [vmem:[%s4110 + $0x108] sm:$0xff]
      %v4145 = vld [vmem:[%s4110 + $0x110] sm:$0xff]
      %v4146 = vld [vmem:[%s4110 + $0x118] sm:$0xff]
      %v4147 = vld [vmem:[%s4110 + $0x120] sm:$0xff]
      %v4148 = vld [vmem:[%s4110 + $0x128] sm:$0xff]
      %v4149 = vld [vmem:[%s4110 + $0x130] sm:$0xff]
      %v4150 = vld [vmem:[%s4110 + $0x138] sm:$0xff]
      %v4151 = vld [vmem:[%s4110 + $0x140] sm:$0xff]
      %v4152 = vld [vmem:[%s4110 + $0x148] sm:$0xff]
      %v4153 = vld [vmem:[%s4110 + $0x150] sm:$0xff]
      %v4154 = vld [vmem:[%s4110 + $0x158] sm:$0xff]
      %v4155 = vld [vmem:[%s4110 + $0x160] sm:$0xff]
      %v4156 = vld [vmem:[%s4110 + $0x168] sm:$0xff]
      %v4157 = vld [vmem:[%s4110 + $0x170] sm:$0xff]
      %v4158 = vld [vmem:[%s4110 + $0x178] sm:$0xff]
      %v4159 = vld [vmem:[%s4110 + $0x180] sm:$0xff]
      %v4160 = vld [vmem:[%s4110 + $0x188] sm:$0xff]
      %v4161 = vld [vmem:[%s4110 + $0x190] sm:$0xff]
      %v4162 = vld [vmem:[%s4110 + $0x198] sm:$0xff]
      %v4163 = vld [vmem:[%s4110 + $0x1a0] sm:$0xff]
      %v4164 = vld [vmem:[%s4110 + $0x1a8] sm:$0xff]
      %v4165 = vld [vmem:[%s4110 + $0x1b0] sm:$0xff]
      %v4166 = vld [vmem:[%s4110 + $0x1b8] sm:$0xff]
      %v4167 = vld [vmem:[%s4110 + $0x1c0] sm:$0xff]
      %v4168 = vld [vmem:[%s4110 + $0x1c8] sm:$0xff]
      %v4169 = vld [vmem:[%s4110 + $0x1d0] sm:$0xff]
      %v4170 = vld [vmem:[%s4110 + $0x1d8] sm:$0xff]
      %v4171 = vld [vmem:[%s4110 + $0x1e0] sm:$0xff]
      %v4172 = vld [vmem:[%s4110 + $0x1e8] sm:$0xff]
      %v4173 = vld [vmem:[%s4110 + $0x1f0] sm:$0xff]
      %v4174 = vld [vmem:[%s4110 + $0x1f8] sm:$0xff]
      %v4175 = vld [vmem:[%s4110 + $0x200] sm:$0xff]
      %v4176 = vld [vmem:[%s4110 + $0x208] sm:$0xff]
      %v4177 = vld [vmem:[%s4110 + $0x210] sm:$0xff]
      %v4178 = vld [vmem:[%s4110 + $0x218] sm:$0xff]
      %v4179 = vld [vmem:[%s4110 + $0x220] sm:$0xff]
      %v4180 = vld [vmem:[%s4110 + $0x228] sm:$0xff]
      %v4181 = vld [vmem:[%s4110 + $0x230] sm:$0xff]
      %v4182 = vld [vmem:[%s4110 + $0x238] sm:$0xff]
      %v4183 = vld [vmem:[%s4110 + $0x240] sm:$0xff]
      %v4184 = vld [vmem:[%s4110 + $0x248] sm:$0xff]
      %v4185 = vld [vmem:[%s4110 + $0x250] sm:$0xff]
      %v4186 = vld [vmem:[%s4110 + $0x258] sm:$0xff]
      %v4187 = vld [vmem:[%s4110 + $0x260] sm:$0xff]
      %v4188 = vld [vmem:[%s4110 + $0x268] sm:$0xff]
      %v4189 = vld [vmem:[%s4110 + $0x270] sm:$0xff]
      %v4190 = vld [vmem:[%s4110 + $0x278] sm:$0xff]
      %v4191 = vld [vmem:[%s4110 + $0x280] sm:$0xff]
      %v4192 = vld [vmem:[%s4110 + $0x288] sm:$0xff]
      %v4193 = vld [vmem:[%s4110 + $0x290] sm:$0xff]
      %v4194 = vld [vmem:[%s4110 + $0x298] sm:$0xff]
      %v4195 = vld [vmem:[%s4110 + $0x2a0] sm:$0xff]
      %v4196 = vld [vmem:[%s4110 + $0x2a8] sm:$0xff]
      %v4197 = vld [vmem:[%s4110 + $0x2b0] sm:$0xff]
      %v4198 = vld [vmem:[%s4110 + $0x2b8] sm:$0xff]
      %v4199 = vld [vmem:[%s4110 + $0x2c0] sm:$0xff]
      %v4200 = vld [vmem:[%s4110 + $0x2c8] sm:$0xff]
      %v4201 = vld [vmem:[%s4110 + $0x2d0] sm:$0xff]
      %v4202 = vld [vmem:[%s4110 + $0x2d8] sm:$0xff]
      %v4203 = vld [vmem:[%s4110 + $0x2e0] sm:$0xff]
      %v4204 = vld [vmem:[%s4110 + $0x2e8] sm:$0xff]
      %v4205 = vld [vmem:[%s4110 + $0x2f0] sm:$0xff]
      %v4206 = vld [vmem:[%s4110 + $0x2f8] sm:$0xff]
      %v4303 = vunpack.c.l.b16 %v4111
      %v4304 = vunpack.c.h.b16 %v4111
      %v4305 = vunpack.c.l.b16 %v4112
      %v4306 = vunpack.c.h.b16 %v4112
      %v4307 = vunpack.c.l.b16 %v4113
      %v4308 = vunpack.c.h.b16 %v4113
      %v4309 = vunpack.c.l.b16 %v4114
      %v4310 = vunpack.c.h.b16 %v4114
      %v4311 = vunpack.c.l.b16 %v4115
      %v4312 = vunpack.c.h.b16 %v4115
      %v4313 = vunpack.c.l.b16 %v4116
      %v4314 = vunpack.c.h.b16 %v4116
      %v4315 = vunpack.c.l.b16 %v4117
      %v4316 = vunpack.c.h.b16 %v4117
      %v4317 = vunpack.c.l.b16 %v4118
      %v4318 = vunpack.c.h.b16 %v4118
      %v4319 = vunpack.c.l.b16 %v4119
      %v4320 = vunpack.c.h.b16 %v4119
      %v4321 = vunpack.c.l.b16 %v4120
      %v4322 = vunpack.c.h.b16 %v4120
      %v4323 = vunpack.c.l.b16 %v4121
      %v4324 = vunpack.c.h.b16 %v4121
      %v4325 = vunpack.c.l.b16 %v4122
      %v4326 = vunpack.c.h.b16 %v4122
      %v4327 = vunpack.c.l.b16 %v4123
      %v4328 = vunpack.c.h.b16 %v4123
      %v4329 = vunpack.c.l.b16 %v4124
      %v4330 = vunpack.c.h.b16 %v4124
      %v4331 = vunpack.c.l.b16 %v4125
      %v4332 = vunpack.c.h.b16 %v4125
      %v4333 = vunpack.c.l.b16 %v4126
      %v4334 = vunpack.c.h.b16 %v4126
      %v4335 = vunpack.c.l.b16 %v4127
      %v4336 = vunpack.c.h.b16 %v4127
      %v4337 = vunpack.c.l.b16 %v4128
      %v4338 = vunpack.c.h.b16 %v4128
      %v4339 = vunpack.c.l.b16 %v4129
      %v4340 = vunpack.c.h.b16 %v4129
      %v4341 = vunpack.c.l.b16 %v4130
      %v4342 = vunpack.c.h.b16 %v4130
      %v4343 = vunpack.c.l.b16 %v4131
      %v4344 = vunpack.c.h.b16 %v4131
      %v4345 = vunpack.c.l.b16 %v4132
      %v4346 = vunpack.c.h.b16 %v4132
      %v4347 = vunpack.c.l.b16 %v4133
      %v4348 = vunpack.c.h.b16 %v4133
      %v4349 = vunpack.c.l.b16 %v4134
      %v4350 = vunpack.c.h.b16 %v4134
      %v4351 = vunpack.c.l.b16 %v4135
      %v4352 = vunpack.c.h.b16 %v4135
      %v4353 = vunpack.c.l.b16 %v4136
      %v4354 = vunpack.c.h.b16 %v4136
      %v4355 = vunpack.c.l.b16 %v4137
      %v4356 = vunpack.c.h.b16 %v4137
      %v4357 = vunpack.c.l.b16 %v4138
      %v4358 = vunpack.c.h.b16 %v4138
      %v4359 = vunpack.c.l.b16 %v4139
      %v4360 = vunpack.c.h.b16 %v4139
      %v4361 = vunpack.c.l.b16 %v4140
      %v4362 = vunpack.c.h.b16 %v4140
      %v4363 = vunpack.c.l.b16 %v4141
      %v4364 = vunpack.c.h.b16 %v4141
      %v4365 = vunpack.c.l.b16 %v4142
      %v4366 = vunpack.c.h.b16 %v4142
      %v4367 = vunpack.c.l.b16 %v4143
      %v4368 = vunpack.c.h.b16 %v4143
      %v4369 = vunpack.c.l.b16 %v4144
      %v4370 = vunpack.c.h.b16 %v4144
      %v4371 = vunpack.c.l.b16 %v4145
      %v4372 = vunpack.c.h.b16 %v4145
      %v4373 = vunpack.c.l.b16 %v4146
      %v4374 = vunpack.c.h.b16 %v4146
      %v4375 = vunpack.c.l.b16 %v4147
      %v4376 = vunpack.c.h.b16 %v4147
      %v4377 = vunpack.c.l.b16 %v4148
      %v4378 = vunpack.c.h.b16 %v4148
      %v4379 = vunpack.c.l.b16 %v4149
      %v4380 = vunpack.c.h.b16 %v4149
      %v4381 = vunpack.c.l.b16 %v4150
      %v4382 = vunpack.c.h.b16 %v4150
      %v4383 = vunpack.c.l.b16 %v4151
      %v4384 = vunpack.c.h.b16 %v4151
      %v4385 = vunpack.c.l.b16 %v4152
      %v4386 = vunpack.c.h.b16 %v4152
      %v4387 = vunpack.c.l.b16 %v4153
      %v4388 = vunpack.c.h.b16 %v4153
      %v4389 = vunpack.c.l.b16 %v4154
      %v4390 = vunpack.c.h.b16 %v4154
      %v4391 = vunpack.c.l.b16 %v4155
      %v4392 = vunpack.c.h.b16 %v4155
      %v4393 = vunpack.c.l.b16 %v4156
      %v4394 = vunpack.c.h.b16 %v4156
      %v4395 = vunpack.c.l.b16 %v4157
      %v4396 = vunpack.c.h.b16 %v4157
      %v4397 = vunpack.c.l.b16 %v4158
      %v4398 = vunpack.c.h.b16 %v4158
      %v4399 = vunpack.c.l.b16 %v4159
      %v4400 = vunpack.c.h.b16 %v4159
      %v4401 = vunpack.c.l.b16 %v4160
      %v4402 = vunpack.c.h.b16 %v4160
      %v4403 = vunpack.c.l.b16 %v4161
      %v4404 = vunpack.c.h.b16 %v4161
      %v4405 = vunpack.c.l.b16 %v4162
      %v4406 = vunpack.c.h.b16 %v4162
      %v4407 = vunpack.c.l.b16 %v4163
      %v4408 = vunpack.c.h.b16 %v4163
      %v4409 = vunpack.c.l.b16 %v4164
      %v4410 = vunpack.c.h.b16 %v4164
      %v4411 = vunpack.c.l.b16 %v4165
      %v4412 = vunpack.c.h.b16 %v4165
      %v4413 = vunpack.c.l.b16 %v4166
      %v4414 = vunpack.c.h.b16 %v4166
      %v4415 = vunpack.c.l.b16 %v4167
      %v4416 = vunpack.c.h.b16 %v4167
      %v4417 = vunpack.c.l.b16 %v4168
      %v4418 = vunpack.c.h.b16 %v4168
      %v4419 = vunpack.c.l.b16 %v4169
      %v4420 = vunpack.c.h.b16 %v4169
      %v4421 = vunpack.c.l.b16 %v4170
      %v4422 = vunpack.c.h.b16 %v4170
      %v4423 = vunpack.c.l.b16 %v4171
      %v4424 = vunpack.c.h.b16 %v4171
      %v4425 = vunpack.c.l.b16 %v4172
      %v4426 = vunpack.c.h.b16 %v4172
      %v4427 = vunpack.c.l.b16 %v4173
      %v4428 = vunpack.c.h.b16 %v4173
      %v4429 = vunpack.c.l.b16 %v4174
      %v4430 = vunpack.c.h.b16 %v4174
      %v4431 = vunpack.c.l.b16 %v4175
      %v4432 = vunpack.c.h.b16 %v4175
      %v4433 = vunpack.c.l.b16 %v4176
      %v4434 = vunpack.c.h.b16 %v4176
      %v4435 = vunpack.c.l.b16 %v4177
      %v4436 = vunpack.c.h.b16 %v4177
      %v4437 = vunpack.c.l.b16 %v4178
      %v4438 = vunpack.c.h.b16 %v4178
      %v4439 = vunpack.c.l.b16 %v4179
      %v4440 = vunpack.c.h.b16 %v4179
      %v4441 = vunpack.c.l.b16 %v4180
      %v4442 = vunpack.c.h.b16 %v4180
      %v4443 = vunpack.c.l.b16 %v4181
      %v4444 = vunpack.c.h.b16 %v4181
      %v4445 = vunpack.c.l.b16 %v4182
      %v4446 = vunpack.c.h.b16 %v4182
      %v4447 = vunpack.c.l.b16 %v4183
      %v4448 = vunpack.c.h.b16 %v4183
      %v4449 = vunpack.c.l.b16 %v4184
      %v4450 = vunpack.c.h.b16 %v4184
      %v4451 = vunpack.c.l.b16 %v4185
      %v4452 = vunpack.c.h.b16 %v4185
      %v4453 = vunpack.c.l.b16 %v4186
      %v4454 = vunpack.c.h.b16 %v4186
      %v4455 = vunpack.c.l.b16 %v4187
      %v4456 = vunpack.c.h.b16 %v4187
      %v4457 = vunpack.c.l.b16 %v4188
      %v4458 = vunpack.c.h.b16 %v4188
      %v4459 = vunpack.c.l.b16 %v4189
      %v4460 = vunpack.c.h.b16 %v4189
      %v4461 = vunpack.c.l.b16 %v4190
      %v4462 = vunpack.c.h.b16 %v4190
      %v4463 = vunpack.c.l.b16 %v4191
      %v4464 = vunpack.c.h.b16 %v4191
      %v4465 = vunpack.c.l.b16 %v4192
      %v4466 = vunpack.c.h.b16 %v4192
      %v4467 = vunpack.c.l.b16 %v4193
      %v4468 = vunpack.c.h.b16 %v4193
      %v4469 = vunpack.c.l.b16 %v4194
      %v4470 = vunpack.c.h.b16 %v4194
      %v4471 = vunpack.c.l.b16 %v4195
      %v4472 = vunpack.c.h.b16 %v4195
      %v4473 = vunpack.c.l.b16 %v4196
      %v4474 = vunpack.c.h.b16 %v4196
      %v4475 = vunpack.c.l.b16 %v4197
      %v4476 = vunpack.c.h.b16 %v4197
      %v4477 = vunpack.c.l.b16 %v4198
      %v4478 = vunpack.c.h.b16 %v4198
      %v4479 = vunpack.c.l.b16 %v4199
      %v4480 = vunpack.c.h.b16 %v4199
      %v4481 = vunpack.c.l.b16 %v4200
      %v4482 = vunpack.c.h.b16 %v4200
      %v4483 = vunpack.c.l.b16 %v4201
      %v4484 = vunpack.c.h.b16 %v4201
      %v4485 = vunpack.c.l.b16 %v4202
      %v4486 = vunpack.c.h.b16 %v4202
      %v4487 = vunpack.c.l.b16 %v4203
      %v4488 = vunpack.c.h.b16 %v4203
      %v4489 = vunpack.c.l.b16 %v4204
      %v4490 = vunpack.c.h.b16 %v4204
      %v4491 = vunpack.c.l.b16 %v4205
      %v4492 = vunpack.c.h.b16 %v4205
      %v4493 = vunpack.c.l.b16 %v4206
      %v4494 = vunpack.c.h.b16 %v4206
      %v4495 = vpack.c.b16 %v4305, %v4303
      %v4496 = vpack.c.b16 %v4306, %v4304
      %v4497 = vpack.c.b16 %v4309, %v4307
      %v4498 = vpack.c.b16 %v4310, %v4308
      %v4499 = vpack.c.b16 %v4313, %v4311
      %v4500 = vpack.c.b16 %v4314, %v4312
      %v4501 = vpack.c.b16 %v4317, %v4315
      %v4502 = vpack.c.b16 %v4318, %v4316
      %v4503 = vpack.c.b16 %v4321, %v4319
      %v4504 = vpack.c.b16 %v4322, %v4320
      %v4505 = vpack.c.b16 %v4325, %v4323
      %v4506 = vpack.c.b16 %v4326, %v4324
      %v4507 = vpack.c.b16 %v4329, %v4327
      %v4508 = vpack.c.b16 %v4330, %v4328
      %v4509 = vpack.c.b16 %v4333, %v4331
      %v4510 = vpack.c.b16 %v4334, %v4332
      %v4511 = vpack.c.b16 %v4337, %v4335
      %v4512 = vpack.c.b16 %v4338, %v4336
      %v4513 = vpack.c.b16 %v4341, %v4339
      %v4514 = vpack.c.b16 %v4342, %v4340
      %v4515 = vpack.c.b16 %v4345, %v4343
      %v4516 = vpack.c.b16 %v4346, %v4344
      %v4517 = vpack.c.b16 %v4349, %v4347
      %v4518 = vpack.c.b16 %v4350, %v4348
      %v4519 = vpack.c.b16 %v4353, %v4351
      %v4520 = vpack.c.b16 %v4354, %v4352
      %v4521 = vpack.c.b16 %v4357, %v4355
      %v4522 = vpack.c.b16 %v4358, %v4356
      %v4523 = vpack.c.b16 %v4361, %v4359
      %v4524 = vpack.c.b16 %v4362, %v4360
      %v4525 = vpack.c.b16 %v4365, %v4363
      %v4526 = vpack.c.b16 %v4366, %v4364
      %v4527 = vpack.c.b16 %v4369, %v4367
      %v4528 = vpack.c.b16 %v4370, %v4368
      %v4529 = vpack.c.b16 %v4373, %v4371
      %v4530 = vpack.c.b16 %v4374, %v4372
      %v4531 = vpack.c.b16 %v4377, %v4375
      %v4532 = vpack.c.b16 %v4378, %v4376
      %v4533 = vpack.c.b16 %v4381, %v4379
      %v4534 = vpack.c.b16 %v4382, %v4380
      %v4535 = vpack.c.b16 %v4385, %v4383
      %v4536 = vpack.c.b16 %v4386, %v4384
      %v4537 = vpack.c.b16 %v4389, %v4387
      %v4538 = vpack.c.b16 %v4390, %v4388
      %v4539 = vpack.c.b16 %v4393, %v4391
      %v4540 = vpack.c.b16 %v4394, %v4392
      %v4541 = vpack.c.b16 %v4397, %v4395
      %v4542 = vpack.c.b16 %v4398, %v4396
      %v4543 = vpack.c.b16 %v4401, %v4399
      %v4544 = vpack.c.b16 %v4402, %v4400
      %v4545 = vpack.c.b16 %v4405, %v4403
      %v4546 = vpack.c.b16 %v4406, %v4404
      %v4547 = vpack.c.b16 %v4409, %v4407
      %v4548 = vpack.c.b16 %v4410, %v4408
      %v4549 = vpack.c.b16 %v4413, %v4411
      %v4550 = vpack.c.b16 %v4414, %v4412
      %v4551 = vpack.c.b16 %v4417, %v4415
      %v4552 = vpack.c.b16 %v4418, %v4416
      %v4553 = vpack.c.b16 %v4421, %v4419
      %v4554 = vpack.c.b16 %v4422, %v4420
      %v4555 = vpack.c.b16 %v4425, %v4423
      %v4556 = vpack.c.b16 %v4426, %v4424
      %v4557 = vpack.c.b16 %v4429, %v4427
      %v4558 = vpack.c.b16 %v4430, %v4428
      %v4559 = vpack.c.b16 %v4433, %v4431
      %v4560 = vpack.c.b16 %v4434, %v4432
      %v4561 = vpack.c.b16 %v4437, %v4435
      %v4562 = vpack.c.b16 %v4438, %v4436
      %v4563 = vpack.c.b16 %v4441, %v4439
      %v4564 = vpack.c.b16 %v4442, %v4440
      %v4565 = vpack.c.b16 %v4445, %v4443
      %v4566 = vpack.c.b16 %v4446, %v4444
      %v4567 = vpack.c.b16 %v4449, %v4447
      %v4568 = vpack.c.b16 %v4450, %v4448
      %v4569 = vpack.c.b16 %v4453, %v4451
      %v4570 = vpack.c.b16 %v4454, %v4452
      %v4571 = vpack.c.b16 %v4457, %v4455
      %v4572 = vpack.c.b16 %v4458, %v4456
      %v4573 = vpack.c.b16 %v4461, %v4459
      %v4574 = vpack.c.b16 %v4462, %v4460
      %v4575 = vpack.c.b16 %v4465, %v4463
      %v4576 = vpack.c.b16 %v4466, %v4464
      %v4577 = vpack.c.b16 %v4469, %v4467
      %v4578 = vpack.c.b16 %v4470, %v4468
      %v4579 = vpack.c.b16 %v4473, %v4471
      %v4580 = vpack.c.b16 %v4474, %v4472
      %v4581 = vpack.c.b16 %v4477, %v4475
      %v4582 = vpack.c.b16 %v4478, %v4476
      %v4583 = vpack.c.b16 %v4481, %v4479
      %v4584 = vpack.c.b16 %v4482, %v4480
      %v4585 = vpack.c.b16 %v4485, %v4483
      %v4586 = vpack.c.b16 %v4486, %v4484
      %v4587 = vpack.c.b16 %v4489, %v4487
      %v4588 = vpack.c.b16 %v4490, %v4488
      %v4589 = vpack.c.b16 %v4493, %v4491
      %v4590 = vpack.c.b16 %v4494, %v4492
      %4687 = vmatprep.subr.bf16.mxu0 %v4510
      %4688 = vmatpush1.bf16.msra.mxu0 %v4509
      %4689 = vmatprep.subr.bf16.mxu0 %v4508
      %4690 = vmatpush1.bf16.msra.mxu0 %v4507
      %4691 = vmatprep.subr.bf16.mxu0 %v4506
      %4692 = vmatpush1.bf16.msra.mxu0 %v4505
      %4693 = vmatprep.subr.bf16.mxu0 %v4504
      %4694 = vmatpush1.bf16.msra.mxu0 %v4503
      %4695 = vmatprep.subr.bf16.mxu0 %v4502
      %4696 = vmatpush1.bf16.msra.mxu0 %v4501
      %4697 = vmatprep.subr.bf16.mxu0 %v4500
      %4698 = vmatpush1.bf16.msra.mxu0 %v4499
      %4699 = vmatprep.subr.bf16.mxu0 %v4498
      %4700 = vmatpush1.bf16.msra.mxu0 %v4497
      %4701 = vmatprep.subr.bf16.mxu0 %v4496
      %4702 = vmatpush1.bf16.msra.mxu0 %v4495
      %4703 = vmatprep.subr.bf16.mxu0 %v4526
      %4704 = vmatpush2.bf16.msra.mxu0 %v4525
      %4705 = vmatprep.subr.bf16.mxu0 %v4524
      %4706 = vmatpush2.bf16.msra.mxu0 %v4523
      %4707 = vmatprep.subr.bf16.mxu0 %v4522
      %4708 = vmatpush2.bf16.msra.mxu0 %v4521
      %4709 = vmatprep.subr.bf16.mxu0 %v4520
      %4710 = vmatpush2.bf16.msra.mxu0 %v4519
      %4711 = vmatprep.subr.bf16.mxu0 %v4518
      %4712 = vmatpush2.bf16.msra.mxu0 %v4517
      %4713 = vmatprep.subr.bf16.mxu0 %v4516
      %4714 = vmatpush2.bf16.msra.mxu0 %v4515
      %4715 = vmatprep.subr.bf16.mxu0 %v4514
      %4716 = vmatpush2.bf16.msra.mxu0 %v4513
      %4717 = vmatprep.subr.bf16.mxu0 %v4512
      %4718 = vmatpush2.bf16.msra.mxu0 %v4511
      %4719 = vmatprep.mubr.bf16.mxu0 %v3203
      %4720 = vmatmul.mubr.bf16.gmra.mxu0 %v3202
      %v4721 = vpop.f32.mrf.mxu0
      %v4722 = vadd.f32 0.0, %v4721
      %v4723 = vpop.f32.mrf.mxu0
      %v4724 = vadd.f32 0.0, %v4723
      %v4725 = vpop.f32.mrf.mxu0
      %v4726 = vadd.f32 0.0, %v4725
      %v4727 = vpop.f32.mrf.mxu0
      %v4728 = vadd.f32 0.0, %v4727
      %4729 = vmatprep.mubr.bf16.mxu0 %v3209
      %4730 = vmatmul.mubr.bf16.gmra.mxu0 %v3208
      %v4731 = vpop.f32.mrf.mxu0
      %v4732 = vadd.f32 0.0, %v4731
      %v4733 = vpop.f32.mrf.mxu0
      %v4734 = vadd.f32 0.0, %v4733
      %v4735 = vpop.f32.mrf.mxu0
      %v4736 = vadd.f32 0.0, %v4735
      %v4737 = vpop.f32.mrf.mxu0
      %v4738 = vadd.f32 0.0, %v4737
      %4739 = vmatprep.mubr.bf16.mxu0 %v3215
      %4740 = vmatmul.mubr.bf16.gmra.mxu0 %v3214
      %v4741 = vpop.f32.mrf.mxu0
      %v4742 = vadd.f32 0.0, %v4741
      %v4743 = vpop.f32.mrf.mxu0
      %v4744 = vadd.f32 0.0, %v4743
      %v4745 = vpop.f32.mrf.mxu0
      %v4746 = vadd.f32 0.0, %v4745
      %v4747 = vpop.f32.mrf.mxu0
      %v4748 = vadd.f32 0.0, %v4747
      %4749 = vmatprep.mubr.bf16.mxu0 %v3221
      %4750 = vmatmul.mubr.bf16.gmra.mxu0 %v3220
      %v4751 = vpop.f32.mrf.mxu0
      %v4752 = vadd.f32 0.0, %v4751
      %v4753 = vpop.f32.mrf.mxu0
      %v4754 = vadd.f32 0.0, %v4753
      %v4755 = vpop.f32.mrf.mxu0
      %v4756 = vadd.f32 0.0, %v4755
      %v4757 = vpop.f32.mrf.mxu0
      %v4758 = vadd.f32 0.0, %v4757
      %4759 = vmatprep.mubr.bf16.mxu0 %v3227
      %4760 = vmatmul.mubr.bf16.gmra.mxu0 %v3226
      %v4761 = vpop.f32.mrf.mxu0
      %v4762 = vadd.f32 0.0, %v4761
      %v4763 = vpop.f32.mrf.mxu0
      %v4764 = vadd.f32 0.0, %v4763
      %v4765 = vpop.f32.mrf.mxu0
      %v4766 = vadd.f32 0.0, %v4765
      %v4767 = vpop.f32.mrf.mxu0
      %v4768 = vadd.f32 0.0, %v4767
      %4769 = vmatprep.mubr.bf16.mxu0 %v3233
      %4770 = vmatmul.mubr.bf16.gmra.mxu0 %v3232
      %v4771 = vpop.f32.mrf.mxu0
      %v4772 = vadd.f32 0.0, %v4771
      %v4773 = vpop.f32.mrf.mxu0
      %v4774 = vadd.f32 0.0, %v4773
      %v4775 = vpop.f32.mrf.mxu0
      %v4776 = vadd.f32 0.0, %v4775
      %v4777 = vpop.f32.mrf.mxu0
      %v4778 = vadd.f32 0.0, %v4777
      %4779 = vdwg.mxu0
      %4780 = vmatprep.subr.bf16.mxu0 %v4542
      %4781 = vmatpush1.bf16.msra.mxu0 %v4541
      %4782 = vmatprep.subr.bf16.mxu0 %v4540
      %4783 = vmatpush1.bf16.msra.mxu0 %v4539
      %4784 = vmatprep.subr.bf16.mxu0 %v4538
      %4785 = vmatpush1.bf16.msra.mxu0 %v4537
      %4786 = vmatprep.subr.bf16.mxu0 %v4536
      %4787 = vmatpush1.bf16.msra.mxu0 %v4535
      %4788 = vmatprep.subr.bf16.mxu0 %v4534
      %4789 = vmatpush1.bf16.msra.mxu0 %v4533
      %4790 = vmatprep.subr.bf16.mxu0 %v4532
      %4791 = vmatpush1.bf16.msra.mxu0 %v4531
      %4792 = vmatprep.subr.bf16.mxu0 %v4530
      %4793 = vmatpush1.bf16.msra.mxu0 %v4529
      %4794 = vmatprep.subr.bf16.mxu0 %v4528
      %4795 = vmatpush1.bf16.msra.mxu0 %v4527
      %4796 = vmatprep.subr.bf16.mxu0 %v4558
      %4797 = vmatpush2.bf16.msra.mxu0 %v4557
      %4798 = vmatprep.subr.bf16.mxu0 %v4556
      %4799 = vmatpush2.bf16.msra.mxu0 %v4555
      %4800 = vmatprep.subr.bf16.mxu0 %v4554
      %4801 = vmatpush2.bf16.msra.mxu0 %v4553
      %4802 = vmatprep.subr.bf16.mxu0 %v4552
      %4803 = vmatpush2.bf16.msra.mxu0 %v4551
      %4804 = vmatprep.subr.bf16.mxu0 %v4550
      %4805 = vmatpush2.bf16.msra.mxu0 %v4549
      %4806 = vmatprep.subr.bf16.mxu0 %v4548
      %4807 = vmatpush2.bf16.msra.mxu0 %v4547
      %4808 = vmatprep.subr.bf16.mxu0 %v4546
      %4809 = vmatpush2.bf16.msra.mxu0 %v4545
      %4810 = vmatprep.subr.bf16.mxu0 %v4544
      %4811 = vmatpush2.bf16.msra.mxu0 %v4543
      %4812 = vmatprep.mubr.bf16.mxu0 %v3205
      %4813 = vmatmul.mubr.bf16.gmra.mxu0 %v3204
      %v4814 = vpop.f32.mrf.mxu0
      %v4815 = vadd.f32 %v4722, %v4814
      %v4816 = vpop.f32.mrf.mxu0
      %v4817 = vadd.f32 %v4724, %v4816
      %v4818 = vpop.f32.mrf.mxu0
      %v4819 = vadd.f32 %v4726, %v4818
      %v4820 = vpop.f32.mrf.mxu0
      %v4821 = vadd.f32 %v4728, %v4820
      %4822 = vmatprep.mubr.bf16.mxu0 %v3211
      %4823 = vmatmul.mubr.bf16.gmra.mxu0 %v3210
      %v4824 = vpop.f32.mrf.mxu0
      %v4825 = vadd.f32 %v4732, %v4824
      %v4826 = vpop.f32.mrf.mxu0
      %v4827 = vadd.f32 %v4734, %v4826
      %v4828 = vpop.f32.mrf.mxu0
      %v4829 = vadd.f32 %v4736, %v4828
      %v4830 = vpop.f32.mrf.mxu0
      %v4831 = vadd.f32 %v4738, %v4830
      %4832 = vmatprep.mubr.bf16.mxu0 %v3217
      %4833 = vmatmul.mubr.bf16.gmra.mxu0 %v3216
      %v4834 = vpop.f32.mrf.mxu0
      %v4835 = vadd.f32 %v4742, %v4834
      %v4836 = vpop.f32.mrf.mxu0
      %v4837 = vadd.f32 %v4744, %v4836
      %v4838 = vpop.f32.mrf.mxu0
      %v4839 = vadd.f32 %v4746, %v4838
      %v4840 = vpop.f32.mrf.mxu0
      %v4841 = vadd.f32 %v4748, %v4840
      %4842 = vmatprep.mubr.bf16.mxu0 %v3223
      %4843 = vmatmul.mubr.bf16.gmra.mxu0 %v3222
      %v4844 = vpop.f32.mrf.mxu0
      %v4845 = vadd.f32 %v4752, %v4844
      %v4846 = vpop.f32.mrf.mxu0
      %v4847 = vadd.f32 %v4754, %v4846
      %v4848 = vpop.f32.mrf.mxu0
      %v4849 = vadd.f32 %v4756, %v4848
      %v4850 = vpop.f32.mrf.mxu0
      %v4851 = vadd.f32 %v4758, %v4850
      %4852 = vmatprep.mubr.bf16.mxu0 %v3229
      %4853 = vmatmul.mubr.bf16.gmra.mxu0 %v3228
      %v4854 = vpop.f32.mrf.mxu0
      %v4855 = vadd.f32 %v4762, %v4854
      %v4856 = vpop.f32.mrf.mxu0
      %v4857 = vadd.f32 %v4764, %v4856
      %v4858 = vpop.f32.mrf.mxu0
      %v4859 = vadd.f32 %v4766, %v4858
      %v4860 = vpop.f32.mrf.mxu0
      %v4861 = vadd.f32 %v4768, %v4860
      %4862 = vmatprep.mubr.bf16.mxu0 %v3235
      %4863 = vmatmul.mubr.bf16.gmra.mxu0 %v3234
      %v4864 = vpop.f32.mrf.mxu0
      %v4865 = vadd.f32 %v4772, %v4864
      %v4866 = vpop.f32.mrf.mxu0
      %v4867 = vadd.f32 %v4774, %v4866
      %v4868 = vpop.f32.mrf.mxu0
      %v4869 = vadd.f32 %v4776, %v4868
      %v4870 = vpop.f32.mrf.mxu0
      %v4871 = vadd.f32 %v4778, %v4870
      %4872 = vdwg.mxu0
      %4873 = vmatprep.subr.bf16.mxu0 %v4574
      %4874 = vmatpush1.bf16.msra.mxu0 %v4573
      %4875 = vmatprep.subr.bf16.mxu0 %v4572
      %4876 = vmatpush1.bf16.msra.mxu0 %v4571
      %4877 = vmatprep.subr.bf16.mxu0 %v4570
      %4878 = vmatpush1.bf16.msra.mxu0 %v4569
      %4879 = vmatprep.subr.bf16.mxu0 %v4568
      %4880 = vmatpush1.bf16.msra.mxu0 %v4567
      %4881 = vmatprep.subr.bf16.mxu0 %v4566
      %4882 = vmatpush1.bf16.msra.mxu0 %v4565
      %4883 = vmatprep.subr.bf16.mxu0 %v4564
      %4884 = vmatpush1.bf16.msra.mxu0 %v4563
      %4885 = vmatprep.subr.bf16.mxu0 %v4562
      %4886 = vmatpush1.bf16.msra.mxu0 %v4561
      %4887 = vmatprep.subr.bf16.mxu0 %v4560
      %4888 = vmatpush1.bf16.msra.mxu0 %v4559
      %4889 = vmatprep.subr.bf16.mxu0 %v4590
      %4890 = vmatpush2.bf16.msra.mxu0 %v4589
      %4891 = vmatprep.subr.bf16.mxu0 %v4588
      %4892 = vmatpush2.bf16.msra.mxu0 %v4587
      %4893 = vmatprep.subr.bf16.mxu0 %v4586
      %4894 = vmatpush2.bf16.msra.mxu0 %v4585
      %4895 = vmatprep.subr.bf16.mxu0 %v4584
      %4896 = vmatpush2.bf16.msra.mxu0 %v4583
      %4897 = vmatprep.subr.bf16.mxu0 %v4582
      %4898 = vmatpush2.bf16.msra.mxu0 %v4581
      %4899 = vmatprep.subr.bf16.mxu0 %v4580
      %4900 = vmatpush2.bf16.msra.mxu0 %v4579
      %4901 = vmatprep.subr.bf16.mxu0 %v4578
      %4902 = vmatpush2.bf16.msra.mxu0 %v4577
      %4903 = vmatprep.subr.bf16.mxu0 %v4576
      %4904 = vmatpush2.bf16.msra.mxu0 %v4575
      %4905 = vmatprep.mubr.bf16.mxu0 %v3207
      %4906 = vmatmul.mubr.bf16.gmra.mxu0 %v3206
      %v4907 = vpop.f32.mrf.mxu0
      %v4908 = vadd.f32 %v4815, %v4907
      %v4909 = vpop.f32.mrf.mxu0
      %v4910 = vadd.f32 %v4817, %v4909
      %v4911 = vpop.f32.mrf.mxu0
      %v4912 = vadd.f32 %v4819, %v4911
      %v4913 = vpop.f32.mrf.mxu0
      %v4914 = vadd.f32 %v4821, %v4913
      %4915 = vmatprep.mubr.bf16.mxu0 %v3213
      %4916 = vmatmul.mubr.bf16.gmra.mxu0 %v3212
      %v4917 = vpop.f32.mrf.mxu0
      %v4918 = vadd.f32 %v4825, %v4917
      %v4919 = vpop.f32.mrf.mxu0
      %v4920 = vadd.f32 %v4827, %v4919
      %v4921 = vpop.f32.mrf.mxu0
      %v4922 = vadd.f32 %v4829, %v4921
      %v4923 = vpop.f32.mrf.mxu0
      %v4924 = vadd.f32 %v4831, %v4923
      %4925 = vmatprep.mubr.bf16.mxu0 %v3219
      %4926 = vmatmul.mubr.bf16.gmra.mxu0 %v3218
      %v4927 = vpop.f32.mrf.mxu0
      %v4928 = vadd.f32 %v4835, %v4927
      %v4929 = vpop.f32.mrf.mxu0
      %v4930 = vadd.f32 %v4837, %v4929
      %v4931 = vpop.f32.mrf.mxu0
      %v4932 = vadd.f32 %v4839, %v4931
      %v4933 = vpop.f32.mrf.mxu0
      %v4934 = vadd.f32 %v4841, %v4933
      %4935 = vmatprep.mubr.bf16.mxu0 %v3225
      %4936 = vmatmul.mubr.bf16.gmra.mxu0 %v3224
      %v4937 = vpop.f32.mrf.mxu0
      %v4938 = vadd.f32 %v4845, %v4937
      %v4939 = vpop.f32.mrf.mxu0
      %v4940 = vadd.f32 %v4847, %v4939
      %v4941 = vpop.f32.mrf.mxu0
      %v4942 = vadd.f32 %v4849, %v4941
      %v4943 = vpop.f32.mrf.mxu0
      %v4944 = vadd.f32 %v4851, %v4943
      %4945 = vmatprep.mubr.bf16.mxu0 %v3231
      %4946 = vmatmul.mubr.bf16.gmra.mxu0 %v3230
      %v4947 = vpop.f32.mrf.mxu0
      %v4948 = vadd.f32 %v4855, %v4947
      %v4949 = vpop.f32.mrf.mxu0
      %v4950 = vadd.f32 %v4857, %v4949
      %v4951 = vpop.f32.mrf.mxu0
      %v4952 = vadd.f32 %v4859, %v4951
      %v4953 = vpop.f32.mrf.mxu0
      %v4954 = vadd.f32 %v4861, %v4953
      %4955 = vmatprep.mubr.bf16.mxu0 %v3237
      %4956 = vmatmul.mubr.bf16.gmra.mxu0 %v3236
      %v4957 = vpop.f32.mrf.mxu0
      %v4958 = vadd.f32 %v4865, %v4957
      %v4959 = vpop.f32.mrf.mxu0
      %v4960 = vadd.f32 %v4867, %v4959
      %v4961 = vpop.f32.mrf.mxu0
      %v4962 = vadd.f32 %v4869, %v4961
      %v4963 = vpop.f32.mrf.mxu0
      %v4964 = vadd.f32 %v4871, %v4963
      %4965 = vdwg.mxu0
      %v4990 = vrot.slane %v4908, 1
      %v4991 = vrot.slane %v4912, 1
      %v4992 = vsel %vm2067, %v4990, %v4991
      %v4993 = vrot.slane %v4910, 1
      %v4994 = vrot.slane %v4914, 1
      %v4995 = vsel %vm2067, %v4993, %v4994
      %v4996 = vrot.slane %v4918, 1
      %v4997 = vsel %vm2067, %v4991, %v4996
      %v4998 = vrot.slane %v4920, 1
      %v4999 = vsel %vm2067, %v4994, %v4998
      %v5000 = vrot.slane %v4922, 1
      %v5001 = vsel %vm2067, %v4996, %v5000
      %v5002 = vrot.slane %v4924, 1
      %v5003 = vsel %vm2067, %v4998, %v5002
      %v5004 = vrot.slane %v4928, 1
      %v5005 = vsel %vm2067, %v5000, %v5004
      %v5006 = vrot.slane %v4930, 1
      %v5007 = vsel %vm2067, %v5002, %v5006
      %v5008 = vrot.slane %v4932, 1
      %v5009 = vsel %vm2067, %v5004, %v5008
      %v5010 = vrot.slane %v4934, 1
      %v5011 = vsel %vm2067, %v5006, %v5010
      %v5012 = vrot.slane %v4938, 1
      %v5013 = vsel %vm2067, %v5008, %v5012
      %v5014 = vrot.slane %v4940, 1
      %v5015 = vsel %vm2067, %v5010, %v5014
      %v5016 = vrot.slane %v4942, 1
      %v5017 = vsel %vm2067, %v5012, %v5016
      %v5018 = vrot.slane %v4944, 1
      %v5019 = vsel %vm2067, %v5014, %v5018
      %v5020 = vrot.slane %v4948, 1
      %v5021 = vsel %vm2067, %v5016, %v5020
      %v5022 = vrot.slane %v4950, 1
      %v5023 = vsel %vm2067, %v5018, %v5022
      %v5024 = vrot.slane %v4952, 1
      %v5025 = vsel %vm2067, %v5020, %v5024
      %v5026 = vrot.slane %v4954, 1
      %v5027 = vsel %vm2067, %v5022, %v5026
      %v5028 = vrot.slane %v4958, 1
      %v5029 = vsel %vm2067, %v5024, %v5028
      %v5030 = vrot.slane %v4960, 1
      %v5031 = vsel %vm2067, %v5026, %v5030
      %v5032 = vrot.slane %v4962, 1
      %v5033 = vsel %vm2067, %v5028, %v5032
      %v5034 = vrot.slane %v4964, 1
      %v5035 = vsel %vm2067, %v5030, %v5034
      %v5058 = vadd.f32 %v4088, %v4992
      %v5059 = vadd.f32 %v4089, %v4995
      %v5060 = vadd.f32 %v4090, %v4997
      %v5061 = vadd.f32 %v4091, %v4999
      %v5062 = vadd.f32 %v4092, %v5001
      %v5063 = vadd.f32 %v4093, %v5003
      %v5064 = vadd.f32 %v4094, %v5005
      %v5065 = vadd.f32 %v4095, %v5007
      %v5066 = vadd.f32 %v4096, %v5009
      %v5067 = vadd.f32 %v4097, %v5011
      %v5068 = vadd.f32 %v4098, %v5013
      %v5069 = vadd.f32 %v4099, %v5015
      %v5070 = vadd.f32 %v4100, %v5017
      %v5071 = vadd.f32 %v4101, %v5019
      %v5072 = vadd.f32 %v4102, %v5021
      %v5073 = vadd.f32 %v4103, %v5023
      %v5074 = vadd.f32 %v4104, %v5025
      %v5075 = vadd.f32 %v4105, %v5027
      %v5076 = vadd.f32 %v4106, %v5029
      %v5077 = vadd.f32 %v4107, %v5031
      %v5078 = vadd.f32 %v4108, %v5033
      %v5079 = vadd.f32 %v4109, %v5035
      %s5080 = scalar_lea.vmem %s198, 6912
      %v5081 = vld [vmem:[%s5080] sm:$0xff]
      %v5082 = vld [vmem:[%s5080 + $0x8] sm:$0xff]
      %v5083 = vld [vmem:[%s5080 + $0x10] sm:$0xff]
      %v5084 = vld [vmem:[%s5080 + $0x18] sm:$0xff]
      %v5085 = vld [vmem:[%s5080 + $0x20] sm:$0xff]
      %v5086 = vld [vmem:[%s5080 + $0x28] sm:$0xff]
      %v5087 = vld [vmem:[%s5080 + $0x30] sm:$0xff]
      %v5088 = vld [vmem:[%s5080 + $0x38] sm:$0xff]
      %v5089 = vld [vmem:[%s5080 + $0x40] sm:$0xff]
      %v5090 = vld [vmem:[%s5080 + $0x48] sm:$0xff]
      %v5091 = vld [vmem:[%s5080 + $0x50] sm:$0xff]
      %v5092 = vld [vmem:[%s5080 + $0x58] sm:$0xff]
      %v5093 = vld [vmem:[%s5080 + $0x60] sm:$0xff]
      %v5094 = vld [vmem:[%s5080 + $0x68] sm:$0xff]
      %v5095 = vld [vmem:[%s5080 + $0x70] sm:$0xff]
      %v5096 = vld [vmem:[%s5080 + $0x78] sm:$0xff]
      %v5097 = vld [vmem:[%s5080 + $0x80] sm:$0xff]
      %v5098 = vld [vmem:[%s5080 + $0x88] sm:$0xff]
      %v5099 = vld [vmem:[%s5080 + $0x90] sm:$0xff]
      %v5100 = vld [vmem:[%s5080 + $0x98] sm:$0xff]
      %v5101 = vld [vmem:[%s5080 + $0xa0] sm:$0xff]
      %v5102 = vld [vmem:[%s5080 + $0xa8] sm:$0xff]
      %v5103 = vld [vmem:[%s5080 + $0xb0] sm:$0xff]
      %v5104 = vld [vmem:[%s5080 + $0xb8] sm:$0xff]
      %v5105 = vld [vmem:[%s5080 + $0xc0] sm:$0xff]
      %v5106 = vld [vmem:[%s5080 + $0xc8] sm:$0xff]
      %v5107 = vld [vmem:[%s5080 + $0xd0] sm:$0xff]
      %v5108 = vld [vmem:[%s5080 + $0xd8] sm:$0xff]
      %v5109 = vld [vmem:[%s5080 + $0xe0] sm:$0xff]
      %v5110 = vld [vmem:[%s5080 + $0xe8] sm:$0xff]
      %v5111 = vld [vmem:[%s5080 + $0xf0] sm:$0xff]
      %v5112 = vld [vmem:[%s5080 + $0xf8] sm:$0xff]
      %v5113 = vld [vmem:[%s5080 + $0x100] sm:$0xff]
      %v5114 = vld [vmem:[%s5080 + $0x108] sm:$0xff]
      %v5115 = vld [vmem:[%s5080 + $0x110] sm:$0xff]
      %v5116 = vld [vmem:[%s5080 + $0x118] sm:$0xff]
      %v5117 = vld [vmem:[%s5080 + $0x120] sm:$0xff]
      %v5118 = vld [vmem:[%s5080 + $0x128] sm:$0xff]
      %v5119 = vld [vmem:[%s5080 + $0x130] sm:$0xff]
      %v5120 = vld [vmem:[%s5080 + $0x138] sm:$0xff]
      %v5121 = vld [vmem:[%s5080 + $0x140] sm:$0xff]
      %v5122 = vld [vmem:[%s5080 + $0x148] sm:$0xff]
      %v5123 = vld [vmem:[%s5080 + $0x150] sm:$0xff]
      %v5124 = vld [vmem:[%s5080 + $0x158] sm:$0xff]
      %v5125 = vld [vmem:[%s5080 + $0x160] sm:$0xff]
      %v5126 = vld [vmem:[%s5080 + $0x168] sm:$0xff]
      %v5127 = vld [vmem:[%s5080 + $0x170] sm:$0xff]
      %v5128 = vld [vmem:[%s5080 + $0x178] sm:$0xff]
      %v5129 = vld [vmem:[%s5080 + $0x180] sm:$0xff]
      %v5130 = vld [vmem:[%s5080 + $0x188] sm:$0xff]
      %v5131 = vld [vmem:[%s5080 + $0x190] sm:$0xff]
      %v5132 = vld [vmem:[%s5080 + $0x198] sm:$0xff]
      %v5133 = vld [vmem:[%s5080 + $0x1a0] sm:$0xff]
      %v5134 = vld [vmem:[%s5080 + $0x1a8] sm:$0xff]
      %v5135 = vld [vmem:[%s5080 + $0x1b0] sm:$0xff]
      %v5136 = vld [vmem:[%s5080 + $0x1b8] sm:$0xff]
      %v5137 = vld [vmem:[%s5080 + $0x1c0] sm:$0xff]
      %v5138 = vld [vmem:[%s5080 + $0x1c8] sm:$0xff]
      %v5139 = vld [vmem:[%s5080 + $0x1d0] sm:$0xff]
      %v5140 = vld [vmem:[%s5080 + $0x1d8] sm:$0xff]
      %v5141 = vld [vmem:[%s5080 + $0x1e0] sm:$0xff]
      %v5142 = vld [vmem:[%s5080 + $0x1e8] sm:$0xff]
      %v5143 = vld [vmem:[%s5080 + $0x1f0] sm:$0xff]
      %v5144 = vld [vmem:[%s5080 + $0x1f8] sm:$0xff]
      %v5145 = vld [vmem:[%s5080 + $0x200] sm:$0xff]
      %v5146 = vld [vmem:[%s5080 + $0x208] sm:$0xff]
      %v5147 = vld [vmem:[%s5080 + $0x210] sm:$0xff]
      %v5148 = vld [vmem:[%s5080 + $0x218] sm:$0xff]
      %v5149 = vld [vmem:[%s5080 + $0x220] sm:$0xff]
      %v5150 = vld [vmem:[%s5080 + $0x228] sm:$0xff]
      %v5151 = vld [vmem:[%s5080 + $0x230] sm:$0xff]
      %v5152 = vld [vmem:[%s5080 + $0x238] sm:$0xff]
      %v5153 = vld [vmem:[%s5080 + $0x240] sm:$0xff]
      %v5154 = vld [vmem:[%s5080 + $0x248] sm:$0xff]
      %v5155 = vld [vmem:[%s5080 + $0x250] sm:$0xff]
      %v5156 = vld [vmem:[%s5080 + $0x258] sm:$0xff]
      %v5157 = vld [vmem:[%s5080 + $0x260] sm:$0xff]
      %v5158 = vld [vmem:[%s5080 + $0x268] sm:$0xff]
      %v5159 = vld [vmem:[%s5080 + $0x270] sm:$0xff]
      %v5160 = vld [vmem:[%s5080 + $0x278] sm:$0xff]
      %v5161 = vld [vmem:[%s5080 + $0x280] sm:$0xff]
      %v5162 = vld [vmem:[%s5080 + $0x288] sm:$0xff]
      %v5163 = vld [vmem:[%s5080 + $0x290] sm:$0xff]
      %v5164 = vld [vmem:[%s5080 + $0x298] sm:$0xff]
      %v5165 = vld [vmem:[%s5080 + $0x2a0] sm:$0xff]
      %v5166 = vld [vmem:[%s5080 + $0x2a8] sm:$0xff]
      %v5167 = vld [vmem:[%s5080 + $0x2b0] sm:$0xff]
      %v5168 = vld [vmem:[%s5080 + $0x2b8] sm:$0xff]
      %v5169 = vld [vmem:[%s5080 + $0x2c0] sm:$0xff]
      %v5170 = vld [vmem:[%s5080 + $0x2c8] sm:$0xff]
      %v5171 = vld [vmem:[%s5080 + $0x2d0] sm:$0xff]
      %v5172 = vld [vmem:[%s5080 + $0x2d8] sm:$0xff]
      %v5173 = vld [vmem:[%s5080 + $0x2e0] sm:$0xff]
      %v5174 = vld [vmem:[%s5080 + $0x2e8] sm:$0xff]
      %v5175 = vld [vmem:[%s5080 + $0x2f0] sm:$0xff]
      %v5176 = vld [vmem:[%s5080 + $0x2f8] sm:$0xff]
      %v5273 = vunpack.c.l.b16 %v5081
      %v5274 = vunpack.c.h.b16 %v5081
      %v5275 = vunpack.c.l.b16 %v5082
      %v5276 = vunpack.c.h.b16 %v5082
      %v5277 = vunpack.c.l.b16 %v5083
      %v5278 = vunpack.c.h.b16 %v5083
      %v5279 = vunpack.c.l.b16 %v5084
      %v5280 = vunpack.c.h.b16 %v5084
      %v5281 = vunpack.c.l.b16 %v5085
      %v5282 = vunpack.c.h.b16 %v5085
      %v5283 = vunpack.c.l.b16 %v5086
      %v5284 = vunpack.c.h.b16 %v5086
      %v5285 = vunpack.c.l.b16 %v5087
      %v5286 = vunpack.c.h.b16 %v5087
      %v5287 = vunpack.c.l.b16 %v5088
      %v5288 = vunpack.c.h.b16 %v5088
      %v5289 = vunpack.c.l.b16 %v5089
      %v5290 = vunpack.c.h.b16 %v5089
      %v5291 = vunpack.c.l.b16 %v5090
      %v5292 = vunpack.c.h.b16 %v5090
      %v5293 = vunpack.c.l.b16 %v5091
      %v5294 = vunpack.c.h.b16 %v5091
      %v5295 = vunpack.c.l.b16 %v5092
      %v5296 = vunpack.c.h.b16 %v5092
      %v5297 = vunpack.c.l.b16 %v5093
      %v5298 = vunpack.c.h.b16 %v5093
      %v5299 = vunpack.c.l.b16 %v5094
      %v5300 = vunpack.c.h.b16 %v5094
      %v5301 = vunpack.c.l.b16 %v5095
      %v5302 = vunpack.c.h.b16 %v5095
      %v5303 = vunpack.c.l.b16 %v5096
      %v5304 = vunpack.c.h.b16 %v5096
      %v5305 = vunpack.c.l.b16 %v5097
      %v5306 = vunpack.c.h.b16 %v5097
      %v5307 = vunpack.c.l.b16 %v5098
      %v5308 = vunpack.c.h.b16 %v5098
      %v5309 = vunpack.c.l.b16 %v5099
      %v5310 = vunpack.c.h.b16 %v5099
      %v5311 = vunpack.c.l.b16 %v5100
      %v5312 = vunpack.c.h.b16 %v5100
      %v5313 = vunpack.c.l.b16 %v5101
      %v5314 = vunpack.c.h.b16 %v5101
      %v5315 = vunpack.c.l.b16 %v5102
      %v5316 = vunpack.c.h.b16 %v5102
      %v5317 = vunpack.c.l.b16 %v5103
      %v5318 = vunpack.c.h.b16 %v5103
      %v5319 = vunpack.c.l.b16 %v5104
      %v5320 = vunpack.c.h.b16 %v5104
      %v5321 = vunpack.c.l.b16 %v5105
      %v5322 = vunpack.c.h.b16 %v5105
      %v5323 = vunpack.c.l.b16 %v5106
      %v5324 = vunpack.c.h.b16 %v5106
      %v5325 = vunpack.c.l.b16 %v5107
      %v5326 = vunpack.c.h.b16 %v5107
      %v5327 = vunpack.c.l.b16 %v5108
      %v5328 = vunpack.c.h.b16 %v5108
      %v5329 = vunpack.c.l.b16 %v5109
      %v5330 = vunpack.c.h.b16 %v5109
      %v5331 = vunpack.c.l.b16 %v5110
      %v5332 = vunpack.c.h.b16 %v5110
      %v5333 = vunpack.c.l.b16 %v5111
      %v5334 = vunpack.c.h.b16 %v5111
      %v5335 = vunpack.c.l.b16 %v5112
      %v5336 = vunpack.c.h.b16 %v5112
      %v5337 = vunpack.c.l.b16 %v5113
      %v5338 = vunpack.c.h.b16 %v5113
      %v5339 = vunpack.c.l.b16 %v5114
      %v5340 = vunpack.c.h.b16 %v5114
      %v5341 = vunpack.c.l.b16 %v5115
      %v5342 = vunpack.c.h.b16 %v5115
      %v5343 = vunpack.c.l.b16 %v5116
      %v5344 = vunpack.c.h.b16 %v5116
      %v5345 = vunpack.c.l.b16 %v5117
      %v5346 = vunpack.c.h.b16 %v5117
      %v5347 = vunpack.c.l.b16 %v5118
      %v5348 = vunpack.c.h.b16 %v5118
      %v5349 = vunpack.c.l.b16 %v5119
      %v5350 = vunpack.c.h.b16 %v5119
      %v5351 = vunpack.c.l.b16 %v5120
      %v5352 = vunpack.c.h.b16 %v5120
      %v5353 = vunpack.c.l.b16 %v5121
      %v5354 = vunpack.c.h.b16 %v5121
      %v5355 = vunpack.c.l.b16 %v5122
      %v5356 = vunpack.c.h.b16 %v5122
      %v5357 = vunpack.c.l.b16 %v5123
      %v5358 = vunpack.c.h.b16 %v5123
      %v5359 = vunpack.c.l.b16 %v5124
      %v5360 = vunpack.c.h.b16 %v5124
      %v5361 = vunpack.c.l.b16 %v5125
      %v5362 = vunpack.c.h.b16 %v5125
      %v5363 = vunpack.c.l.b16 %v5126
      %v5364 = vunpack.c.h.b16 %v5126
      %v5365 = vunpack.c.l.b16 %v5127
      %v5366 = vunpack.c.h.b16 %v5127
      %v5367 = vunpack.c.l.b16 %v5128
      %v5368 = vunpack.c.h.b16 %v5128
      %v5369 = vunpack.c.l.b16 %v5129
      %v5370 = vunpack.c.h.b16 %v5129
      %v5371 = vunpack.c.l.b16 %v5130
      %v5372 = vunpack.c.h.b16 %v5130
      %v5373 = vunpack.c.l.b16 %v5131
      %v5374 = vunpack.c.h.b16 %v5131
      %v5375 = vunpack.c.l.b16 %v5132
      %v5376 = vunpack.c.h.b16 %v5132
      %v5377 = vunpack.c.l.b16 %v5133
      %v5378 = vunpack.c.h.b16 %v5133
      %v5379 = vunpack.c.l.b16 %v5134
      %v5380 = vunpack.c.h.b16 %v5134
      %v5381 = vunpack.c.l.b16 %v5135
      %v5382 = vunpack.c.h.b16 %v5135
      %v5383 = vunpack.c.l.b16 %v5136
      %v5384 = vunpack.c.h.b16 %v5136
      %v5385 = vunpack.c.l.b16 %v5137
      %v5386 = vunpack.c.h.b16 %v5137
      %v5387 = vunpack.c.l.b16 %v5138
      %v5388 = vunpack.c.h.b16 %v5138
      %v5389 = vunpack.c.l.b16 %v5139
      %v5390 = vunpack.c.h.b16 %v5139
      %v5391 = vunpack.c.l.b16 %v5140
      %v5392 = vunpack.c.h.b16 %v5140
      %v5393 = vunpack.c.l.b16 %v5141
      %v5394 = vunpack.c.h.b16 %v5141
      %v5395 = vunpack.c.l.b16 %v5142
      %v5396 = vunpack.c.h.b16 %v5142
      %v5397 = vunpack.c.l.b16 %v5143
      %v5398 = vunpack.c.h.b16 %v5143
      %v5399 = vunpack.c.l.b16 %v5144
      %v5400 = vunpack.c.h.b16 %v5144
      %v5401 = vunpack.c.l.b16 %v5145
      %v5402 = vunpack.c.h.b16 %v5145
      %v5403 = vunpack.c.l.b16 %v5146
      %v5404 = vunpack.c.h.b16 %v5146
      %v5405 = vunpack.c.l.b16 %v5147
      %v5406 = vunpack.c.h.b16 %v5147
      %v5407 = vunpack.c.l.b16 %v5148
      %v5408 = vunpack.c.h.b16 %v5148
      %v5409 = vunpack.c.l.b16 %v5149
      %v5410 = vunpack.c.h.b16 %v5149
      %v5411 = vunpack.c.l.b16 %v5150
      %v5412 = vunpack.c.h.b16 %v5150
      %v5413 = vunpack.c.l.b16 %v5151
      %v5414 = vunpack.c.h.b16 %v5151
      %v5415 = vunpack.c.l.b16 %v5152
      %v5416 = vunpack.c.h.b16 %v5152
      %v5417 = vunpack.c.l.b16 %v5153
      %v5418 = vunpack.c.h.b16 %v5153
      %v5419 = vunpack.c.l.b16 %v5154
      %v5420 = vunpack.c.h.b16 %v5154
      %v5421 = vunpack.c.l.b16 %v5155
      %v5422 = vunpack.c.h.b16 %v5155
      %v5423 = vunpack.c.l.b16 %v5156
      %v5424 = vunpack.c.h.b16 %v5156
      %v5425 = vunpack.c.l.b16 %v5157
      %v5426 = vunpack.c.h.b16 %v5157
      %v5427 = vunpack.c.l.b16 %v5158
      %v5428 = vunpack.c.h.b16 %v5158
      %v5429 = vunpack.c.l.b16 %v5159
      %v5430 = vunpack.c.h.b16 %v5159
      %v5431 = vunpack.c.l.b16 %v5160
      %v5432 = vunpack.c.h.b16 %v5160
      %v5433 = vunpack.c.l.b16 %v5161
      %v5434 = vunpack.c.h.b16 %v5161
      %v5435 = vunpack.c.l.b16 %v5162
      %v5436 = vunpack.c.h.b16 %v5162
      %v5437 = vunpack.c.l.b16 %v5163
      %v5438 = vunpack.c.h.b16 %v5163
      %v5439 = vunpack.c.l.b16 %v5164
      %v5440 = vunpack.c.h.b16 %v5164
      %v5441 = vunpack.c.l.b16 %v5165
      %v5442 = vunpack.c.h.b16 %v5165
      %v5443 = vunpack.c.l.b16 %v5166
      %v5444 = vunpack.c.h.b16 %v5166
      %v5445 = vunpack.c.l.b16 %v5167
      %v5446 = vunpack.c.h.b16 %v5167
      %v5447 = vunpack.c.l.b16 %v5168
      %v5448 = vunpack.c.h.b16 %v5168
      %v5449 = vunpack.c.l.b16 %v5169
      %v5450 = vunpack.c.h.b16 %v5169
      %v5451 = vunpack.c.l.b16 %v5170
      %v5452 = vunpack.c.h.b16 %v5170
      %v5453 = vunpack.c.l.b16 %v5171
      %v5454 = vunpack.c.h.b16 %v5171
      %v5455 = vunpack.c.l.b16 %v5172
      %v5456 = vunpack.c.h.b16 %v5172
      %v5457 = vunpack.c.l.b16 %v5173
      %v5458 = vunpack.c.h.b16 %v5173
      %v5459 = vunpack.c.l.b16 %v5174
      %v5460 = vunpack.c.h.b16 %v5174
      %v5461 = vunpack.c.l.b16 %v5175
      %v5462 = vunpack.c.h.b16 %v5175
      %v5463 = vunpack.c.l.b16 %v5176
      %v5464 = vunpack.c.h.b16 %v5176
      %v5465 = vpack.c.b16 %v5275, %v5273
      %v5466 = vpack.c.b16 %v5276, %v5274
      %v5467 = vpack.c.b16 %v5279, %v5277
      %v5468 = vpack.c.b16 %v5280, %v5278
      %v5469 = vpack.c.b16 %v5283, %v5281
      %v5470 = vpack.c.b16 %v5284, %v5282
      %v5471 = vpack.c.b16 %v5287, %v5285
      %v5472 = vpack.c.b16 %v5288, %v5286
      %v5473 = vpack.c.b16 %v5291, %v5289
      %v5474 = vpack.c.b16 %v5292, %v5290
      %v5475 = vpack.c.b16 %v5295, %v5293
      %v5476 = vpack.c.b16 %v5296, %v5294
      %v5477 = vpack.c.b16 %v5299, %v5297
      %v5478 = vpack.c.b16 %v5300, %v5298
      %v5479 = vpack.c.b16 %v5303, %v5301
      %v5480 = vpack.c.b16 %v5304, %v5302
      %v5481 = vpack.c.b16 %v5307, %v5305
      %v5482 = vpack.c.b16 %v5308, %v5306
      %v5483 = vpack.c.b16 %v5311, %v5309
      %v5484 = vpack.c.b16 %v5312, %v5310
      %v5485 = vpack.c.b16 %v5315, %v5313
      %v5486 = vpack.c.b16 %v5316, %v5314
      %v5487 = vpack.c.b16 %v5319, %v5317
      %v5488 = vpack.c.b16 %v5320, %v5318
      %v5489 = vpack.c.b16 %v5323, %v5321
      %v5490 = vpack.c.b16 %v5324, %v5322
      %v5491 = vpack.c.b16 %v5327, %v5325
      %v5492 = vpack.c.b16 %v5328, %v5326
      %v5493 = vpack.c.b16 %v5331, %v5329
      %v5494 = vpack.c.b16 %v5332, %v5330
      %v5495 = vpack.c.b16 %v5335, %v5333
      %v5496 = vpack.c.b16 %v5336, %v5334
      %v5497 = vpack.c.b16 %v5339, %v5337
      %v5498 = vpack.c.b16 %v5340, %v5338
      %v5499 = vpack.c.b16 %v5343, %v5341
      %v5500 = vpack.c.b16 %v5344, %v5342
      %v5501 = vpack.c.b16 %v5347, %v5345
      %v5502 = vpack.c.b16 %v5348, %v5346
      %v5503 = vpack.c.b16 %v5351, %v5349
      %v5504 = vpack.c.b16 %v5352, %v5350
      %v5505 = vpack.c.b16 %v5355, %v5353
      %v5506 = vpack.c.b16 %v5356, %v5354
      %v5507 = vpack.c.b16 %v5359, %v5357
      %v5508 = vpack.c.b16 %v5360, %v5358
      %v5509 = vpack.c.b16 %v5363, %v5361
      %v5510 = vpack.c.b16 %v5364, %v5362
      %v5511 = vpack.c.b16 %v5367, %v5365
      %v5512 = vpack.c.b16 %v5368, %v5366
      %v5513 = vpack.c.b16 %v5371, %v5369
      %v5514 = vpack.c.b16 %v5372, %v5370
      %v5515 = vpack.c.b16 %v5375, %v5373
      %v5516 = vpack.c.b16 %v5376, %v5374
      %v5517 = vpack.c.b16 %v5379, %v5377
      %v5518 = vpack.c.b16 %v5380, %v5378
      %v5519 = vpack.c.b16 %v5383, %v5381
      %v5520 = vpack.c.b16 %v5384, %v5382
      %v5521 = vpack.c.b16 %v5387, %v5385
      %v5522 = vpack.c.b16 %v5388, %v5386
      %v5523 = vpack.c.b16 %v5391, %v5389
      %v5524 = vpack.c.b16 %v5392, %v5390
      %v5525 = vpack.c.b16 %v5395, %v5393
      %v5526 = vpack.c.b16 %v5396, %v5394
      %v5527 = vpack.c.b16 %v5399, %v5397
      %v5528 = vpack.c.b16 %v5400, %v5398
      %v5529 = vpack.c.b16 %v5403, %v5401
      %v5530 = vpack.c.b16 %v5404, %v5402
      %v5531 = vpack.c.b16 %v5407, %v5405
      %v5532 = vpack.c.b16 %v5408, %v5406
      %v5533 = vpack.c.b16 %v5411, %v5409
      %v5534 = vpack.c.b16 %v5412, %v5410
      %v5535 = vpack.c.b16 %v5415, %v5413
      %v5536 = vpack.c.b16 %v5416, %v5414
      %v5537 = vpack.c.b16 %v5419, %v5417
      %v5538 = vpack.c.b16 %v5420, %v5418
      %v5539 = vpack.c.b16 %v5423, %v5421
      %v5540 = vpack.c.b16 %v5424, %v5422
      %v5541 = vpack.c.b16 %v5427, %v5425
      %v5542 = vpack.c.b16 %v5428, %v5426
      %v5543 = vpack.c.b16 %v5431, %v5429
      %v5544 = vpack.c.b16 %v5432, %v5430
      %v5545 = vpack.c.b16 %v5435, %v5433
      %v5546 = vpack.c.b16 %v5436, %v5434
      %v5547 = vpack.c.b16 %v5439, %v5437
      %v5548 = vpack.c.b16 %v5440, %v5438
      %v5549 = vpack.c.b16 %v5443, %v5441
      %v5550 = vpack.c.b16 %v5444, %v5442
      %v5551 = vpack.c.b16 %v5447, %v5445
      %v5552 = vpack.c.b16 %v5448, %v5446
      %v5553 = vpack.c.b16 %v5451, %v5449
      %v5554 = vpack.c.b16 %v5452, %v5450
      %v5555 = vpack.c.b16 %v5455, %v5453
      %v5556 = vpack.c.b16 %v5456, %v5454
      %v5557 = vpack.c.b16 %v5459, %v5457
      %v5558 = vpack.c.b16 %v5460, %v5458
      %v5559 = vpack.c.b16 %v5463, %v5461
      %v5560 = vpack.c.b16 %v5464, %v5462
      %5657 = vmatprep.subr.bf16.mxu0 %v5480
      %5658 = vmatpush1.bf16.msra.mxu0 %v5479
      %5659 = vmatprep.subr.bf16.mxu0 %v5478
      %5660 = vmatpush1.bf16.msra.mxu0 %v5477
      %5661 = vmatprep.subr.bf16.mxu0 %v5476
      %5662 = vmatpush1.bf16.msra.mxu0 %v5475
      %5663 = vmatprep.subr.bf16.mxu0 %v5474
      %5664 = vmatpush1.bf16.msra.mxu0 %v5473
      %5665 = vmatprep.subr.bf16.mxu0 %v5472
      %5666 = vmatpush1.bf16.msra.mxu0 %v5471
      %5667 = vmatprep.subr.bf16.mxu0 %v5470
      %5668 = vmatpush1.bf16.msra.mxu0 %v5469
      %5669 = vmatprep.subr.bf16.mxu0 %v5468
      %5670 = vmatpush1.bf16.msra.mxu0 %v5467
      %5671 = vmatprep.subr.bf16.mxu0 %v5466
      %5672 = vmatpush1.bf16.msra.mxu0 %v5465
      %5673 = vmatprep.subr.bf16.mxu0 %v5496
      %5674 = vmatpush2.bf16.msra.mxu0 %v5495
      %5675 = vmatprep.subr.bf16.mxu0 %v5494
      %5676 = vmatpush2.bf16.msra.mxu0 %v5493
      %5677 = vmatprep.subr.bf16.mxu0 %v5492
      %5678 = vmatpush2.bf16.msra.mxu0 %v5491
      %5679 = vmatprep.subr.bf16.mxu0 %v5490
      %5680 = vmatpush2.bf16.msra.mxu0 %v5489
      %5681 = vmatprep.subr.bf16.mxu0 %v5488
      %5682 = vmatpush2.bf16.msra.mxu0 %v5487
      %5683 = vmatprep.subr.bf16.mxu0 %v5486
      %5684 = vmatpush2.bf16.msra.mxu0 %v5485
      %5685 = vmatprep.subr.bf16.mxu0 %v5484
      %5686 = vmatpush2.bf16.msra.mxu0 %v5483
      %5687 = vmatprep.subr.bf16.mxu0 %v5482
      %5688 = vmatpush2.bf16.msra.mxu0 %v5481
      %5689 = vmatprep.mubr.bf16.mxu0 %v3203
      %5690 = vmatmul.mubr.bf16.gmra.mxu0 %v3202
      %v5691 = vpop.f32.mrf.mxu0
      %v5692 = vadd.f32 0.0, %v5691
      %v5693 = vpop.f32.mrf.mxu0
      %v5694 = vadd.f32 0.0, %v5693
      %v5695 = vpop.f32.mrf.mxu0
      %v5696 = vadd.f32 0.0, %v5695
      %v5697 = vpop.f32.mrf.mxu0
      %v5698 = vadd.f32 0.0, %v5697
      %5699 = vmatprep.mubr.bf16.mxu0 %v3209
      %5700 = vmatmul.mubr.bf16.gmra.mxu0 %v3208
      %v5701 = vpop.f32.mrf.mxu0
      %v5702 = vadd.f32 0.0, %v5701
      %v5703 = vpop.f32.mrf.mxu0
      %v5704 = vadd.f32 0.0, %v5703
      %v5705 = vpop.f32.mrf.mxu0
      %v5706 = vadd.f32 0.0, %v5705
      %v5707 = vpop.f32.mrf.mxu0
      %v5708 = vadd.f32 0.0, %v5707
      %5709 = vmatprep.mubr.bf16.mxu0 %v3215
      %5710 = vmatmul.mubr.bf16.gmra.mxu0 %v3214
      %v5711 = vpop.f32.mrf.mxu0
      %v5712 = vadd.f32 0.0, %v5711
      %v5713 = vpop.f32.mrf.mxu0
      %v5714 = vadd.f32 0.0, %v5713
      %v5715 = vpop.f32.mrf.mxu0
      %v5716 = vadd.f32 0.0, %v5715
      %v5717 = vpop.f32.mrf.mxu0
      %v5718 = vadd.f32 0.0, %v5717
      %5719 = vmatprep.mubr.bf16.mxu0 %v3221
      %5720 = vmatmul.mubr.bf16.gmra.mxu0 %v3220
      %v5721 = vpop.f32.mrf.mxu0
      %v5722 = vadd.f32 0.0, %v5721
      %v5723 = vpop.f32.mrf.mxu0
      %v5724 = vadd.f32 0.0, %v5723
      %v5725 = vpop.f32.mrf.mxu0
      %v5726 = vadd.f32 0.0, %v5725
      %v5727 = vpop.f32.mrf.mxu0
      %v5728 = vadd.f32 0.0, %v5727
      %5729 = vmatprep.mubr.bf16.mxu0 %v3227
      %5730 = vmatmul.mubr.bf16.gmra.mxu0 %v3226
      %v5731 = vpop.f32.mrf.mxu0
      %v5732 = vadd.f32 0.0, %v5731
      %v5733 = vpop.f32.mrf.mxu0
      %v5734 = vadd.f32 0.0, %v5733
      %v5735 = vpop.f32.mrf.mxu0
      %v5736 = vadd.f32 0.0, %v5735
      %v5737 = vpop.f32.mrf.mxu0
      %v5738 = vadd.f32 0.0, %v5737
      %5739 = vmatprep.mubr.bf16.mxu0 %v3233
      %5740 = vmatmul.mubr.bf16.gmra.mxu0 %v3232
      %v5741 = vpop.f32.mrf.mxu0
      %v5742 = vadd.f32 0.0, %v5741
      %v5743 = vpop.f32.mrf.mxu0
      %v5744 = vadd.f32 0.0, %v5743
      %v5745 = vpop.f32.mrf.mxu0
      %v5746 = vadd.f32 0.0, %v5745
      %v5747 = vpop.f32.mrf.mxu0
      %v5748 = vadd.f32 0.0, %v5747
      %5749 = vdwg.mxu0
      %5750 = vmatprep.subr.bf16.mxu0 %v5512
      %5751 = vmatpush1.bf16.msra.mxu0 %v5511
      %5752 = vmatprep.subr.bf16.mxu0 %v5510
      %5753 = vmatpush1.bf16.msra.mxu0 %v5509
      %5754 = vmatprep.subr.bf16.mxu0 %v5508
      %5755 = vmatpush1.bf16.msra.mxu0 %v5507
      %5756 = vmatprep.subr.bf16.mxu0 %v5506
      %5757 = vmatpush1.bf16.msra.mxu0 %v5505
      %5758 = vmatprep.subr.bf16.mxu0 %v5504
      %5759 = vmatpush1.bf16.msra.mxu0 %v5503
      %5760 = vmatprep.subr.bf16.mxu0 %v5502
      %5761 = vmatpush1.bf16.msra.mxu0 %v5501
      %5762 = vmatprep.subr.bf16.mxu0 %v5500
      %5763 = vmatpush1.bf16.msra.mxu0 %v5499
      %5764 = vmatprep.subr.bf16.mxu0 %v5498
      %5765 = vmatpush1.bf16.msra.mxu0 %v5497
      %5766 = vmatprep.subr.bf16.mxu0 %v5528
      %5767 = vmatpush2.bf16.msra.mxu0 %v5527
      %5768 = vmatprep.subr.bf16.mxu0 %v5526
      %5769 = vmatpush2.bf16.msra.mxu0 %v5525
      %5770 = vmatprep.subr.bf16.mxu0 %v5524
      %5771 = vmatpush2.bf16.msra.mxu0 %v5523
      %5772 = vmatprep.subr.bf16.mxu0 %v5522
      %5773 = vmatpush2.bf16.msra.mxu0 %v5521
      %5774 = vmatprep.subr.bf16.mxu0 %v5520
      %5775 = vmatpush2.bf16.msra.mxu0 %v5519
      %5776 = vmatprep.subr.bf16.mxu0 %v5518
      %5777 = vmatpush2.bf16.msra.mxu0 %v5517
      %5778 = vmatprep.subr.bf16.mxu0 %v5516
      %5779 = vmatpush2.bf16.msra.mxu0 %v5515
      %5780 = vmatprep.subr.bf16.mxu0 %v5514
      %5781 = vmatpush2.bf16.msra.mxu0 %v5513
      %5782 = vmatprep.mubr.bf16.mxu0 %v3205
      %5783 = vmatmul.mubr.bf16.gmra.mxu0 %v3204
      %v5784 = vpop.f32.mrf.mxu0
      %v5785 = vadd.f32 %v5692, %v5784
      %v5786 = vpop.f32.mrf.mxu0
      %v5787 = vadd.f32 %v5694, %v5786
      %v5788 = vpop.f32.mrf.mxu0
      %v5789 = vadd.f32 %v5696, %v5788
      %v5790 = vpop.f32.mrf.mxu0
      %v5791 = vadd.f32 %v5698, %v5790
      %5792 = vmatprep.mubr.bf16.mxu0 %v3211
      %5793 = vmatmul.mubr.bf16.gmra.mxu0 %v3210
      %v5794 = vpop.f32.mrf.mxu0
      %v5795 = vadd.f32 %v5702, %v5794
      %v5796 = vpop.f32.mrf.mxu0
      %v5797 = vadd.f32 %v5704, %v5796
      %v5798 = vpop.f32.mrf.mxu0
      %v5799 = vadd.f32 %v5706, %v5798
      %v5800 = vpop.f32.mrf.mxu0
      %v5801 = vadd.f32 %v5708, %v5800
      %5802 = vmatprep.mubr.bf16.mxu0 %v3217
      %5803 = vmatmul.mubr.bf16.gmra.mxu0 %v3216
      %v5804 = vpop.f32.mrf.mxu0
      %v5805 = vadd.f32 %v5712, %v5804
      %v5806 = vpop.f32.mrf.mxu0
      %v5807 = vadd.f32 %v5714, %v5806
      %v5808 = vpop.f32.mrf.mxu0
      %v5809 = vadd.f32 %v5716, %v5808
      %v5810 = vpop.f32.mrf.mxu0
      %v5811 = vadd.f32 %v5718, %v5810
      %5812 = vmatprep.mubr.bf16.mxu0 %v3223
      %5813 = vmatmul.mubr.bf16.gmra.mxu0 %v3222
      %v5814 = vpop.f32.mrf.mxu0
      %v5815 = vadd.f32 %v5722, %v5814
      %v5816 = vpop.f32.mrf.mxu0
      %v5817 = vadd.f32 %v5724, %v5816
      %v5818 = vpop.f32.mrf.mxu0
      %v5819 = vadd.f32 %v5726, %v5818
      %v5820 = vpop.f32.mrf.mxu0
      %v5821 = vadd.f32 %v5728, %v5820
      %5822 = vmatprep.mubr.bf16.mxu0 %v3229
      %5823 = vmatmul.mubr.bf16.gmra.mxu0 %v3228
      %v5824 = vpop.f32.mrf.mxu0
      %v5825 = vadd.f32 %v5732, %v5824
      %v5826 = vpop.f32.mrf.mxu0
      %v5827 = vadd.f32 %v5734, %v5826
      %v5828 = vpop.f32.mrf.mxu0
      %v5829 = vadd.f32 %v5736, %v5828
      %v5830 = vpop.f32.mrf.mxu0
      %v5831 = vadd.f32 %v5738, %v5830
      %5832 = vmatprep.mubr.bf16.mxu0 %v3235
      %5833 = vmatmul.mubr.bf16.gmra.mxu0 %v3234
      %v5834 = vpop.f32.mrf.mxu0
      %v5835 = vadd.f32 %v5742, %v5834
      %v5836 = vpop.f32.mrf.mxu0
      %v5837 = vadd.f32 %v5744, %v5836
      %v5838 = vpop.f32.mrf.mxu0
      %v5839 = vadd.f32 %v5746, %v5838
      %v5840 = vpop.f32.mrf.mxu0
      %v5841 = vadd.f32 %v5748, %v5840
      %5842 = vdwg.mxu0
      %5843 = vmatprep.subr.bf16.mxu0 %v5544
      %5844 = vmatpush1.bf16.msra.mxu0 %v5543
      %5845 = vmatprep.subr.bf16.mxu0 %v5542
      %5846 = vmatpush1.bf16.msra.mxu0 %v5541
      %5847 = vmatprep.subr.bf16.mxu0 %v5540
      %5848 = vmatpush1.bf16.msra.mxu0 %v5539
      %5849 = vmatprep.subr.bf16.mxu0 %v5538
      %5850 = vmatpush1.bf16.msra.mxu0 %v5537
      %5851 = vmatprep.subr.bf16.mxu0 %v5536
      %5852 = vmatpush1.bf16.msra.mxu0 %v5535
      %5853 = vmatprep.subr.bf16.mxu0 %v5534
      %5854 = vmatpush1.bf16.msra.mxu0 %v5533
      %5855 = vmatprep.subr.bf16.mxu0 %v5532
      %5856 = vmatpush1.bf16.msra.mxu0 %v5531
      %5857 = vmatprep.subr.bf16.mxu0 %v5530
      %5858 = vmatpush1.bf16.msra.mxu0 %v5529
      %5859 = vmatprep.subr.bf16.mxu0 %v5560
      %5860 = vmatpush2.bf16.msra.mxu0 %v5559
      %5861 = vmatprep.subr.bf16.mxu0 %v5558
      %5862 = vmatpush2.bf16.msra.mxu0 %v5557
      %5863 = vmatprep.subr.bf16.mxu0 %v5556
      %5864 = vmatpush2.bf16.msra.mxu0 %v5555
      %5865 = vmatprep.subr.bf16.mxu0 %v5554
      %5866 = vmatpush2.bf16.msra.mxu0 %v5553
      %5867 = vmatprep.subr.bf16.mxu0 %v5552
      %5868 = vmatpush2.bf16.msra.mxu0 %v5551
      %5869 = vmatprep.subr.bf16.mxu0 %v5550
      %5870 = vmatpush2.bf16.msra.mxu0 %v5549
      %5871 = vmatprep.subr.bf16.mxu0 %v5548
      %5872 = vmatpush2.bf16.msra.mxu0 %v5547
      %5873 = vmatprep.subr.bf16.mxu0 %v5546
      %5874 = vmatpush2.bf16.msra.mxu0 %v5545
      %5875 = vmatprep.mubr.bf16.mxu0 %v3207
      %5876 = vmatmul.mubr.bf16.gmra.mxu0 %v3206
      %v5877 = vpop.f32.mrf.mxu0
      %v5878 = vadd.f32 %v5785, %v5877
      %v5879 = vpop.f32.mrf.mxu0
      %v5880 = vadd.f32 %v5787, %v5879
      %v5881 = vpop.f32.mrf.mxu0
      %v5882 = vadd.f32 %v5789, %v5881
      %v5883 = vpop.f32.mrf.mxu0
      %v5884 = vadd.f32 %v5791, %v5883
      %5885 = vmatprep.mubr.bf16.mxu0 %v3213
      %5886 = vmatmul.mubr.bf16.gmra.mxu0 %v3212
      %v5887 = vpop.f32.mrf.mxu0
      %v5888 = vadd.f32 %v5795, %v5887
      %v5889 = vpop.f32.mrf.mxu0
      %v5890 = vadd.f32 %v5797, %v5889
      %v5891 = vpop.f32.mrf.mxu0
      %v5892 = vadd.f32 %v5799, %v5891
      %v5893 = vpop.f32.mrf.mxu0
      %v5894 = vadd.f32 %v5801, %v5893
      %5895 = vmatprep.mubr.bf16.mxu0 %v3219
      %5896 = vmatmul.mubr.bf16.gmra.mxu0 %v3218
      %v5897 = vpop.f32.mrf.mxu0
      %v5898 = vadd.f32 %v5805, %v5897
      %v5899 = vpop.f32.mrf.mxu0
      %v5900 = vadd.f32 %v5807, %v5899
      %v5901 = vpop.f32.mrf.mxu0
      %v5902 = vadd.f32 %v5809, %v5901
      %v5903 = vpop.f32.mrf.mxu0
      %v5904 = vadd.f32 %v5811, %v5903
      %5905 = vmatprep.mubr.bf16.mxu0 %v3225
      %5906 = vmatmul.mubr.bf16.gmra.mxu0 %v3224
      %v5907 = vpop.f32.mrf.mxu0
      %v5908 = vadd.f32 %v5815, %v5907
      %v5909 = vpop.f32.mrf.mxu0
      %v5910 = vadd.f32 %v5817, %v5909
      %v5911 = vpop.f32.mrf.mxu0
      %v5912 = vadd.f32 %v5819, %v5911
      %v5913 = vpop.f32.mrf.mxu0
      %v5914 = vadd.f32 %v5821, %v5913
      %5915 = vmatprep.mubr.bf16.mxu0 %v3231
      %5916 = vmatmul.mubr.bf16.gmra.mxu0 %v3230
      %v5917 = vpop.f32.mrf.mxu0
      %v5918 = vadd.f32 %v5825, %v5917
      %v5919 = vpop.f32.mrf.mxu0
      %v5920 = vadd.f32 %v5827, %v5919
      %v5921 = vpop.f32.mrf.mxu0
      %v5922 = vadd.f32 %v5829, %v5921
      %v5923 = vpop.f32.mrf.mxu0
      %v5924 = vadd.f32 %v5831, %v5923
      %5925 = vmatprep.mubr.bf16.mxu0 %v3237
      %5926 = vmatmul.mubr.bf16.gmra.mxu0 %v3236
      %v5927 = vpop.f32.mrf.mxu0
      %v5928 = vadd.f32 %v5835, %v5927
      %v5929 = vpop.f32.mrf.mxu0
      %v5930 = vadd.f32 %v5837, %v5929
      %v5931 = vpop.f32.mrf.mxu0
      %v5932 = vadd.f32 %v5839, %v5931
      %v5933 = vpop.f32.mrf.mxu0
      %v5934 = vadd.f32 %v5841, %v5933
      %5935 = vdwg.mxu0
      %v5960 = vrot.slane %v5878, 2
      %v5961 = vrot.slane %v5882, 2
      %v5962 = vsel %vm3038, %v5960, %v5961
      %v5963 = vrot.slane %v5880, 2
      %v5964 = vrot.slane %v5884, 2
      %v5965 = vsel %vm3038, %v5963, %v5964
      %v5966 = vrot.slane %v5888, 2
      %v5967 = vsel %vm3038, %v5961, %v5966
      %v5968 = vrot.slane %v5890, 2
      %v5969 = vsel %vm3038, %v5964, %v5968
      %v5970 = vrot.slane %v5892, 2
      %v5971 = vsel %vm3038, %v5966, %v5970
      %v5972 = vrot.slane %v5894, 2
      %v5973 = vsel %vm3038, %v5968, %v5972
      %v5974 = vrot.slane %v5898, 2
      %v5975 = vsel %vm3038, %v5970, %v5974
      %v5976 = vrot.slane %v5900, 2
      %v5977 = vsel %vm3038, %v5972, %v5976
      %v5978 = vrot.slane %v5902, 2
      %v5979 = vsel %vm3038, %v5974, %v5978
      %v5980 = vrot.slane %v5904, 2
      %v5981 = vsel %vm3038, %v5976, %v5980
      %v5982 = vrot.slane %v5908, 2
      %v5983 = vsel %vm3038, %v5978, %v5982
      %v5984 = vrot.slane %v5910, 2
      %v5985 = vsel %vm3038, %v5980, %v5984
      %v5986 = vrot.slane %v5912, 2
      %v5987 = vsel %vm3038, %v5982, %v5986
      %v5988 = vrot.slane %v5914, 2
      %v5989 = vsel %vm3038, %v5984, %v5988
      %v5990 = vrot.slane %v5918, 2
      %v5991 = vsel %vm3038, %v5986, %v5990
      %v5992 = vrot.slane %v5920, 2
      %v5993 = vsel %vm3038, %v5988, %v5992
      %v5994 = vrot.slane %v5922, 2
      %v5995 = vsel %vm3038, %v5990, %v5994
      %v5996 = vrot.slane %v5924, 2
      %v5997 = vsel %vm3038, %v5992, %v5996
      %v5998 = vrot.slane %v5928, 2
      %v5999 = vsel %vm3038, %v5994, %v5998
      %v6000 = vrot.slane %v5930, 2
      %v6001 = vsel %vm3038, %v5996, %v6000
      %v6002 = vrot.slane %v5932, 2
      %v6003 = vsel %vm3038, %v5998, %v6002
      %v6004 = vrot.slane %v5934, 2
      %v6005 = vsel %vm3038, %v6000, %v6004
      %v6028 = vadd.f32 %v5058, %v5962
      %v6029 = vadd.f32 %v5059, %v5965
      %v6030 = vadd.f32 %v5060, %v5967
      %v6031 = vadd.f32 %v5061, %v5969
      %v6032 = vadd.f32 %v5062, %v5971
      %v6033 = vadd.f32 %v5063, %v5973
      %v6034 = vadd.f32 %v5064, %v5975
      %v6035 = vadd.f32 %v5065, %v5977
      %v6036 = vadd.f32 %v5066, %v5979
      %v6037 = vadd.f32 %v5067, %v5981
      %v6038 = vadd.f32 %v5068, %v5983
      %v6039 = vadd.f32 %v5069, %v5985
      %v6040 = vadd.f32 %v5070, %v5987
      %v6041 = vadd.f32 %v5071, %v5989
      %v6042 = vadd.f32 %v5072, %v5991
      %v6043 = vadd.f32 %v5073, %v5993
      %v6044 = vadd.f32 %v5074, %v5995
      %v6045 = vadd.f32 %v5075, %v5997
      %v6046 = vadd.f32 %v5076, %v5999
      %v6047 = vadd.f32 %v5077, %v6001
      %v6048 = vadd.f32 %v5078, %v6003
      %v6049 = vadd.f32 %v5079, %v6005
      %s6050 = scalar_lea.vmem %s193, 1152
      %v6051 = vld [vmem:[%s6050] sm:$0xff]
      %v6052 = vld [vmem:[%s6050 + $0x8] sm:$0xff]
      %v6053 = vld [vmem:[%s6050 + $0x10] sm:$0xff]
      %v6054 = vld [vmem:[%s6050 + $0x18] sm:$0xff]
      %v6055 = vld [vmem:[%s6050 + $0x20] sm:$0xff]
      %v6056 = vld [vmem:[%s6050 + $0x28] sm:$0xff]
      %v6057 = vld [vmem:[%s6050 + $0x30] sm:$0xff]
      %v6058 = vld [vmem:[%s6050 + $0x38] sm:$0xff]
      %v6059 = vld [vmem:[%s6050 + $0x40] sm:$0xff]
      %v6060 = vld [vmem:[%s6050 + $0x48] sm:$0xff]
      %v6061 = vld [vmem:[%s6050 + $0x50] sm:$0xff]
      %v6062 = vld [vmem:[%s6050 + $0x58] sm:$0xff]
      %v6063 = vld [vmem:[%s6050 + $0x60] sm:$0xff]
      %v6064 = vld [vmem:[%s6050 + $0x68] sm:$0xff]
      %v6065 = vld [vmem:[%s6050 + $0x70] sm:$0xff]
      %v6066 = vld [vmem:[%s6050 + $0x78] sm:$0xff]
      %v6067 = vld [vmem:[%s6050 + $0x80] sm:$0xff]
      %v6068 = vld [vmem:[%s6050 + $0x88] sm:$0xff]
      %v6069 = vld [vmem:[%s6050 + $0x90] sm:$0xff]
      %v6070 = vld [vmem:[%s6050 + $0x98] sm:$0xff]
      %v6071 = vld [vmem:[%s6050 + $0xa0] sm:$0xff]
      %v6072 = vld [vmem:[%s6050 + $0xa8] sm:$0xff]
      %v6073 = vld [vmem:[%s6050 + $0xb0] sm:$0xff]
      %v6074 = vld [vmem:[%s6050 + $0xb8] sm:$0xff]
      %v6075 = vld [vmem:[%s6050 + $0xc0] sm:$0xff]
      %v6076 = vld [vmem:[%s6050 + $0xc8] sm:$0xff]
      %v6077 = vld [vmem:[%s6050 + $0xd0] sm:$0xff]
      %v6078 = vld [vmem:[%s6050 + $0xd8] sm:$0xff]
      %v6079 = vld [vmem:[%s6050 + $0xe0] sm:$0xff]
      %v6080 = vld [vmem:[%s6050 + $0xe8] sm:$0xff]
      %v6081 = vld [vmem:[%s6050 + $0xf0] sm:$0xff]
      %v6082 = vld [vmem:[%s6050 + $0xf8] sm:$0xff]
      %v6083 = vld [vmem:[%s6050 + $0x100] sm:$0xff]
      %v6084 = vld [vmem:[%s6050 + $0x108] sm:$0xff]
      %v6085 = vld [vmem:[%s6050 + $0x110] sm:$0xff]
      %v6086 = vld [vmem:[%s6050 + $0x118] sm:$0xff]
      %v6087 = vld [vmem:[%s6050 + $0x120] sm:$0xff]
      %v6088 = vld [vmem:[%s6050 + $0x128] sm:$0xff]
      %v6089 = vld [vmem:[%s6050 + $0x130] sm:$0xff]
      %v6090 = vld [vmem:[%s6050 + $0x138] sm:$0xff]
      %v6091 = vld [vmem:[%s6050 + $0x140] sm:$0xff]
      %v6092 = vld [vmem:[%s6050 + $0x148] sm:$0xff]
      %v6093 = vld [vmem:[%s6050 + $0x150] sm:$0xff]
      %v6094 = vld [vmem:[%s6050 + $0x158] sm:$0xff]
      %v6095 = vld [vmem:[%s6050 + $0x160] sm:$0xff]
      %v6096 = vld [vmem:[%s6050 + $0x168] sm:$0xff]
      %v6097 = vld [vmem:[%s6050 + $0x170] sm:$0xff]
      %v6098 = vld [vmem:[%s6050 + $0x178] sm:$0xff]
      %v6099 = vld [vmem:[%s6050 + $0x180] sm:$0xff]
      %v6100 = vld [vmem:[%s6050 + $0x188] sm:$0xff]
      %v6101 = vld [vmem:[%s6050 + $0x190] sm:$0xff]
      %v6102 = vld [vmem:[%s6050 + $0x198] sm:$0xff]
      %v6103 = vld [vmem:[%s6050 + $0x1a0] sm:$0xff]
      %v6104 = vld [vmem:[%s6050 + $0x1a8] sm:$0xff]
      %v6105 = vld [vmem:[%s6050 + $0x1b0] sm:$0xff]
      %v6106 = vld [vmem:[%s6050 + $0x1b8] sm:$0xff]
      %v6107 = vld [vmem:[%s6050 + $0x1c0] sm:$0xff]
      %v6108 = vld [vmem:[%s6050 + $0x1c8] sm:$0xff]
      %v6109 = vld [vmem:[%s6050 + $0x1d0] sm:$0xff]
      %v6110 = vld [vmem:[%s6050 + $0x1d8] sm:$0xff]
      %v6111 = vld [vmem:[%s6050 + $0x1e0] sm:$0xff]
      %v6112 = vld [vmem:[%s6050 + $0x1e8] sm:$0xff]
      %v6113 = vld [vmem:[%s6050 + $0x1f0] sm:$0xff]
      %v6114 = vld [vmem:[%s6050 + $0x1f8] sm:$0xff]
      %v6115 = vld [vmem:[%s6050 + $0x200] sm:$0xff]
      %v6116 = vld [vmem:[%s6050 + $0x208] sm:$0xff]
      %v6117 = vld [vmem:[%s6050 + $0x210] sm:$0x3]
      %v6118 = vld [vmem:[%s6050 + $0x218] sm:$0x3]
      %v6119 = vld [vmem:[%s6050 + $0x220] sm:$0x3]
      %v6120 = vld [vmem:[%s6050 + $0x228] sm:$0x3]
      %v6121 = vld [vmem:[%s6050 + $0x230] sm:$0x3]
      %v6122 = vld [vmem:[%s6050 + $0x238] sm:$0x3]
      %v6123 = vpack.c.bf16 %v6057, %v6051
      %v6124 = vpack.c.bf16 %v6058, %v6052
      %v6125 = vpack.c.bf16 %v6059, %v6053
      %v6126 = vpack.c.bf16 %v6060, %v6054
      %v6127 = vpack.c.bf16 %v6061, %v6055
      %v6128 = vpack.c.bf16 %v6062, %v6056
      %v6129 = vpack.c.bf16 %v6069, %v6063
      %v6130 = vpack.c.bf16 %v6070, %v6064
      %v6131 = vpack.c.bf16 %v6071, %v6065
      %v6132 = vpack.c.bf16 %v6072, %v6066
      %v6133 = vpack.c.bf16 %v6073, %v6067
      %v6134 = vpack.c.bf16 %v6074, %v6068
      %v6135 = vpack.c.bf16 %v6081, %v6075
      %v6136 = vpack.c.bf16 %v6082, %v6076
      %v6137 = vpack.c.bf16 %v6083, %v6077
      %v6138 = vpack.c.bf16 %v6084, %v6078
      %v6139 = vpack.c.bf16 %v6085, %v6079
      %v6140 = vpack.c.bf16 %v6086, %v6080
      %v6141 = vpack.c.bf16 %v6093, %v6087
      %v6142 = vpack.c.bf16 %v6094, %v6088
      %v6143 = vpack.c.bf16 %v6095, %v6089
      %v6144 = vpack.c.bf16 %v6096, %v6090
      %v6145 = vpack.c.bf16 %v6097, %v6091
      %v6146 = vpack.c.bf16 %v6098, %v6092
      %v6147 = vpack.c.bf16 %v6105, %v6099
      %v6148 = vpack.c.bf16 %v6106, %v6100
      %v6149 = vpack.c.bf16 %v6107, %v6101
      %v6150 = vpack.c.bf16 %v6108, %v6102
      %v6151 = vpack.c.bf16 %v6109, %v6103
      %v6152 = vpack.c.bf16 %v6110, %v6104
      %v6153 = vpack.c.bf16 %v6117, %v6111
      %v6154 = vpack.c.bf16 %v6118, %v6112
      %v6155 = vpack.c.bf16 %v6119, %v6113
      %v6156 = vpack.c.bf16 %v6120, %v6114
      %v6157 = vpack.c.bf16 %v6121, %v6115
      %v6158 = vpack.c.bf16 %v6122, %v6116
      %s6159 = scalar_lea.vmem %s198, 1536
      %v6160 = vld [vmem:[%s6159] sm:$0xff]
      %v6161 = vld [vmem:[%s6159 + $0x8] sm:$0xff]
      %v6162 = vld [vmem:[%s6159 + $0x10] sm:$0xff]
      %v6163 = vld [vmem:[%s6159 + $0x18] sm:$0xff]
      %v6164 = vld [vmem:[%s6159 + $0x20] sm:$0xff]
      %v6165 = vld [vmem:[%s6159 + $0x28] sm:$0xff]
      %v6166 = vld [vmem:[%s6159 + $0x30] sm:$0xff]
      %v6167 = vld [vmem:[%s6159 + $0x38] sm:$0xff]
      %v6168 = vld [vmem:[%s6159 + $0x40] sm:$0xff]
      %v6169 = vld [vmem:[%s6159 + $0x48] sm:$0xff]
      %v6170 = vld [vmem:[%s6159 + $0x50] sm:$0xff]
      %v6171 = vld [vmem:[%s6159 + $0x58] sm:$0xff]
      %v6172 = vld [vmem:[%s6159 + $0x60] sm:$0xff]
      %v6173 = vld [vmem:[%s6159 + $0x68] sm:$0xff]
      %v6174 = vld [vmem:[%s6159 + $0x70] sm:$0xff]
      %v6175 = vld [vmem:[%s6159 + $0x78] sm:$0xff]
      %v6176 = vld [vmem:[%s6159 + $0x80] sm:$0xff]
      %v6177 = vld [vmem:[%s6159 + $0x88] sm:$0xff]
      %v6178 = vld [vmem:[%s6159 + $0x90] sm:$0xff]
      %v6179 = vld [vmem:[%s6159 + $0x98] sm:$0xff]
      %v6180 = vld [vmem:[%s6159 + $0xa0] sm:$0xff]
      %v6181 = vld [vmem:[%s6159 + $0xa8] sm:$0xff]
      %v6182 = vld [vmem:[%s6159 + $0xb0] sm:$0xff]
      %v6183 = vld [vmem:[%s6159 + $0xb8] sm:$0xff]
      %v6184 = vld [vmem:[%s6159 + $0xc0] sm:$0xff]
      %v6185 = vld [vmem:[%s6159 + $0xc8] sm:$0xff]
      %v6186 = vld [vmem:[%s6159 + $0xd0] sm:$0xff]
      %v6187 = vld [vmem:[%s6159 + $0xd8] sm:$0xff]
      %v6188 = vld [vmem:[%s6159 + $0xe0] sm:$0xff]
      %v6189 = vld [vmem:[%s6159 + $0xe8] sm:$0xff]
      %v6190 = vld [vmem:[%s6159 + $0xf0] sm:$0xff]
      %v6191 = vld [vmem:[%s6159 + $0xf8] sm:$0xff]
      %v6192 = vld [vmem:[%s6159 + $0x100] sm:$0xff]
      %v6193 = vld [vmem:[%s6159 + $0x108] sm:$0xff]
      %v6194 = vld [vmem:[%s6159 + $0x110] sm:$0xff]
      %v6195 = vld [vmem:[%s6159 + $0x118] sm:$0xff]
      %v6196 = vld [vmem:[%s6159 + $0x120] sm:$0xff]
      %v6197 = vld [vmem:[%s6159 + $0x128] sm:$0xff]
      %v6198 = vld [vmem:[%s6159 + $0x130] sm:$0xff]
      %v6199 = vld [vmem:[%s6159 + $0x138] sm:$0xff]
      %v6200 = vld [vmem:[%s6159 + $0x140] sm:$0xff]
      %v6201 = vld [vmem:[%s6159 + $0x148] sm:$0xff]
      %v6202 = vld [vmem:[%s6159 + $0x150] sm:$0xff]
      %v6203 = vld [vmem:[%s6159 + $0x158] sm:$0xff]
      %v6204 = vld [vmem:[%s6159 + $0x160] sm:$0xff]
      %v6205 = vld [vmem:[%s6159 + $0x168] sm:$0xff]
      %v6206 = vld [vmem:[%s6159 + $0x170] sm:$0xff]
      %v6207 = vld [vmem:[%s6159 + $0x178] sm:$0xff]
      %v6208 = vld [vmem:[%s6159 + $0x180] sm:$0xff]
      %v6209 = vld [vmem:[%s6159 + $0x188] sm:$0xff]
      %v6210 = vld [vmem:[%s6159 + $0x190] sm:$0xff]
      %v6211 = vld [vmem:[%s6159 + $0x198] sm:$0xff]
      %v6212 = vld [vmem:[%s6159 + $0x1a0] sm:$0xff]
      %v6213 = vld [vmem:[%s6159 + $0x1a8] sm:$0xff]
      %v6214 = vld [vmem:[%s6159 + $0x1b0] sm:$0xff]
      %v6215 = vld [vmem:[%s6159 + $0x1b8] sm:$0xff]
      %v6216 = vld [vmem:[%s6159 + $0x1c0] sm:$0xff]
      %v6217 = vld [vmem:[%s6159 + $0x1c8] sm:$0xff]
      %v6218 = vld [vmem:[%s6159 + $0x1d0] sm:$0xff]
      %v6219 = vld [vmem:[%s6159 + $0x1d8] sm:$0xff]
      %v6220 = vld [vmem:[%s6159 + $0x1e0] sm:$0xff]
      %v6221 = vld [vmem:[%s6159 + $0x1e8] sm:$0xff]
      %v6222 = vld [vmem:[%s6159 + $0x1f0] sm:$0xff]
      %v6223 = vld [vmem:[%s6159 + $0x1f8] sm:$0xff]
      %v6224 = vld [vmem:[%s6159 + $0x200] sm:$0xff]
      %v6225 = vld [vmem:[%s6159 + $0x208] sm:$0xff]
      %v6226 = vld [vmem:[%s6159 + $0x210] sm:$0xff]
      %v6227 = vld [vmem:[%s6159 + $0x218] sm:$0xff]
      %v6228 = vld [vmem:[%s6159 + $0x220] sm:$0xff]
      %v6229 = vld [vmem:[%s6159 + $0x228] sm:$0xff]
      %v6230 = vld [vmem:[%s6159 + $0x230] sm:$0xff]
      %v6231 = vld [vmem:[%s6159 + $0x238] sm:$0xff]
      %v6232 = vld [vmem:[%s6159 + $0x240] sm:$0xff]
      %v6233 = vld [vmem:[%s6159 + $0x248] sm:$0xff]
      %v6234 = vld [vmem:[%s6159 + $0x250] sm:$0xff]
      %v6235 = vld [vmem:[%s6159 + $0x258] sm:$0xff]
      %v6236 = vld [vmem:[%s6159 + $0x260] sm:$0xff]
      %v6237 = vld [vmem:[%s6159 + $0x268] sm:$0xff]
      %v6238 = vld [vmem:[%s6159 + $0x270] sm:$0xff]
      %v6239 = vld [vmem:[%s6159 + $0x278] sm:$0xff]
      %v6240 = vld [vmem:[%s6159 + $0x280] sm:$0xff]
      %v6241 = vld [vmem:[%s6159 + $0x288] sm:$0xff]
      %v6242 = vld [vmem:[%s6159 + $0x290] sm:$0xff]
      %v6243 = vld [vmem:[%s6159 + $0x298] sm:$0xff]
      %v6244 = vld [vmem:[%s6159 + $0x2a0] sm:$0xff]
      %v6245 = vld [vmem:[%s6159 + $0x2a8] sm:$0xff]
      %v6246 = vld [vmem:[%s6159 + $0x2b0] sm:$0xff]
      %v6247 = vld [vmem:[%s6159 + $0x2b8] sm:$0xff]
      %v6248 = vld [vmem:[%s6159 + $0x2c0] sm:$0xff]
      %v6249 = vld [vmem:[%s6159 + $0x2c8] sm:$0xff]
      %v6250 = vld [vmem:[%s6159 + $0x2d0] sm:$0xff]
      %v6251 = vld [vmem:[%s6159 + $0x2d8] sm:$0xff]
      %v6252 = vld [vmem:[%s6159 + $0x2e0] sm:$0xff]
      %v6253 = vld [vmem:[%s6159 + $0x2e8] sm:$0xff]
      %v6254 = vld [vmem:[%s6159 + $0x2f0] sm:$0xff]
      %v6255 = vld [vmem:[%s6159 + $0x2f8] sm:$0xff]
      %v6352 = vunpack.c.l.b16 %v6160
      %v6353 = vunpack.c.h.b16 %v6160
      %v6354 = vunpack.c.l.b16 %v6161
      %v6355 = vunpack.c.h.b16 %v6161
      %v6356 = vunpack.c.l.b16 %v6162
      %v6357 = vunpack.c.h.b16 %v6162
      %v6358 = vunpack.c.l.b16 %v6163
      %v6359 = vunpack.c.h.b16 %v6163
      %v6360 = vunpack.c.l.b16 %v6164
      %v6361 = vunpack.c.h.b16 %v6164
      %v6362 = vunpack.c.l.b16 %v6165
      %v6363 = vunpack.c.h.b16 %v6165
      %v6364 = vunpack.c.l.b16 %v6166
      %v6365 = vunpack.c.h.b16 %v6166
      %v6366 = vunpack.c.l.b16 %v6167
      %v6367 = vunpack.c.h.b16 %v6167
      %v6368 = vunpack.c.l.b16 %v6168
      %v6369 = vunpack.c.h.b16 %v6168
      %v6370 = vunpack.c.l.b16 %v6169
      %v6371 = vunpack.c.h.b16 %v6169
      %v6372 = vunpack.c.l.b16 %v6170
      %v6373 = vunpack.c.h.b16 %v6170
      %v6374 = vunpack.c.l.b16 %v6171
      %v6375 = vunpack.c.h.b16 %v6171
      %v6376 = vunpack.c.l.b16 %v6172
      %v6377 = vunpack.c.h.b16 %v6172
      %v6378 = vunpack.c.l.b16 %v6173
      %v6379 = vunpack.c.h.b16 %v6173
      %v6380 = vunpack.c.l.b16 %v6174
      %v6381 = vunpack.c.h.b16 %v6174
      %v6382 = vunpack.c.l.b16 %v6175
      %v6383 = vunpack.c.h.b16 %v6175
      %v6384 = vunpack.c.l.b16 %v6176
      %v6385 = vunpack.c.h.b16 %v6176
      %v6386 = vunpack.c.l.b16 %v6177
      %v6387 = vunpack.c.h.b16 %v6177
      %v6388 = vunpack.c.l.b16 %v6178
      %v6389 = vunpack.c.h.b16 %v6178
      %v6390 = vunpack.c.l.b16 %v6179
      %v6391 = vunpack.c.h.b16 %v6179
      %v6392 = vunpack.c.l.b16 %v6180
      %v6393 = vunpack.c.h.b16 %v6180
      %v6394 = vunpack.c.l.b16 %v6181
      %v6395 = vunpack.c.h.b16 %v6181
      %v6396 = vunpack.c.l.b16 %v6182
      %v6397 = vunpack.c.h.b16 %v6182
      %v6398 = vunpack.c.l.b16 %v6183
      %v6399 = vunpack.c.h.b16 %v6183
      %v6400 = vunpack.c.l.b16 %v6184
      %v6401 = vunpack.c.h.b16 %v6184
      %v6402 = vunpack.c.l.b16 %v6185
      %v6403 = vunpack.c.h.b16 %v6185
      %v6404 = vunpack.c.l.b16 %v6186
      %v6405 = vunpack.c.h.b16 %v6186
      %v6406 = vunpack.c.l.b16 %v6187
      %v6407 = vunpack.c.h.b16 %v6187
      %v6408 = vunpack.c.l.b16 %v6188
      %v6409 = vunpack.c.h.b16 %v6188
      %v6410 = vunpack.c.l.b16 %v6189
      %v6411 = vunpack.c.h.b16 %v6189
      %v6412 = vunpack.c.l.b16 %v6190
      %v6413 = vunpack.c.h.b16 %v6190
      %v6414 = vunpack.c.l.b16 %v6191
      %v6415 = vunpack.c.h.b16 %v6191
      %v6416 = vunpack.c.l.b16 %v6192
      %v6417 = vunpack.c.h.b16 %v6192
      %v6418 = vunpack.c.l.b16 %v6193
      %v6419 = vunpack.c.h.b16 %v6193
      %v6420 = vunpack.c.l.b16 %v6194
      %v6421 = vunpack.c.h.b16 %v6194
      %v6422 = vunpack.c.l.b16 %v6195
      %v6423 = vunpack.c.h.b16 %v6195
      %v6424 = vunpack.c.l.b16 %v6196
      %v6425 = vunpack.c.h.b16 %v6196
      %v6426 = vunpack.c.l.b16 %v6197
      %v6427 = vunpack.c.h.b16 %v6197
      %v6428 = vunpack.c.l.b16 %v6198
      %v6429 = vunpack.c.h.b16 %v6198
      %v6430 = vunpack.c.l.b16 %v6199
      %v6431 = vunpack.c.h.b16 %v6199
      %v6432 = vunpack.c.l.b16 %v6200
      %v6433 = vunpack.c.h.b16 %v6200
      %v6434 = vunpack.c.l.b16 %v6201
      %v6435 = vunpack.c.h.b16 %v6201
      %v6436 = vunpack.c.l.b16 %v6202
      %v6437 = vunpack.c.h.b16 %v6202
      %v6438 = vunpack.c.l.b16 %v6203
      %v6439 = vunpack.c.h.b16 %v6203
      %v6440 = vunpack.c.l.b16 %v6204
      %v6441 = vunpack.c.h.b16 %v6204
      %v6442 = vunpack.c.l.b16 %v6205
      %v6443 = vunpack.c.h.b16 %v6205
      %v6444 = vunpack.c.l.b16 %v6206
      %v6445 = vunpack.c.h.b16 %v6206
      %v6446 = vunpack.c.l.b16 %v6207
      %v6447 = vunpack.c.h.b16 %v6207
      %v6448 = vunpack.c.l.b16 %v6208
      %v6449 = vunpack.c.h.b16 %v6208
      %v6450 = vunpack.c.l.b16 %v6209
      %v6451 = vunpack.c.h.b16 %v6209
      %v6452 = vunpack.c.l.b16 %v6210
      %v6453 = vunpack.c.h.b16 %v6210
      %v6454 = vunpack.c.l.b16 %v6211
      %v6455 = vunpack.c.h.b16 %v6211
      %v6456 = vunpack.c.l.b16 %v6212
      %v6457 = vunpack.c.h.b16 %v6212
      %v6458 = vunpack.c.l.b16 %v6213
      %v6459 = vunpack.c.h.b16 %v6213
      %v6460 = vunpack.c.l.b16 %v6214
      %v6461 = vunpack.c.h.b16 %v6214
      %v6462 = vunpack.c.l.b16 %v6215
      %v6463 = vunpack.c.h.b16 %v6215
      %v6464 = vunpack.c.l.b16 %v6216
      %v6465 = vunpack.c.h.b16 %v6216
      %v6466 = vunpack.c.l.b16 %v6217
      %v6467 = vunpack.c.h.b16 %v6217
      %v6468 = vunpack.c.l.b16 %v6218
      %v6469 = vunpack.c.h.b16 %v6218
      %v6470 = vunpack.c.l.b16 %v6219
      %v6471 = vunpack.c.h.b16 %v6219
      %v6472 = vunpack.c.l.b16 %v6220
      %v6473 = vunpack.c.h.b16 %v6220
      %v6474 = vunpack.c.l.b16 %v6221
      %v6475 = vunpack.c.h.b16 %v6221
      %v6476 = vunpack.c.l.b16 %v6222
      %v6477 = vunpack.c.h.b16 %v6222
      %v6478 = vunpack.c.l.b16 %v6223
      %v6479 = vunpack.c.h.b16 %v6223
      %v6480 = vunpack.c.l.b16 %v6224
      %v6481 = vunpack.c.h.b16 %v6224
      %v6482 = vunpack.c.l.b16 %v6225
      %v6483 = vunpack.c.h.b16 %v6225
      %v6484 = vunpack.c.l.b16 %v6226
      %v6485 = vunpack.c.h.b16 %v6226
      %v6486 = vunpack.c.l.b16 %v6227
      %v6487 = vunpack.c.h.b16 %v6227
      %v6488 = vunpack.c.l.b16 %v6228
      %v6489 = vunpack.c.h.b16 %v6228
      %v6490 = vunpack.c.l.b16 %v6229
      %v6491 = vunpack.c.h.b16 %v6229
      %v6492 = vunpack.c.l.b16 %v6230
      %v6493 = vunpack.c.h.b16 %v6230
      %v6494 = vunpack.c.l.b16 %v6231
      %v6495 = vunpack.c.h.b16 %v6231
      %v6496 = vunpack.c.l.b16 %v6232
      %v6497 = vunpack.c.h.b16 %v6232
      %v6498 = vunpack.c.l.b16 %v6233
      %v6499 = vunpack.c.h.b16 %v6233
      %v6500 = vunpack.c.l.b16 %v6234
      %v6501 = vunpack.c.h.b16 %v6234
      %v6502 = vunpack.c.l.b16 %v6235
      %v6503 = vunpack.c.h.b16 %v6235
      %v6504 = vunpack.c.l.b16 %v6236
      %v6505 = vunpack.c.h.b16 %v6236
      %v6506 = vunpack.c.l.b16 %v6237
      %v6507 = vunpack.c.h.b16 %v6237
      %v6508 = vunpack.c.l.b16 %v6238
      %v6509 = vunpack.c.h.b16 %v6238
      %v6510 = vunpack.c.l.b16 %v6239
      %v6511 = vunpack.c.h.b16 %v6239
      %v6512 = vunpack.c.l.b16 %v6240
      %v6513 = vunpack.c.h.b16 %v6240
      %v6514 = vunpack.c.l.b16 %v6241
      %v6515 = vunpack.c.h.b16 %v6241
      %v6516 = vunpack.c.l.b16 %v6242
      %v6517 = vunpack.c.h.b16 %v6242
      %v6518 = vunpack.c.l.b16 %v6243
      %v6519 = vunpack.c.h.b16 %v6243
      %v6520 = vunpack.c.l.b16 %v6244
      %v6521 = vunpack.c.h.b16 %v6244
      %v6522 = vunpack.c.l.b16 %v6245
      %v6523 = vunpack.c.h.b16 %v6245
      %v6524 = vunpack.c.l.b16 %v6246
      %v6525 = vunpack.c.h.b16 %v6246
      %v6526 = vunpack.c.l.b16 %v6247
      %v6527 = vunpack.c.h.b16 %v6247
      %v6528 = vunpack.c.l.b16 %v6248
      %v6529 = vunpack.c.h.b16 %v6248
      %v6530 = vunpack.c.l.b16 %v6249
      %v6531 = vunpack.c.h.b16 %v6249
      %v6532 = vunpack.c.l.b16 %v6250
      %v6533 = vunpack.c.h.b16 %v6250
      %v6534 = vunpack.c.l.b16 %v6251
      %v6535 = vunpack.c.h.b16 %v6251
      %v6536 = vunpack.c.l.b16 %v6252
      %v6537 = vunpack.c.h.b16 %v6252
      %v6538 = vunpack.c.l.b16 %v6253
      %v6539 = vunpack.c.h.b16 %v6253
      %v6540 = vunpack.c.l.b16 %v6254
      %v6541 = vunpack.c.h.b16 %v6254
      %v6542 = vunpack.c.l.b16 %v6255
      %v6543 = vunpack.c.h.b16 %v6255
      %v6544 = vpack.c.b16 %v6354, %v6352
      %v6545 = vpack.c.b16 %v6355, %v6353
      %v6546 = vpack.c.b16 %v6358, %v6356
      %v6547 = vpack.c.b16 %v6359, %v6357
      %v6548 = vpack.c.b16 %v6362, %v6360
      %v6549 = vpack.c.b16 %v6363, %v6361
      %v6550 = vpack.c.b16 %v6366, %v6364
      %v6551 = vpack.c.b16 %v6367, %v6365
      %v6552 = vpack.c.b16 %v6370, %v6368
      %v6553 = vpack.c.b16 %v6371, %v6369
      %v6554 = vpack.c.b16 %v6374, %v6372
      %v6555 = vpack.c.b16 %v6375, %v6373
      %v6556 = vpack.c.b16 %v6378, %v6376
      %v6557 = vpack.c.b16 %v6379, %v6377
      %v6558 = vpack.c.b16 %v6382, %v6380
      %v6559 = vpack.c.b16 %v6383, %v6381
      %v6560 = vpack.c.b16 %v6386, %v6384
      %v6561 = vpack.c.b16 %v6387, %v6385
      %v6562 = vpack.c.b16 %v6390, %v6388
      %v6563 = vpack.c.b16 %v6391, %v6389
      %v6564 = vpack.c.b16 %v6394, %v6392
      %v6565 = vpack.c.b16 %v6395, %v6393
      %v6566 = vpack.c.b16 %v6398, %v6396
      %v6567 = vpack.c.b16 %v6399, %v6397
      %v6568 = vpack.c.b16 %v6402, %v6400
      %v6569 = vpack.c.b16 %v6403, %v6401
      %v6570 = vpack.c.b16 %v6406, %v6404
      %v6571 = vpack.c.b16 %v6407, %v6405
      %v6572 = vpack.c.b16 %v6410, %v6408
      %v6573 = vpack.c.b16 %v6411, %v6409
      %v6574 = vpack.c.b16 %v6414, %v6412
      %v6575 = vpack.c.b16 %v6415, %v6413
      %v6576 = vpack.c.b16 %v6418, %v6416
      %v6577 = vpack.c.b16 %v6419, %v6417
      %v6578 = vpack.c.b16 %v6422, %v6420
      %v6579 = vpack.c.b16 %v6423, %v6421
      %v6580 = vpack.c.b16 %v6426, %v6424
      %v6581 = vpack.c.b16 %v6427, %v6425
      %v6582 = vpack.c.b16 %v6430, %v6428
      %v6583 = vpack.c.b16 %v6431, %v6429
      %v6584 = vpack.c.b16 %v6434, %v6432
      %v6585 = vpack.c.b16 %v6435, %v6433
      %v6586 = vpack.c.b16 %v6438, %v6436
      %v6587 = vpack.c.b16 %v6439, %v6437
      %v6588 = vpack.c.b16 %v6442, %v6440
      %v6589 = vpack.c.b16 %v6443, %v6441
      %v6590 = vpack.c.b16 %v6446, %v6444
      %v6591 = vpack.c.b16 %v6447, %v6445
      %v6592 = vpack.c.b16 %v6450, %v6448
      %v6593 = vpack.c.b16 %v6451, %v6449
      %v6594 = vpack.c.b16 %v6454, %v6452
      %v6595 = vpack.c.b16 %v6455, %v6453
      %v6596 = vpack.c.b16 %v6458, %v6456
      %v6597 = vpack.c.b16 %v6459, %v6457
      %v6598 = vpack.c.b16 %v6462, %v6460
      %v6599 = vpack.c.b16 %v6463, %v6461
      %v6600 = vpack.c.b16 %v6466, %v6464
      %v6601 = vpack.c.b16 %v6467, %v6465
      %v6602 = vpack.c.b16 %v6470, %v6468
      %v6603 = vpack.c.b16 %v6471, %v6469
      %v6604 = vpack.c.b16 %v6474, %v6472
      %v6605 = vpack.c.b16 %v6475, %v6473
      %v6606 = vpack.c.b16 %v6478, %v6476
      %v6607 = vpack.c.b16 %v6479, %v6477
      %v6608 = vpack.c.b16 %v6482, %v6480
      %v6609 = vpack.c.b16 %v6483, %v6481
      %v6610 = vpack.c.b16 %v6486, %v6484
      %v6611 = vpack.c.b16 %v6487, %v6485
      %v6612 = vpack.c.b16 %v6490, %v6488
      %v6613 = vpack.c.b16 %v6491, %v6489
      %v6614 = vpack.c.b16 %v6494, %v6492
      %v6615 = vpack.c.b16 %v6495, %v6493
      %v6616 = vpack.c.b16 %v6498, %v6496
      %v6617 = vpack.c.b16 %v6499, %v6497
      %v6618 = vpack.c.b16 %v6502, %v6500
      %v6619 = vpack.c.b16 %v6503, %v6501
      %v6620 = vpack.c.b16 %v6506, %v6504
      %v6621 = vpack.c.b16 %v6507, %v6505
      %v6622 = vpack.c.b16 %v6510, %v6508
      %v6623 = vpack.c.b16 %v6511, %v6509
      %v6624 = vpack.c.b16 %v6514, %v6512
      %v6625 = vpack.c.b16 %v6515, %v6513
      %v6626 = vpack.c.b16 %v6518, %v6516
      %v6627 = vpack.c.b16 %v6519, %v6517
      %v6628 = vpack.c.b16 %v6522, %v6520
      %v6629 = vpack.c.b16 %v6523, %v6521
      %v6630 = vpack.c.b16 %v6526, %v6524
      %v6631 = vpack.c.b16 %v6527, %v6525
      %v6632 = vpack.c.b16 %v6530, %v6528
      %v6633 = vpack.c.b16 %v6531, %v6529
      %v6634 = vpack.c.b16 %v6534, %v6532
      %v6635 = vpack.c.b16 %v6535, %v6533
      %v6636 = vpack.c.b16 %v6538, %v6536
      %v6637 = vpack.c.b16 %v6539, %v6537
      %v6638 = vpack.c.b16 %v6542, %v6540
      %v6639 = vpack.c.b16 %v6543, %v6541
      %6736 = vmatprep.subr.bf16.mxu0 %v6559
      %6737 = vmatpush1.bf16.msra.mxu0 %v6558
      %6738 = vmatprep.subr.bf16.mxu0 %v6557
      %6739 = vmatpush1.bf16.msra.mxu0 %v6556
      %6740 = vmatprep.subr.bf16.mxu0 %v6555
      %6741 = vmatpush1.bf16.msra.mxu0 %v6554
      %6742 = vmatprep.subr.bf16.mxu0 %v6553
      %6743 = vmatpush1.bf16.msra.mxu0 %v6552
      %6744 = vmatprep.subr.bf16.mxu0 %v6551
      %6745 = vmatpush1.bf16.msra.mxu0 %v6550
      %6746 = vmatprep.subr.bf16.mxu0 %v6549
      %6747 = vmatpush1.bf16.msra.mxu0 %v6548
      %6748 = vmatprep.subr.bf16.mxu0 %v6547
      %6749 = vmatpush1.bf16.msra.mxu0 %v6546
      %6750 = vmatprep.subr.bf16.mxu0 %v6545
      %6751 = vmatpush1.bf16.msra.mxu0 %v6544
      %6752 = vmatprep.subr.bf16.mxu0 %v6575
      %6753 = vmatpush2.bf16.msra.mxu0 %v6574
      %6754 = vmatprep.subr.bf16.mxu0 %v6573
      %6755 = vmatpush2.bf16.msra.mxu0 %v6572
      %6756 = vmatprep.subr.bf16.mxu0 %v6571
      %6757 = vmatpush2.bf16.msra.mxu0 %v6570
      %6758 = vmatprep.subr.bf16.mxu0 %v6569
      %6759 = vmatpush2.bf16.msra.mxu0 %v6568
      %6760 = vmatprep.subr.bf16.mxu0 %v6567
      %6761 = vmatpush2.bf16.msra.mxu0 %v6566
      %6762 = vmatprep.subr.bf16.mxu0 %v6565
      %6763 = vmatpush2.bf16.msra.mxu0 %v6564
      %6764 = vmatprep.subr.bf16.mxu0 %v6563
      %6765 = vmatpush2.bf16.msra.mxu0 %v6562
      %6766 = vmatprep.subr.bf16.mxu0 %v6561
      %6767 = vmatpush2.bf16.msra.mxu0 %v6560
      %6768 = vmatprep.mubr.bf16.mxu0 %v6124
      %6769 = vmatmul.mubr.bf16.gmra.mxu0 %v6123
      %v6770 = vpop.f32.mrf.mxu0
      %v6771 = vadd.f32 0.0, %v6770
      %v6772 = vpop.f32.mrf.mxu0
      %v6773 = vadd.f32 0.0, %v6772
      %v6774 = vpop.f32.mrf.mxu0
      %v6775 = vadd.f32 0.0, %v6774
      %v6776 = vpop.f32.mrf.mxu0
      %v6777 = vadd.f32 0.0, %v6776
      %6778 = vmatprep.mubr.bf16.mxu0 %v6130
      %6779 = vmatmul.mubr.bf16.gmra.mxu0 %v6129
      %v6780 = vpop.f32.mrf.mxu0
      %v6781 = vadd.f32 0.0, %v6780
      %v6782 = vpop.f32.mrf.mxu0
      %v6783 = vadd.f32 0.0, %v6782
      %v6784 = vpop.f32.mrf.mxu0
      %v6785 = vadd.f32 0.0, %v6784
      %v6786 = vpop.f32.mrf.mxu0
      %v6787 = vadd.f32 0.0, %v6786
      %6788 = vmatprep.mubr.bf16.mxu0 %v6136
      %6789 = vmatmul.mubr.bf16.gmra.mxu0 %v6135
      %v6790 = vpop.f32.mrf.mxu0
      %v6791 = vadd.f32 0.0, %v6790
      %v6792 = vpop.f32.mrf.mxu0
      %v6793 = vadd.f32 0.0, %v6792
      %v6794 = vpop.f32.mrf.mxu0
      %v6795 = vadd.f32 0.0, %v6794
      %v6796 = vpop.f32.mrf.mxu0
      %v6797 = vadd.f32 0.0, %v6796
      %6798 = vmatprep.mubr.bf16.mxu0 %v6142
      %6799 = vmatmul.mubr.bf16.gmra.mxu0 %v6141
      %v6800 = vpop.f32.mrf.mxu0
      %v6801 = vadd.f32 0.0, %v6800
      %v6802 = vpop.f32.mrf.mxu0
      %v6803 = vadd.f32 0.0, %v6802
      %v6804 = vpop.f32.mrf.mxu0
      %v6805 = vadd.f32 0.0, %v6804
      %v6806 = vpop.f32.mrf.mxu0
      %v6807 = vadd.f32 0.0, %v6806
      %6808 = vmatprep.mubr.bf16.mxu0 %v6148
      %6809 = vmatmul.mubr.bf16.gmra.mxu0 %v6147
      %v6810 = vpop.f32.mrf.mxu0
      %v6811 = vadd.f32 0.0, %v6810
      %v6812 = vpop.f32.mrf.mxu0
      %v6813 = vadd.f32 0.0, %v6812
      %v6814 = vpop.f32.mrf.mxu0
      %v6815 = vadd.f32 0.0, %v6814
      %v6816 = vpop.f32.mrf.mxu0
      %v6817 = vadd.f32 0.0, %v6816
      %6818 = vmatprep.mubr.bf16.mxu0 %v6154
      %6819 = vmatmul.mubr.bf16.gmra.mxu0 %v6153
      %v6820 = vpop.f32.mrf.mxu0
      %v6821 = vadd.f32 0.0, %v6820
      %v6822 = vpop.f32.mrf.mxu0
      %v6823 = vadd.f32 0.0, %v6822
      %v6824 = vpop.f32.mrf.mxu0
      %v6825 = vpop.f32.mrf.mxu0
      %6826 = vdwg.mxu0
      %6827 = vmatprep.subr.bf16.mxu0 %v6591
      %6828 = vmatpush1.bf16.msra.mxu0 %v6590
      %6829 = vmatprep.subr.bf16.mxu0 %v6589
      %6830 = vmatpush1.bf16.msra.mxu0 %v6588
      %6831 = vmatprep.subr.bf16.mxu0 %v6587
      %6832 = vmatpush1.bf16.msra.mxu0 %v6586
      %6833 = vmatprep.subr.bf16.mxu0 %v6585
      %6834 = vmatpush1.bf16.msra.mxu0 %v6584
      %6835 = vmatprep.subr.bf16.mxu0 %v6583
      %6836 = vmatpush1.bf16.msra.mxu0 %v6582
      %6837 = vmatprep.subr.bf16.mxu0 %v6581
      %6838 = vmatpush1.bf16.msra.mxu0 %v6580
      %6839 = vmatprep.subr.bf16.mxu0 %v6579
      %6840 = vmatpush1.bf16.msra.mxu0 %v6578
      %6841 = vmatprep.subr.bf16.mxu0 %v6577
      %6842 = vmatpush1.bf16.msra.mxu0 %v6576
      %6843 = vmatprep.subr.bf16.mxu0 %v6607
      %6844 = vmatpush2.bf16.msra.mxu0 %v6606
      %6845 = vmatprep.subr.bf16.mxu0 %v6605
      %6846 = vmatpush2.bf16.msra.mxu0 %v6604
      %6847 = vmatprep.subr.bf16.mxu0 %v6603
      %6848 = vmatpush2.bf16.msra.mxu0 %v6602
      %6849 = vmatprep.subr.bf16.mxu0 %v6601
      %6850 = vmatpush2.bf16.msra.mxu0 %v6600
      %6851 = vmatprep.subr.bf16.mxu0 %v6599
      %6852 = vmatpush2.bf16.msra.mxu0 %v6598
      %6853 = vmatprep.subr.bf16.mxu0 %v6597
      %6854 = vmatpush2.bf16.msra.mxu0 %v6596
      %6855 = vmatprep.subr.bf16.mxu0 %v6595
      %6856 = vmatpush2.bf16.msra.mxu0 %v6594
      %6857 = vmatprep.subr.bf16.mxu0 %v6593
      %6858 = vmatpush2.bf16.msra.mxu0 %v6592
      %6859 = vmatprep.mubr.bf16.mxu0 %v6126
      %6860 = vmatmul.mubr.bf16.gmra.mxu0 %v6125
      %v6861 = vpop.f32.mrf.mxu0
      %v6862 = vadd.f32 %v6771, %v6861
      %v6863 = vpop.f32.mrf.mxu0
      %v6864 = vadd.f32 %v6773, %v6863
      %v6865 = vpop.f32.mrf.mxu0
      %v6866 = vadd.f32 %v6775, %v6865
      %v6867 = vpop.f32.mrf.mxu0
      %v6868 = vadd.f32 %v6777, %v6867
      %6869 = vmatprep.mubr.bf16.mxu0 %v6132
      %6870 = vmatmul.mubr.bf16.gmra.mxu0 %v6131
      %v6871 = vpop.f32.mrf.mxu0
      %v6872 = vadd.f32 %v6781, %v6871
      %v6873 = vpop.f32.mrf.mxu0
      %v6874 = vadd.f32 %v6783, %v6873
      %v6875 = vpop.f32.mrf.mxu0
      %v6876 = vadd.f32 %v6785, %v6875
      %v6877 = vpop.f32.mrf.mxu0
      %v6878 = vadd.f32 %v6787, %v6877
      %6879 = vmatprep.mubr.bf16.mxu0 %v6138
      %6880 = vmatmul.mubr.bf16.gmra.mxu0 %v6137
      %v6881 = vpop.f32.mrf.mxu0
      %v6882 = vadd.f32 %v6791, %v6881
      %v6883 = vpop.f32.mrf.mxu0
      %v6884 = vadd.f32 %v6793, %v6883
      %v6885 = vpop.f32.mrf.mxu0
      %v6886 = vadd.f32 %v6795, %v6885
      %v6887 = vpop.f32.mrf.mxu0
      %v6888 = vadd.f32 %v6797, %v6887
      %6889 = vmatprep.mubr.bf16.mxu0 %v6144
      %6890 = vmatmul.mubr.bf16.gmra.mxu0 %v6143
      %v6891 = vpop.f32.mrf.mxu0
      %v6892 = vadd.f32 %v6801, %v6891
      %v6893 = vpop.f32.mrf.mxu0
      %v6894 = vadd.f32 %v6803, %v6893
      %v6895 = vpop.f32.mrf.mxu0
      %v6896 = vadd.f32 %v6805, %v6895
      %v6897 = vpop.f32.mrf.mxu0
      %v6898 = vadd.f32 %v6807, %v6897
      %6899 = vmatprep.mubr.bf16.mxu0 %v6150
      %6900 = vmatmul.mubr.bf16.gmra.mxu0 %v6149
      %v6901 = vpop.f32.mrf.mxu0
      %v6902 = vadd.f32 %v6811, %v6901
      %v6903 = vpop.f32.mrf.mxu0
      %v6904 = vadd.f32 %v6813, %v6903
      %v6905 = vpop.f32.mrf.mxu0
      %v6906 = vadd.f32 %v6815, %v6905
      %v6907 = vpop.f32.mrf.mxu0
      %v6908 = vadd.f32 %v6817, %v6907
      %6909 = vmatprep.mubr.bf16.mxu0 %v6156
      %6910 = vmatmul.mubr.bf16.gmra.mxu0 %v6155
      %v6911 = vpop.f32.mrf.mxu0
      %v6912 = vadd.f32 %v6821, %v6911
      %v6913 = vpop.f32.mrf.mxu0
      %v6914 = vadd.f32 %v6823, %v6913
      %v6915 = vpop.f32.mrf.mxu0
      %v6916 = vpop.f32.mrf.mxu0
      %6917 = vdwg.mxu0
      %6918 = vmatprep.subr.bf16.mxu0 %v6623
      %6919 = vmatpush1.bf16.msra.mxu0 %v6622
      %6920 = vmatprep.subr.bf16.mxu0 %v6621
      %6921 = vmatpush1.bf16.msra.mxu0 %v6620
      %6922 = vmatprep.subr.bf16.mxu0 %v6619
      %6923 = vmatpush1.bf16.msra.mxu0 %v6618
      %6924 = vmatprep.subr.bf16.mxu0 %v6617
      %6925 = vmatpush1.bf16.msra.mxu0 %v6616
      %6926 = vmatprep.subr.bf16.mxu0 %v6615
      %6927 = vmatpush1.bf16.msra.mxu0 %v6614
      %6928 = vmatprep.subr.bf16.mxu0 %v6613
      %6929 = vmatpush1.bf16.msra.mxu0 %v6612
      %6930 = vmatprep.subr.bf16.mxu0 %v6611
      %6931 = vmatpush1.bf16.msra.mxu0 %v6610
      %6932 = vmatprep.subr.bf16.mxu0 %v6609
      %6933 = vmatpush1.bf16.msra.mxu0 %v6608
      %6934 = vmatprep.subr.bf16.mxu0 %v6639
      %6935 = vmatpush2.bf16.msra.mxu0 %v6638
      %6936 = vmatprep.subr.bf16.mxu0 %v6637
      %6937 = vmatpush2.bf16.msra.mxu0 %v6636
      %6938 = vmatprep.subr.bf16.mxu0 %v6635
      %6939 = vmatpush2.bf16.msra.mxu0 %v6634
      %6940 = vmatprep.subr.bf16.mxu0 %v6633
      %6941 = vmatpush2.bf16.msra.mxu0 %v6632
      %6942 = vmatprep.subr.bf16.mxu0 %v6631
      %6943 = vmatpush2.bf16.msra.mxu0 %v6630
      %6944 = vmatprep.subr.bf16.mxu0 %v6629
      %6945 = vmatpush2.bf16.msra.mxu0 %v6628
      %6946 = vmatprep.subr.bf16.mxu0 %v6627
      %6947 = vmatpush2.bf16.msra.mxu0 %v6626
      %6948 = vmatprep.subr.bf16.mxu0 %v6625
      %6949 = vmatpush2.bf16.msra.mxu0 %v6624
      %6950 = vmatprep.mubr.bf16.mxu0 %v6128
      %6951 = vmatmul.mubr.bf16.gmra.mxu0 %v6127
      %v6952 = vpop.f32.mrf.mxu0
      %v6953 = vadd.f32 %v6862, %v6952
      %v6954 = vpop.f32.mrf.mxu0
      %v6955 = vadd.f32 %v6864, %v6954
      %v6956 = vpop.f32.mrf.mxu0
      %v6957 = vadd.f32 %v6866, %v6956
      %v6958 = vpop.f32.mrf.mxu0
      %v6959 = vadd.f32 %v6868, %v6958
      %6960 = vmatprep.mubr.bf16.mxu0 %v6134
      %6961 = vmatmul.mubr.bf16.gmra.mxu0 %v6133
      %v6962 = vpop.f32.mrf.mxu0
      %v6963 = vadd.f32 %v6872, %v6962
      %v6964 = vpop.f32.mrf.mxu0
      %v6965 = vadd.f32 %v6874, %v6964
      %v6966 = vpop.f32.mrf.mxu0
      %v6967 = vadd.f32 %v6876, %v6966
      %v6968 = vpop.f32.mrf.mxu0
      %v6969 = vadd.f32 %v6878, %v6968
      %6970 = vmatprep.mubr.bf16.mxu0 %v6140
      %6971 = vmatmul.mubr.bf16.gmra.mxu0 %v6139
      %v6972 = vpop.f32.mrf.mxu0
      %v6973 = vadd.f32 %v6882, %v6972
      %v6974 = vpop.f32.mrf.mxu0
      %v6975 = vadd.f32 %v6884, %v6974
      %v6976 = vpop.f32.mrf.mxu0
      %v6977 = vadd.f32 %v6886, %v6976
      %v6978 = vpop.f32.mrf.mxu0
      %v6979 = vadd.f32 %v6888, %v6978
      %6980 = vmatprep.mubr.bf16.mxu0 %v6146
      %6981 = vmatmul.mubr.bf16.gmra.mxu0 %v6145
      %v6982 = vpop.f32.mrf.mxu0
      %v6983 = vadd.f32 %v6892, %v6982
      %v6984 = vpop.f32.mrf.mxu0
      %v6985 = vadd.f32 %v6894, %v6984
      %v6986 = vpop.f32.mrf.mxu0
      %v6987 = vadd.f32 %v6896, %v6986
      %v6988 = vpop.f32.mrf.mxu0
      %v6989 = vadd.f32 %v6898, %v6988
      %6990 = vmatprep.mubr.bf16.mxu0 %v6152
      %6991 = vmatmul.mubr.bf16.gmra.mxu0 %v6151
      %v6992 = vpop.f32.mrf.mxu0
      %v6993 = vadd.f32 %v6902, %v6992
      %v6994 = vpop.f32.mrf.mxu0
      %v6995 = vadd.f32 %v6904, %v6994
      %v6996 = vpop.f32.mrf.mxu0
      %v6997 = vadd.f32 %v6906, %v6996
      %v6998 = vpop.f32.mrf.mxu0
      %v6999 = vadd.f32 %v6908, %v6998
      %7000 = vmatprep.mubr.bf16.mxu0 %v6158
      %7001 = vmatmul.mubr.bf16.gmra.mxu0 %v6157
      %v7002 = vpop.f32.mrf.mxu0
      %v7003 = vadd.f32 %v6912, %v7002
      %v7004 = vpop.f32.mrf.mxu0
      %v7005 = vadd.f32 %v6914, %v7004
      %v7006 = vpop.f32.mrf.mxu0
      %v7007 = vpop.f32.mrf.mxu0
      %7008 = vdwg.mxu0
      %v7009 = vadd.f32 %v6028, %v6953
      %v7010 = vadd.f32 %v6029, %v6955
      %v7011 = vadd.f32 %v6030, %v6957
      %v7012 = vadd.f32 %v6031, %v6959
      %v7013 = vadd.f32 %v6032, %v6963
      %v7014 = vadd.f32 %v6033, %v6965
      %v7015 = vadd.f32 %v6034, %v6967
      %v7016 = vadd.f32 %v6035, %v6969
      %v7017 = vadd.f32 %v6036, %v6973
      %v7018 = vadd.f32 %v6037, %v6975
      %v7019 = vadd.f32 %v6038, %v6977
      %v7020 = vadd.f32 %v6039, %v6979
      %v7021 = vadd.f32 %v6040, %v6983
      %v7022 = vadd.f32 %v6041, %v6985
      %v7023 = vadd.f32 %v6042, %v6987
      %v7024 = vadd.f32 %v6043, %v6989
      %v7025 = vadd.f32 %v6044, %v6993
      %v7026 = vadd.f32 %v6045, %v6995
      %v7027 = vadd.f32 %v6046, %v6997
      %v7028 = vadd.f32 %v6047, %v6999
      %v7029 = vadd.f32 %v6048, %v7003
      %v7030 = vadd.f32 %v6049, %v7005
      %s7031 = scalar_lea.vmem %s198, 4608
      %v7032 = vld [vmem:[%s7031] sm:$0xff]
      %v7033 = vld [vmem:[%s7031 + $0x8] sm:$0xff]
      %v7034 = vld [vmem:[%s7031 + $0x10] sm:$0xff]
      %v7035 = vld [vmem:[%s7031 + $0x18] sm:$0xff]
      %v7036 = vld [vmem:[%s7031 + $0x20] sm:$0xff]
      %v7037 = vld [vmem:[%s7031 + $0x28] sm:$0xff]
      %v7038 = vld [vmem:[%s7031 + $0x30] sm:$0xff]
      %v7039 = vld [vmem:[%s7031 + $0x38] sm:$0xff]
      %v7040 = vld [vmem:[%s7031 + $0x40] sm:$0xff]
      %v7041 = vld [vmem:[%s7031 + $0x48] sm:$0xff]
      %v7042 = vld [vmem:[%s7031 + $0x50] sm:$0xff]
      %v7043 = vld [vmem:[%s7031 + $0x58] sm:$0xff]
      %v7044 = vld [vmem:[%s7031 + $0x60] sm:$0xff]
      %v7045 = vld [vmem:[%s7031 + $0x68] sm:$0xff]
      %v7046 = vld [vmem:[%s7031 + $0x70] sm:$0xff]
      %v7047 = vld [vmem:[%s7031 + $0x78] sm:$0xff]
      %v7048 = vld [vmem:[%s7031 + $0x80] sm:$0xff]
      %v7049 = vld [vmem:[%s7031 + $0x88] sm:$0xff]
      %v7050 = vld [vmem:[%s7031 + $0x90] sm:$0xff]
      %v7051 = vld [vmem:[%s7031 + $0x98] sm:$0xff]
      %v7052 = vld [vmem:[%s7031 + $0xa0] sm:$0xff]
      %v7053 = vld [vmem:[%s7031 + $0xa8] sm:$0xff]
      %v7054 = vld [vmem:[%s7031 + $0xb0] sm:$0xff]
      %v7055 = vld [vmem:[%s7031 + $0xb8] sm:$0xff]
      %v7056 = vld [vmem:[%s7031 + $0xc0] sm:$0xff]
      %v7057 = vld [vmem:[%s7031 + $0xc8] sm:$0xff]
      %v7058 = vld [vmem:[%s7031 + $0xd0] sm:$0xff]
      %v7059 = vld [vmem:[%s7031 + $0xd8] sm:$0xff]
      %v7060 = vld [vmem:[%s7031 + $0xe0] sm:$0xff]
      %v7061 = vld [vmem:[%s7031 + $0xe8] sm:$0xff]
      %v7062 = vld [vmem:[%s7031 + $0xf0] sm:$0xff]
      %v7063 = vld [vmem:[%s7031 + $0xf8] sm:$0xff]
      %v7064 = vld [vmem:[%s7031 + $0x100] sm:$0xff]
      %v7065 = vld [vmem:[%s7031 + $0x108] sm:$0xff]
      %v7066 = vld [vmem:[%s7031 + $0x110] sm:$0xff]
      %v7067 = vld [vmem:[%s7031 + $0x118] sm:$0xff]
      %v7068 = vld [vmem:[%s7031 + $0x120] sm:$0xff]
      %v7069 = vld [vmem:[%s7031 + $0x128] sm:$0xff]
      %v7070 = vld [vmem:[%s7031 + $0x130] sm:$0xff]
      %v7071 = vld [vmem:[%s7031 + $0x138] sm:$0xff]
      %v7072 = vld [vmem:[%s7031 + $0x140] sm:$0xff]
      %v7073 = vld [vmem:[%s7031 + $0x148] sm:$0xff]
      %v7074 = vld [vmem:[%s7031 + $0x150] sm:$0xff]
      %v7075 = vld [vmem:[%s7031 + $0x158] sm:$0xff]
      %v7076 = vld [vmem:[%s7031 + $0x160] sm:$0xff]
      %v7077 = vld [vmem:[%s7031 + $0x168] sm:$0xff]
      %v7078 = vld [vmem:[%s7031 + $0x170] sm:$0xff]
      %v7079 = vld [vmem:[%s7031 + $0x178] sm:$0xff]
      %v7080 = vld [vmem:[%s7031 + $0x180] sm:$0xff]
      %v7081 = vld [vmem:[%s7031 + $0x188] sm:$0xff]
      %v7082 = vld [vmem:[%s7031 + $0x190] sm:$0xff]
      %v7083 = vld [vmem:[%s7031 + $0x198] sm:$0xff]
      %v7084 = vld [vmem:[%s7031 + $0x1a0] sm:$0xff]
      %v7085 = vld [vmem:[%s7031 + $0x1a8] sm:$0xff]
      %v7086 = vld [vmem:[%s7031 + $0x1b0] sm:$0xff]
      %v7087 = vld [vmem:[%s7031 + $0x1b8] sm:$0xff]
      %v7088 = vld [vmem:[%s7031 + $0x1c0] sm:$0xff]
      %v7089 = vld [vmem:[%s7031 + $0x1c8] sm:$0xff]
      %v7090 = vld [vmem:[%s7031 + $0x1d0] sm:$0xff]
      %v7091 = vld [vmem:[%s7031 + $0x1d8] sm:$0xff]
      %v7092 = vld [vmem:[%s7031 + $0x1e0] sm:$0xff]
      %v7093 = vld [vmem:[%s7031 + $0x1e8] sm:$0xff]
      %v7094 = vld [vmem:[%s7031 + $0x1f0] sm:$0xff]
      %v7095 = vld [vmem:[%s7031 + $0x1f8] sm:$0xff]
      %v7096 = vld [vmem:[%s7031 + $0x200] sm:$0xff]
      %v7097 = vld [vmem:[%s7031 + $0x208] sm:$0xff]
      %v7098 = vld [vmem:[%s7031 + $0x210] sm:$0xff]
      %v7099 = vld [vmem:[%s7031 + $0x218] sm:$0xff]
      %v7100 = vld [vmem:[%s7031 + $0x220] sm:$0xff]
      %v7101 = vld [vmem:[%s7031 + $0x228] sm:$0xff]
      %v7102 = vld [vmem:[%s7031 + $0x230] sm:$0xff]
      %v7103 = vld [vmem:[%s7031 + $0x238] sm:$0xff]
      %v7104 = vld [vmem:[%s7031 + $0x240] sm:$0xff]
      %v7105 = vld [vmem:[%s7031 + $0x248] sm:$0xff]
      %v7106 = vld [vmem:[%s7031 + $0x250] sm:$0xff]
      %v7107 = vld [vmem:[%s7031 + $0x258] sm:$0xff]
      %v7108 = vld [vmem:[%s7031 + $0x260] sm:$0xff]
      %v7109 = vld [vmem:[%s7031 + $0x268] sm:$0xff]
      %v7110 = vld [vmem:[%s7031 + $0x270] sm:$0xff]
      %v7111 = vld [vmem:[%s7031 + $0x278] sm:$0xff]
      %v7112 = vld [vmem:[%s7031 + $0x280] sm:$0xff]
      %v7113 = vld [vmem:[%s7031 + $0x288] sm:$0xff]
      %v7114 = vld [vmem:[%s7031 + $0x290] sm:$0xff]
      %v7115 = vld [vmem:[%s7031 + $0x298] sm:$0xff]
      %v7116 = vld [vmem:[%s7031 + $0x2a0] sm:$0xff]
      %v7117 = vld [vmem:[%s7031 + $0x2a8] sm:$0xff]
      %v7118 = vld [vmem:[%s7031 + $0x2b0] sm:$0xff]
      %v7119 = vld [vmem:[%s7031 + $0x2b8] sm:$0xff]
      %v7120 = vld [vmem:[%s7031 + $0x2c0] sm:$0xff]
      %v7121 = vld [vmem:[%s7031 + $0x2c8] sm:$0xff]
      %v7122 = vld [vmem:[%s7031 + $0x2d0] sm:$0xff]
      %v7123 = vld [vmem:[%s7031 + $0x2d8] sm:$0xff]
      %v7124 = vld [vmem:[%s7031 + $0x2e0] sm:$0xff]
      %v7125 = vld [vmem:[%s7031 + $0x2e8] sm:$0xff]
      %v7126 = vld [vmem:[%s7031 + $0x2f0] sm:$0xff]
      %v7127 = vld [vmem:[%s7031 + $0x2f8] sm:$0xff]
      %v7224 = vunpack.c.l.b16 %v7032
      %v7225 = vunpack.c.h.b16 %v7032
      %v7226 = vunpack.c.l.b16 %v7033
      %v7227 = vunpack.c.h.b16 %v7033
      %v7228 = vunpack.c.l.b16 %v7034
      %v7229 = vunpack.c.h.b16 %v7034
      %v7230 = vunpack.c.l.b16 %v7035
      %v7231 = vunpack.c.h.b16 %v7035
      %v7232 = vunpack.c.l.b16 %v7036
      %v7233 = vunpack.c.h.b16 %v7036
      %v7234 = vunpack.c.l.b16 %v7037
      %v7235 = vunpack.c.h.b16 %v7037
      %v7236 = vunpack.c.l.b16 %v7038
      %v7237 = vunpack.c.h.b16 %v7038
      %v7238 = vunpack.c.l.b16 %v7039
      %v7239 = vunpack.c.h.b16 %v7039
      %v7240 = vunpack.c.l.b16 %v7040
      %v7241 = vunpack.c.h.b16 %v7040
      %v7242 = vunpack.c.l.b16 %v7041
      %v7243 = vunpack.c.h.b16 %v7041
      %v7244 = vunpack.c.l.b16 %v7042
      %v7245 = vunpack.c.h.b16 %v7042
      %v7246 = vunpack.c.l.b16 %v7043
      %v7247 = vunpack.c.h.b16 %v7043
      %v7248 = vunpack.c.l.b16 %v7044
      %v7249 = vunpack.c.h.b16 %v7044
      %v7250 = vunpack.c.l.b16 %v7045
      %v7251 = vunpack.c.h.b16 %v7045
      %v7252 = vunpack.c.l.b16 %v7046
      %v7253 = vunpack.c.h.b16 %v7046
      %v7254 = vunpack.c.l.b16 %v7047
      %v7255 = vunpack.c.h.b16 %v7047
      %v7256 = vunpack.c.l.b16 %v7048
      %v7257 = vunpack.c.h.b16 %v7048
      %v7258 = vunpack.c.l.b16 %v7049
      %v7259 = vunpack.c.h.b16 %v7049
      %v7260 = vunpack.c.l.b16 %v7050
      %v7261 = vunpack.c.h.b16 %v7050
      %v7262 = vunpack.c.l.b16 %v7051
      %v7263 = vunpack.c.h.b16 %v7051
      %v7264 = vunpack.c.l.b16 %v7052
      %v7265 = vunpack.c.h.b16 %v7052
      %v7266 = vunpack.c.l.b16 %v7053
      %v7267 = vunpack.c.h.b16 %v7053
      %v7268 = vunpack.c.l.b16 %v7054
      %v7269 = vunpack.c.h.b16 %v7054
      %v7270 = vunpack.c.l.b16 %v7055
      %v7271 = vunpack.c.h.b16 %v7055
      %v7272 = vunpack.c.l.b16 %v7056
      %v7273 = vunpack.c.h.b16 %v7056
      %v7274 = vunpack.c.l.b16 %v7057
      %v7275 = vunpack.c.h.b16 %v7057
      %v7276 = vunpack.c.l.b16 %v7058
      %v7277 = vunpack.c.h.b16 %v7058
      %v7278 = vunpack.c.l.b16 %v7059
      %v7279 = vunpack.c.h.b16 %v7059
      %v7280 = vunpack.c.l.b16 %v7060
      %v7281 = vunpack.c.h.b16 %v7060
      %v7282 = vunpack.c.l.b16 %v7061
      %v7283 = vunpack.c.h.b16 %v7061
      %v7284 = vunpack.c.l.b16 %v7062
      %v7285 = vunpack.c.h.b16 %v7062
      %v7286 = vunpack.c.l.b16 %v7063
      %v7287 = vunpack.c.h.b16 %v7063
      %v7288 = vunpack.c.l.b16 %v7064
      %v7289 = vunpack.c.h.b16 %v7064
      %v7290 = vunpack.c.l.b16 %v7065
      %v7291 = vunpack.c.h.b16 %v7065
      %v7292 = vunpack.c.l.b16 %v7066
      %v7293 = vunpack.c.h.b16 %v7066
      %v7294 = vunpack.c.l.b16 %v7067
      %v7295 = vunpack.c.h.b16 %v7067
      %v7296 = vunpack.c.l.b16 %v7068
      %v7297 = vunpack.c.h.b16 %v7068
      %v7298 = vunpack.c.l.b16 %v7069
      %v7299 = vunpack.c.h.b16 %v7069
      %v7300 = vunpack.c.l.b16 %v7070
      %v7301 = vunpack.c.h.b16 %v7070
      %v7302 = vunpack.c.l.b16 %v7071
      %v7303 = vunpack.c.h.b16 %v7071
      %v7304 = vunpack.c.l.b16 %v7072
      %v7305 = vunpack.c.h.b16 %v7072
      %v7306 = vunpack.c.l.b16 %v7073
      %v7307 = vunpack.c.h.b16 %v7073
      %v7308 = vunpack.c.l.b16 %v7074
      %v7309 = vunpack.c.h.b16 %v7074
      %v7310 = vunpack.c.l.b16 %v7075
      %v7311 = vunpack.c.h.b16 %v7075
      %v7312 = vunpack.c.l.b16 %v7076
      %v7313 = vunpack.c.h.b16 %v7076
      %v7314 = vunpack.c.l.b16 %v7077
      %v7315 = vunpack.c.h.b16 %v7077
      %v7316 = vunpack.c.l.b16 %v7078
      %v7317 = vunpack.c.h.b16 %v7078
      %v7318 = vunpack.c.l.b16 %v7079
      %v7319 = vunpack.c.h.b16 %v7079
      %v7320 = vunpack.c.l.b16 %v7080
      %v7321 = vunpack.c.h.b16 %v7080
      %v7322 = vunpack.c.l.b16 %v7081
      %v7323 = vunpack.c.h.b16 %v7081
      %v7324 = vunpack.c.l.b16 %v7082
      %v7325 = vunpack.c.h.b16 %v7082
      %v7326 = vunpack.c.l.b16 %v7083
      %v7327 = vunpack.c.h.b16 %v7083
      %v7328 = vunpack.c.l.b16 %v7084
      %v7329 = vunpack.c.h.b16 %v7084
      %v7330 = vunpack.c.l.b16 %v7085
      %v7331 = vunpack.c.h.b16 %v7085
      %v7332 = vunpack.c.l.b16 %v7086
      %v7333 = vunpack.c.h.b16 %v7086
      %v7334 = vunpack.c.l.b16 %v7087
      %v7335 = vunpack.c.h.b16 %v7087
      %v7336 = vunpack.c.l.b16 %v7088
      %v7337 = vunpack.c.h.b16 %v7088
      %v7338 = vunpack.c.l.b16 %v7089
      %v7339 = vunpack.c.h.b16 %v7089
      %v7340 = vunpack.c.l.b16 %v7090
      %v7341 = vunpack.c.h.b16 %v7090
      %v7342 = vunpack.c.l.b16 %v7091
      %v7343 = vunpack.c.h.b16 %v7091
      %v7344 = vunpack.c.l.b16 %v7092
      %v7345 = vunpack.c.h.b16 %v7092
      %v7346 = vunpack.c.l.b16 %v7093
      %v7347 = vunpack.c.h.b16 %v7093
      %v7348 = vunpack.c.l.b16 %v7094
      %v7349 = vunpack.c.h.b16 %v7094
      %v7350 = vunpack.c.l.b16 %v7095
      %v7351 = vunpack.c.h.b16 %v7095
      %v7352 = vunpack.c.l.b16 %v7096
      %v7353 = vunpack.c.h.b16 %v7096
      %v7354 = vunpack.c.l.b16 %v7097
      %v7355 = vunpack.c.h.b16 %v7097
      %v7356 = vunpack.c.l.b16 %v7098
      %v7357 = vunpack.c.h.b16 %v7098
      %v7358 = vunpack.c.l.b16 %v7099
      %v7359 = vunpack.c.h.b16 %v7099
      %v7360 = vunpack.c.l.b16 %v7100
      %v7361 = vunpack.c.h.b16 %v7100
      %v7362 = vunpack.c.l.b16 %v7101
      %v7363 = vunpack.c.h.b16 %v7101
      %v7364 = vunpack.c.l.b16 %v7102
      %v7365 = vunpack.c.h.b16 %v7102
      %v7366 = vunpack.c.l.b16 %v7103
      %v7367 = vunpack.c.h.b16 %v7103
      %v7368 = vunpack.c.l.b16 %v7104
      %v7369 = vunpack.c.h.b16 %v7104
      %v7370 = vunpack.c.l.b16 %v7105
      %v7371 = vunpack.c.h.b16 %v7105
      %v7372 = vunpack.c.l.b16 %v7106
      %v7373 = vunpack.c.h.b16 %v7106
      %v7374 = vunpack.c.l.b16 %v7107
      %v7375 = vunpack.c.h.b16 %v7107
      %v7376 = vunpack.c.l.b16 %v7108
      %v7377 = vunpack.c.h.b16 %v7108
      %v7378 = vunpack.c.l.b16 %v7109
      %v7379 = vunpack.c.h.b16 %v7109
      %v7380 = vunpack.c.l.b16 %v7110
      %v7381 = vunpack.c.h.b16 %v7110
      %v7382 = vunpack.c.l.b16 %v7111
      %v7383 = vunpack.c.h.b16 %v7111
      %v7384 = vunpack.c.l.b16 %v7112
      %v7385 = vunpack.c.h.b16 %v7112
      %v7386 = vunpack.c.l.b16 %v7113
      %v7387 = vunpack.c.h.b16 %v7113
      %v7388 = vunpack.c.l.b16 %v7114
      %v7389 = vunpack.c.h.b16 %v7114
      %v7390 = vunpack.c.l.b16 %v7115
      %v7391 = vunpack.c.h.b16 %v7115
      %v7392 = vunpack.c.l.b16 %v7116
      %v7393 = vunpack.c.h.b16 %v7116
      %v7394 = vunpack.c.l.b16 %v7117
      %v7395 = vunpack.c.h.b16 %v7117
      %v7396 = vunpack.c.l.b16 %v7118
      %v7397 = vunpack.c.h.b16 %v7118
      %v7398 = vunpack.c.l.b16 %v7119
      %v7399 = vunpack.c.h.b16 %v7119
      %v7400 = vunpack.c.l.b16 %v7120
      %v7401 = vunpack.c.h.b16 %v7120
      %v7402 = vunpack.c.l.b16 %v7121
      %v7403 = vunpack.c.h.b16 %v7121
      %v7404 = vunpack.c.l.b16 %v7122
      %v7405 = vunpack.c.h.b16 %v7122
      %v7406 = vunpack.c.l.b16 %v7123
      %v7407 = vunpack.c.h.b16 %v7123
      %v7408 = vunpack.c.l.b16 %v7124
      %v7409 = vunpack.c.h.b16 %v7124
      %v7410 = vunpack.c.l.b16 %v7125
      %v7411 = vunpack.c.h.b16 %v7125
      %v7412 = vunpack.c.l.b16 %v7126
      %v7413 = vunpack.c.h.b16 %v7126
      %v7414 = vunpack.c.l.b16 %v7127
      %v7415 = vunpack.c.h.b16 %v7127
      %v7416 = vpack.c.b16 %v7226, %v7224
      %v7417 = vpack.c.b16 %v7227, %v7225
      %v7418 = vpack.c.b16 %v7230, %v7228
      %v7419 = vpack.c.b16 %v7231, %v7229
      %v7420 = vpack.c.b16 %v7234, %v7232
      %v7421 = vpack.c.b16 %v7235, %v7233
      %v7422 = vpack.c.b16 %v7238, %v7236
      %v7423 = vpack.c.b16 %v7239, %v7237
      %v7424 = vpack.c.b16 %v7242, %v7240
      %v7425 = vpack.c.b16 %v7243, %v7241
      %v7426 = vpack.c.b16 %v7246, %v7244
      %v7427 = vpack.c.b16 %v7247, %v7245
      %v7428 = vpack.c.b16 %v7250, %v7248
      %v7429 = vpack.c.b16 %v7251, %v7249
      %v7430 = vpack.c.b16 %v7254, %v7252
      %v7431 = vpack.c.b16 %v7255, %v7253
      %v7432 = vpack.c.b16 %v7258, %v7256
      %v7433 = vpack.c.b16 %v7259, %v7257
      %v7434 = vpack.c.b16 %v7262, %v7260
      %v7435 = vpack.c.b16 %v7263, %v7261
      %v7436 = vpack.c.b16 %v7266, %v7264
      %v7437 = vpack.c.b16 %v7267, %v7265
      %v7438 = vpack.c.b16 %v7270, %v7268
      %v7439 = vpack.c.b16 %v7271, %v7269
      %v7440 = vpack.c.b16 %v7274, %v7272
      %v7441 = vpack.c.b16 %v7275, %v7273
      %v7442 = vpack.c.b16 %v7278, %v7276
      %v7443 = vpack.c.b16 %v7279, %v7277
      %v7444 = vpack.c.b16 %v7282, %v7280
      %v7445 = vpack.c.b16 %v7283, %v7281
      %v7446 = vpack.c.b16 %v7286, %v7284
      %v7447 = vpack.c.b16 %v7287, %v7285
      %v7448 = vpack.c.b16 %v7290, %v7288
      %v7449 = vpack.c.b16 %v7291, %v7289
      %v7450 = vpack.c.b16 %v7294, %v7292
      %v7451 = vpack.c.b16 %v7295, %v7293
      %v7452 = vpack.c.b16 %v7298, %v7296
      %v7453 = vpack.c.b16 %v7299, %v7297
      %v7454 = vpack.c.b16 %v7302, %v7300
      %v7455 = vpack.c.b16 %v7303, %v7301
      %v7456 = vpack.c.b16 %v7306, %v7304
      %v7457 = vpack.c.b16 %v7307, %v7305
      %v7458 = vpack.c.b16 %v7310, %v7308
      %v7459 = vpack.c.b16 %v7311, %v7309
      %v7460 = vpack.c.b16 %v7314, %v7312
      %v7461 = vpack.c.b16 %v7315, %v7313
      %v7462 = vpack.c.b16 %v7318, %v7316
      %v7463 = vpack.c.b16 %v7319, %v7317
      %v7464 = vpack.c.b16 %v7322, %v7320
      %v7465 = vpack.c.b16 %v7323, %v7321
      %v7466 = vpack.c.b16 %v7326, %v7324
      %v7467 = vpack.c.b16 %v7327, %v7325
      %v7468 = vpack.c.b16 %v7330, %v7328
      %v7469 = vpack.c.b16 %v7331, %v7329
      %v7470 = vpack.c.b16 %v7334, %v7332
      %v7471 = vpack.c.b16 %v7335, %v7333
      %v7472 = vpack.c.b16 %v7338, %v7336
      %v7473 = vpack.c.b16 %v7339, %v7337
      %v7474 = vpack.c.b16 %v7342, %v7340
      %v7475 = vpack.c.b16 %v7343, %v7341
      %v7476 = vpack.c.b16 %v7346, %v7344
      %v7477 = vpack.c.b16 %v7347, %v7345
      %v7478 = vpack.c.b16 %v7350, %v7348
      %v7479 = vpack.c.b16 %v7351, %v7349
      %v7480 = vpack.c.b16 %v7354, %v7352
      %v7481 = vpack.c.b16 %v7355, %v7353
      %v7482 = vpack.c.b16 %v7358, %v7356
      %v7483 = vpack.c.b16 %v7359, %v7357
      %v7484 = vpack.c.b16 %v7362, %v7360
      %v7485 = vpack.c.b16 %v7363, %v7361
      %v7486 = vpack.c.b16 %v7366, %v7364
      %v7487 = vpack.c.b16 %v7367, %v7365
      %v7488 = vpack.c.b16 %v7370, %v7368
      %v7489 = vpack.c.b16 %v7371, %v7369
      %v7490 = vpack.c.b16 %v7374, %v7372
      %v7491 = vpack.c.b16 %v7375, %v7373
      %v7492 = vpack.c.b16 %v7378, %v7376
      %v7493 = vpack.c.b16 %v7379, %v7377
      %v7494 = vpack.c.b16 %v7382, %v7380
      %v7495 = vpack.c.b16 %v7383, %v7381
      %v7496 = vpack.c.b16 %v7386, %v7384
      %v7497 = vpack.c.b16 %v7387, %v7385
      %v7498 = vpack.c.b16 %v7390, %v7388
      %v7499 = vpack.c.b16 %v7391, %v7389
      %v7500 = vpack.c.b16 %v7394, %v7392
      %v7501 = vpack.c.b16 %v7395, %v7393
      %v7502 = vpack.c.b16 %v7398, %v7396
      %v7503 = vpack.c.b16 %v7399, %v7397
      %v7504 = vpack.c.b16 %v7402, %v7400
      %v7505 = vpack.c.b16 %v7403, %v7401
      %v7506 = vpack.c.b16 %v7406, %v7404
      %v7507 = vpack.c.b16 %v7407, %v7405
      %v7508 = vpack.c.b16 %v7410, %v7408
      %v7509 = vpack.c.b16 %v7411, %v7409
      %v7510 = vpack.c.b16 %v7414, %v7412
      %v7511 = vpack.c.b16 %v7415, %v7413
      %7608 = vmatprep.subr.bf16.mxu0 %v7431
      %7609 = vmatpush1.bf16.msra.mxu0 %v7430
      %7610 = vmatprep.subr.bf16.mxu0 %v7429
      %7611 = vmatpush1.bf16.msra.mxu0 %v7428
      %7612 = vmatprep.subr.bf16.mxu0 %v7427
      %7613 = vmatpush1.bf16.msra.mxu0 %v7426
      %7614 = vmatprep.subr.bf16.mxu0 %v7425
      %7615 = vmatpush1.bf16.msra.mxu0 %v7424
      %7616 = vmatprep.subr.bf16.mxu0 %v7423
      %7617 = vmatpush1.bf16.msra.mxu0 %v7422
      %7618 = vmatprep.subr.bf16.mxu0 %v7421
      %7619 = vmatpush1.bf16.msra.mxu0 %v7420
      %7620 = vmatprep.subr.bf16.mxu0 %v7419
      %7621 = vmatpush1.bf16.msra.mxu0 %v7418
      %7622 = vmatprep.subr.bf16.mxu0 %v7417
      %7623 = vmatpush1.bf16.msra.mxu0 %v7416
      %7624 = vmatprep.subr.bf16.mxu0 %v7447
      %7625 = vmatpush2.bf16.msra.mxu0 %v7446
      %7626 = vmatprep.subr.bf16.mxu0 %v7445
      %7627 = vmatpush2.bf16.msra.mxu0 %v7444
      %7628 = vmatprep.subr.bf16.mxu0 %v7443
      %7629 = vmatpush2.bf16.msra.mxu0 %v7442
      %7630 = vmatprep.subr.bf16.mxu0 %v7441
      %7631 = vmatpush2.bf16.msra.mxu0 %v7440
      %7632 = vmatprep.subr.bf16.mxu0 %v7439
      %7633 = vmatpush2.bf16.msra.mxu0 %v7438
      %7634 = vmatprep.subr.bf16.mxu0 %v7437
      %7635 = vmatpush2.bf16.msra.mxu0 %v7436
      %7636 = vmatprep.subr.bf16.mxu0 %v7435
      %7637 = vmatpush2.bf16.msra.mxu0 %v7434
      %7638 = vmatprep.subr.bf16.mxu0 %v7433
      %7639 = vmatpush2.bf16.msra.mxu0 %v7432
      %7640 = vmatprep.mubr.bf16.mxu0 %v6124
      %7641 = vmatmul.mubr.bf16.gmra.mxu0 %v6123
      %v7642 = vpop.f32.mrf.mxu0
      %v7643 = vadd.f32 0.0, %v7642
      %v7644 = vpop.f32.mrf.mxu0
      %v7645 = vadd.f32 0.0, %v7644
      %v7646 = vpop.f32.mrf.mxu0
      %v7647 = vadd.f32 0.0, %v7646
      %v7648 = vpop.f32.mrf.mxu0
      %v7649 = vadd.f32 0.0, %v7648
      %7650 = vmatprep.mubr.bf16.mxu0 %v6130
      %7651 = vmatmul.mubr.bf16.gmra.mxu0 %v6129
      %v7652 = vpop.f32.mrf.mxu0
      %v7653 = vadd.f32 0.0, %v7652
      %v7654 = vpop.f32.mrf.mxu0
      %v7655 = vadd.f32 0.0, %v7654
      %v7656 = vpop.f32.mrf.mxu0
      %v7657 = vadd.f32 0.0, %v7656
      %v7658 = vpop.f32.mrf.mxu0
      %v7659 = vadd.f32 0.0, %v7658
      %7660 = vmatprep.mubr.bf16.mxu0 %v6136
      %7661 = vmatmul.mubr.bf16.gmra.mxu0 %v6135
      %v7662 = vpop.f32.mrf.mxu0
      %v7663 = vadd.f32 0.0, %v7662
      %v7664 = vpop.f32.mrf.mxu0
      %v7665 = vadd.f32 0.0, %v7664
      %v7666 = vpop.f32.mrf.mxu0
      %v7667 = vadd.f32 0.0, %v7666
      %v7668 = vpop.f32.mrf.mxu0
      %v7669 = vadd.f32 0.0, %v7668
      %7670 = vmatprep.mubr.bf16.mxu0 %v6142
      %7671 = vmatmul.mubr.bf16.gmra.mxu0 %v6141
      %v7672 = vpop.f32.mrf.mxu0
      %v7673 = vadd.f32 0.0, %v7672
      %v7674 = vpop.f32.mrf.mxu0
      %v7675 = vadd.f32 0.0, %v7674
      %v7676 = vpop.f32.mrf.mxu0
      %v7677 = vadd.f32 0.0, %v7676
      %v7678 = vpop.f32.mrf.mxu0
      %v7679 = vadd.f32 0.0, %v7678
      %7680 = vmatprep.mubr.bf16.mxu0 %v6148
      %7681 = vmatmul.mubr.bf16.gmra.mxu0 %v6147
      %v7682 = vpop.f32.mrf.mxu0
      %v7683 = vadd.f32 0.0, %v7682
      %v7684 = vpop.f32.mrf.mxu0
      %v7685 = vadd.f32 0.0, %v7684
      %v7686 = vpop.f32.mrf.mxu0
      %v7687 = vadd.f32 0.0, %v7686
      %v7688 = vpop.f32.mrf.mxu0
      %v7689 = vadd.f32 0.0, %v7688
      %7690 = vmatprep.mubr.bf16.mxu0 %v6154
      %7691 = vmatmul.mubr.bf16.gmra.mxu0 %v6153
      %v7692 = vpop.f32.mrf.mxu0
      %v7693 = vadd.f32 0.0, %v7692
      %v7694 = vpop.f32.mrf.mxu0
      %v7695 = vadd.f32 0.0, %v7694
      %v7696 = vpop.f32.mrf.mxu0
      %v7697 = vadd.f32 0.0, %v7696
      %v7698 = vpop.f32.mrf.mxu0
      %v7699 = vadd.f32 0.0, %v7698
      %7700 = vdwg.mxu0
      %7701 = vmatprep.subr.bf16.mxu0 %v7463
      %7702 = vmatpush1.bf16.msra.mxu0 %v7462
      %7703 = vmatprep.subr.bf16.mxu0 %v7461
      %7704 = vmatpush1.bf16.msra.mxu0 %v7460
      %7705 = vmatprep.subr.bf16.mxu0 %v7459
      %7706 = vmatpush1.bf16.msra.mxu0 %v7458
      %7707 = vmatprep.subr.bf16.mxu0 %v7457
      %7708 = vmatpush1.bf16.msra.mxu0 %v7456
      %7709 = vmatprep.subr.bf16.mxu0 %v7455
      %7710 = vmatpush1.bf16.msra.mxu0 %v7454
      %7711 = vmatprep.subr.bf16.mxu0 %v7453
      %7712 = vmatpush1.bf16.msra.mxu0 %v7452
      %7713 = vmatprep.subr.bf16.mxu0 %v7451
      %7714 = vmatpush1.bf16.msra.mxu0 %v7450
      %7715 = vmatprep.subr.bf16.mxu0 %v7449
      %7716 = vmatpush1.bf16.msra.mxu0 %v7448
      %7717 = vmatprep.subr.bf16.mxu0 %v7479
      %7718 = vmatpush2.bf16.msra.mxu0 %v7478
      %7719 = vmatprep.subr.bf16.mxu0 %v7477
      %7720 = vmatpush2.bf16.msra.mxu0 %v7476
      %7721 = vmatprep.subr.bf16.mxu0 %v7475
      %7722 = vmatpush2.bf16.msra.mxu0 %v7474
      %7723 = vmatprep.subr.bf16.mxu0 %v7473
      %7724 = vmatpush2.bf16.msra.mxu0 %v7472
      %7725 = vmatprep.subr.bf16.mxu0 %v7471
      %7726 = vmatpush2.bf16.msra.mxu0 %v7470
      %7727 = vmatprep.subr.bf16.mxu0 %v7469
      %7728 = vmatpush2.bf16.msra.mxu0 %v7468
      %7729 = vmatprep.subr.bf16.mxu0 %v7467
      %7730 = vmatpush2.bf16.msra.mxu0 %v7466
      %7731 = vmatprep.subr.bf16.mxu0 %v7465
      %7732 = vmatpush2.bf16.msra.mxu0 %v7464
      %7733 = vmatprep.mubr.bf16.mxu0 %v6126
      %7734 = vmatmul.mubr.bf16.gmra.mxu0 %v6125
      %v7735 = vpop.f32.mrf.mxu0
      %v7736 = vadd.f32 %v7643, %v7735
      %v7737 = vpop.f32.mrf.mxu0
      %v7738 = vadd.f32 %v7645, %v7737
      %v7739 = vpop.f32.mrf.mxu0
      %v7740 = vadd.f32 %v7647, %v7739
      %v7741 = vpop.f32.mrf.mxu0
      %v7742 = vadd.f32 %v7649, %v7741
      %7743 = vmatprep.mubr.bf16.mxu0 %v6132
      %7744 = vmatmul.mubr.bf16.gmra.mxu0 %v6131
      %v7745 = vpop.f32.mrf.mxu0
      %v7746 = vadd.f32 %v7653, %v7745
      %v7747 = vpop.f32.mrf.mxu0
      %v7748 = vadd.f32 %v7655, %v7747
      %v7749 = vpop.f32.mrf.mxu0
      %v7750 = vadd.f32 %v7657, %v7749
      %v7751 = vpop.f32.mrf.mxu0
      %v7752 = vadd.f32 %v7659, %v7751
      %7753 = vmatprep.mubr.bf16.mxu0 %v6138
      %7754 = vmatmul.mubr.bf16.gmra.mxu0 %v6137
      %v7755 = vpop.f32.mrf.mxu0
      %v7756 = vadd.f32 %v7663, %v7755
      %v7757 = vpop.f32.mrf.mxu0
      %v7758 = vadd.f32 %v7665, %v7757
      %v7759 = vpop.f32.mrf.mxu0
      %v7760 = vadd.f32 %v7667, %v7759
      %v7761 = vpop.f32.mrf.mxu0
      %v7762 = vadd.f32 %v7669, %v7761
      %7763 = vmatprep.mubr.bf16.mxu0 %v6144
      %7764 = vmatmul.mubr.bf16.gmra.mxu0 %v6143
      %v7765 = vpop.f32.mrf.mxu0
      %v7766 = vadd.f32 %v7673, %v7765
      %v7767 = vpop.f32.mrf.mxu0
      %v7768 = vadd.f32 %v7675, %v7767
      %v7769 = vpop.f32.mrf.mxu0
      %v7770 = vadd.f32 %v7677, %v7769
      %v7771 = vpop.f32.mrf.mxu0
      %v7772 = vadd.f32 %v7679, %v7771
      %7773 = vmatprep.mubr.bf16.mxu0 %v6150
      %7774 = vmatmul.mubr.bf16.gmra.mxu0 %v6149
      %v7775 = vpop.f32.mrf.mxu0
      %v7776 = vadd.f32 %v7683, %v7775
      %v7777 = vpop.f32.mrf.mxu0
      %v7778 = vadd.f32 %v7685, %v7777
      %v7779 = vpop.f32.mrf.mxu0
      %v7780 = vadd.f32 %v7687, %v7779
      %v7781 = vpop.f32.mrf.mxu0
      %v7782 = vadd.f32 %v7689, %v7781
      %7783 = vmatprep.mubr.bf16.mxu0 %v6156
      %7784 = vmatmul.mubr.bf16.gmra.mxu0 %v6155
      %v7785 = vpop.f32.mrf.mxu0
      %v7786 = vadd.f32 %v7693, %v7785
      %v7787 = vpop.f32.mrf.mxu0
      %v7788 = vadd.f32 %v7695, %v7787
      %v7789 = vpop.f32.mrf.mxu0
      %v7790 = vadd.f32 %v7697, %v7789
      %v7791 = vpop.f32.mrf.mxu0
      %v7792 = vadd.f32 %v7699, %v7791
      %7793 = vdwg.mxu0
      %7794 = vmatprep.subr.bf16.mxu0 %v7495
      %7795 = vmatpush1.bf16.msra.mxu0 %v7494
      %7796 = vmatprep.subr.bf16.mxu0 %v7493
      %7797 = vmatpush1.bf16.msra.mxu0 %v7492
      %7798 = vmatprep.subr.bf16.mxu0 %v7491
      %7799 = vmatpush1.bf16.msra.mxu0 %v7490
      %7800 = vmatprep.subr.bf16.mxu0 %v7489
      %7801 = vmatpush1.bf16.msra.mxu0 %v7488
      %7802 = vmatprep.subr.bf16.mxu0 %v7487
      %7803 = vmatpush1.bf16.msra.mxu0 %v7486
      %7804 = vmatprep.subr.bf16.mxu0 %v7485
      %7805 = vmatpush1.bf16.msra.mxu0 %v7484
      %7806 = vmatprep.subr.bf16.mxu0 %v7483
      %7807 = vmatpush1.bf16.msra.mxu0 %v7482
      %7808 = vmatprep.subr.bf16.mxu0 %v7481
      %7809 = vmatpush1.bf16.msra.mxu0 %v7480
      %7810 = vmatprep.subr.bf16.mxu0 %v7511
      %7811 = vmatpush2.bf16.msra.mxu0 %v7510
      %7812 = vmatprep.subr.bf16.mxu0 %v7509
      %7813 = vmatpush2.bf16.msra.mxu0 %v7508
      %7814 = vmatprep.subr.bf16.mxu0 %v7507
      %7815 = vmatpush2.bf16.msra.mxu0 %v7506
      %7816 = vmatprep.subr.bf16.mxu0 %v7505
      %7817 = vmatpush2.bf16.msra.mxu0 %v7504
      %7818 = vmatprep.subr.bf16.mxu0 %v7503
      %7819 = vmatpush2.bf16.msra.mxu0 %v7502
      %7820 = vmatprep.subr.bf16.mxu0 %v7501
      %7821 = vmatpush2.bf16.msra.mxu0 %v7500
      %7822 = vmatprep.subr.bf16.mxu0 %v7499
      %7823 = vmatpush2.bf16.msra.mxu0 %v7498
      %7824 = vmatprep.subr.bf16.mxu0 %v7497
      %7825 = vmatpush2.bf16.msra.mxu0 %v7496
      %7826 = vmatprep.mubr.bf16.mxu0 %v6128
      %7827 = vmatmul.mubr.bf16.gmra.mxu0 %v6127
      %v7828 = vpop.f32.mrf.mxu0
      %v7829 = vadd.f32 %v7736, %v7828
      %v7830 = vpop.f32.mrf.mxu0
      %v7831 = vadd.f32 %v7738, %v7830
      %v7832 = vpop.f32.mrf.mxu0
      %v7833 = vadd.f32 %v7740, %v7832
      %v7834 = vpop.f32.mrf.mxu0
      %v7835 = vadd.f32 %v7742, %v7834
      %7836 = vmatprep.mubr.bf16.mxu0 %v6134
      %7837 = vmatmul.mubr.bf16.gmra.mxu0 %v6133
      %v7838 = vpop.f32.mrf.mxu0
      %v7839 = vadd.f32 %v7746, %v7838
      %v7840 = vpop.f32.mrf.mxu0
      %v7841 = vadd.f32 %v7748, %v7840
      %v7842 = vpop.f32.mrf.mxu0
      %v7843 = vadd.f32 %v7750, %v7842
      %v7844 = vpop.f32.mrf.mxu0
      %v7845 = vadd.f32 %v7752, %v7844
      %7846 = vmatprep.mubr.bf16.mxu0 %v6140
      %7847 = vmatmul.mubr.bf16.gmra.mxu0 %v6139
      %v7848 = vpop.f32.mrf.mxu0
      %v7849 = vadd.f32 %v7756, %v7848
      %v7850 = vpop.f32.mrf.mxu0
      %v7851 = vadd.f32 %v7758, %v7850
      %v7852 = vpop.f32.mrf.mxu0
      %v7853 = vadd.f32 %v7760, %v7852
      %v7854 = vpop.f32.mrf.mxu0
      %v7855 = vadd.f32 %v7762, %v7854
      %7856 = vmatprep.mubr.bf16.mxu0 %v6146
      %7857 = vmatmul.mubr.bf16.gmra.mxu0 %v6145
      %v7858 = vpop.f32.mrf.mxu0
      %v7859 = vadd.f32 %v7766, %v7858
      %v7860 = vpop.f32.mrf.mxu0
      %v7861 = vadd.f32 %v7768, %v7860
      %v7862 = vpop.f32.mrf.mxu0
      %v7863 = vadd.f32 %v7770, %v7862
      %v7864 = vpop.f32.mrf.mxu0
      %v7865 = vadd.f32 %v7772, %v7864
      %7866 = vmatprep.mubr.bf16.mxu0 %v6152
      %7867 = vmatmul.mubr.bf16.gmra.mxu0 %v6151
      %v7868 = vpop.f32.mrf.mxu0
      %v7869 = vadd.f32 %v7776, %v7868
      %v7870 = vpop.f32.mrf.mxu0
      %v7871 = vadd.f32 %v7778, %v7870
      %v7872 = vpop.f32.mrf.mxu0
      %v7873 = vadd.f32 %v7780, %v7872
      %v7874 = vpop.f32.mrf.mxu0
      %v7875 = vadd.f32 %v7782, %v7874
      %7876 = vmatprep.mubr.bf16.mxu0 %v6158
      %7877 = vmatmul.mubr.bf16.gmra.mxu0 %v6157
      %v7878 = vpop.f32.mrf.mxu0
      %v7879 = vadd.f32 %v7786, %v7878
      %v7880 = vpop.f32.mrf.mxu0
      %v7881 = vadd.f32 %v7788, %v7880
      %v7882 = vpop.f32.mrf.mxu0
      %v7883 = vadd.f32 %v7790, %v7882
      %v7884 = vpop.f32.mrf.mxu0
      %v7885 = vadd.f32 %v7792, %v7884
      %7886 = vdwg.mxu0
      %v7911 = vrot.slane %v7829, 1
      %v7912 = vrot.slane %v7833, 1
      %v7913 = vsel %vm2067, %v7911, %v7912
      %v7914 = vrot.slane %v7831, 1
      %v7915 = vrot.slane %v7835, 1
      %v7916 = vsel %vm2067, %v7914, %v7915
      %v7917 = vrot.slane %v7839, 1
      %v7918 = vsel %vm2067, %v7912, %v7917
      %v7919 = vrot.slane %v7841, 1
      %v7920 = vsel %vm2067, %v7915, %v7919
      %v7921 = vrot.slane %v7843, 1
      %v7922 = vsel %vm2067, %v7917, %v7921
      %v7923 = vrot.slane %v7845, 1
      %v7924 = vsel %vm2067, %v7919, %v7923
      %v7925 = vrot.slane %v7849, 1
      %v7926 = vsel %vm2067, %v7921, %v7925
      %v7927 = vrot.slane %v7851, 1
      %v7928 = vsel %vm2067, %v7923, %v7927
      %v7929 = vrot.slane %v7853, 1
      %v7930 = vsel %vm2067, %v7925, %v7929
      %v7931 = vrot.slane %v7855, 1
      %v7932 = vsel %vm2067, %v7927, %v7931
      %v7933 = vrot.slane %v7859, 1
      %v7934 = vsel %vm2067, %v7929, %v7933
      %v7935 = vrot.slane %v7861, 1
      %v7936 = vsel %vm2067, %v7931, %v7935
      %v7937 = vrot.slane %v7863, 1
      %v7938 = vsel %vm2067, %v7933, %v7937
      %v7939 = vrot.slane %v7865, 1
      %v7940 = vsel %vm2067, %v7935, %v7939
      %v7941 = vrot.slane %v7869, 1
      %v7942 = vsel %vm2067, %v7937, %v7941
      %v7943 = vrot.slane %v7871, 1
      %v7944 = vsel %vm2067, %v7939, %v7943
      %v7945 = vrot.slane %v7873, 1
      %v7946 = vsel %vm2067, %v7941, %v7945
      %v7947 = vrot.slane %v7875, 1
      %v7948 = vsel %vm2067, %v7943, %v7947
      %v7949 = vrot.slane %v7879, 1
      %v7950 = vsel %vm2067, %v7945, %v7949
      %v7951 = vrot.slane %v7881, 1
      %v7952 = vsel %vm2067, %v7947, %v7951
      %v7953 = vrot.slane %v7883, 1
      %v7954 = vsel %vm2067, %v7949, %v7953
      %v7955 = vrot.slane %v7885, 1
      %v7956 = vsel %vm2067, %v7951, %v7955
      %v7979 = vadd.f32 %v7009, %v7913
      %v7980 = vadd.f32 %v7010, %v7916
      %v7981 = vadd.f32 %v7011, %v7918
      %v7982 = vadd.f32 %v7012, %v7920
      %v7983 = vadd.f32 %v7013, %v7922
      %v7984 = vadd.f32 %v7014, %v7924
      %v7985 = vadd.f32 %v7015, %v7926
      %v7986 = vadd.f32 %v7016, %v7928
      %v7987 = vadd.f32 %v7017, %v7930
      %v7988 = vadd.f32 %v7018, %v7932
      %v7989 = vadd.f32 %v7019, %v7934
      %v7990 = vadd.f32 %v7020, %v7936
      %v7991 = vadd.f32 %v7021, %v7938
      %v7992 = vadd.f32 %v7022, %v7940
      %v7993 = vadd.f32 %v7023, %v7942
      %v7994 = vadd.f32 %v7024, %v7944
      %v7995 = vadd.f32 %v7025, %v7946
      %v7996 = vadd.f32 %v7026, %v7948
      %v7997 = vadd.f32 %v7027, %v7950
      %v7998 = vadd.f32 %v7028, %v7952
      %v7999 = vadd.f32 %v7029, %v7954
      %v8000 = vadd.f32 %v7030, %v7956
      %s8001 = scalar_lea.vmem %s198, 7680
      %v8002 = vld [vmem:[%s8001] sm:$0xff]
      %v8003 = vld [vmem:[%s8001 + $0x8] sm:$0xff]
      %v8004 = vld [vmem:[%s8001 + $0x10] sm:$0xff]
      %v8005 = vld [vmem:[%s8001 + $0x18] sm:$0xff]
      %v8006 = vld [vmem:[%s8001 + $0x20] sm:$0xff]
      %v8007 = vld [vmem:[%s8001 + $0x28] sm:$0xff]
      %v8008 = vld [vmem:[%s8001 + $0x30] sm:$0xff]
      %v8009 = vld [vmem:[%s8001 + $0x38] sm:$0xff]
      %v8010 = vld [vmem:[%s8001 + $0x40] sm:$0xff]
      %v8011 = vld [vmem:[%s8001 + $0x48] sm:$0xff]
      %v8012 = vld [vmem:[%s8001 + $0x50] sm:$0xff]
      %v8013 = vld [vmem:[%s8001 + $0x58] sm:$0xff]
      %v8014 = vld [vmem:[%s8001 + $0x60] sm:$0xff]
      %v8015 = vld [vmem:[%s8001 + $0x68] sm:$0xff]
      %v8016 = vld [vmem:[%s8001 + $0x70] sm:$0xff]
      %v8017 = vld [vmem:[%s8001 + $0x78] sm:$0xff]
      %v8018 = vld [vmem:[%s8001 + $0x80] sm:$0xff]
      %v8019 = vld [vmem:[%s8001 + $0x88] sm:$0xff]
      %v8020 = vld [vmem:[%s8001 + $0x90] sm:$0xff]
      %v8021 = vld [vmem:[%s8001 + $0x98] sm:$0xff]
      %v8022 = vld [vmem:[%s8001 + $0xa0] sm:$0xff]
      %v8023 = vld [vmem:[%s8001 + $0xa8] sm:$0xff]
      %v8024 = vld [vmem:[%s8001 + $0xb0] sm:$0xff]
      %v8025 = vld [vmem:[%s8001 + $0xb8] sm:$0xff]
      %v8026 = vld [vmem:[%s8001 + $0xc0] sm:$0xff]
      %v8027 = vld [vmem:[%s8001 + $0xc8] sm:$0xff]
      %v8028 = vld [vmem:[%s8001 + $0xd0] sm:$0xff]
      %v8029 = vld [vmem:[%s8001 + $0xd8] sm:$0xff]
      %v8030 = vld [vmem:[%s8001 + $0xe0] sm:$0xff]
      %v8031 = vld [vmem:[%s8001 + $0xe8] sm:$0xff]
      %v8032 = vld [vmem:[%s8001 + $0xf0] sm:$0xff]
      %v8033 = vld [vmem:[%s8001 + $0xf8] sm:$0xff]
      %v8034 = vld [vmem:[%s8001 + $0x100] sm:$0xff]
      %v8035 = vld [vmem:[%s8001 + $0x108] sm:$0xff]
      %v8036 = vld [vmem:[%s8001 + $0x110] sm:$0xff]
      %v8037 = vld [vmem:[%s8001 + $0x118] sm:$0xff]
      %v8038 = vld [vmem:[%s8001 + $0x120] sm:$0xff]
      %v8039 = vld [vmem:[%s8001 + $0x128] sm:$0xff]
      %v8040 = vld [vmem:[%s8001 + $0x130] sm:$0xff]
      %v8041 = vld [vmem:[%s8001 + $0x138] sm:$0xff]
      %v8042 = vld [vmem:[%s8001 + $0x140] sm:$0xff]
      %v8043 = vld [vmem:[%s8001 + $0x148] sm:$0xff]
      %v8044 = vld [vmem:[%s8001 + $0x150] sm:$0xff]
      %v8045 = vld [vmem:[%s8001 + $0x158] sm:$0xff]
      %v8046 = vld [vmem:[%s8001 + $0x160] sm:$0xff]
      %v8047 = vld [vmem:[%s8001 + $0x168] sm:$0xff]
      %v8048 = vld [vmem:[%s8001 + $0x170] sm:$0xff]
      %v8049 = vld [vmem:[%s8001 + $0x178] sm:$0xff]
      %v8050 = vld [vmem:[%s8001 + $0x180] sm:$0xff]
      %v8051 = vld [vmem:[%s8001 + $0x188] sm:$0xff]
      %v8052 = vld [vmem:[%s8001 + $0x190] sm:$0xff]
      %v8053 = vld [vmem:[%s8001 + $0x198] sm:$0xff]
      %v8054 = vld [vmem:[%s8001 + $0x1a0] sm:$0xff]
      %v8055 = vld [vmem:[%s8001 + $0x1a8] sm:$0xff]
      %v8056 = vld [vmem:[%s8001 + $0x1b0] sm:$0xff]
      %v8057 = vld [vmem:[%s8001 + $0x1b8] sm:$0xff]
      %v8058 = vld [vmem:[%s8001 + $0x1c0] sm:$0xff]
      %v8059 = vld [vmem:[%s8001 + $0x1c8] sm:$0xff]
      %v8060 = vld [vmem:[%s8001 + $0x1d0] sm:$0xff]
      %v8061 = vld [vmem:[%s8001 + $0x1d8] sm:$0xff]
      %v8062 = vld [vmem:[%s8001 + $0x1e0] sm:$0xff]
      %v8063 = vld [vmem:[%s8001 + $0x1e8] sm:$0xff]
      %v8064 = vld [vmem:[%s8001 + $0x1f0] sm:$0xff]
      %v8065 = vld [vmem:[%s8001 + $0x1f8] sm:$0xff]
      %v8066 = vld [vmem:[%s8001 + $0x200] sm:$0xff]
      %v8067 = vld [vmem:[%s8001 + $0x208] sm:$0xff]
      %v8068 = vld [vmem:[%s8001 + $0x210] sm:$0xff]
      %v8069 = vld [vmem:[%s8001 + $0x218] sm:$0xff]
      %v8070 = vld [vmem:[%s8001 + $0x220] sm:$0xff]
      %v8071 = vld [vmem:[%s8001 + $0x228] sm:$0xff]
      %v8072 = vld [vmem:[%s8001 + $0x230] sm:$0xff]
      %v8073 = vld [vmem:[%s8001 + $0x238] sm:$0xff]
      %v8074 = vld [vmem:[%s8001 + $0x240] sm:$0xff]
      %v8075 = vld [vmem:[%s8001 + $0x248] sm:$0xff]
      %v8076 = vld [vmem:[%s8001 + $0x250] sm:$0xff]
      %v8077 = vld [vmem:[%s8001 + $0x258] sm:$0xff]
      %v8078 = vld [vmem:[%s8001 + $0x260] sm:$0xff]
      %v8079 = vld [vmem:[%s8001 + $0x268] sm:$0xff]
      %v8080 = vld [vmem:[%s8001 + $0x270] sm:$0xff]
      %v8081 = vld [vmem:[%s8001 + $0x278] sm:$0xff]
      %v8082 = vld [vmem:[%s8001 + $0x280] sm:$0xff]
      %v8083 = vld [vmem:[%s8001 + $0x288] sm:$0xff]
      %v8084 = vld [vmem:[%s8001 + $0x290] sm:$0xff]
      %v8085 = vld [vmem:[%s8001 + $0x298] sm:$0xff]
      %v8086 = vld [vmem:[%s8001 + $0x2a0] sm:$0xff]
      %v8087 = vld [vmem:[%s8001 + $0x2a8] sm:$0xff]
      %v8088 = vld [vmem:[%s8001 + $0x2b0] sm:$0xff]
      %v8089 = vld [vmem:[%s8001 + $0x2b8] sm:$0xff]
      %v8090 = vld [vmem:[%s8001 + $0x2c0] sm:$0xff]
      %v8091 = vld [vmem:[%s8001 + $0x2c8] sm:$0xff]
      %v8092 = vld [vmem:[%s8001 + $0x2d0] sm:$0xff]
      %v8093 = vld [vmem:[%s8001 + $0x2d8] sm:$0xff]
      %v8094 = vld [vmem:[%s8001 + $0x2e0] sm:$0xff]
      %v8095 = vld [vmem:[%s8001 + $0x2e8] sm:$0xff]
      %v8096 = vld [vmem:[%s8001 + $0x2f0] sm:$0xff]
      %v8097 = vld [vmem:[%s8001 + $0x2f8] sm:$0xff]
      %v8194 = vunpack.c.l.b16 %v8002
      %v8195 = vunpack.c.h.b16 %v8002
      %v8196 = vunpack.c.l.b16 %v8003
      %v8197 = vunpack.c.h.b16 %v8003
      %v8198 = vunpack.c.l.b16 %v8004
      %v8199 = vunpack.c.h.b16 %v8004
      %v8200 = vunpack.c.l.b16 %v8005
      %v8201 = vunpack.c.h.b16 %v8005
      %v8202 = vunpack.c.l.b16 %v8006
      %v8203 = vunpack.c.h.b16 %v8006
      %v8204 = vunpack.c.l.b16 %v8007
      %v8205 = vunpack.c.h.b16 %v8007
      %v8206 = vunpack.c.l.b16 %v8008
      %v8207 = vunpack.c.h.b16 %v8008
      %v8208 = vunpack.c.l.b16 %v8009
      %v8209 = vunpack.c.h.b16 %v8009
      %v8210 = vunpack.c.l.b16 %v8010
      %v8211 = vunpack.c.h.b16 %v8010
      %v8212 = vunpack.c.l.b16 %v8011
      %v8213 = vunpack.c.h.b16 %v8011
      %v8214 = vunpack.c.l.b16 %v8012
      %v8215 = vunpack.c.h.b16 %v8012
      %v8216 = vunpack.c.l.b16 %v8013
      %v8217 = vunpack.c.h.b16 %v8013
      %v8218 = vunpack.c.l.b16 %v8014
      %v8219 = vunpack.c.h.b16 %v8014
      %v8220 = vunpack.c.l.b16 %v8015
      %v8221 = vunpack.c.h.b16 %v8015
      %v8222 = vunpack.c.l.b16 %v8016
      %v8223 = vunpack.c.h.b16 %v8016
      %v8224 = vunpack.c.l.b16 %v8017
      %v8225 = vunpack.c.h.b16 %v8017
      %v8226 = vunpack.c.l.b16 %v8018
      %v8227 = vunpack.c.h.b16 %v8018
      %v8228 = vunpack.c.l.b16 %v8019
      %v8229 = vunpack.c.h.b16 %v8019
      %v8230 = vunpack.c.l.b16 %v8020
      %v8231 = vunpack.c.h.b16 %v8020
      %v8232 = vunpack.c.l.b16 %v8021
      %v8233 = vunpack.c.h.b16 %v8021
      %v8234 = vunpack.c.l.b16 %v8022
      %v8235 = vunpack.c.h.b16 %v8022
      %v8236 = vunpack.c.l.b16 %v8023
      %v8237 = vunpack.c.h.b16 %v8023
      %v8238 = vunpack.c.l.b16 %v8024
      %v8239 = vunpack.c.h.b16 %v8024
      %v8240 = vunpack.c.l.b16 %v8025
      %v8241 = vunpack.c.h.b16 %v8025
      %v8242 = vunpack.c.l.b16 %v8026
      %v8243 = vunpack.c.h.b16 %v8026
      %v8244 = vunpack.c.l.b16 %v8027
      %v8245 = vunpack.c.h.b16 %v8027
      %v8246 = vunpack.c.l.b16 %v8028
      %v8247 = vunpack.c.h.b16 %v8028
      %v8248 = vunpack.c.l.b16 %v8029
      %v8249 = vunpack.c.h.b16 %v8029
      %v8250 = vunpack.c.l.b16 %v8030
      %v8251 = vunpack.c.h.b16 %v8030
      %v8252 = vunpack.c.l.b16 %v8031
      %v8253 = vunpack.c.h.b16 %v8031
      %v8254 = vunpack.c.l.b16 %v8032
      %v8255 = vunpack.c.h.b16 %v8032
      %v8256 = vunpack.c.l.b16 %v8033
      %v8257 = vunpack.c.h.b16 %v8033
      %v8258 = vunpack.c.l.b16 %v8034
      %v8259 = vunpack.c.h.b16 %v8034
      %v8260 = vunpack.c.l.b16 %v8035
      %v8261 = vunpack.c.h.b16 %v8035
      %v8262 = vunpack.c.l.b16 %v8036
      %v8263 = vunpack.c.h.b16 %v8036
      %v8264 = vunpack.c.l.b16 %v8037
      %v8265 = vunpack.c.h.b16 %v8037
      %v8266 = vunpack.c.l.b16 %v8038
      %v8267 = vunpack.c.h.b16 %v8038
      %v8268 = vunpack.c.l.b16 %v8039
      %v8269 = vunpack.c.h.b16 %v8039
      %v8270 = vunpack.c.l.b16 %v8040
      %v8271 = vunpack.c.h.b16 %v8040
      %v8272 = vunpack.c.l.b16 %v8041
      %v8273 = vunpack.c.h.b16 %v8041
      %v8274 = vunpack.c.l.b16 %v8042
      %v8275 = vunpack.c.h.b16 %v8042
      %v8276 = vunpack.c.l.b16 %v8043
      %v8277 = vunpack.c.h.b16 %v8043
      %v8278 = vunpack.c.l.b16 %v8044
      %v8279 = vunpack.c.h.b16 %v8044
      %v8280 = vunpack.c.l.b16 %v8045
      %v8281 = vunpack.c.h.b16 %v8045
      %v8282 = vunpack.c.l.b16 %v8046
      %v8283 = vunpack.c.h.b16 %v8046
      %v8284 = vunpack.c.l.b16 %v8047
      %v8285 = vunpack.c.h.b16 %v8047
      %v8286 = vunpack.c.l.b16 %v8048
      %v8287 = vunpack.c.h.b16 %v8048
      %v8288 = vunpack.c.l.b16 %v8049
      %v8289 = vunpack.c.h.b16 %v8049
      %v8290 = vunpack.c.l.b16 %v8050
      %v8291 = vunpack.c.h.b16 %v8050
      %v8292 = vunpack.c.l.b16 %v8051
      %v8293 = vunpack.c.h.b16 %v8051
      %v8294 = vunpack.c.l.b16 %v8052
      %v8295 = vunpack.c.h.b16 %v8052
      %v8296 = vunpack.c.l.b16 %v8053
      %v8297 = vunpack.c.h.b16 %v8053
      %v8298 = vunpack.c.l.b16 %v8054
      %v8299 = vunpack.c.h.b16 %v8054
      %v8300 = vunpack.c.l.b16 %v8055
      %v8301 = vunpack.c.h.b16 %v8055
      %v8302 = vunpack.c.l.b16 %v8056
      %v8303 = vunpack.c.h.b16 %v8056
      %v8304 = vunpack.c.l.b16 %v8057
      %v8305 = vunpack.c.h.b16 %v8057
      %v8306 = vunpack.c.l.b16 %v8058
      %v8307 = vunpack.c.h.b16 %v8058
      %v8308 = vunpack.c.l.b16 %v8059
      %v8309 = vunpack.c.h.b16 %v8059
      %v8310 = vunpack.c.l.b16 %v8060
      %v8311 = vunpack.c.h.b16 %v8060
      %v8312 = vunpack.c.l.b16 %v8061
      %v8313 = vunpack.c.h.b16 %v8061
      %v8314 = vunpack.c.l.b16 %v8062
      %v8315 = vunpack.c.h.b16 %v8062
      %v8316 = vunpack.c.l.b16 %v8063
      %v8317 = vunpack.c.h.b16 %v8063
      %v8318 = vunpack.c.l.b16 %v8064
      %v8319 = vunpack.c.h.b16 %v8064
      %v8320 = vunpack.c.l.b16 %v8065
      %v8321 = vunpack.c.h.b16 %v8065
      %v8322 = vunpack.c.l.b16 %v8066
      %v8323 = vunpack.c.h.b16 %v8066
      %v8324 = vunpack.c.l.b16 %v8067
      %v8325 = vunpack.c.h.b16 %v8067
      %v8326 = vunpack.c.l.b16 %v8068
      %v8327 = vunpack.c.h.b16 %v8068
      %v8328 = vunpack.c.l.b16 %v8069
      %v8329 = vunpack.c.h.b16 %v8069
      %v8330 = vunpack.c.l.b16 %v8070
      %v8331 = vunpack.c.h.b16 %v8070
      %v8332 = vunpack.c.l.b16 %v8071
      %v8333 = vunpack.c.h.b16 %v8071
      %v8334 = vunpack.c.l.b16 %v8072
      %v8335 = vunpack.c.h.b16 %v8072
      %v8336 = vunpack.c.l.b16 %v8073
      %v8337 = vunpack.c.h.b16 %v8073
      %v8338 = vunpack.c.l.b16 %v8074
      %v8339 = vunpack.c.h.b16 %v8074
      %v8340 = vunpack.c.l.b16 %v8075
      %v8341 = vunpack.c.h.b16 %v8075
      %v8342 = vunpack.c.l.b16 %v8076
      %v8343 = vunpack.c.h.b16 %v8076
      %v8344 = vunpack.c.l.b16 %v8077
      %v8345 = vunpack.c.h.b16 %v8077
      %v8346 = vunpack.c.l.b16 %v8078
      %v8347 = vunpack.c.h.b16 %v8078
      %v8348 = vunpack.c.l.b16 %v8079
      %v8349 = vunpack.c.h.b16 %v8079
      %v8350 = vunpack.c.l.b16 %v8080
      %v8351 = vunpack.c.h.b16 %v8080
      %v8352 = vunpack.c.l.b16 %v8081
      %v8353 = vunpack.c.h.b16 %v8081
      %v8354 = vunpack.c.l.b16 %v8082
      %v8355 = vunpack.c.h.b16 %v8082
      %v8356 = vunpack.c.l.b16 %v8083
      %v8357 = vunpack.c.h.b16 %v8083
      %v8358 = vunpack.c.l.b16 %v8084
      %v8359 = vunpack.c.h.b16 %v8084
      %v8360 = vunpack.c.l.b16 %v8085
      %v8361 = vunpack.c.h.b16 %v8085
      %v8362 = vunpack.c.l.b16 %v8086
      %v8363 = vunpack.c.h.b16 %v8086
      %v8364 = vunpack.c.l.b16 %v8087
      %v8365 = vunpack.c.h.b16 %v8087
      %v8366 = vunpack.c.l.b16 %v8088
      %v8367 = vunpack.c.h.b16 %v8088
      %v8368 = vunpack.c.l.b16 %v8089
      %v8369 = vunpack.c.h.b16 %v8089
      %v8370 = vunpack.c.l.b16 %v8090
      %v8371 = vunpack.c.h.b16 %v8090
      %v8372 = vunpack.c.l.b16 %v8091
      %v8373 = vunpack.c.h.b16 %v8091
      %v8374 = vunpack.c.l.b16 %v8092
      %v8375 = vunpack.c.h.b16 %v8092
      %v8376 = vunpack.c.l.b16 %v8093
      %v8377 = vunpack.c.h.b16 %v8093
      %v8378 = vunpack.c.l.b16 %v8094
      %v8379 = vunpack.c.h.b16 %v8094
      %v8380 = vunpack.c.l.b16 %v8095
      %v8381 = vunpack.c.h.b16 %v8095
      %v8382 = vunpack.c.l.b16 %v8096
      %v8383 = vunpack.c.h.b16 %v8096
      %v8384 = vunpack.c.l.b16 %v8097
      %v8385 = vunpack.c.h.b16 %v8097
      %v8386 = vpack.c.b16 %v8196, %v8194
      %v8387 = vpack.c.b16 %v8197, %v8195
      %v8388 = vpack.c.b16 %v8200, %v8198
      %v8389 = vpack.c.b16 %v8201, %v8199
      %v8390 = vpack.c.b16 %v8204, %v8202
      %v8391 = vpack.c.b16 %v8205, %v8203
      %v8392 = vpack.c.b16 %v8208, %v8206
      %v8393 = vpack.c.b16 %v8209, %v8207
      %v8394 = vpack.c.b16 %v8212, %v8210
      %v8395 = vpack.c.b16 %v8213, %v8211
      %v8396 = vpack.c.b16 %v8216, %v8214
      %v8397 = vpack.c.b16 %v8217, %v8215
      %v8398 = vpack.c.b16 %v8220, %v8218
      %v8399 = vpack.c.b16 %v8221, %v8219
      %v8400 = vpack.c.b16 %v8224, %v8222
      %v8401 = vpack.c.b16 %v8225, %v8223
      %v8402 = vpack.c.b16 %v8228, %v8226
      %v8403 = vpack.c.b16 %v8229, %v8227
      %v8404 = vpack.c.b16 %v8232, %v8230
      %v8405 = vpack.c.b16 %v8233, %v8231
      %v8406 = vpack.c.b16 %v8236, %v8234
      %v8407 = vpack.c.b16 %v8237, %v8235
      %v8408 = vpack.c.b16 %v8240, %v8238
      %v8409 = vpack.c.b16 %v8241, %v8239
      %v8410 = vpack.c.b16 %v8244, %v8242
      %v8411 = vpack.c.b16 %v8245, %v8243
      %v8412 = vpack.c.b16 %v8248, %v8246
      %v8413 = vpack.c.b16 %v8249, %v8247
      %v8414 = vpack.c.b16 %v8252, %v8250
      %v8415 = vpack.c.b16 %v8253, %v8251
      %v8416 = vpack.c.b16 %v8256, %v8254
      %v8417 = vpack.c.b16 %v8257, %v8255
      %v8418 = vpack.c.b16 %v8260, %v8258
      %v8419 = vpack.c.b16 %v8261, %v8259
      %v8420 = vpack.c.b16 %v8264, %v8262
      %v8421 = vpack.c.b16 %v8265, %v8263
      %v8422 = vpack.c.b16 %v8268, %v8266
      %v8423 = vpack.c.b16 %v8269, %v8267
      %v8424 = vpack.c.b16 %v8272, %v8270
      %v8425 = vpack.c.b16 %v8273, %v8271
      %v8426 = vpack.c.b16 %v8276, %v8274
      %v8427 = vpack.c.b16 %v8277, %v8275
      %v8428 = vpack.c.b16 %v8280, %v8278
      %v8429 = vpack.c.b16 %v8281, %v8279
      %v8430 = vpack.c.b16 %v8284, %v8282
      %v8431 = vpack.c.b16 %v8285, %v8283
      %v8432 = vpack.c.b16 %v8288, %v8286
      %v8433 = vpack.c.b16 %v8289, %v8287
      %v8434 = vpack.c.b16 %v8292, %v8290
      %v8435 = vpack.c.b16 %v8293, %v8291
      %v8436 = vpack.c.b16 %v8296, %v8294
      %v8437 = vpack.c.b16 %v8297, %v8295
      %v8438 = vpack.c.b16 %v8300, %v8298
      %v8439 = vpack.c.b16 %v8301, %v8299
      %v8440 = vpack.c.b16 %v8304, %v8302
      %v8441 = vpack.c.b16 %v8305, %v8303
      %v8442 = vpack.c.b16 %v8308, %v8306
      %v8443 = vpack.c.b16 %v8309, %v8307
      %v8444 = vpack.c.b16 %v8312, %v8310
      %v8445 = vpack.c.b16 %v8313, %v8311
      %v8446 = vpack.c.b16 %v8316, %v8314
      %v8447 = vpack.c.b16 %v8317, %v8315
      %v8448 = vpack.c.b16 %v8320, %v8318
      %v8449 = vpack.c.b16 %v8321, %v8319
      %v8450 = vpack.c.b16 %v8324, %v8322
      %v8451 = vpack.c.b16 %v8325, %v8323
      %v8452 = vpack.c.b16 %v8328, %v8326
      %v8453 = vpack.c.b16 %v8329, %v8327
      %v8454 = vpack.c.b16 %v8332, %v8330
      %v8455 = vpack.c.b16 %v8333, %v8331
      %v8456 = vpack.c.b16 %v8336, %v8334
      %v8457 = vpack.c.b16 %v8337, %v8335
      %v8458 = vpack.c.b16 %v8340, %v8338
      %v8459 = vpack.c.b16 %v8341, %v8339
      %v8460 = vpack.c.b16 %v8344, %v8342
      %v8461 = vpack.c.b16 %v8345, %v8343
      %v8462 = vpack.c.b16 %v8348, %v8346
      %v8463 = vpack.c.b16 %v8349, %v8347
      %v8464 = vpack.c.b16 %v8352, %v8350
      %v8465 = vpack.c.b16 %v8353, %v8351
      %v8466 = vpack.c.b16 %v8356, %v8354
      %v8467 = vpack.c.b16 %v8357, %v8355
      %v8468 = vpack.c.b16 %v8360, %v8358
      %v8469 = vpack.c.b16 %v8361, %v8359
      %v8470 = vpack.c.b16 %v8364, %v8362
      %v8471 = vpack.c.b16 %v8365, %v8363
      %v8472 = vpack.c.b16 %v8368, %v8366
      %v8473 = vpack.c.b16 %v8369, %v8367
      %v8474 = vpack.c.b16 %v8372, %v8370
      %v8475 = vpack.c.b16 %v8373, %v8371
      %v8476 = vpack.c.b16 %v8376, %v8374
      %v8477 = vpack.c.b16 %v8377, %v8375
      %v8478 = vpack.c.b16 %v8380, %v8378
      %v8479 = vpack.c.b16 %v8381, %v8379
      %v8480 = vpack.c.b16 %v8384, %v8382
      %v8481 = vpack.c.b16 %v8385, %v8383
      %8578 = vmatprep.subr.bf16.mxu0 %v8401
      %8579 = vmatpush1.bf16.msra.mxu0 %v8400
      %8580 = vmatprep.subr.bf16.mxu0 %v8399
      %8581 = vmatpush1.bf16.msra.mxu0 %v8398
      %8582 = vmatprep.subr.bf16.mxu0 %v8397
      %8583 = vmatpush1.bf16.msra.mxu0 %v8396
      %8584 = vmatprep.subr.bf16.mxu0 %v8395
      %8585 = vmatpush1.bf16.msra.mxu0 %v8394
      %8586 = vmatprep.subr.bf16.mxu0 %v8393
      %8587 = vmatpush1.bf16.msra.mxu0 %v8392
      %8588 = vmatprep.subr.bf16.mxu0 %v8391
      %8589 = vmatpush1.bf16.msra.mxu0 %v8390
      %8590 = vmatprep.subr.bf16.mxu0 %v8389
      %8591 = vmatpush1.bf16.msra.mxu0 %v8388
      %8592 = vmatprep.subr.bf16.mxu0 %v8387
      %8593 = vmatpush1.bf16.msra.mxu0 %v8386
      %8594 = vmatprep.subr.bf16.mxu0 %v8417
      %8595 = vmatpush2.bf16.msra.mxu0 %v8416
      %8596 = vmatprep.subr.bf16.mxu0 %v8415
      %8597 = vmatpush2.bf16.msra.mxu0 %v8414
      %8598 = vmatprep.subr.bf16.mxu0 %v8413
      %8599 = vmatpush2.bf16.msra.mxu0 %v8412
      %8600 = vmatprep.subr.bf16.mxu0 %v8411
      %8601 = vmatpush2.bf16.msra.mxu0 %v8410
      %8602 = vmatprep.subr.bf16.mxu0 %v8409
      %8603 = vmatpush2.bf16.msra.mxu0 %v8408
      %8604 = vmatprep.subr.bf16.mxu0 %v8407
      %8605 = vmatpush2.bf16.msra.mxu0 %v8406
      %8606 = vmatprep.subr.bf16.mxu0 %v8405
      %8607 = vmatpush2.bf16.msra.mxu0 %v8404
      %8608 = vmatprep.subr.bf16.mxu0 %v8403
      %8609 = vmatpush2.bf16.msra.mxu0 %v8402
      %8610 = vmatprep.mubr.bf16.mxu0 %v6124
      %8611 = vmatmul.mubr.bf16.gmra.mxu0 %v6123
      %v8612 = vpop.f32.mrf.mxu0
      %v8613 = vadd.f32 0.0, %v8612
      %v8614 = vpop.f32.mrf.mxu0
      %v8615 = vadd.f32 0.0, %v8614
      %v8616 = vpop.f32.mrf.mxu0
      %v8617 = vadd.f32 0.0, %v8616
      %v8618 = vpop.f32.mrf.mxu0
      %v8619 = vadd.f32 0.0, %v8618
      %8620 = vmatprep.mubr.bf16.mxu0 %v6130
      %8621 = vmatmul.mubr.bf16.gmra.mxu0 %v6129
      %v8622 = vpop.f32.mrf.mxu0
      %v8623 = vadd.f32 0.0, %v8622
      %v8624 = vpop.f32.mrf.mxu0
      %v8625 = vadd.f32 0.0, %v8624
      %v8626 = vpop.f32.mrf.mxu0
      %v8627 = vadd.f32 0.0, %v8626
      %v8628 = vpop.f32.mrf.mxu0
      %v8629 = vadd.f32 0.0, %v8628
      %8630 = vmatprep.mubr.bf16.mxu0 %v6136
      %8631 = vmatmul.mubr.bf16.gmra.mxu0 %v6135
      %v8632 = vpop.f32.mrf.mxu0
      %v8633 = vadd.f32 0.0, %v8632
      %v8634 = vpop.f32.mrf.mxu0
      %v8635 = vadd.f32 0.0, %v8634
      %v8636 = vpop.f32.mrf.mxu0
      %v8637 = vadd.f32 0.0, %v8636
      %v8638 = vpop.f32.mrf.mxu0
      %v8639 = vadd.f32 0.0, %v8638
      %8640 = vmatprep.mubr.bf16.mxu0 %v6142
      %8641 = vmatmul.mubr.bf16.gmra.mxu0 %v6141
      %v8642 = vpop.f32.mrf.mxu0
      %v8643 = vadd.f32 0.0, %v8642
      %v8644 = vpop.f32.mrf.mxu0
      %v8645 = vadd.f32 0.0, %v8644
      %v8646 = vpop.f32.mrf.mxu0
      %v8647 = vadd.f32 0.0, %v8646
      %v8648 = vpop.f32.mrf.mxu0
      %v8649 = vadd.f32 0.0, %v8648
      %8650 = vmatprep.mubr.bf16.mxu0 %v6148
      %8651 = vmatmul.mubr.bf16.gmra.mxu0 %v6147
      %v8652 = vpop.f32.mrf.mxu0
      %v8653 = vadd.f32 0.0, %v8652
      %v8654 = vpop.f32.mrf.mxu0
      %v8655 = vadd.f32 0.0, %v8654
      %v8656 = vpop.f32.mrf.mxu0
      %v8657 = vadd.f32 0.0, %v8656
      %v8658 = vpop.f32.mrf.mxu0
      %v8659 = vadd.f32 0.0, %v8658
      %8660 = vmatprep.mubr.bf16.mxu0 %v6154
      %8661 = vmatmul.mubr.bf16.gmra.mxu0 %v6153
      %v8662 = vpop.f32.mrf.mxu0
      %v8663 = vadd.f32 0.0, %v8662
      %v8664 = vpop.f32.mrf.mxu0
      %v8665 = vadd.f32 0.0, %v8664
      %v8666 = vpop.f32.mrf.mxu0
      %v8667 = vadd.f32 0.0, %v8666
      %v8668 = vpop.f32.mrf.mxu0
      %v8669 = vadd.f32 0.0, %v8668
      %8670 = vdwg.mxu0
      %8671 = vmatprep.subr.bf16.mxu0 %v8433
      %8672 = vmatpush1.bf16.msra.mxu0 %v8432
      %8673 = vmatprep.subr.bf16.mxu0 %v8431
      %8674 = vmatpush1.bf16.msra.mxu0 %v8430
      %8675 = vmatprep.subr.bf16.mxu0 %v8429
      %8676 = vmatpush1.bf16.msra.mxu0 %v8428
      %8677 = vmatprep.subr.bf16.mxu0 %v8427
      %8678 = vmatpush1.bf16.msra.mxu0 %v8426
      %8679 = vmatprep.subr.bf16.mxu0 %v8425
      %8680 = vmatpush1.bf16.msra.mxu0 %v8424
      %8681 = vmatprep.subr.bf16.mxu0 %v8423
      %8682 = vmatpush1.bf16.msra.mxu0 %v8422
      %8683 = vmatprep.subr.bf16.mxu0 %v8421
      %8684 = vmatpush1.bf16.msra.mxu0 %v8420
      %8685 = vmatprep.subr.bf16.mxu0 %v8419
      %8686 = vmatpush1.bf16.msra.mxu0 %v8418
      %8687 = vmatprep.subr.bf16.mxu0 %v8449
      %8688 = vmatpush2.bf16.msra.mxu0 %v8448
      %8689 = vmatprep.subr.bf16.mxu0 %v8447
      %8690 = vmatpush2.bf16.msra.mxu0 %v8446
      %8691 = vmatprep.subr.bf16.mxu0 %v8445
      %8692 = vmatpush2.bf16.msra.mxu0 %v8444
      %8693 = vmatprep.subr.bf16.mxu0 %v8443
      %8694 = vmatpush2.bf16.msra.mxu0 %v8442
      %8695 = vmatprep.subr.bf16.mxu0 %v8441
      %8696 = vmatpush2.bf16.msra.mxu0 %v8440
      %8697 = vmatprep.subr.bf16.mxu0 %v8439
      %8698 = vmatpush2.bf16.msra.mxu0 %v8438
      %8699 = vmatprep.subr.bf16.mxu0 %v8437
      %8700 = vmatpush2.bf16.msra.mxu0 %v8436
      %8701 = vmatprep.subr.bf16.mxu0 %v8435
      %8702 = vmatpush2.bf16.msra.mxu0 %v8434
      %8703 = vmatprep.mubr.bf16.mxu0 %v6126
      %8704 = vmatmul.mubr.bf16.gmra.mxu0 %v6125
      %v8705 = vpop.f32.mrf.mxu0
      %v8706 = vadd.f32 %v8613, %v8705
      %v8707 = vpop.f32.mrf.mxu0
      %v8708 = vadd.f32 %v8615, %v8707
      %v8709 = vpop.f32.mrf.mxu0
      %v8710 = vadd.f32 %v8617, %v8709
      %v8711 = vpop.f32.mrf.mxu0
      %v8712 = vadd.f32 %v8619, %v8711
      %8713 = vmatprep.mubr.bf16.mxu0 %v6132
      %8714 = vmatmul.mubr.bf16.gmra.mxu0 %v6131
      %v8715 = vpop.f32.mrf.mxu0
      %v8716 = vadd.f32 %v8623, %v8715
      %v8717 = vpop.f32.mrf.mxu0
      %v8718 = vadd.f32 %v8625, %v8717
      %v8719 = vpop.f32.mrf.mxu0
      %v8720 = vadd.f32 %v8627, %v8719
      %v8721 = vpop.f32.mrf.mxu0
      %v8722 = vadd.f32 %v8629, %v8721
      %8723 = vmatprep.mubr.bf16.mxu0 %v6138
      %8724 = vmatmul.mubr.bf16.gmra.mxu0 %v6137
      %v8725 = vpop.f32.mrf.mxu0
      %v8726 = vadd.f32 %v8633, %v8725
      %v8727 = vpop.f32.mrf.mxu0
      %v8728 = vadd.f32 %v8635, %v8727
      %v8729 = vpop.f32.mrf.mxu0
      %v8730 = vadd.f32 %v8637, %v8729
      %v8731 = vpop.f32.mrf.mxu0
      %v8732 = vadd.f32 %v8639, %v8731
      %8733 = vmatprep.mubr.bf16.mxu0 %v6144
      %8734 = vmatmul.mubr.bf16.gmra.mxu0 %v6143
      %v8735 = vpop.f32.mrf.mxu0
      %v8736 = vadd.f32 %v8643, %v8735
      %v8737 = vpop.f32.mrf.mxu0
      %v8738 = vadd.f32 %v8645, %v8737
      %v8739 = vpop.f32.mrf.mxu0
      %v8740 = vadd.f32 %v8647, %v8739
      %v8741 = vpop.f32.mrf.mxu0
      %v8742 = vadd.f32 %v8649, %v8741
      %8743 = vmatprep.mubr.bf16.mxu0 %v6150
      %8744 = vmatmul.mubr.bf16.gmra.mxu0 %v6149
      %v8745 = vpop.f32.mrf.mxu0
      %v8746 = vadd.f32 %v8653, %v8745
      %v8747 = vpop.f32.mrf.mxu0
      %v8748 = vadd.f32 %v8655, %v8747
      %v8749 = vpop.f32.mrf.mxu0
      %v8750 = vadd.f32 %v8657, %v8749
      %v8751 = vpop.f32.mrf.mxu0
      %v8752 = vadd.f32 %v8659, %v8751
      %8753 = vmatprep.mubr.bf16.mxu0 %v6156
      %8754 = vmatmul.mubr.bf16.gmra.mxu0 %v6155
      %v8755 = vpop.f32.mrf.mxu0
      %v8756 = vadd.f32 %v8663, %v8755
      %v8757 = vpop.f32.mrf.mxu0
      %v8758 = vadd.f32 %v8665, %v8757
      %v8759 = vpop.f32.mrf.mxu0
      %v8760 = vadd.f32 %v8667, %v8759
      %v8761 = vpop.f32.mrf.mxu0
      %v8762 = vadd.f32 %v8669, %v8761
      %8763 = vdwg.mxu0
      %8764 = vmatprep.subr.bf16.mxu0 %v8465
      %8765 = vmatpush1.bf16.msra.mxu0 %v8464
      %8766 = vmatprep.subr.bf16.mxu0 %v8463
      %8767 = vmatpush1.bf16.msra.mxu0 %v8462
      %8768 = vmatprep.subr.bf16.mxu0 %v8461
      %8769 = vmatpush1.bf16.msra.mxu0 %v8460
      %8770 = vmatprep.subr.bf16.mxu0 %v8459
      %8771 = vmatpush1.bf16.msra.mxu0 %v8458
      %8772 = vmatprep.subr.bf16.mxu0 %v8457
      %8773 = vmatpush1.bf16.msra.mxu0 %v8456
      %8774 = vmatprep.subr.bf16.mxu0 %v8455
      %8775 = vmatpush1.bf16.msra.mxu0 %v8454
      %8776 = vmatprep.subr.bf16.mxu0 %v8453
      %8777 = vmatpush1.bf16.msra.mxu0 %v8452
      %8778 = vmatprep.subr.bf16.mxu0 %v8451
      %8779 = vmatpush1.bf16.msra.mxu0 %v8450
      %8780 = vmatprep.subr.bf16.mxu0 %v8481
      %8781 = vmatpush2.bf16.msra.mxu0 %v8480
      %8782 = vmatprep.subr.bf16.mxu0 %v8479
      %8783 = vmatpush2.bf16.msra.mxu0 %v8478
      %8784 = vmatprep.subr.bf16.mxu0 %v8477
      %8785 = vmatpush2.bf16.msra.mxu0 %v8476
      %8786 = vmatprep.subr.bf16.mxu0 %v8475
      %8787 = vmatpush2.bf16.msra.mxu0 %v8474
      %8788 = vmatprep.subr.bf16.mxu0 %v8473
      %8789 = vmatpush2.bf16.msra.mxu0 %v8472
      %8790 = vmatprep.subr.bf16.mxu0 %v8471
      %8791 = vmatpush2.bf16.msra.mxu0 %v8470
      %8792 = vmatprep.subr.bf16.mxu0 %v8469
      %8793 = vmatpush2.bf16.msra.mxu0 %v8468
      %8794 = vmatprep.subr.bf16.mxu0 %v8467
      %8795 = vmatpush2.bf16.msra.mxu0 %v8466
      %8796 = vmatprep.mubr.bf16.mxu0 %v6128
      %8797 = vmatmul.mubr.bf16.gmra.mxu0 %v6127
      %v8798 = vpop.f32.mrf.mxu0
      %v8799 = vadd.f32 %v8706, %v8798
      %v8800 = vpop.f32.mrf.mxu0
      %v8801 = vadd.f32 %v8708, %v8800
      %v8802 = vpop.f32.mrf.mxu0
      %v8803 = vadd.f32 %v8710, %v8802
      %v8804 = vpop.f32.mrf.mxu0
      %v8805 = vadd.f32 %v8712, %v8804
      %8806 = vmatprep.mubr.bf16.mxu0 %v6134
      %8807 = vmatmul.mubr.bf16.gmra.mxu0 %v6133
      %v8808 = vpop.f32.mrf.mxu0
      %v8809 = vadd.f32 %v8716, %v8808
      %v8810 = vpop.f32.mrf.mxu0
      %v8811 = vadd.f32 %v8718, %v8810
      %v8812 = vpop.f32.mrf.mxu0
      %v8813 = vadd.f32 %v8720, %v8812
      %v8814 = vpop.f32.mrf.mxu0
      %v8815 = vadd.f32 %v8722, %v8814
      %8816 = vmatprep.mubr.bf16.mxu0 %v6140
      %8817 = vmatmul.mubr.bf16.gmra.mxu0 %v6139
      %v8818 = vpop.f32.mrf.mxu0
      %v8819 = vadd.f32 %v8726, %v8818
      %v8820 = vpop.f32.mrf.mxu0
      %v8821 = vadd.f32 %v8728, %v8820
      %v8822 = vpop.f32.mrf.mxu0
      %v8823 = vadd.f32 %v8730, %v8822
      %v8824 = vpop.f32.mrf.mxu0
      %v8825 = vadd.f32 %v8732, %v8824
      %8826 = vmatprep.mubr.bf16.mxu0 %v6146
      %8827 = vmatmul.mubr.bf16.gmra.mxu0 %v6145
      %v8828 = vpop.f32.mrf.mxu0
      %v8829 = vadd.f32 %v8736, %v8828
      %v8830 = vpop.f32.mrf.mxu0
      %v8831 = vadd.f32 %v8738, %v8830
      %v8832 = vpop.f32.mrf.mxu0
      %v8833 = vadd.f32 %v8740, %v8832
      %v8834 = vpop.f32.mrf.mxu0
      %v8835 = vadd.f32 %v8742, %v8834
      %8836 = vmatprep.mubr.bf16.mxu0 %v6152
      %8837 = vmatmul.mubr.bf16.gmra.mxu0 %v6151
      %v8838 = vpop.f32.mrf.mxu0
      %v8839 = vadd.f32 %v8746, %v8838
      %v8840 = vpop.f32.mrf.mxu0
      %v8841 = vadd.f32 %v8748, %v8840
      %v8842 = vpop.f32.mrf.mxu0
      %v8843 = vadd.f32 %v8750, %v8842
      %v8844 = vpop.f32.mrf.mxu0
      %v8845 = vadd.f32 %v8752, %v8844
      %8846 = vmatprep.mubr.bf16.mxu0 %v6158
      %8847 = vmatmul.mubr.bf16.gmra.mxu0 %v6157
      %v8848 = vpop.f32.mrf.mxu0
      %v8849 = vadd.f32 %v8756, %v8848
      %v8850 = vpop.f32.mrf.mxu0
      %v8851 = vadd.f32 %v8758, %v8850
      %v8852 = vpop.f32.mrf.mxu0
      %v8853 = vadd.f32 %v8760, %v8852
      %v8854 = vpop.f32.mrf.mxu0
      %v8855 = vadd.f32 %v8762, %v8854
      %8856 = vdwg.mxu0
      %v8881 = vrot.slane %v8799, 2
      %v8882 = vrot.slane %v8803, 2
      %v8883 = vsel %vm3038, %v8881, %v8882
      %v8884 = vrot.slane %v8801, 2
      %v8885 = vrot.slane %v8805, 2
      %v8886 = vsel %vm3038, %v8884, %v8885
      %v8887 = vrot.slane %v8809, 2
      %v8888 = vsel %vm3038, %v8882, %v8887
      %v8889 = vrot.slane %v8811, 2
      %v8890 = vsel %vm3038, %v8885, %v8889
      %v8891 = vrot.slane %v8813, 2
      %v8892 = vsel %vm3038, %v8887, %v8891
      %v8893 = vrot.slane %v8815, 2
      %v8894 = vsel %vm3038, %v8889, %v8893
      %v8895 = vrot.slane %v8819, 2
      %v8896 = vsel %vm3038, %v8891, %v8895
      %v8897 = vrot.slane %v8821, 2
      %v8898 = vsel %vm3038, %v8893, %v8897
      %v8899 = vrot.slane %v8823, 2
      %v8900 = vsel %vm3038, %v8895, %v8899
      %v8901 = vrot.slane %v8825, 2
      %v8902 = vsel %vm3038, %v8897, %v8901
      %v8903 = vrot.slane %v8829, 2
      %v8904 = vsel %vm3038, %v8899, %v8903
      %v8905 = vrot.slane %v8831, 2
      %v8906 = vsel %vm3038, %v8901, %v8905
      %v8907 = vrot.slane %v8833, 2
      %v8908 = vsel %vm3038, %v8903, %v8907
      %v8909 = vrot.slane %v8835, 2
      %v8910 = vsel %vm3038, %v8905, %v8909
      %v8911 = vrot.slane %v8839, 2
      %v8912 = vsel %vm3038, %v8907, %v8911
      %v8913 = vrot.slane %v8841, 2
      %v8914 = vsel %vm3038, %v8909, %v8913
      %v8915 = vrot.slane %v8843, 2
      %v8916 = vsel %vm3038, %v8911, %v8915
      %v8917 = vrot.slane %v8845, 2
      %v8918 = vsel %vm3038, %v8913, %v8917
      %v8919 = vrot.slane %v8849, 2
      %v8920 = vsel %vm3038, %v8915, %v8919
      %v8921 = vrot.slane %v8851, 2
      %v8922 = vsel %vm3038, %v8917, %v8921
      %v8923 = vrot.slane %v8853, 2
      %v8924 = vsel %vm3038, %v8919, %v8923
      %v8925 = vrot.slane %v8855, 2
      %v8926 = vsel %vm3038, %v8921, %v8925
      %v8949 = vadd.f32 %v7979, %v8883
      %v8950 = vadd.f32 %v7980, %v8886
      %v8951 = vadd.f32 %v7981, %v8888
      %v8952 = vadd.f32 %v7982, %v8890
      %v8953 = vadd.f32 %v7983, %v8892
      %v8954 = vadd.f32 %v7984, %v8894
      %v8955 = vadd.f32 %v7985, %v8896
      %v8956 = vadd.f32 %v7986, %v8898
      %v8957 = vadd.f32 %v7987, %v8900
      %v8958 = vadd.f32 %v7988, %v8902
      %v8959 = vadd.f32 %v7989, %v8904
      %v8960 = vadd.f32 %v7990, %v8906
      %v8961 = vadd.f32 %v7991, %v8908
      %v8962 = vadd.f32 %v7992, %v8910
      %v8963 = vadd.f32 %v7993, %v8912
      %v8964 = vadd.f32 %v7994, %v8914
      %v8965 = vadd.f32 %v7995, %v8916
      %v8966 = vadd.f32 %v7996, %v8918
      %v8967 = vadd.f32 %v7997, %v8920
      %v8968 = vadd.f32 %v7998, %v8922
      %v8969 = vadd.f32 %v7999, %v8924
      %v8970 = vadd.f32 %v8000, %v8926
      %s8971 = scalar_lea.vmem %s193, 1728
      %v8972 = vld [vmem:[%s8971] sm:$0xff]
      %v8973 = vld [vmem:[%s8971 + $0x8] sm:$0xff]
      %v8974 = vld [vmem:[%s8971 + $0x10] sm:$0xff]
      %v8975 = vld [vmem:[%s8971 + $0x18] sm:$0xff]
      %v8976 = vld [vmem:[%s8971 + $0x20] sm:$0xff]
      %v8977 = vld [vmem:[%s8971 + $0x28] sm:$0xff]
      %v8978 = vld [vmem:[%s8971 + $0x30] sm:$0xff]
      %v8979 = vld [vmem:[%s8971 + $0x38] sm:$0xff]
      %v8980 = vld [vmem:[%s8971 + $0x40] sm:$0xff]
      %v8981 = vld [vmem:[%s8971 + $0x48] sm:$0xff]
      %v8982 = vld [vmem:[%s8971 + $0x50] sm:$0xff]
      %v8983 = vld [vmem:[%s8971 + $0x58] sm:$0xff]
      %v8984 = vld [vmem:[%s8971 + $0x60] sm:$0xff]
      %v8985 = vld [vmem:[%s8971 + $0x68] sm:$0xff]
      %v8986 = vld [vmem:[%s8971 + $0x70] sm:$0xff]
      %v8987 = vld [vmem:[%s8971 + $0x78] sm:$0xff]
      %v8988 = vld [vmem:[%s8971 + $0x80] sm:$0xff]
      %v8989 = vld [vmem:[%s8971 + $0x88] sm:$0xff]
      %v8990 = vld [vmem:[%s8971 + $0x90] sm:$0xff]
      %v8991 = vld [vmem:[%s8971 + $0x98] sm:$0xff]
      %v8992 = vld [vmem:[%s8971 + $0xa0] sm:$0xff]
      %v8993 = vld [vmem:[%s8971 + $0xa8] sm:$0xff]
      %v8994 = vld [vmem:[%s8971 + $0xb0] sm:$0xff]
      %v8995 = vld [vmem:[%s8971 + $0xb8] sm:$0xff]
      %v8996 = vld [vmem:[%s8971 + $0xc0] sm:$0xff]
      %v8997 = vld [vmem:[%s8971 + $0xc8] sm:$0xff]
      %v8998 = vld [vmem:[%s8971 + $0xd0] sm:$0xff]
      %v8999 = vld [vmem:[%s8971 + $0xd8] sm:$0xff]
      %v9000 = vld [vmem:[%s8971 + $0xe0] sm:$0xff]
      %v9001 = vld [vmem:[%s8971 + $0xe8] sm:$0xff]
      %v9002 = vld [vmem:[%s8971 + $0xf0] sm:$0xff]
      %v9003 = vld [vmem:[%s8971 + $0xf8] sm:$0xff]
      %v9004 = vld [vmem:[%s8971 + $0x100] sm:$0xff]
      %v9005 = vld [vmem:[%s8971 + $0x108] sm:$0xff]
      %v9006 = vld [vmem:[%s8971 + $0x110] sm:$0xff]
      %v9007 = vld [vmem:[%s8971 + $0x118] sm:$0xff]
      %v9008 = vld [vmem:[%s8971 + $0x120] sm:$0xff]
      %v9009 = vld [vmem:[%s8971 + $0x128] sm:$0xff]
      %v9010 = vld [vmem:[%s8971 + $0x130] sm:$0xff]
      %v9011 = vld [vmem:[%s8971 + $0x138] sm:$0xff]
      %v9012 = vld [vmem:[%s8971 + $0x140] sm:$0xff]
      %v9013 = vld [vmem:[%s8971 + $0x148] sm:$0xff]
      %v9014 = vld [vmem:[%s8971 + $0x150] sm:$0xff]
      %v9015 = vld [vmem:[%s8971 + $0x158] sm:$0xff]
      %v9016 = vld [vmem:[%s8971 + $0x160] sm:$0xff]
      %v9017 = vld [vmem:[%s8971 + $0x168] sm:$0xff]
      %v9018 = vld [vmem:[%s8971 + $0x170] sm:$0xff]
      %v9019 = vld [vmem:[%s8971 + $0x178] sm:$0xff]
      %v9020 = vld [vmem:[%s8971 + $0x180] sm:$0xff]
      %v9021 = vld [vmem:[%s8971 + $0x188] sm:$0xff]
      %v9022 = vld [vmem:[%s8971 + $0x190] sm:$0xff]
      %v9023 = vld [vmem:[%s8971 + $0x198] sm:$0xff]
      %v9024 = vld [vmem:[%s8971 + $0x1a0] sm:$0xff]
      %v9025 = vld [vmem:[%s8971 + $0x1a8] sm:$0xff]
      %v9026 = vld [vmem:[%s8971 + $0x1b0] sm:$0xff]
      %v9027 = vld [vmem:[%s8971 + $0x1b8] sm:$0xff]
      %v9028 = vld [vmem:[%s8971 + $0x1c0] sm:$0xff]
      %v9029 = vld [vmem:[%s8971 + $0x1c8] sm:$0xff]
      %v9030 = vld [vmem:[%s8971 + $0x1d0] sm:$0xff]
      %v9031 = vld [vmem:[%s8971 + $0x1d8] sm:$0xff]
      %v9032 = vld [vmem:[%s8971 + $0x1e0] sm:$0xff]
      %v9033 = vld [vmem:[%s8971 + $0x1e8] sm:$0xff]
      %v9034 = vld [vmem:[%s8971 + $0x1f0] sm:$0xff]
      %v9035 = vld [vmem:[%s8971 + $0x1f8] sm:$0xff]
      %v9036 = vld [vmem:[%s8971 + $0x200] sm:$0xff]
      %v9037 = vld [vmem:[%s8971 + $0x208] sm:$0xff]
      %v9038 = vld [vmem:[%s8971 + $0x210] sm:$0x3]
      %v9039 = vld [vmem:[%s8971 + $0x218] sm:$0x3]
      %v9040 = vld [vmem:[%s8971 + $0x220] sm:$0x3]
      %v9041 = vld [vmem:[%s8971 + $0x228] sm:$0x3]
      %v9042 = vld [vmem:[%s8971 + $0x230] sm:$0x3]
      %v9043 = vld [vmem:[%s8971 + $0x238] sm:$0x3]
      %v9044 = vpack.c.bf16 %v8978, %v8972
      %v9045 = vpack.c.bf16 %v8979, %v8973
      %v9046 = vpack.c.bf16 %v8980, %v8974
      %v9047 = vpack.c.bf16 %v8981, %v8975
      %v9048 = vpack.c.bf16 %v8982, %v8976
      %v9049 = vpack.c.bf16 %v8983, %v8977
      %v9050 = vpack.c.bf16 %v8990, %v8984
      %v9051 = vpack.c.bf16 %v8991, %v8985
      %v9052 = vpack.c.bf16 %v8992, %v8986
      %v9053 = vpack.c.bf16 %v8993, %v8987
      %v9054 = vpack.c.bf16 %v8994, %v8988
      %v9055 = vpack.c.bf16 %v8995, %v8989
      %v9056 = vpack.c.bf16 %v9002, %v8996
      %v9057 = vpack.c.bf16 %v9003, %v8997
      %v9058 = vpack.c.bf16 %v9004, %v8998
      %v9059 = vpack.c.bf16 %v9005, %v8999
      %v9060 = vpack.c.bf16 %v9006, %v9000
      %v9061 = vpack.c.bf16 %v9007, %v9001
      %v9062 = vpack.c.bf16 %v9014, %v9008
      %v9063 = vpack.c.bf16 %v9015, %v9009
      %v9064 = vpack.c.bf16 %v9016, %v9010
      %v9065 = vpack.c.bf16 %v9017, %v9011
      %v9066 = vpack.c.bf16 %v9018, %v9012
      %v9067 = vpack.c.bf16 %v9019, %v9013
      %v9068 = vpack.c.bf16 %v9026, %v9020
      %v9069 = vpack.c.bf16 %v9027, %v9021
      %v9070 = vpack.c.bf16 %v9028, %v9022
      %v9071 = vpack.c.bf16 %v9029, %v9023
      %v9072 = vpack.c.bf16 %v9030, %v9024
      %v9073 = vpack.c.bf16 %v9031, %v9025
      %v9074 = vpack.c.bf16 %v9038, %v9032
      %v9075 = vpack.c.bf16 %v9039, %v9033
      %v9076 = vpack.c.bf16 %v9040, %v9034
      %v9077 = vpack.c.bf16 %v9041, %v9035
      %v9078 = vpack.c.bf16 %v9042, %v9036
      %v9079 = vpack.c.bf16 %v9043, %v9037
      %s9080 = scalar_lea.vmem %s198, 2304
      %v9081 = vld [vmem:[%s9080] sm:$0xff]
      %v9082 = vld [vmem:[%s9080 + $0x8] sm:$0xff]
      %v9083 = vld [vmem:[%s9080 + $0x10] sm:$0xff]
      %v9084 = vld [vmem:[%s9080 + $0x18] sm:$0xff]
      %v9085 = vld [vmem:[%s9080 + $0x20] sm:$0xff]
      %v9086 = vld [vmem:[%s9080 + $0x28] sm:$0xff]
      %v9087 = vld [vmem:[%s9080 + $0x30] sm:$0xff]
      %v9088 = vld [vmem:[%s9080 + $0x38] sm:$0xff]
      %v9089 = vld [vmem:[%s9080 + $0x40] sm:$0xff]
      %v9090 = vld [vmem:[%s9080 + $0x48] sm:$0xff]
      %v9091 = vld [vmem:[%s9080 + $0x50] sm:$0xff]
      %v9092 = vld [vmem:[%s9080 + $0x58] sm:$0xff]
      %v9093 = vld [vmem:[%s9080 + $0x60] sm:$0xff]
      %v9094 = vld [vmem:[%s9080 + $0x68] sm:$0xff]
      %v9095 = vld [vmem:[%s9080 + $0x70] sm:$0xff]
      %v9096 = vld [vmem:[%s9080 + $0x78] sm:$0xff]
      %v9097 = vld [vmem:[%s9080 + $0x80] sm:$0xff]
      %v9098 = vld [vmem:[%s9080 + $0x88] sm:$0xff]
      %v9099 = vld [vmem:[%s9080 + $0x90] sm:$0xff]
      %v9100 = vld [vmem:[%s9080 + $0x98] sm:$0xff]
      %v9101 = vld [vmem:[%s9080 + $0xa0] sm:$0xff]
      %v9102 = vld [vmem:[%s9080 + $0xa8] sm:$0xff]
      %v9103 = vld [vmem:[%s9080 + $0xb0] sm:$0xff]
      %v9104 = vld [vmem:[%s9080 + $0xb8] sm:$0xff]
      %v9105 = vld [vmem:[%s9080 + $0xc0] sm:$0xff]
      %v9106 = vld [vmem:[%s9080 + $0xc8] sm:$0xff]
      %v9107 = vld [vmem:[%s9080 + $0xd0] sm:$0xff]
      %v9108 = vld [vmem:[%s9080 + $0xd8] sm:$0xff]
      %v9109 = vld [vmem:[%s9080 + $0xe0] sm:$0xff]
      %v9110 = vld [vmem:[%s9080 + $0xe8] sm:$0xff]
      %v9111 = vld [vmem:[%s9080 + $0xf0] sm:$0xff]
      %v9112 = vld [vmem:[%s9080 + $0xf8] sm:$0xff]
      %v9113 = vld [vmem:[%s9080 + $0x100] sm:$0xff]
      %v9114 = vld [vmem:[%s9080 + $0x108] sm:$0xff]
      %v9115 = vld [vmem:[%s9080 + $0x110] sm:$0xff]
      %v9116 = vld [vmem:[%s9080 + $0x118] sm:$0xff]
      %v9117 = vld [vmem:[%s9080 + $0x120] sm:$0xff]
      %v9118 = vld [vmem:[%s9080 + $0x128] sm:$0xff]
      %v9119 = vld [vmem:[%s9080 + $0x130] sm:$0xff]
      %v9120 = vld [vmem:[%s9080 + $0x138] sm:$0xff]
      %v9121 = vld [vmem:[%s9080 + $0x140] sm:$0xff]
      %v9122 = vld [vmem:[%s9080 + $0x148] sm:$0xff]
      %v9123 = vld [vmem:[%s9080 + $0x150] sm:$0xff]
      %v9124 = vld [vmem:[%s9080 + $0x158] sm:$0xff]
      %v9125 = vld [vmem:[%s9080 + $0x160] sm:$0xff]
      %v9126 = vld [vmem:[%s9080 + $0x168] sm:$0xff]
      %v9127 = vld [vmem:[%s9080 + $0x170] sm:$0xff]
      %v9128 = vld [vmem:[%s9080 + $0x178] sm:$0xff]
      %v9129 = vld [vmem:[%s9080 + $0x180] sm:$0xff]
      %v9130 = vld [vmem:[%s9080 + $0x188] sm:$0xff]
      %v9131 = vld [vmem:[%s9080 + $0x190] sm:$0xff]
      %v9132 = vld [vmem:[%s9080 + $0x198] sm:$0xff]
      %v9133 = vld [vmem:[%s9080 + $0x1a0] sm:$0xff]
      %v9134 = vld [vmem:[%s9080 + $0x1a8] sm:$0xff]
      %v9135 = vld [vmem:[%s9080 + $0x1b0] sm:$0xff]
      %v9136 = vld [vmem:[%s9080 + $0x1b8] sm:$0xff]
      %v9137 = vld [vmem:[%s9080 + $0x1c0] sm:$0xff]
      %v9138 = vld [vmem:[%s9080 + $0x1c8] sm:$0xff]
      %v9139 = vld [vmem:[%s9080 + $0x1d0] sm:$0xff]
      %v9140 = vld [vmem:[%s9080 + $0x1d8] sm:$0xff]
      %v9141 = vld [vmem:[%s9080 + $0x1e0] sm:$0xff]
      %v9142 = vld [vmem:[%s9080 + $0x1e8] sm:$0xff]
      %v9143 = vld [vmem:[%s9080 + $0x1f0] sm:$0xff]
      %v9144 = vld [vmem:[%s9080 + $0x1f8] sm:$0xff]
      %v9145 = vld [vmem:[%s9080 + $0x200] sm:$0xff]
      %v9146 = vld [vmem:[%s9080 + $0x208] sm:$0xff]
      %v9147 = vld [vmem:[%s9080 + $0x210] sm:$0xff]
      %v9148 = vld [vmem:[%s9080 + $0x218] sm:$0xff]
      %v9149 = vld [vmem:[%s9080 + $0x220] sm:$0xff]
      %v9150 = vld [vmem:[%s9080 + $0x228] sm:$0xff]
      %v9151 = vld [vmem:[%s9080 + $0x230] sm:$0xff]
      %v9152 = vld [vmem:[%s9080 + $0x238] sm:$0xff]
      %v9153 = vld [vmem:[%s9080 + $0x240] sm:$0xff]
      %v9154 = vld [vmem:[%s9080 + $0x248] sm:$0xff]
      %v9155 = vld [vmem:[%s9080 + $0x250] sm:$0xff]
      %v9156 = vld [vmem:[%s9080 + $0x258] sm:$0xff]
      %v9157 = vld [vmem:[%s9080 + $0x260] sm:$0xff]
      %v9158 = vld [vmem:[%s9080 + $0x268] sm:$0xff]
      %v9159 = vld [vmem:[%s9080 + $0x270] sm:$0xff]
      %v9160 = vld [vmem:[%s9080 + $0x278] sm:$0xff]
      %v9161 = vld [vmem:[%s9080 + $0x280] sm:$0xff]
      %v9162 = vld [vmem:[%s9080 + $0x288] sm:$0xff]
      %v9163 = vld [vmem:[%s9080 + $0x290] sm:$0xff]
      %v9164 = vld [vmem:[%s9080 + $0x298] sm:$0xff]
      %v9165 = vld [vmem:[%s9080 + $0x2a0] sm:$0xff]
      %v9166 = vld [vmem:[%s9080 + $0x2a8] sm:$0xff]
      %v9167 = vld [vmem:[%s9080 + $0x2b0] sm:$0xff]
      %v9168 = vld [vmem:[%s9080 + $0x2b8] sm:$0xff]
      %v9169 = vld [vmem:[%s9080 + $0x2c0] sm:$0xff]
      %v9170 = vld [vmem:[%s9080 + $0x2c8] sm:$0xff]
      %v9171 = vld [vmem:[%s9080 + $0x2d0] sm:$0xff]
      %v9172 = vld [vmem:[%s9080 + $0x2d8] sm:$0xff]
      %v9173 = vld [vmem:[%s9080 + $0x2e0] sm:$0xff]
      %v9174 = vld [vmem:[%s9080 + $0x2e8] sm:$0xff]
      %v9175 = vld [vmem:[%s9080 + $0x2f0] sm:$0xff]
      %v9176 = vld [vmem:[%s9080 + $0x2f8] sm:$0xff]
      %v9273 = vunpack.c.l.b16 %v9081
      %v9274 = vunpack.c.h.b16 %v9081
      %v9275 = vunpack.c.l.b16 %v9082
      %v9276 = vunpack.c.h.b16 %v9082
      %v9277 = vunpack.c.l.b16 %v9083
      %v9278 = vunpack.c.h.b16 %v9083
      %v9279 = vunpack.c.l.b16 %v9084
      %v9280 = vunpack.c.h.b16 %v9084
      %v9281 = vunpack.c.l.b16 %v9085
      %v9282 = vunpack.c.h.b16 %v9085
      %v9283 = vunpack.c.l.b16 %v9086
      %v9284 = vunpack.c.h.b16 %v9086
      %v9285 = vunpack.c.l.b16 %v9087
      %v9286 = vunpack.c.h.b16 %v9087
      %v9287 = vunpack.c.l.b16 %v9088
      %v9288 = vunpack.c.h.b16 %v9088
      %v9289 = vunpack.c.l.b16 %v9089
      %v9290 = vunpack.c.h.b16 %v9089
      %v9291 = vunpack.c.l.b16 %v9090
      %v9292 = vunpack.c.h.b16 %v9090
      %v9293 = vunpack.c.l.b16 %v9091
      %v9294 = vunpack.c.h.b16 %v9091
      %v9295 = vunpack.c.l.b16 %v9092
      %v9296 = vunpack.c.h.b16 %v9092
      %v9297 = vunpack.c.l.b16 %v9093
      %v9298 = vunpack.c.h.b16 %v9093
      %v9299 = vunpack.c.l.b16 %v9094
      %v9300 = vunpack.c.h.b16 %v9094
      %v9301 = vunpack.c.l.b16 %v9095
      %v9302 = vunpack.c.h.b16 %v9095
      %v9303 = vunpack.c.l.b16 %v9096
      %v9304 = vunpack.c.h.b16 %v9096
      %v9305 = vunpack.c.l.b16 %v9097
      %v9306 = vunpack.c.h.b16 %v9097
      %v9307 = vunpack.c.l.b16 %v9098
      %v9308 = vunpack.c.h.b16 %v9098
      %v9309 = vunpack.c.l.b16 %v9099
      %v9310 = vunpack.c.h.b16 %v9099
      %v9311 = vunpack.c.l.b16 %v9100
      %v9312 = vunpack.c.h.b16 %v9100
      %v9313 = vunpack.c.l.b16 %v9101
      %v9314 = vunpack.c.h.b16 %v9101
      %v9315 = vunpack.c.l.b16 %v9102
      %v9316 = vunpack.c.h.b16 %v9102
      %v9317 = vunpack.c.l.b16 %v9103
      %v9318 = vunpack.c.h.b16 %v9103
      %v9319 = vunpack.c.l.b16 %v9104
      %v9320 = vunpack.c.h.b16 %v9104
      %v9321 = vunpack.c.l.b16 %v9105
      %v9322 = vunpack.c.h.b16 %v9105
      %v9323 = vunpack.c.l.b16 %v9106
      %v9324 = vunpack.c.h.b16 %v9106
      %v9325 = vunpack.c.l.b16 %v9107
      %v9326 = vunpack.c.h.b16 %v9107
      %v9327 = vunpack.c.l.b16 %v9108
      %v9328 = vunpack.c.h.b16 %v9108
      %v9329 = vunpack.c.l.b16 %v9109
      %v9330 = vunpack.c.h.b16 %v9109
      %v9331 = vunpack.c.l.b16 %v9110
      %v9332 = vunpack.c.h.b16 %v9110
      %v9333 = vunpack.c.l.b16 %v9111
      %v9334 = vunpack.c.h.b16 %v9111
      %v9335 = vunpack.c.l.b16 %v9112
      %v9336 = vunpack.c.h.b16 %v9112
      %v9337 = vunpack.c.l.b16 %v9113
      %v9338 = vunpack.c.h.b16 %v9113
      %v9339 = vunpack.c.l.b16 %v9114
      %v9340 = vunpack.c.h.b16 %v9114
      %v9341 = vunpack.c.l.b16 %v9115
      %v9342 = vunpack.c.h.b16 %v9115
      %v9343 = vunpack.c.l.b16 %v9116
      %v9344 = vunpack.c.h.b16 %v9116
      %v9345 = vunpack.c.l.b16 %v9117
      %v9346 = vunpack.c.h.b16 %v9117
      %v9347 = vunpack.c.l.b16 %v9118
      %v9348 = vunpack.c.h.b16 %v9118
      %v9349 = vunpack.c.l.b16 %v9119
      %v9350 = vunpack.c.h.b16 %v9119
      %v9351 = vunpack.c.l.b16 %v9120
      %v9352 = vunpack.c.h.b16 %v9120
      %v9353 = vunpack.c.l.b16 %v9121
      %v9354 = vunpack.c.h.b16 %v9121
      %v9355 = vunpack.c.l.b16 %v9122
      %v9356 = vunpack.c.h.b16 %v9122
      %v9357 = vunpack.c.l.b16 %v9123
      %v9358 = vunpack.c.h.b16 %v9123
      %v9359 = vunpack.c.l.b16 %v9124
      %v9360 = vunpack.c.h.b16 %v9124
      %v9361 = vunpack.c.l.b16 %v9125
      %v9362 = vunpack.c.h.b16 %v9125
      %v9363 = vunpack.c.l.b16 %v9126
      %v9364 = vunpack.c.h.b16 %v9126
      %v9365 = vunpack.c.l.b16 %v9127
      %v9366 = vunpack.c.h.b16 %v9127
      %v9367 = vunpack.c.l.b16 %v9128
      %v9368 = vunpack.c.h.b16 %v9128
      %v9369 = vunpack.c.l.b16 %v9129
      %v9370 = vunpack.c.h.b16 %v9129
      %v9371 = vunpack.c.l.b16 %v9130
      %v9372 = vunpack.c.h.b16 %v9130
      %v9373 = vunpack.c.l.b16 %v9131
      %v9374 = vunpack.c.h.b16 %v9131
      %v9375 = vunpack.c.l.b16 %v9132
      %v9376 = vunpack.c.h.b16 %v9132
      %v9377 = vunpack.c.l.b16 %v9133
      %v9378 = vunpack.c.h.b16 %v9133
      %v9379 = vunpack.c.l.b16 %v9134
      %v9380 = vunpack.c.h.b16 %v9134
      %v9381 = vunpack.c.l.b16 %v9135
      %v9382 = vunpack.c.h.b16 %v9135
      %v9383 = vunpack.c.l.b16 %v9136
      %v9384 = vunpack.c.h.b16 %v9136
      %v9385 = vunpack.c.l.b16 %v9137
      %v9386 = vunpack.c.h.b16 %v9137
      %v9387 = vunpack.c.l.b16 %v9138
      %v9388 = vunpack.c.h.b16 %v9138
      %v9389 = vunpack.c.l.b16 %v9139
      %v9390 = vunpack.c.h.b16 %v9139
      %v9391 = vunpack.c.l.b16 %v9140
      %v9392 = vunpack.c.h.b16 %v9140
      %v9393 = vunpack.c.l.b16 %v9141
      %v9394 = vunpack.c.h.b16 %v9141
      %v9395 = vunpack.c.l.b16 %v9142
      %v9396 = vunpack.c.h.b16 %v9142
      %v9397 = vunpack.c.l.b16 %v9143
      %v9398 = vunpack.c.h.b16 %v9143
      %v9399 = vunpack.c.l.b16 %v9144
      %v9400 = vunpack.c.h.b16 %v9144
      %v9401 = vunpack.c.l.b16 %v9145
      %v9402 = vunpack.c.h.b16 %v9145
      %v9403 = vunpack.c.l.b16 %v9146
      %v9404 = vunpack.c.h.b16 %v9146
      %v9405 = vunpack.c.l.b16 %v9147
      %v9406 = vunpack.c.h.b16 %v9147
      %v9407 = vunpack.c.l.b16 %v9148
      %v9408 = vunpack.c.h.b16 %v9148
      %v9409 = vunpack.c.l.b16 %v9149
      %v9410 = vunpack.c.h.b16 %v9149
      %v9411 = vunpack.c.l.b16 %v9150
      %v9412 = vunpack.c.h.b16 %v9150
      %v9413 = vunpack.c.l.b16 %v9151
      %v9414 = vunpack.c.h.b16 %v9151
      %v9415 = vunpack.c.l.b16 %v9152
      %v9416 = vunpack.c.h.b16 %v9152
      %v9417 = vunpack.c.l.b16 %v9153
      %v9418 = vunpack.c.h.b16 %v9153
      %v9419 = vunpack.c.l.b16 %v9154
      %v9420 = vunpack.c.h.b16 %v9154
      %v9421 = vunpack.c.l.b16 %v9155
      %v9422 = vunpack.c.h.b16 %v9155
      %v9423 = vunpack.c.l.b16 %v9156
      %v9424 = vunpack.c.h.b16 %v9156
      %v9425 = vunpack.c.l.b16 %v9157
      %v9426 = vunpack.c.h.b16 %v9157
      %v9427 = vunpack.c.l.b16 %v9158
      %v9428 = vunpack.c.h.b16 %v9158
      %v9429 = vunpack.c.l.b16 %v9159
      %v9430 = vunpack.c.h.b16 %v9159
      %v9431 = vunpack.c.l.b16 %v9160
      %v9432 = vunpack.c.h.b16 %v9160
      %v9433 = vunpack.c.l.b16 %v9161
      %v9434 = vunpack.c.h.b16 %v9161
      %v9435 = vunpack.c.l.b16 %v9162
      %v9436 = vunpack.c.h.b16 %v9162
      %v9437 = vunpack.c.l.b16 %v9163
      %v9438 = vunpack.c.h.b16 %v9163
      %v9439 = vunpack.c.l.b16 %v9164
      %v9440 = vunpack.c.h.b16 %v9164
      %v9441 = vunpack.c.l.b16 %v9165
      %v9442 = vunpack.c.h.b16 %v9165
      %v9443 = vunpack.c.l.b16 %v9166
      %v9444 = vunpack.c.h.b16 %v9166
      %v9445 = vunpack.c.l.b16 %v9167
      %v9446 = vunpack.c.h.b16 %v9167
      %v9447 = vunpack.c.l.b16 %v9168
      %v9448 = vunpack.c.h.b16 %v9168
      %v9449 = vunpack.c.l.b16 %v9169
      %v9450 = vunpack.c.h.b16 %v9169
      %v9451 = vunpack.c.l.b16 %v9170
      %v9452 = vunpack.c.h.b16 %v9170
      %v9453 = vunpack.c.l.b16 %v9171
      %v9454 = vunpack.c.h.b16 %v9171
      %v9455 = vunpack.c.l.b16 %v9172
      %v9456 = vunpack.c.h.b16 %v9172
      %v9457 = vunpack.c.l.b16 %v9173
      %v9458 = vunpack.c.h.b16 %v9173
      %v9459 = vunpack.c.l.b16 %v9174
      %v9460 = vunpack.c.h.b16 %v9174
      %v9461 = vunpack.c.l.b16 %v9175
      %v9462 = vunpack.c.h.b16 %v9175
      %v9463 = vunpack.c.l.b16 %v9176
      %v9464 = vunpack.c.h.b16 %v9176
      %v9465 = vpack.c.b16 %v9275, %v9273
      %v9466 = vpack.c.b16 %v9276, %v9274
      %v9467 = vpack.c.b16 %v9279, %v9277
      %v9468 = vpack.c.b16 %v9280, %v9278
      %v9469 = vpack.c.b16 %v9283, %v9281
      %v9470 = vpack.c.b16 %v9284, %v9282
      %v9471 = vpack.c.b16 %v9287, %v9285
      %v9472 = vpack.c.b16 %v9288, %v9286
      %v9473 = vpack.c.b16 %v9291, %v9289
      %v9474 = vpack.c.b16 %v9292, %v9290
      %v9475 = vpack.c.b16 %v9295, %v9293
      %v9476 = vpack.c.b16 %v9296, %v9294
      %v9477 = vpack.c.b16 %v9299, %v9297
      %v9478 = vpack.c.b16 %v9300, %v9298
      %v9479 = vpack.c.b16 %v9303, %v9301
      %v9480 = vpack.c.b16 %v9304, %v9302
      %v9481 = vpack.c.b16 %v9307, %v9305
      %v9482 = vpack.c.b16 %v9308, %v9306
      %v9483 = vpack.c.b16 %v9311, %v9309
      %v9484 = vpack.c.b16 %v9312, %v9310
      %v9485 = vpack.c.b16 %v9315, %v9313
      %v9486 = vpack.c.b16 %v9316, %v9314
      %v9487 = vpack.c.b16 %v9319, %v9317
      %v9488 = vpack.c.b16 %v9320, %v9318
      %v9489 = vpack.c.b16 %v9323, %v9321
      %v9490 = vpack.c.b16 %v9324, %v9322
      %v9491 = vpack.c.b16 %v9327, %v9325
      %v9492 = vpack.c.b16 %v9328, %v9326
      %v9493 = vpack.c.b16 %v9331, %v9329
      %v9494 = vpack.c.b16 %v9332, %v9330
      %v9495 = vpack.c.b16 %v9335, %v9333
      %v9496 = vpack.c.b16 %v9336, %v9334
      %v9497 = vpack.c.b16 %v9339, %v9337
      %v9498 = vpack.c.b16 %v9340, %v9338
      %v9499 = vpack.c.b16 %v9343, %v9341
      %v9500 = vpack.c.b16 %v9344, %v9342
      %v9501 = vpack.c.b16 %v9347, %v9345
      %v9502 = vpack.c.b16 %v9348, %v9346
      %v9503 = vpack.c.b16 %v9351, %v9349
      %v9504 = vpack.c.b16 %v9352, %v9350
      %v9505 = vpack.c.b16 %v9355, %v9353
      %v9506 = vpack.c.b16 %v9356, %v9354
      %v9507 = vpack.c.b16 %v9359, %v9357
      %v9508 = vpack.c.b16 %v9360, %v9358
      %v9509 = vpack.c.b16 %v9363, %v9361
      %v9510 = vpack.c.b16 %v9364, %v9362
      %v9511 = vpack.c.b16 %v9367, %v9365
      %v9512 = vpack.c.b16 %v9368, %v9366
      %v9513 = vpack.c.b16 %v9371, %v9369
      %v9514 = vpack.c.b16 %v9372, %v9370
      %v9515 = vpack.c.b16 %v9375, %v9373
      %v9516 = vpack.c.b16 %v9376, %v9374
      %v9517 = vpack.c.b16 %v9379, %v9377
      %v9518 = vpack.c.b16 %v9380, %v9378
      %v9519 = vpack.c.b16 %v9383, %v9381
      %v9520 = vpack.c.b16 %v9384, %v9382
      %v9521 = vpack.c.b16 %v9387, %v9385
      %v9522 = vpack.c.b16 %v9388, %v9386
      %v9523 = vpack.c.b16 %v9391, %v9389
      %v9524 = vpack.c.b16 %v9392, %v9390
      %v9525 = vpack.c.b16 %v9395, %v9393
      %v9526 = vpack.c.b16 %v9396, %v9394
      %v9527 = vpack.c.b16 %v9399, %v9397
      %v9528 = vpack.c.b16 %v9400, %v9398
      %v9529 = vpack.c.b16 %v9403, %v9401
      %v9530 = vpack.c.b16 %v9404, %v9402
      %v9531 = vpack.c.b16 %v9407, %v9405
      %v9532 = vpack.c.b16 %v9408, %v9406
      %v9533 = vpack.c.b16 %v9411, %v9409
      %v9534 = vpack.c.b16 %v9412, %v9410
      %v9535 = vpack.c.b16 %v9415, %v9413
      %v9536 = vpack.c.b16 %v9416, %v9414
      %v9537 = vpack.c.b16 %v9419, %v9417
      %v9538 = vpack.c.b16 %v9420, %v9418
      %v9539 = vpack.c.b16 %v9423, %v9421
      %v9540 = vpack.c.b16 %v9424, %v9422
      %v9541 = vpack.c.b16 %v9427, %v9425
      %v9542 = vpack.c.b16 %v9428, %v9426
      %v9543 = vpack.c.b16 %v9431, %v9429
      %v9544 = vpack.c.b16 %v9432, %v9430
      %v9545 = vpack.c.b16 %v9435, %v9433
      %v9546 = vpack.c.b16 %v9436, %v9434
      %v9547 = vpack.c.b16 %v9439, %v9437
      %v9548 = vpack.c.b16 %v9440, %v9438
      %v9549 = vpack.c.b16 %v9443, %v9441
      %v9550 = vpack.c.b16 %v9444, %v9442
      %v9551 = vpack.c.b16 %v9447, %v9445
      %v9552 = vpack.c.b16 %v9448, %v9446
      %v9553 = vpack.c.b16 %v9451, %v9449
      %v9554 = vpack.c.b16 %v9452, %v9450
      %v9555 = vpack.c.b16 %v9455, %v9453
      %v9556 = vpack.c.b16 %v9456, %v9454
      %v9557 = vpack.c.b16 %v9459, %v9457
      %v9558 = vpack.c.b16 %v9460, %v9458
      %v9559 = vpack.c.b16 %v9463, %v9461
      %v9560 = vpack.c.b16 %v9464, %v9462
      %9657 = vmatprep.subr.bf16.mxu0 %v9480
      %9658 = vmatpush1.bf16.msra.mxu0 %v9479
      %9659 = vmatprep.subr.bf16.mxu0 %v9478
      %9660 = vmatpush1.bf16.msra.mxu0 %v9477
      %9661 = vmatprep.subr.bf16.mxu0 %v9476
      %9662 = vmatpush1.bf16.msra.mxu0 %v9475
      %9663 = vmatprep.subr.bf16.mxu0 %v9474
      %9664 = vmatpush1.bf16.msra.mxu0 %v9473
      %9665 = vmatprep.subr.bf16.mxu0 %v9472
      %9666 = vmatpush1.bf16.msra.mxu0 %v9471
      %9667 = vmatprep.subr.bf16.mxu0 %v9470
      %9668 = vmatpush1.bf16.msra.mxu0 %v9469
      %9669 = vmatprep.subr.bf16.mxu0 %v9468
      %9670 = vmatpush1.bf16.msra.mxu0 %v9467
      %9671 = vmatprep.subr.bf16.mxu0 %v9466
      %9672 = vmatpush1.bf16.msra.mxu0 %v9465
      %9673 = vmatprep.subr.bf16.mxu0 %v9496
      %9674 = vmatpush2.bf16.msra.mxu0 %v9495
      %9675 = vmatprep.subr.bf16.mxu0 %v9494
      %9676 = vmatpush2.bf16.msra.mxu0 %v9493
      %9677 = vmatprep.subr.bf16.mxu0 %v9492
      %9678 = vmatpush2.bf16.msra.mxu0 %v9491
      %9679 = vmatprep.subr.bf16.mxu0 %v9490
      %9680 = vmatpush2.bf16.msra.mxu0 %v9489
      %9681 = vmatprep.subr.bf16.mxu0 %v9488
      %9682 = vmatpush2.bf16.msra.mxu0 %v9487
      %9683 = vmatprep.subr.bf16.mxu0 %v9486
      %9684 = vmatpush2.bf16.msra.mxu0 %v9485
      %9685 = vmatprep.subr.bf16.mxu0 %v9484
      %9686 = vmatpush2.bf16.msra.mxu0 %v9483
      %9687 = vmatprep.subr.bf16.mxu0 %v9482
      %9688 = vmatpush2.bf16.msra.mxu0 %v9481
      %9689 = vmatprep.mubr.bf16.mxu0 %v9045
      %9690 = vmatmul.mubr.bf16.gmra.mxu0 %v9044
      %v9691 = vpop.f32.mrf.mxu0
      %v9692 = vadd.f32 0.0, %v9691
      %v9693 = vpop.f32.mrf.mxu0
      %v9694 = vadd.f32 0.0, %v9693
      %v9695 = vpop.f32.mrf.mxu0
      %v9696 = vadd.f32 0.0, %v9695
      %v9697 = vpop.f32.mrf.mxu0
      %v9698 = vadd.f32 0.0, %v9697
      %9699 = vmatprep.mubr.bf16.mxu0 %v9051
      %9700 = vmatmul.mubr.bf16.gmra.mxu0 %v9050
      %v9701 = vpop.f32.mrf.mxu0
      %v9702 = vadd.f32 0.0, %v9701
      %v9703 = vpop.f32.mrf.mxu0
      %v9704 = vadd.f32 0.0, %v9703
      %v9705 = vpop.f32.mrf.mxu0
      %v9706 = vadd.f32 0.0, %v9705
      %v9707 = vpop.f32.mrf.mxu0
      %v9708 = vadd.f32 0.0, %v9707
      %9709 = vmatprep.mubr.bf16.mxu0 %v9057
      %9710 = vmatmul.mubr.bf16.gmra.mxu0 %v9056
      %v9711 = vpop.f32.mrf.mxu0
      %v9712 = vadd.f32 0.0, %v9711
      %v9713 = vpop.f32.mrf.mxu0
      %v9714 = vadd.f32 0.0, %v9713
      %v9715 = vpop.f32.mrf.mxu0
      %v9716 = vadd.f32 0.0, %v9715
      %v9717 = vpop.f32.mrf.mxu0
      %v9718 = vadd.f32 0.0, %v9717
      %9719 = vmatprep.mubr.bf16.mxu0 %v9063
      %9720 = vmatmul.mubr.bf16.gmra.mxu0 %v9062
      %v9721 = vpop.f32.mrf.mxu0
      %v9722 = vadd.f32 0.0, %v9721
      %v9723 = vpop.f32.mrf.mxu0
      %v9724 = vadd.f32 0.0, %v9723
      %v9725 = vpop.f32.mrf.mxu0
      %v9726 = vadd.f32 0.0, %v9725
      %v9727 = vpop.f32.mrf.mxu0
      %v9728 = vadd.f32 0.0, %v9727
      %9729 = vmatprep.mubr.bf16.mxu0 %v9069
      %9730 = vmatmul.mubr.bf16.gmra.mxu0 %v9068
      %v9731 = vpop.f32.mrf.mxu0
      %v9732 = vadd.f32 0.0, %v9731
      %v9733 = vpop.f32.mrf.mxu0
      %v9734 = vadd.f32 0.0, %v9733
      %v9735 = vpop.f32.mrf.mxu0
      %v9736 = vadd.f32 0.0, %v9735
      %v9737 = vpop.f32.mrf.mxu0
      %v9738 = vadd.f32 0.0, %v9737
      %9739 = vmatprep.mubr.bf16.mxu0 %v9075
      %9740 = vmatmul.mubr.bf16.gmra.mxu0 %v9074
      %v9741 = vpop.f32.mrf.mxu0
      %v9742 = vadd.f32 0.0, %v9741
      %v9743 = vpop.f32.mrf.mxu0
      %v9744 = vadd.f32 0.0, %v9743
      %v9745 = vpop.f32.mrf.mxu0
      %v9746 = vpop.f32.mrf.mxu0
      %9747 = vdwg.mxu0
      %9748 = vmatprep.subr.bf16.mxu0 %v9512
      %9749 = vmatpush1.bf16.msra.mxu0 %v9511
      %9750 = vmatprep.subr.bf16.mxu0 %v9510
      %9751 = vmatpush1.bf16.msra.mxu0 %v9509
      %9752 = vmatprep.subr.bf16.mxu0 %v9508
      %9753 = vmatpush1.bf16.msra.mxu0 %v9507
      %9754 = vmatprep.subr.bf16.mxu0 %v9506
      %9755 = vmatpush1.bf16.msra.mxu0 %v9505
      %9756 = vmatprep.subr.bf16.mxu0 %v9504
      %9757 = vmatpush1.bf16.msra.mxu0 %v9503
      %9758 = vmatprep.subr.bf16.mxu0 %v9502
      %9759 = vmatpush1.bf16.msra.mxu0 %v9501
      %9760 = vmatprep.subr.bf16.mxu0 %v9500
      %9761 = vmatpush1.bf16.msra.mxu0 %v9499
      %9762 = vmatprep.subr.bf16.mxu0 %v9498
      %9763 = vmatpush1.bf16.msra.mxu0 %v9497
      %9764 = vmatprep.subr.bf16.mxu0 %v9528
      %9765 = vmatpush2.bf16.msra.mxu0 %v9527
      %9766 = vmatprep.subr.bf16.mxu0 %v9526
      %9767 = vmatpush2.bf16.msra.mxu0 %v9525
      %9768 = vmatprep.subr.bf16.mxu0 %v9524
      %9769 = vmatpush2.bf16.msra.mxu0 %v9523
      %9770 = vmatprep.subr.bf16.mxu0 %v9522
      %9771 = vmatpush2.bf16.msra.mxu0 %v9521
      %9772 = vmatprep.subr.bf16.mxu0 %v9520
      %9773 = vmatpush2.bf16.msra.mxu0 %v9519
      %9774 = vmatprep.subr.bf16.mxu0 %v9518
      %9775 = vmatpush2.bf16.msra.mxu0 %v9517
      %9776 = vmatprep.subr.bf16.mxu0 %v9516
      %9777 = vmatpush2.bf16.msra.mxu0 %v9515
      %9778 = vmatprep.subr.bf16.mxu0 %v9514
      %9779 = vmatpush2.bf16.msra.mxu0 %v9513
      %9780 = vmatprep.mubr.bf16.mxu0 %v9047
      %9781 = vmatmul.mubr.bf16.gmra.mxu0 %v9046
      %v9782 = vpop.f32.mrf.mxu0
      %v9783 = vadd.f32 %v9692, %v9782
      %v9784 = vpop.f32.mrf.mxu0
      %v9785 = vadd.f32 %v9694, %v9784
      %v9786 = vpop.f32.mrf.mxu0
      %v9787 = vadd.f32 %v9696, %v9786
      %v9788 = vpop.f32.mrf.mxu0
      %v9789 = vadd.f32 %v9698, %v9788
      %9790 = vmatprep.mubr.bf16.mxu0 %v9053
      %9791 = vmatmul.mubr.bf16.gmra.mxu0 %v9052
      %v9792 = vpop.f32.mrf.mxu0
      %v9793 = vadd.f32 %v9702, %v9792
      %v9794 = vpop.f32.mrf.mxu0
      %v9795 = vadd.f32 %v9704, %v9794
      %v9796 = vpop.f32.mrf.mxu0
      %v9797 = vadd.f32 %v9706, %v9796
      %v9798 = vpop.f32.mrf.mxu0
      %v9799 = vadd.f32 %v9708, %v9798
      %9800 = vmatprep.mubr.bf16.mxu0 %v9059
      %9801 = vmatmul.mubr.bf16.gmra.mxu0 %v9058
      %v9802 = vpop.f32.mrf.mxu0
      %v9803 = vadd.f32 %v9712, %v9802
      %v9804 = vpop.f32.mrf.mxu0
      %v9805 = vadd.f32 %v9714, %v9804
      %v9806 = vpop.f32.mrf.mxu0
      %v9807 = vadd.f32 %v9716, %v9806
      %v9808 = vpop.f32.mrf.mxu0
      %v9809 = vadd.f32 %v9718, %v9808
      %9810 = vmatprep.mubr.bf16.mxu0 %v9065
      %9811 = vmatmul.mubr.bf16.gmra.mxu0 %v9064
      %v9812 = vpop.f32.mrf.mxu0
      %v9813 = vadd.f32 %v9722, %v9812
      %v9814 = vpop.f32.mrf.mxu0
      %v9815 = vadd.f32 %v9724, %v9814
      %v9816 = vpop.f32.mrf.mxu0
      %v9817 = vadd.f32 %v9726, %v9816
      %v9818 = vpop.f32.mrf.mxu0
      %v9819 = vadd.f32 %v9728, %v9818
      %9820 = vmatprep.mubr.bf16.mxu0 %v9071
      %9821 = vmatmul.mubr.bf16.gmra.mxu0 %v9070
      %v9822 = vpop.f32.mrf.mxu0
      %v9823 = vadd.f32 %v9732, %v9822
      %v9824 = vpop.f32.mrf.mxu0
      %v9825 = vadd.f32 %v9734, %v9824
      %v9826 = vpop.f32.mrf.mxu0
      %v9827 = vadd.f32 %v9736, %v9826
      %v9828 = vpop.f32.mrf.mxu0
      %v9829 = vadd.f32 %v9738, %v9828
      %9830 = vmatprep.mubr.bf16.mxu0 %v9077
      %9831 = vmatmul.mubr.bf16.gmra.mxu0 %v9076
      %v9832 = vpop.f32.mrf.mxu0
      %v9833 = vadd.f32 %v9742, %v9832
      %v9834 = vpop.f32.mrf.mxu0
      %v9835 = vadd.f32 %v9744, %v9834
      %v9836 = vpop.f32.mrf.mxu0
      %v9837 = vpop.f32.mrf.mxu0
      %9838 = vdwg.mxu0
      %9839 = vmatprep.subr.bf16.mxu0 %v9544
      %9840 = vmatpush1.bf16.msra.mxu0 %v9543
      %9841 = vmatprep.subr.bf16.mxu0 %v9542
      %9842 = vmatpush1.bf16.msra.mxu0 %v9541
      %9843 = vmatprep.subr.bf16.mxu0 %v9540
      %9844 = vmatpush1.bf16.msra.mxu0 %v9539
      %9845 = vmatprep.subr.bf16.mxu0 %v9538
      %9846 = vmatpush1.bf16.msra.mxu0 %v9537
      %9847 = vmatprep.subr.bf16.mxu0 %v9536
      %9848 = vmatpush1.bf16.msra.mxu0 %v9535
      %9849 = vmatprep.subr.bf16.mxu0 %v9534
      %9850 = vmatpush1.bf16.msra.mxu0 %v9533
      %9851 = vmatprep.subr.bf16.mxu0 %v9532
      %9852 = vmatpush1.bf16.msra.mxu0 %v9531
      %9853 = vmatprep.subr.bf16.mxu0 %v9530
      %9854 = vmatpush1.bf16.msra.mxu0 %v9529
      %9855 = vmatprep.subr.bf16.mxu0 %v9560
      %9856 = vmatpush2.bf16.msra.mxu0 %v9559
      %9857 = vmatprep.subr.bf16.mxu0 %v9558
      %9858 = vmatpush2.bf16.msra.mxu0 %v9557
      %9859 = vmatprep.subr.bf16.mxu0 %v9556
      %9860 = vmatpush2.bf16.msra.mxu0 %v9555
      %9861 = vmatprep.subr.bf16.mxu0 %v9554
      %9862 = vmatpush2.bf16.msra.mxu0 %v9553
      %9863 = vmatprep.subr.bf16.mxu0 %v9552
      %9864 = vmatpush2.bf16.msra.mxu0 %v9551
      %9865 = vmatprep.subr.bf16.mxu0 %v9550
      %9866 = vmatpush2.bf16.msra.mxu0 %v9549
      %9867 = vmatprep.subr.bf16.mxu0 %v9548
      %9868 = vmatpush2.bf16.msra.mxu0 %v9547
      %9869 = vmatprep.subr.bf16.mxu0 %v9546
      %9870 = vmatpush2.bf16.msra.mxu0 %v9545
      %9871 = vmatprep.mubr.bf16.mxu0 %v9049
      %9872 = vmatmul.mubr.bf16.gmra.mxu0 %v9048
      %v9873 = vpop.f32.mrf.mxu0
      %v9874 = vadd.f32 %v9783, %v9873
      %v9875 = vpop.f32.mrf.mxu0
      %v9876 = vadd.f32 %v9785, %v9875
      %v9877 = vpop.f32.mrf.mxu0
      %v9878 = vadd.f32 %v9787, %v9877
      %v9879 = vpop.f32.mrf.mxu0
      %v9880 = vadd.f32 %v9789, %v9879
      %9881 = vmatprep.mubr.bf16.mxu0 %v9055
      %9882 = vmatmul.mubr.bf16.gmra.mxu0 %v9054
      %v9883 = vpop.f32.mrf.mxu0
      %v9884 = vadd.f32 %v9793, %v9883
      %v9885 = vpop.f32.mrf.mxu0
      %v9886 = vadd.f32 %v9795, %v9885
      %v9887 = vpop.f32.mrf.mxu0
      %v9888 = vadd.f32 %v9797, %v9887
      %v9889 = vpop.f32.mrf.mxu0
      %v9890 = vadd.f32 %v9799, %v9889
      %9891 = vmatprep.mubr.bf16.mxu0 %v9061
      %9892 = vmatmul.mubr.bf16.gmra.mxu0 %v9060
      %v9893 = vpop.f32.mrf.mxu0
      %v9894 = vadd.f32 %v9803, %v9893
      %v9895 = vpop.f32.mrf.mxu0
      %v9896 = vadd.f32 %v9805, %v9895
      %v9897 = vpop.f32.mrf.mxu0
      %v9898 = vadd.f32 %v9807, %v9897
      %v9899 = vpop.f32.mrf.mxu0
      %v9900 = vadd.f32 %v9809, %v9899
      %9901 = vmatprep.mubr.bf16.mxu0 %v9067
      %9902 = vmatmul.mubr.bf16.gmra.mxu0 %v9066
      %v9903 = vpop.f32.mrf.mxu0
      %v9904 = vadd.f32 %v9813, %v9903
      %v9905 = vpop.f32.mrf.mxu0
      %v9906 = vadd.f32 %v9815, %v9905
      %v9907 = vpop.f32.mrf.mxu0
      %v9908 = vadd.f32 %v9817, %v9907
      %v9909 = vpop.f32.mrf.mxu0
      %v9910 = vadd.f32 %v9819, %v9909
      %9911 = vmatprep.mubr.bf16.mxu0 %v9073
      %9912 = vmatmul.mubr.bf16.gmra.mxu0 %v9072
      %v9913 = vpop.f32.mrf.mxu0
      %v9914 = vadd.f32 %v9823, %v9913
      %v9915 = vpop.f32.mrf.mxu0
      %v9916 = vadd.f32 %v9825, %v9915
      %v9917 = vpop.f32.mrf.mxu0
      %v9918 = vadd.f32 %v9827, %v9917
      %v9919 = vpop.f32.mrf.mxu0
      %v9920 = vadd.f32 %v9829, %v9919
      %9921 = vmatprep.mubr.bf16.mxu0 %v9079
      %9922 = vmatmul.mubr.bf16.gmra.mxu0 %v9078
      %v9923 = vpop.f32.mrf.mxu0
      %v9924 = vadd.f32 %v9833, %v9923
      %v9925 = vpop.f32.mrf.mxu0
      %v9926 = vadd.f32 %v9835, %v9925
      %v9927 = vpop.f32.mrf.mxu0
      %v9928 = vpop.f32.mrf.mxu0
      %9929 = vdwg.mxu0
      %v9930 = vadd.f32 %v8949, %v9874
      %v9931 = vadd.f32 %v8950, %v9876
      %v9932 = vadd.f32 %v8951, %v9878
      %v9933 = vadd.f32 %v8952, %v9880
      %v9934 = vadd.f32 %v8953, %v9884
      %v9935 = vadd.f32 %v8954, %v9886
      %v9936 = vadd.f32 %v8955, %v9888
      %v9937 = vadd.f32 %v8956, %v9890
      %v9938 = vadd.f32 %v8957, %v9894
      %v9939 = vadd.f32 %v8958, %v9896
      %v9940 = vadd.f32 %v8959, %v9898
      %v9941 = vadd.f32 %v8960, %v9900
      %v9942 = vadd.f32 %v8961, %v9904
      %v9943 = vadd.f32 %v8962, %v9906
      %v9944 = vadd.f32 %v8963, %v9908
      %v9945 = vadd.f32 %v8964, %v9910
      %v9946 = vadd.f32 %v8965, %v9914
      %v9947 = vadd.f32 %v8966, %v9916
      %v9948 = vadd.f32 %v8967, %v9918
      %v9949 = vadd.f32 %v8968, %v9920
      %v9950 = vadd.f32 %v8969, %v9924
      %v9951 = vadd.f32 %v8970, %v9926
      %s9952 = scalar_lea.vmem %s198, 5376
      %v9953 = vld [vmem:[%s9952] sm:$0xff]
      %v9954 = vld [vmem:[%s9952 + $0x8] sm:$0xff]
      %v9955 = vld [vmem:[%s9952 + $0x10] sm:$0xff]
      %v9956 = vld [vmem:[%s9952 + $0x18] sm:$0xff]
      %v9957 = vld [vmem:[%s9952 + $0x20] sm:$0xff]
      %v9958 = vld [vmem:[%s9952 + $0x28] sm:$0xff]
      %v9959 = vld [vmem:[%s9952 + $0x30] sm:$0xff]
      %v9960 = vld [vmem:[%s9952 + $0x38] sm:$0xff]
      %v9961 = vld [vmem:[%s9952 + $0x40] sm:$0xff]
      %v9962 = vld [vmem:[%s9952 + $0x48] sm:$0xff]
      %v9963 = vld [vmem:[%s9952 + $0x50] sm:$0xff]
      %v9964 = vld [vmem:[%s9952 + $0x58] sm:$0xff]
      %v9965 = vld [vmem:[%s9952 + $0x60] sm:$0xff]
      %v9966 = vld [vmem:[%s9952 + $0x68] sm:$0xff]
      %v9967 = vld [vmem:[%s9952 + $0x70] sm:$0xff]
      %v9968 = vld [vmem:[%s9952 + $0x78] sm:$0xff]
      %v9969 = vld [vmem:[%s9952 + $0x80] sm:$0xff]
      %v9970 = vld [vmem:[%s9952 + $0x88] sm:$0xff]
      %v9971 = vld [vmem:[%s9952 + $0x90] sm:$0xff]
      %v9972 = vld [vmem:[%s9952 + $0x98] sm:$0xff]
      %v9973 = vld [vmem:[%s9952 + $0xa0] sm:$0xff]
      %v9974 = vld [vmem:[%s9952 + $0xa8] sm:$0xff]
      %v9975 = vld [vmem:[%s9952 + $0xb0] sm:$0xff]
      %v9976 = vld [vmem:[%s9952 + $0xb8] sm:$0xff]
      %v9977 = vld [vmem:[%s9952 + $0xc0] sm:$0xff]
      %v9978 = vld [vmem:[%s9952 + $0xc8] sm:$0xff]
      %v9979 = vld [vmem:[%s9952 + $0xd0] sm:$0xff]
      %v9980 = vld [vmem:[%s9952 + $0xd8] sm:$0xff]
      %v9981 = vld [vmem:[%s9952 + $0xe0] sm:$0xff]
      %v9982 = vld [vmem:[%s9952 + $0xe8] sm:$0xff]
      %v9983 = vld [vmem:[%s9952 + $0xf0] sm:$0xff]
      %v9984 = vld [vmem:[%s9952 + $0xf8] sm:$0xff]
      %v9985 = vld [vmem:[%s9952 + $0x100] sm:$0xff]
      %v9986 = vld [vmem:[%s9952 + $0x108] sm:$0xff]
      %v9987 = vld [vmem:[%s9952 + $0x110] sm:$0xff]
      %v9988 = vld [vmem:[%s9952 + $0x118] sm:$0xff]
      %v9989 = vld [vmem:[%s9952 + $0x120] sm:$0xff]
      %v9990 = vld [vmem:[%s9952 + $0x128] sm:$0xff]
      %v9991 = vld [vmem:[%s9952 + $0x130] sm:$0xff]
      %v9992 = vld [vmem:[%s9952 + $0x138] sm:$0xff]
      %v9993 = vld [vmem:[%s9952 + $0x140] sm:$0xff]
      %v9994 = vld [vmem:[%s9952 + $0x148] sm:$0xff]
      %v9995 = vld [vmem:[%s9952 + $0x150] sm:$0xff]
      %v9996 = vld [vmem:[%s9952 + $0x158] sm:$0xff]
      %v9997 = vld [vmem:[%s9952 + $0x160] sm:$0xff]
      %v9998 = vld [vmem:[%s9952 + $0x168] sm:$0xff]
      %v9999 = vld [vmem:[%s9952 + $0x170] sm:$0xff]
      %v10000 = vld [vmem:[%s9952 + $0x178] sm:$0xff]
      %v10001 = vld [vmem:[%s9952 + $0x180] sm:$0xff]
      %v10002 = vld [vmem:[%s9952 + $0x188] sm:$0xff]
      %v10003 = vld [vmem:[%s9952 + $0x190] sm:$0xff]
      %v10004 = vld [vmem:[%s9952 + $0x198] sm:$0xff]
      %v10005 = vld [vmem:[%s9952 + $0x1a0] sm:$0xff]
      %v10006 = vld [vmem:[%s9952 + $0x1a8] sm:$0xff]
      %v10007 = vld [vmem:[%s9952 + $0x1b0] sm:$0xff]
      %v10008 = vld [vmem:[%s9952 + $0x1b8] sm:$0xff]
      %v10009 = vld [vmem:[%s9952 + $0x1c0] sm:$0xff]
      %v10010 = vld [vmem:[%s9952 + $0x1c8] sm:$0xff]
      %v10011 = vld [vmem:[%s9952 + $0x1d0] sm:$0xff]
      %v10012 = vld [vmem:[%s9952 + $0x1d8] sm:$0xff]
      %v10013 = vld [vmem:[%s9952 + $0x1e0] sm:$0xff]
      %v10014 = vld [vmem:[%s9952 + $0x1e8] sm:$0xff]
      %v10015 = vld [vmem:[%s9952 + $0x1f0] sm:$0xff]
      %v10016 = vld [vmem:[%s9952 + $0x1f8] sm:$0xff]
      %v10017 = vld [vmem:[%s9952 + $0x200] sm:$0xff]
      %v10018 = vld [vmem:[%s9952 + $0x208] sm:$0xff]
      %v10019 = vld [vmem:[%s9952 + $0x210] sm:$0xff]
      %v10020 = vld [vmem:[%s9952 + $0x218] sm:$0xff]
      %v10021 = vld [vmem:[%s9952 + $0x220] sm:$0xff]
      %v10022 = vld [vmem:[%s9952 + $0x228] sm:$0xff]
      %v10023 = vld [vmem:[%s9952 + $0x230] sm:$0xff]
      %v10024 = vld [vmem:[%s9952 + $0x238] sm:$0xff]
      %v10025 = vld [vmem:[%s9952 + $0x240] sm:$0xff]
      %v10026 = vld [vmem:[%s9952 + $0x248] sm:$0xff]
      %v10027 = vld [vmem:[%s9952 + $0x250] sm:$0xff]
      %v10028 = vld [vmem:[%s9952 + $0x258] sm:$0xff]
      %v10029 = vld [vmem:[%s9952 + $0x260] sm:$0xff]
      %v10030 = vld [vmem:[%s9952 + $0x268] sm:$0xff]
      %v10031 = vld [vmem:[%s9952 + $0x270] sm:$0xff]
      %v10032 = vld [vmem:[%s9952 + $0x278] sm:$0xff]
      %v10033 = vld [vmem:[%s9952 + $0x280] sm:$0xff]
      %v10034 = vld [vmem:[%s9952 + $0x288] sm:$0xff]
      %v10035 = vld [vmem:[%s9952 + $0x290] sm:$0xff]
      %v10036 = vld [vmem:[%s9952 + $0x298] sm:$0xff]
      %v10037 = vld [vmem:[%s9952 + $0x2a0] sm:$0xff]
      %v10038 = vld [vmem:[%s9952 + $0x2a8] sm:$0xff]
      %v10039 = vld [vmem:[%s9952 + $0x2b0] sm:$0xff]
      %v10040 = vld [vmem:[%s9952 + $0x2b8] sm:$0xff]
      %v10041 = vld [vmem:[%s9952 + $0x2c0] sm:$0xff]
      %v10042 = vld [vmem:[%s9952 + $0x2c8] sm:$0xff]
      %v10043 = vld [vmem:[%s9952 + $0x2d0] sm:$0xff]
      %v10044 = vld [vmem:[%s9952 + $0x2d8] sm:$0xff]
      %v10045 = vld [vmem:[%s9952 + $0x2e0] sm:$0xff]
      %v10046 = vld [vmem:[%s9952 + $0x2e8] sm:$0xff]
      %v10047 = vld [vmem:[%s9952 + $0x2f0] sm:$0xff]
      %v10048 = vld [vmem:[%s9952 + $0x2f8] sm:$0xff]
      %v10145 = vunpack.c.l.b16 %v9953
      %v10146 = vunpack.c.h.b16 %v9953
      %v10147 = vunpack.c.l.b16 %v9954
      %v10148 = vunpack.c.h.b16 %v9954
      %v10149 = vunpack.c.l.b16 %v9955
      %v10150 = vunpack.c.h.b16 %v9955
      %v10151 = vunpack.c.l.b16 %v9956
      %v10152 = vunpack.c.h.b16 %v9956
      %v10153 = vunpack.c.l.b16 %v9957
      %v10154 = vunpack.c.h.b16 %v9957
      %v10155 = vunpack.c.l.b16 %v9958
      %v10156 = vunpack.c.h.b16 %v9958
      %v10157 = vunpack.c.l.b16 %v9959
      %v10158 = vunpack.c.h.b16 %v9959
      %v10159 = vunpack.c.l.b16 %v9960
      %v10160 = vunpack.c.h.b16 %v9960
      %v10161 = vunpack.c.l.b16 %v9961
      %v10162 = vunpack.c.h.b16 %v9961
      %v10163 = vunpack.c.l.b16 %v9962
      %v10164 = vunpack.c.h.b16 %v9962
      %v10165 = vunpack.c.l.b16 %v9963
      %v10166 = vunpack.c.h.b16 %v9963
      %v10167 = vunpack.c.l.b16 %v9964
      %v10168 = vunpack.c.h.b16 %v9964
      %v10169 = vunpack.c.l.b16 %v9965
      %v10170 = vunpack.c.h.b16 %v9965
      %v10171 = vunpack.c.l.b16 %v9966
      %v10172 = vunpack.c.h.b16 %v9966
      %v10173 = vunpack.c.l.b16 %v9967
      %v10174 = vunpack.c.h.b16 %v9967
      %v10175 = vunpack.c.l.b16 %v9968
      %v10176 = vunpack.c.h.b16 %v9968
      %v10177 = vunpack.c.l.b16 %v9969
      %v10178 = vunpack.c.h.b16 %v9969
      %v10179 = vunpack.c.l.b16 %v9970
      %v10180 = vunpack.c.h.b16 %v9970
      %v10181 = vunpack.c.l.b16 %v9971
      %v10182 = vunpack.c.h.b16 %v9971
      %v10183 = vunpack.c.l.b16 %v9972
      %v10184 = vunpack.c.h.b16 %v9972
      %v10185 = vunpack.c.l.b16 %v9973
      %v10186 = vunpack.c.h.b16 %v9973
      %v10187 = vunpack.c.l.b16 %v9974
      %v10188 = vunpack.c.h.b16 %v9974
      %v10189 = vunpack.c.l.b16 %v9975
      %v10190 = vunpack.c.h.b16 %v9975
      %v10191 = vunpack.c.l.b16 %v9976
      %v10192 = vunpack.c.h.b16 %v9976
      %v10193 = vunpack.c.l.b16 %v9977
      %v10194 = vunpack.c.h.b16 %v9977
      %v10195 = vunpack.c.l.b16 %v9978
      %v10196 = vunpack.c.h.b16 %v9978
      %v10197 = vunpack.c.l.b16 %v9979
      %v10198 = vunpack.c.h.b16 %v9979
      %v10199 = vunpack.c.l.b16 %v9980
      %v10200 = vunpack.c.h.b16 %v9980
      %v10201 = vunpack.c.l.b16 %v9981
      %v10202 = vunpack.c.h.b16 %v9981
      %v10203 = vunpack.c.l.b16 %v9982
      %v10204 = vunpack.c.h.b16 %v9982
      %v10205 = vunpack.c.l.b16 %v9983
      %v10206 = vunpack.c.h.b16 %v9983
      %v10207 = vunpack.c.l.b16 %v9984
      %v10208 = vunpack.c.h.b16 %v9984
      %v10209 = vunpack.c.l.b16 %v9985
      %v10210 = vunpack.c.h.b16 %v9985
      %v10211 = vunpack.c.l.b16 %v9986
      %v10212 = vunpack.c.h.b16 %v9986
      %v10213 = vunpack.c.l.b16 %v9987
      %v10214 = vunpack.c.h.b16 %v9987
      %v10215 = vunpack.c.l.b16 %v9988
      %v10216 = vunpack.c.h.b16 %v9988
      %v10217 = vunpack.c.l.b16 %v9989
      %v10218 = vunpack.c.h.b16 %v9989
      %v10219 = vunpack.c.l.b16 %v9990
      %v10220 = vunpack.c.h.b16 %v9990
      %v10221 = vunpack.c.l.b16 %v9991
      %v10222 = vunpack.c.h.b16 %v9991
      %v10223 = vunpack.c.l.b16 %v9992
      %v10224 = vunpack.c.h.b16 %v9992
      %v10225 = vunpack.c.l.b16 %v9993
      %v10226 = vunpack.c.h.b16 %v9993
      %v10227 = vunpack.c.l.b16 %v9994
      %v10228 = vunpack.c.h.b16 %v9994
      %v10229 = vunpack.c.l.b16 %v9995
      %v10230 = vunpack.c.h.b16 %v9995
      %v10231 = vunpack.c.l.b16 %v9996
      %v10232 = vunpack.c.h.b16 %v9996
      %v10233 = vunpack.c.l.b16 %v9997
      %v10234 = vunpack.c.h.b16 %v9997
      %v10235 = vunpack.c.l.b16 %v9998
      %v10236 = vunpack.c.h.b16 %v9998
      %v10237 = vunpack.c.l.b16 %v9999
      %v10238 = vunpack.c.h.b16 %v9999
      %v10239 = vunpack.c.l.b16 %v10000
      %v10240 = vunpack.c.h.b16 %v10000
      %v10241 = vunpack.c.l.b16 %v10001
      %v10242 = vunpack.c.h.b16 %v10001
      %v10243 = vunpack.c.l.b16 %v10002
      %v10244 = vunpack.c.h.b16 %v10002
      %v10245 = vunpack.c.l.b16 %v10003
      %v10246 = vunpack.c.h.b16 %v10003
      %v10247 = vunpack.c.l.b16 %v10004
      %v10248 = vunpack.c.h.b16 %v10004
      %v10249 = vunpack.c.l.b16 %v10005
      %v10250 = vunpack.c.h.b16 %v10005
      %v10251 = vunpack.c.l.b16 %v10006
      %v10252 = vunpack.c.h.b16 %v10006
      %v10253 = vunpack.c.l.b16 %v10007
      %v10254 = vunpack.c.h.b16 %v10007
      %v10255 = vunpack.c.l.b16 %v10008
      %v10256 = vunpack.c.h.b16 %v10008
      %v10257 = vunpack.c.l.b16 %v10009
      %v10258 = vunpack.c.h.b16 %v10009
      %v10259 = vunpack.c.l.b16 %v10010
      %v10260 = vunpack.c.h.b16 %v10010
      %v10261 = vunpack.c.l.b16 %v10011
      %v10262 = vunpack.c.h.b16 %v10011
      %v10263 = vunpack.c.l.b16 %v10012
      %v10264 = vunpack.c.h.b16 %v10012
      %v10265 = vunpack.c.l.b16 %v10013
      %v10266 = vunpack.c.h.b16 %v10013
      %v10267 = vunpack.c.l.b16 %v10014
      %v10268 = vunpack.c.h.b16 %v10014
      %v10269 = vunpack.c.l.b16 %v10015
      %v10270 = vunpack.c.h.b16 %v10015
      %v10271 = vunpack.c.l.b16 %v10016
      %v10272 = vunpack.c.h.b16 %v10016
      %v10273 = vunpack.c.l.b16 %v10017
      %v10274 = vunpack.c.h.b16 %v10017
      %v10275 = vunpack.c.l.b16 %v10018
      %v10276 = vunpack.c.h.b16 %v10018
      %v10277 = vunpack.c.l.b16 %v10019
      %v10278 = vunpack.c.h.b16 %v10019
      %v10279 = vunpack.c.l.b16 %v10020
      %v10280 = vunpack.c.h.b16 %v10020
      %v10281 = vunpack.c.l.b16 %v10021
      %v10282 = vunpack.c.h.b16 %v10021
      %v10283 = vunpack.c.l.b16 %v10022
      %v10284 = vunpack.c.h.b16 %v10022
      %v10285 = vunpack.c.l.b16 %v10023
      %v10286 = vunpack.c.h.b16 %v10023
      %v10287 = vunpack.c.l.b16 %v10024
      %v10288 = vunpack.c.h.b16 %v10024
      %v10289 = vunpack.c.l.b16 %v10025
      %v10290 = vunpack.c.h.b16 %v10025
      %v10291 = vunpack.c.l.b16 %v10026
      %v10292 = vunpack.c.h.b16 %v10026
      %v10293 = vunpack.c.l.b16 %v10027
      %v10294 = vunpack.c.h.b16 %v10027
      %v10295 = vunpack.c.l.b16 %v10028
      %v10296 = vunpack.c.h.b16 %v10028
      %v10297 = vunpack.c.l.b16 %v10029
      %v10298 = vunpack.c.h.b16 %v10029
      %v10299 = vunpack.c.l.b16 %v10030
      %v10300 = vunpack.c.h.b16 %v10030
      %v10301 = vunpack.c.l.b16 %v10031
      %v10302 = vunpack.c.h.b16 %v10031
      %v10303 = vunpack.c.l.b16 %v10032
      %v10304 = vunpack.c.h.b16 %v10032
      %v10305 = vunpack.c.l.b16 %v10033
      %v10306 = vunpack.c.h.b16 %v10033
      %v10307 = vunpack.c.l.b16 %v10034
      %v10308 = vunpack.c.h.b16 %v10034
      %v10309 = vunpack.c.l.b16 %v10035
      %v10310 = vunpack.c.h.b16 %v10035
      %v10311 = vunpack.c.l.b16 %v10036
      %v10312 = vunpack.c.h.b16 %v10036
      %v10313 = vunpack.c.l.b16 %v10037
      %v10314 = vunpack.c.h.b16 %v10037
      %v10315 = vunpack.c.l.b16 %v10038
      %v10316 = vunpack.c.h.b16 %v10038
      %v10317 = vunpack.c.l.b16 %v10039
      %v10318 = vunpack.c.h.b16 %v10039
      %v10319 = vunpack.c.l.b16 %v10040
      %v10320 = vunpack.c.h.b16 %v10040
      %v10321 = vunpack.c.l.b16 %v10041
      %v10322 = vunpack.c.h.b16 %v10041
      %v10323 = vunpack.c.l.b16 %v10042
      %v10324 = vunpack.c.h.b16 %v10042
      %v10325 = vunpack.c.l.b16 %v10043
      %v10326 = vunpack.c.h.b16 %v10043
      %v10327 = vunpack.c.l.b16 %v10044
      %v10328 = vunpack.c.h.b16 %v10044
      %v10329 = vunpack.c.l.b16 %v10045
      %v10330 = vunpack.c.h.b16 %v10045
      %v10331 = vunpack.c.l.b16 %v10046
      %v10332 = vunpack.c.h.b16 %v10046
      %v10333 = vunpack.c.l.b16 %v10047
      %v10334 = vunpack.c.h.b16 %v10047
      %v10335 = vunpack.c.l.b16 %v10048
      %v10336 = vunpack.c.h.b16 %v10048
      %v10337 = vpack.c.b16 %v10147, %v10145
      %v10338 = vpack.c.b16 %v10148, %v10146
      %v10339 = vpack.c.b16 %v10151, %v10149
      %v10340 = vpack.c.b16 %v10152, %v10150
      %v10341 = vpack.c.b16 %v10155, %v10153
      %v10342 = vpack.c.b16 %v10156, %v10154
      %v10343 = vpack.c.b16 %v10159, %v10157
      %v10344 = vpack.c.b16 %v10160, %v10158
      %v10345 = vpack.c.b16 %v10163, %v10161
      %v10346 = vpack.c.b16 %v10164, %v10162
      %v10347 = vpack.c.b16 %v10167, %v10165
      %v10348 = vpack.c.b16 %v10168, %v10166
      %v10349 = vpack.c.b16 %v10171, %v10169
      %v10350 = vpack.c.b16 %v10172, %v10170
      %v10351 = vpack.c.b16 %v10175, %v10173
      %v10352 = vpack.c.b16 %v10176, %v10174
      %v10353 = vpack.c.b16 %v10179, %v10177
      %v10354 = vpack.c.b16 %v10180, %v10178
      %v10355 = vpack.c.b16 %v10183, %v10181
      %v10356 = vpack.c.b16 %v10184, %v10182
      %v10357 = vpack.c.b16 %v10187, %v10185
      %v10358 = vpack.c.b16 %v10188, %v10186
      %v10359 = vpack.c.b16 %v10191, %v10189
      %v10360 = vpack.c.b16 %v10192, %v10190
      %v10361 = vpack.c.b16 %v10195, %v10193
      %v10362 = vpack.c.b16 %v10196, %v10194
      %v10363 = vpack.c.b16 %v10199, %v10197
      %v10364 = vpack.c.b16 %v10200, %v10198
      %v10365 = vpack.c.b16 %v10203, %v10201
      %v10366 = vpack.c.b16 %v10204, %v10202
      %v10367 = vpack.c.b16 %v10207, %v10205
      %v10368 = vpack.c.b16 %v10208, %v10206
      %v10369 = vpack.c.b16 %v10211, %v10209
      %v10370 = vpack.c.b16 %v10212, %v10210
      %v10371 = vpack.c.b16 %v10215, %v10213
      %v10372 = vpack.c.b16 %v10216, %v10214
      %v10373 = vpack.c.b16 %v10219, %v10217
      %v10374 = vpack.c.b16 %v10220, %v10218
      %v10375 = vpack.c.b16 %v10223, %v10221
      %v10376 = vpack.c.b16 %v10224, %v10222
      %v10377 = vpack.c.b16 %v10227, %v10225
      %v10378 = vpack.c.b16 %v10228, %v10226
      %v10379 = vpack.c.b16 %v10231, %v10229
      %v10380 = vpack.c.b16 %v10232, %v10230
      %v10381 = vpack.c.b16 %v10235, %v10233
      %v10382 = vpack.c.b16 %v10236, %v10234
      %v10383 = vpack.c.b16 %v10239, %v10237
      %v10384 = vpack.c.b16 %v10240, %v10238
      %v10385 = vpack.c.b16 %v10243, %v10241
      %v10386 = vpack.c.b16 %v10244, %v10242
      %v10387 = vpack.c.b16 %v10247, %v10245
      %v10388 = vpack.c.b16 %v10248, %v10246
      %v10389 = vpack.c.b16 %v10251, %v10249
      %v10390 = vpack.c.b16 %v10252, %v10250
      %v10391 = vpack.c.b16 %v10255, %v10253
      %v10392 = vpack.c.b16 %v10256, %v10254
      %v10393 = vpack.c.b16 %v10259, %v10257
      %v10394 = vpack.c.b16 %v10260, %v10258
      %v10395 = vpack.c.b16 %v10263, %v10261
      %v10396 = vpack.c.b16 %v10264, %v10262
      %v10397 = vpack.c.b16 %v10267, %v10265
      %v10398 = vpack.c.b16 %v10268, %v10266
      %v10399 = vpack.c.b16 %v10271, %v10269
      %v10400 = vpack.c.b16 %v10272, %v10270
      %v10401 = vpack.c.b16 %v10275, %v10273
      %v10402 = vpack.c.b16 %v10276, %v10274
      %v10403 = vpack.c.b16 %v10279, %v10277
      %v10404 = vpack.c.b16 %v10280, %v10278
      %v10405 = vpack.c.b16 %v10283, %v10281
      %v10406 = vpack.c.b16 %v10284, %v10282
      %v10407 = vpack.c.b16 %v10287, %v10285
      %v10408 = vpack.c.b16 %v10288, %v10286
      %v10409 = vpack.c.b16 %v10291, %v10289
      %v10410 = vpack.c.b16 %v10292, %v10290
      %v10411 = vpack.c.b16 %v10295, %v10293
      %v10412 = vpack.c.b16 %v10296, %v10294
      %v10413 = vpack.c.b16 %v10299, %v10297
      %v10414 = vpack.c.b16 %v10300, %v10298
      %v10415 = vpack.c.b16 %v10303, %v10301
      %v10416 = vpack.c.b16 %v10304, %v10302
      %v10417 = vpack.c.b16 %v10307, %v10305
      %v10418 = vpack.c.b16 %v10308, %v10306
      %v10419 = vpack.c.b16 %v10311, %v10309
      %v10420 = vpack.c.b16 %v10312, %v10310
      %v10421 = vpack.c.b16 %v10315, %v10313
      %v10422 = vpack.c.b16 %v10316, %v10314
      %v10423 = vpack.c.b16 %v10319, %v10317
      %v10424 = vpack.c.b16 %v10320, %v10318
      %v10425 = vpack.c.b16 %v10323, %v10321
      %v10426 = vpack.c.b16 %v10324, %v10322
      %v10427 = vpack.c.b16 %v10327, %v10325
      %v10428 = vpack.c.b16 %v10328, %v10326
      %v10429 = vpack.c.b16 %v10331, %v10329
      %v10430 = vpack.c.b16 %v10332, %v10330
      %v10431 = vpack.c.b16 %v10335, %v10333
      %v10432 = vpack.c.b16 %v10336, %v10334
      %10529 = vmatprep.subr.bf16.mxu0 %v10352
      %10530 = vmatpush1.bf16.msra.mxu0 %v10351
      %10531 = vmatprep.subr.bf16.mxu0 %v10350
      %10532 = vmatpush1.bf16.msra.mxu0 %v10349
      %10533 = vmatprep.subr.bf16.mxu0 %v10348
      %10534 = vmatpush1.bf16.msra.mxu0 %v10347
      %10535 = vmatprep.subr.bf16.mxu0 %v10346
      %10536 = vmatpush1.bf16.msra.mxu0 %v10345
      %10537 = vmatprep.subr.bf16.mxu0 %v10344
      %10538 = vmatpush1.bf16.msra.mxu0 %v10343
      %10539 = vmatprep.subr.bf16.mxu0 %v10342
      %10540 = vmatpush1.bf16.msra.mxu0 %v10341
      %10541 = vmatprep.subr.bf16.mxu0 %v10340
      %10542 = vmatpush1.bf16.msra.mxu0 %v10339
      %10543 = vmatprep.subr.bf16.mxu0 %v10338
      %10544 = vmatpush1.bf16.msra.mxu0 %v10337
      %10545 = vmatprep.subr.bf16.mxu0 %v10368
      %10546 = vmatpush2.bf16.msra.mxu0 %v10367
      %10547 = vmatprep.subr.bf16.mxu0 %v10366
      %10548 = vmatpush2.bf16.msra.mxu0 %v10365
      %10549 = vmatprep.subr.bf16.mxu0 %v10364
      %10550 = vmatpush2.bf16.msra.mxu0 %v10363
      %10551 = vmatprep.subr.bf16.mxu0 %v10362
      %10552 = vmatpush2.bf16.msra.mxu0 %v10361
      %10553 = vmatprep.subr.bf16.mxu0 %v10360
      %10554 = vmatpush2.bf16.msra.mxu0 %v10359
      %10555 = vmatprep.subr.bf16.mxu0 %v10358
      %10556 = vmatpush2.bf16.msra.mxu0 %v10357
      %10557 = vmatprep.subr.bf16.mxu0 %v10356
      %10558 = vmatpush2.bf16.msra.mxu0 %v10355
      %10559 = vmatprep.subr.bf16.mxu0 %v10354
      %10560 = vmatpush2.bf16.msra.mxu0 %v10353
      %10561 = vmatprep.mubr.bf16.mxu0 %v9045
      %10562 = vmatmul.mubr.bf16.gmra.mxu0 %v9044
      %v10563 = vpop.f32.mrf.mxu0
      %v10564 = vadd.f32 0.0, %v10563
      %v10565 = vpop.f32.mrf.mxu0
      %v10566 = vadd.f32 0.0, %v10565
      %v10567 = vpop.f32.mrf.mxu0
      %v10568 = vadd.f32 0.0, %v10567
      %v10569 = vpop.f32.mrf.mxu0
      %v10570 = vadd.f32 0.0, %v10569
      %10571 = vmatprep.mubr.bf16.mxu0 %v9051
      %10572 = vmatmul.mubr.bf16.gmra.mxu0 %v9050
      %v10573 = vpop.f32.mrf.mxu0
      %v10574 = vadd.f32 0.0, %v10573
      %v10575 = vpop.f32.mrf.mxu0
      %v10576 = vadd.f32 0.0, %v10575
      %v10577 = vpop.f32.mrf.mxu0
      %v10578 = vadd.f32 0.0, %v10577
      %v10579 = vpop.f32.mrf.mxu0
      %v10580 = vadd.f32 0.0, %v10579
      %10581 = vmatprep.mubr.bf16.mxu0 %v9057
      %10582 = vmatmul.mubr.bf16.gmra.mxu0 %v9056
      %v10583 = vpop.f32.mrf.mxu0
      %v10584 = vadd.f32 0.0, %v10583
      %v10585 = vpop.f32.mrf.mxu0
      %v10586 = vadd.f32 0.0, %v10585
      %v10587 = vpop.f32.mrf.mxu0
      %v10588 = vadd.f32 0.0, %v10587
      %v10589 = vpop.f32.mrf.mxu0
      %v10590 = vadd.f32 0.0, %v10589
      %10591 = vmatprep.mubr.bf16.mxu0 %v9063
      %10592 = vmatmul.mubr.bf16.gmra.mxu0 %v9062
      %v10593 = vpop.f32.mrf.mxu0
      %v10594 = vadd.f32 0.0, %v10593
      %v10595 = vpop.f32.mrf.mxu0
      %v10596 = vadd.f32 0.0, %v10595
      %v10597 = vpop.f32.mrf.mxu0
      %v10598 = vadd.f32 0.0, %v10597
      %v10599 = vpop.f32.mrf.mxu0
      %v10600 = vadd.f32 0.0, %v10599
      %10601 = vmatprep.mubr.bf16.mxu0 %v9069
      %10602 = vmatmul.mubr.bf16.gmra.mxu0 %v9068
      %v10603 = vpop.f32.mrf.mxu0
      %v10604 = vadd.f32 0.0, %v10603
      %v10605 = vpop.f32.mrf.mxu0
      %v10606 = vadd.f32 0.0, %v10605
      %v10607 = vpop.f32.mrf.mxu0
      %v10608 = vadd.f32 0.0, %v10607
      %v10609 = vpop.f32.mrf.mxu0
      %v10610 = vadd.f32 0.0, %v10609
      %10611 = vmatprep.mubr.bf16.mxu0 %v9075
      %10612 = vmatmul.mubr.bf16.gmra.mxu0 %v9074
      %v10613 = vpop.f32.mrf.mxu0
      %v10614 = vadd.f32 0.0, %v10613
      %v10615 = vpop.f32.mrf.mxu0
      %v10616 = vadd.f32 0.0, %v10615
      %v10617 = vpop.f32.mrf.mxu0
      %v10618 = vadd.f32 0.0, %v10617
      %v10619 = vpop.f32.mrf.mxu0
      %v10620 = vadd.f32 0.0, %v10619
      %10621 = vdwg.mxu0
      %10622 = vmatprep.subr.bf16.mxu0 %v10384
      %10623 = vmatpush1.bf16.msra.mxu0 %v10383
      %10624 = vmatprep.subr.bf16.mxu0 %v10382
      %10625 = vmatpush1.bf16.msra.mxu0 %v10381
      %10626 = vmatprep.subr.bf16.mxu0 %v10380
      %10627 = vmatpush1.bf16.msra.mxu0 %v10379
      %10628 = vmatprep.subr.bf16.mxu0 %v10378
      %10629 = vmatpush1.bf16.msra.mxu0 %v10377
      %10630 = vmatprep.subr.bf16.mxu0 %v10376
      %10631 = vmatpush1.bf16.msra.mxu0 %v10375
      %10632 = vmatprep.subr.bf16.mxu0 %v10374
      %10633 = vmatpush1.bf16.msra.mxu0 %v10373
      %10634 = vmatprep.subr.bf16.mxu0 %v10372
      %10635 = vmatpush1.bf16.msra.mxu0 %v10371
      %10636 = vmatprep.subr.bf16.mxu0 %v10370
      %10637 = vmatpush1.bf16.msra.mxu0 %v10369
      %10638 = vmatprep.subr.bf16.mxu0 %v10400
      %10639 = vmatpush2.bf16.msra.mxu0 %v10399
      %10640 = vmatprep.subr.bf16.mxu0 %v10398
      %10641 = vmatpush2.bf16.msra.mxu0 %v10397
      %10642 = vmatprep.subr.bf16.mxu0 %v10396
      %10643 = vmatpush2.bf16.msra.mxu0 %v10395
      %10644 = vmatprep.subr.bf16.mxu0 %v10394
      %10645 = vmatpush2.bf16.msra.mxu0 %v10393
      %10646 = vmatprep.subr.bf16.mxu0 %v10392
      %10647 = vmatpush2.bf16.msra.mxu0 %v10391
      %10648 = vmatprep.subr.bf16.mxu0 %v10390
      %10649 = vmatpush2.bf16.msra.mxu0 %v10389
      %10650 = vmatprep.subr.bf16.mxu0 %v10388
      %10651 = vmatpush2.bf16.msra.mxu0 %v10387
      %10652 = vmatprep.subr.bf16.mxu0 %v10386
      %10653 = vmatpush2.bf16.msra.mxu0 %v10385
      %10654 = vmatprep.mubr.bf16.mxu0 %v9047
      %10655 = vmatmul.mubr.bf16.gmra.mxu0 %v9046
      %v10656 = vpop.f32.mrf.mxu0
      %v10657 = vadd.f32 %v10564, %v10656
      %v10658 = vpop.f32.mrf.mxu0
      %v10659 = vadd.f32 %v10566, %v10658
      %v10660 = vpop.f32.mrf.mxu0
      %v10661 = vadd.f32 %v10568, %v10660
      %v10662 = vpop.f32.mrf.mxu0
      %v10663 = vadd.f32 %v10570, %v10662
      %10664 = vmatprep.mubr.bf16.mxu0 %v9053
      %10665 = vmatmul.mubr.bf16.gmra.mxu0 %v9052
      %v10666 = vpop.f32.mrf.mxu0
      %v10667 = vadd.f32 %v10574, %v10666
      %v10668 = vpop.f32.mrf.mxu0
      %v10669 = vadd.f32 %v10576, %v10668
      %v10670 = vpop.f32.mrf.mxu0
      %v10671 = vadd.f32 %v10578, %v10670
      %v10672 = vpop.f32.mrf.mxu0
      %v10673 = vadd.f32 %v10580, %v10672
      %10674 = vmatprep.mubr.bf16.mxu0 %v9059
      %10675 = vmatmul.mubr.bf16.gmra.mxu0 %v9058
      %v10676 = vpop.f32.mrf.mxu0
      %v10677 = vadd.f32 %v10584, %v10676
      %v10678 = vpop.f32.mrf.mxu0
      %v10679 = vadd.f32 %v10586, %v10678
      %v10680 = vpop.f32.mrf.mxu0
      %v10681 = vadd.f32 %v10588, %v10680
      %v10682 = vpop.f32.mrf.mxu0
      %v10683 = vadd.f32 %v10590, %v10682
      %10684 = vmatprep.mubr.bf16.mxu0 %v9065
      %10685 = vmatmul.mubr.bf16.gmra.mxu0 %v9064
      %v10686 = vpop.f32.mrf.mxu0
      %v10687 = vadd.f32 %v10594, %v10686
      %v10688 = vpop.f32.mrf.mxu0
      %v10689 = vadd.f32 %v10596, %v10688
      %v10690 = vpop.f32.mrf.mxu0
      %v10691 = vadd.f32 %v10598, %v10690
      %v10692 = vpop.f32.mrf.mxu0
      %v10693 = vadd.f32 %v10600, %v10692
      %10694 = vmatprep.mubr.bf16.mxu0 %v9071
      %10695 = vmatmul.mubr.bf16.gmra.mxu0 %v9070
      %v10696 = vpop.f32.mrf.mxu0
      %v10697 = vadd.f32 %v10604, %v10696
      %v10698 = vpop.f32.mrf.mxu0
      %v10699 = vadd.f32 %v10606, %v10698
      %v10700 = vpop.f32.mrf.mxu0
      %v10701 = vadd.f32 %v10608, %v10700
      %v10702 = vpop.f32.mrf.mxu0
      %v10703 = vadd.f32 %v10610, %v10702
      %10704 = vmatprep.mubr.bf16.mxu0 %v9077
      %10705 = vmatmul.mubr.bf16.gmra.mxu0 %v9076
      %v10706 = vpop.f32.mrf.mxu0
      %v10707 = vadd.f32 %v10614, %v10706
      %v10708 = vpop.f32.mrf.mxu0
      %v10709 = vadd.f32 %v10616, %v10708
      %v10710 = vpop.f32.mrf.mxu0
      %v10711 = vadd.f32 %v10618, %v10710
      %v10712 = vpop.f32.mrf.mxu0
      %v10713 = vadd.f32 %v10620, %v10712
      %10714 = vdwg.mxu0
      %10715 = vmatprep.subr.bf16.mxu0 %v10416
      %10716 = vmatpush1.bf16.msra.mxu0 %v10415
      %10717 = vmatprep.subr.bf16.mxu0 %v10414
      %10718 = vmatpush1.bf16.msra.mxu0 %v10413
      %10719 = vmatprep.subr.bf16.mxu0 %v10412
      %10720 = vmatpush1.bf16.msra.mxu0 %v10411
      %10721 = vmatprep.subr.bf16.mxu0 %v10410
      %10722 = vmatpush1.bf16.msra.mxu0 %v10409
      %10723 = vmatprep.subr.bf16.mxu0 %v10408
      %10724 = vmatpush1.bf16.msra.mxu0 %v10407
      %10725 = vmatprep.subr.bf16.mxu0 %v10406
      %10726 = vmatpush1.bf16.msra.mxu0 %v10405
      %10727 = vmatprep.subr.bf16.mxu0 %v10404
      %10728 = vmatpush1.bf16.msra.mxu0 %v10403
      %10729 = vmatprep.subr.bf16.mxu0 %v10402
      %10730 = vmatpush1.bf16.msra.mxu0 %v10401
      %10731 = vmatprep.subr.bf16.mxu0 %v10432
      %10732 = vmatpush2.bf16.msra.mxu0 %v10431
      %10733 = vmatprep.subr.bf16.mxu0 %v10430
      %10734 = vmatpush2.bf16.msra.mxu0 %v10429
      %10735 = vmatprep.subr.bf16.mxu0 %v10428
      %10736 = vmatpush2.bf16.msra.mxu0 %v10427
      %10737 = vmatprep.subr.bf16.mxu0 %v10426
      %10738 = vmatpush2.bf16.msra.mxu0 %v10425
      %10739 = vmatprep.subr.bf16.mxu0 %v10424
      %10740 = vmatpush2.bf16.msra.mxu0 %v10423
      %10741 = vmatprep.subr.bf16.mxu0 %v10422
      %10742 = vmatpush2.bf16.msra.mxu0 %v10421
      %10743 = vmatprep.subr.bf16.mxu0 %v10420
      %10744 = vmatpush2.bf16.msra.mxu0 %v10419
      %10745 = vmatprep.subr.bf16.mxu0 %v10418
      %10746 = vmatpush2.bf16.msra.mxu0 %v10417
      %10747 = vmatprep.mubr.bf16.mxu0 %v9049
      %10748 = vmatmul.mubr.bf16.gmra.mxu0 %v9048
      %v10749 = vpop.f32.mrf.mxu0
      %v10750 = vadd.f32 %v10657, %v10749
      %v10751 = vpop.f32.mrf.mxu0
      %v10752 = vadd.f32 %v10659, %v10751
      %v10753 = vpop.f32.mrf.mxu0
      %v10754 = vadd.f32 %v10661, %v10753
      %v10755 = vpop.f32.mrf.mxu0
      %v10756 = vadd.f32 %v10663, %v10755
      %10757 = vmatprep.mubr.bf16.mxu0 %v9055
      %10758 = vmatmul.mubr.bf16.gmra.mxu0 %v9054
      %v10759 = vpop.f32.mrf.mxu0
      %v10760 = vadd.f32 %v10667, %v10759
      %v10761 = vpop.f32.mrf.mxu0
      %v10762 = vadd.f32 %v10669, %v10761
      %v10763 = vpop.f32.mrf.mxu0
      %v10764 = vadd.f32 %v10671, %v10763
      %v10765 = vpop.f32.mrf.mxu0
      %v10766 = vadd.f32 %v10673, %v10765
      %10767 = vmatprep.mubr.bf16.mxu0 %v9061
      %10768 = vmatmul.mubr.bf16.gmra.mxu0 %v9060
      %v10769 = vpop.f32.mrf.mxu0
      %v10770 = vadd.f32 %v10677, %v10769
      %v10771 = vpop.f32.mrf.mxu0
      %v10772 = vadd.f32 %v10679, %v10771
      %v10773 = vpop.f32.mrf.mxu0
      %v10774 = vadd.f32 %v10681, %v10773
      %v10775 = vpop.f32.mrf.mxu0
      %v10776 = vadd.f32 %v10683, %v10775
      %10777 = vmatprep.mubr.bf16.mxu0 %v9067
      %10778 = vmatmul.mubr.bf16.gmra.mxu0 %v9066
      %v10779 = vpop.f32.mrf.mxu0
      %v10780 = vadd.f32 %v10687, %v10779
      %v10781 = vpop.f32.mrf.mxu0
      %v10782 = vadd.f32 %v10689, %v10781
      %v10783 = vpop.f32.mrf.mxu0
      %v10784 = vadd.f32 %v10691, %v10783
      %v10785 = vpop.f32.mrf.mxu0
      %v10786 = vadd.f32 %v10693, %v10785
      %10787 = vmatprep.mubr.bf16.mxu0 %v9073
      %10788 = vmatmul.mubr.bf16.gmra.mxu0 %v9072
      %v10789 = vpop.f32.mrf.mxu0
      %v10790 = vadd.f32 %v10697, %v10789
      %v10791 = vpop.f32.mrf.mxu0
      %v10792 = vadd.f32 %v10699, %v10791
      %v10793 = vpop.f32.mrf.mxu0
      %v10794 = vadd.f32 %v10701, %v10793
      %v10795 = vpop.f32.mrf.mxu0
      %v10796 = vadd.f32 %v10703, %v10795
      %10797 = vmatprep.mubr.bf16.mxu0 %v9079
      %10798 = vmatmul.mubr.bf16.gmra.mxu0 %v9078
      %v10799 = vpop.f32.mrf.mxu0
      %v10800 = vadd.f32 %v10707, %v10799
      %v10801 = vpop.f32.mrf.mxu0
      %v10802 = vadd.f32 %v10709, %v10801
      %v10803 = vpop.f32.mrf.mxu0
      %v10804 = vadd.f32 %v10711, %v10803
      %v10805 = vpop.f32.mrf.mxu0
      %v10806 = vadd.f32 %v10713, %v10805
      %10807 = vdwg.mxu0
      %v10832 = vrot.slane %v10750, 1
      %v10833 = vrot.slane %v10754, 1
      %v10834 = vsel %vm2067, %v10832, %v10833
      %v10835 = vrot.slane %v10752, 1
      %v10836 = vrot.slane %v10756, 1
      %v10837 = vsel %vm2067, %v10835, %v10836
      %v10838 = vrot.slane %v10760, 1
      %v10839 = vsel %vm2067, %v10833, %v10838
      %v10840 = vrot.slane %v10762, 1
      %v10841 = vsel %vm2067, %v10836, %v10840
      %v10842 = vrot.slane %v10764, 1
      %v10843 = vsel %vm2067, %v10838, %v10842
      %v10844 = vrot.slane %v10766, 1
      %v10845 = vsel %vm2067, %v10840, %v10844
      %v10846 = vrot.slane %v10770, 1
      %v10847 = vsel %vm2067, %v10842, %v10846
      %v10848 = vrot.slane %v10772, 1
      %v10849 = vsel %vm2067, %v10844, %v10848
      %v10850 = vrot.slane %v10774, 1
      %v10851 = vsel %vm2067, %v10846, %v10850
      %v10852 = vrot.slane %v10776, 1
      %v10853 = vsel %vm2067, %v10848, %v10852
      %v10854 = vrot.slane %v10780, 1
      %v10855 = vsel %vm2067, %v10850, %v10854
      %v10856 = vrot.slane %v10782, 1
      %v10857 = vsel %vm2067, %v10852, %v10856
      %v10858 = vrot.slane %v10784, 1
      %v10859 = vsel %vm2067, %v10854, %v10858
      %v10860 = vrot.slane %v10786, 1
      %v10861 = vsel %vm2067, %v10856, %v10860
      %v10862 = vrot.slane %v10790, 1
      %v10863 = vsel %vm2067, %v10858, %v10862
      %v10864 = vrot.slane %v10792, 1
      %v10865 = vsel %vm2067, %v10860, %v10864
      %v10866 = vrot.slane %v10794, 1
      %v10867 = vsel %vm2067, %v10862, %v10866
      %v10868 = vrot.slane %v10796, 1
      %v10869 = vsel %vm2067, %v10864, %v10868
      %v10870 = vrot.slane %v10800, 1
      %v10871 = vsel %vm2067, %v10866, %v10870
      %v10872 = vrot.slane %v10802, 1
      %v10873 = vsel %vm2067, %v10868, %v10872
      %v10874 = vrot.slane %v10804, 1
      %v10875 = vsel %vm2067, %v10870, %v10874
      %v10876 = vrot.slane %v10806, 1
      %v10877 = vsel %vm2067, %v10872, %v10876
      %v10900 = vadd.f32 %v9930, %v10834
      %v10901 = vadd.f32 %v9931, %v10837
      %v10902 = vadd.f32 %v9932, %v10839
      %v10903 = vadd.f32 %v9933, %v10841
      %v10904 = vadd.f32 %v9934, %v10843
      %v10905 = vadd.f32 %v9935, %v10845
      %v10906 = vadd.f32 %v9936, %v10847
      %v10907 = vadd.f32 %v9937, %v10849
      %v10908 = vadd.f32 %v9938, %v10851
      %v10909 = vadd.f32 %v9939, %v10853
      %v10910 = vadd.f32 %v9940, %v10855
      %v10911 = vadd.f32 %v9941, %v10857
      %v10912 = vadd.f32 %v9942, %v10859
      %v10913 = vadd.f32 %v9943, %v10861
      %v10914 = vadd.f32 %v9944, %v10863
      %v10915 = vadd.f32 %v9945, %v10865
      %v10916 = vadd.f32 %v9946, %v10867
      %v10917 = vadd.f32 %v9947, %v10869
      %v10918 = vadd.f32 %v9948, %v10871
      %v10919 = vadd.f32 %v9949, %v10873
      %v10920 = vadd.f32 %v9950, %v10875
      %v10921 = vadd.f32 %v9951, %v10877
      %s10922 = scalar_lea.vmem %s198, 8448
      %v10923 = vld [vmem:[%s10922] sm:$0xff]
      %v10924 = vld [vmem:[%s10922 + $0x8] sm:$0xff]
      %v10925 = vld [vmem:[%s10922 + $0x10] sm:$0xff]
      %v10926 = vld [vmem:[%s10922 + $0x18] sm:$0xff]
      %v10927 = vld [vmem:[%s10922 + $0x20] sm:$0xff]
      %v10928 = vld [vmem:[%s10922 + $0x28] sm:$0xff]
      %v10929 = vld [vmem:[%s10922 + $0x30] sm:$0xff]
      %v10930 = vld [vmem:[%s10922 + $0x38] sm:$0xff]
      %v10931 = vld [vmem:[%s10922 + $0x40] sm:$0xff]
      %v10932 = vld [vmem:[%s10922 + $0x48] sm:$0xff]
      %v10933 = vld [vmem:[%s10922 + $0x50] sm:$0xff]
      %v10934 = vld [vmem:[%s10922 + $0x58] sm:$0xff]
      %v10935 = vld [vmem:[%s10922 + $0x60] sm:$0xff]
      %v10936 = vld [vmem:[%s10922 + $0x68] sm:$0xff]
      %v10937 = vld [vmem:[%s10922 + $0x70] sm:$0xff]
      %v10938 = vld [vmem:[%s10922 + $0x78] sm:$0xff]
      %v10939 = vld [vmem:[%s10922 + $0x80] sm:$0xff]
      %v10940 = vld [vmem:[%s10922 + $0x88] sm:$0xff]
      %v10941 = vld [vmem:[%s10922 + $0x90] sm:$0xff]
      %v10942 = vld [vmem:[%s10922 + $0x98] sm:$0xff]
      %v10943 = vld [vmem:[%s10922 + $0xa0] sm:$0xff]
      %v10944 = vld [vmem:[%s10922 + $0xa8] sm:$0xff]
      %v10945 = vld [vmem:[%s10922 + $0xb0] sm:$0xff]
      %v10946 = vld [vmem:[%s10922 + $0xb8] sm:$0xff]
      %v10947 = vld [vmem:[%s10922 + $0xc0] sm:$0xff]
      %v10948 = vld [vmem:[%s10922 + $0xc8] sm:$0xff]
      %v10949 = vld [vmem:[%s10922 + $0xd0] sm:$0xff]
      %v10950 = vld [vmem:[%s10922 + $0xd8] sm:$0xff]
      %v10951 = vld [vmem:[%s10922 + $0xe0] sm:$0xff]
      %v10952 = vld [vmem:[%s10922 + $0xe8] sm:$0xff]
      %v10953 = vld [vmem:[%s10922 + $0xf0] sm:$0xff]
      %v10954 = vld [vmem:[%s10922 + $0xf8] sm:$0xff]
      %v10955 = vld [vmem:[%s10922 + $0x100] sm:$0xff]
      %v10956 = vld [vmem:[%s10922 + $0x108] sm:$0xff]
      %v10957 = vld [vmem:[%s10922 + $0x110] sm:$0xff]
      %v10958 = vld [vmem:[%s10922 + $0x118] sm:$0xff]
      %v10959 = vld [vmem:[%s10922 + $0x120] sm:$0xff]
      %v10960 = vld [vmem:[%s10922 + $0x128] sm:$0xff]
      %v10961 = vld [vmem:[%s10922 + $0x130] sm:$0xff]
      %v10962 = vld [vmem:[%s10922 + $0x138] sm:$0xff]
      %v10963 = vld [vmem:[%s10922 + $0x140] sm:$0xff]
      %v10964 = vld [vmem:[%s10922 + $0x148] sm:$0xff]
      %v10965 = vld [vmem:[%s10922 + $0x150] sm:$0xff]
      %v10966 = vld [vmem:[%s10922 + $0x158] sm:$0xff]
      %v10967 = vld [vmem:[%s10922 + $0x160] sm:$0xff]
      %v10968 = vld [vmem:[%s10922 + $0x168] sm:$0xff]
      %v10969 = vld [vmem:[%s10922 + $0x170] sm:$0xff]
      %v10970 = vld [vmem:[%s10922 + $0x178] sm:$0xff]
      %v10971 = vld [vmem:[%s10922 + $0x180] sm:$0xff]
      %v10972 = vld [vmem:[%s10922 + $0x188] sm:$0xff]
      %v10973 = vld [vmem:[%s10922 + $0x190] sm:$0xff]
      %v10974 = vld [vmem:[%s10922 + $0x198] sm:$0xff]
      %v10975 = vld [vmem:[%s10922 + $0x1a0] sm:$0xff]
      %v10976 = vld [vmem:[%s10922 + $0x1a8] sm:$0xff]
      %v10977 = vld [vmem:[%s10922 + $0x1b0] sm:$0xff]
      %v10978 = vld [vmem:[%s10922 + $0x1b8] sm:$0xff]
      %v10979 = vld [vmem:[%s10922 + $0x1c0] sm:$0xff]
      %v10980 = vld [vmem:[%s10922 + $0x1c8] sm:$0xff]
      %v10981 = vld [vmem:[%s10922 + $0x1d0] sm:$0xff]
      %v10982 = vld [vmem:[%s10922 + $0x1d8] sm:$0xff]
      %v10983 = vld [vmem:[%s10922 + $0x1e0] sm:$0xff]
      %v10984 = vld [vmem:[%s10922 + $0x1e8] sm:$0xff]
      %v10985 = vld [vmem:[%s10922 + $0x1f0] sm:$0xff]
      %v10986 = vld [vmem:[%s10922 + $0x1f8] sm:$0xff]
      %v10987 = vld [vmem:[%s10922 + $0x200] sm:$0xff]
      %v10988 = vld [vmem:[%s10922 + $0x208] sm:$0xff]
      %v10989 = vld [vmem:[%s10922 + $0x210] sm:$0xff]
      %v10990 = vld [vmem:[%s10922 + $0x218] sm:$0xff]
      %v10991 = vld [vmem:[%s10922 + $0x220] sm:$0xff]
      %v10992 = vld [vmem:[%s10922 + $0x228] sm:$0xff]
      %v10993 = vld [vmem:[%s10922 + $0x230] sm:$0xff]
      %v10994 = vld [vmem:[%s10922 + $0x238] sm:$0xff]
      %v10995 = vld [vmem:[%s10922 + $0x240] sm:$0xff]
      %v10996 = vld [vmem:[%s10922 + $0x248] sm:$0xff]
      %v10997 = vld [vmem:[%s10922 + $0x250] sm:$0xff]
      %v10998 = vld [vmem:[%s10922 + $0x258] sm:$0xff]
      %v10999 = vld [vmem:[%s10922 + $0x260] sm:$0xff]
      %v11000 = vld [vmem:[%s10922 + $0x268] sm:$0xff]
      %v11001 = vld [vmem:[%s10922 + $0x270] sm:$0xff]
      %v11002 = vld [vmem:[%s10922 + $0x278] sm:$0xff]
      %v11003 = vld [vmem:[%s10922 + $0x280] sm:$0xff]
      %v11004 = vld [vmem:[%s10922 + $0x288] sm:$0xff]
      %v11005 = vld [vmem:[%s10922 + $0x290] sm:$0xff]
      %v11006 = vld [vmem:[%s10922 + $0x298] sm:$0xff]
      %v11007 = vld [vmem:[%s10922 + $0x2a0] sm:$0xff]
      %v11008 = vld [vmem:[%s10922 + $0x2a8] sm:$0xff]
      %v11009 = vld [vmem:[%s10922 + $0x2b0] sm:$0xff]
      %v11010 = vld [vmem:[%s10922 + $0x2b8] sm:$0xff]
      %v11011 = vld [vmem:[%s10922 + $0x2c0] sm:$0xff]
      %v11012 = vld [vmem:[%s10922 + $0x2c8] sm:$0xff]
      %v11013 = vld [vmem:[%s10922 + $0x2d0] sm:$0xff]
      %v11014 = vld [vmem:[%s10922 + $0x2d8] sm:$0xff]
      %v11015 = vld [vmem:[%s10922 + $0x2e0] sm:$0xff]
      %v11016 = vld [vmem:[%s10922 + $0x2e8] sm:$0xff]
      %v11017 = vld [vmem:[%s10922 + $0x2f0] sm:$0xff]
      %v11018 = vld [vmem:[%s10922 + $0x2f8] sm:$0xff]
      %v11115 = vunpack.c.l.b16 %v10923
      %v11116 = vunpack.c.h.b16 %v10923
      %v11117 = vunpack.c.l.b16 %v10924
      %v11118 = vunpack.c.h.b16 %v10924
      %v11119 = vunpack.c.l.b16 %v10925
      %v11120 = vunpack.c.h.b16 %v10925
      %v11121 = vunpack.c.l.b16 %v10926
      %v11122 = vunpack.c.h.b16 %v10926
      %v11123 = vunpack.c.l.b16 %v10927
      %v11124 = vunpack.c.h.b16 %v10927
      %v11125 = vunpack.c.l.b16 %v10928
      %v11126 = vunpack.c.h.b16 %v10928
      %v11127 = vunpack.c.l.b16 %v10929
      %v11128 = vunpack.c.h.b16 %v10929
      %v11129 = vunpack.c.l.b16 %v10930
      %v11130 = vunpack.c.h.b16 %v10930
      %v11131 = vunpack.c.l.b16 %v10931
      %v11132 = vunpack.c.h.b16 %v10931
      %v11133 = vunpack.c.l.b16 %v10932
      %v11134 = vunpack.c.h.b16 %v10932
      %v11135 = vunpack.c.l.b16 %v10933
      %v11136 = vunpack.c.h.b16 %v10933
      %v11137 = vunpack.c.l.b16 %v10934
      %v11138 = vunpack.c.h.b16 %v10934
      %v11139 = vunpack.c.l.b16 %v10935
      %v11140 = vunpack.c.h.b16 %v10935
      %v11141 = vunpack.c.l.b16 %v10936
      %v11142 = vunpack.c.h.b16 %v10936
      %v11143 = vunpack.c.l.b16 %v10937
      %v11144 = vunpack.c.h.b16 %v10937
      %v11145 = vunpack.c.l.b16 %v10938
      %v11146 = vunpack.c.h.b16 %v10938
      %v11147 = vunpack.c.l.b16 %v10939
      %v11148 = vunpack.c.h.b16 %v10939
      %v11149 = vunpack.c.l.b16 %v10940
      %v11150 = vunpack.c.h.b16 %v10940
      %v11151 = vunpack.c.l.b16 %v10941
      %v11152 = vunpack.c.h.b16 %v10941
      %v11153 = vunpack.c.l.b16 %v10942
      %v11154 = vunpack.c.h.b16 %v10942
      %v11155 = vunpack.c.l.b16 %v10943
      %v11156 = vunpack.c.h.b16 %v10943
      %v11157 = vunpack.c.l.b16 %v10944
      %v11158 = vunpack.c.h.b16 %v10944
      %v11159 = vunpack.c.l.b16 %v10945
      %v11160 = vunpack.c.h.b16 %v10945
      %v11161 = vunpack.c.l.b16 %v10946
      %v11162 = vunpack.c.h.b16 %v10946
      %v11163 = vunpack.c.l.b16 %v10947
      %v11164 = vunpack.c.h.b16 %v10947
      %v11165 = vunpack.c.l.b16 %v10948
      %v11166 = vunpack.c.h.b16 %v10948
      %v11167 = vunpack.c.l.b16 %v10949
      %v11168 = vunpack.c.h.b16 %v10949
      %v11169 = vunpack.c.l.b16 %v10950
      %v11170 = vunpack.c.h.b16 %v10950
      %v11171 = vunpack.c.l.b16 %v10951
      %v11172 = vunpack.c.h.b16 %v10951
      %v11173 = vunpack.c.l.b16 %v10952
      %v11174 = vunpack.c.h.b16 %v10952
      %v11175 = vunpack.c.l.b16 %v10953
      %v11176 = vunpack.c.h.b16 %v10953
      %v11177 = vunpack.c.l.b16 %v10954
      %v11178 = vunpack.c.h.b16 %v10954
      %v11179 = vunpack.c.l.b16 %v10955
      %v11180 = vunpack.c.h.b16 %v10955
      %v11181 = vunpack.c.l.b16 %v10956
      %v11182 = vunpack.c.h.b16 %v10956
      %v11183 = vunpack.c.l.b16 %v10957
      %v11184 = vunpack.c.h.b16 %v10957
      %v11185 = vunpack.c.l.b16 %v10958
      %v11186 = vunpack.c.h.b16 %v10958
      %v11187 = vunpack.c.l.b16 %v10959
      %v11188 = vunpack.c.h.b16 %v10959
      %v11189 = vunpack.c.l.b16 %v10960
      %v11190 = vunpack.c.h.b16 %v10960
      %v11191 = vunpack.c.l.b16 %v10961
      %v11192 = vunpack.c.h.b16 %v10961
      %v11193 = vunpack.c.l.b16 %v10962
      %v11194 = vunpack.c.h.b16 %v10962
      %v11195 = vunpack.c.l.b16 %v10963
      %v11196 = vunpack.c.h.b16 %v10963
      %v11197 = vunpack.c.l.b16 %v10964
      %v11198 = vunpack.c.h.b16 %v10964
      %v11199 = vunpack.c.l.b16 %v10965
      %v11200 = vunpack.c.h.b16 %v10965
      %v11201 = vunpack.c.l.b16 %v10966
      %v11202 = vunpack.c.h.b16 %v10966
      %v11203 = vunpack.c.l.b16 %v10967
      %v11204 = vunpack.c.h.b16 %v10967
      %v11205 = vunpack.c.l.b16 %v10968
      %v11206 = vunpack.c.h.b16 %v10968
      %v11207 = vunpack.c.l.b16 %v10969
      %v11208 = vunpack.c.h.b16 %v10969
      %v11209 = vunpack.c.l.b16 %v10970
      %v11210 = vunpack.c.h.b16 %v10970
      %v11211 = vunpack.c.l.b16 %v10971
      %v11212 = vunpack.c.h.b16 %v10971
      %v11213 = vunpack.c.l.b16 %v10972
      %v11214 = vunpack.c.h.b16 %v10972
      %v11215 = vunpack.c.l.b16 %v10973
      %v11216 = vunpack.c.h.b16 %v10973
      %v11217 = vunpack.c.l.b16 %v10974
      %v11218 = vunpack.c.h.b16 %v10974
      %v11219 = vunpack.c.l.b16 %v10975
      %v11220 = vunpack.c.h.b16 %v10975
      %v11221 = vunpack.c.l.b16 %v10976
      %v11222 = vunpack.c.h.b16 %v10976
      %v11223 = vunpack.c.l.b16 %v10977
      %v11224 = vunpack.c.h.b16 %v10977
      %v11225 = vunpack.c.l.b16 %v10978
      %v11226 = vunpack.c.h.b16 %v10978
      %v11227 = vunpack.c.l.b16 %v10979
      %v11228 = vunpack.c.h.b16 %v10979
      %v11229 = vunpack.c.l.b16 %v10980
      %v11230 = vunpack.c.h.b16 %v10980
      %v11231 = vunpack.c.l.b16 %v10981
      %v11232 = vunpack.c.h.b16 %v10981
      %v11233 = vunpack.c.l.b16 %v10982
      %v11234 = vunpack.c.h.b16 %v10982
      %v11235 = vunpack.c.l.b16 %v10983
      %v11236 = vunpack.c.h.b16 %v10983
      %v11237 = vunpack.c.l.b16 %v10984
      %v11238 = vunpack.c.h.b16 %v10984
      %v11239 = vunpack.c.l.b16 %v10985
      %v11240 = vunpack.c.h.b16 %v10985
      %v11241 = vunpack.c.l.b16 %v10986
      %v11242 = vunpack.c.h.b16 %v10986
      %v11243 = vunpack.c.l.b16 %v10987
      %v11244 = vunpack.c.h.b16 %v10987
      %v11245 = vunpack.c.l.b16 %v10988
      %v11246 = vunpack.c.h.b16 %v10988
      %v11247 = vunpack.c.l.b16 %v10989
      %v11248 = vunpack.c.h.b16 %v10989
      %v11249 = vunpack.c.l.b16 %v10990
      %v11250 = vunpack.c.h.b16 %v10990
      %v11251 = vunpack.c.l.b16 %v10991
      %v11252 = vunpack.c.h.b16 %v10991
      %v11253 = vunpack.c.l.b16 %v10992
      %v11254 = vunpack.c.h.b16 %v10992
      %v11255 = vunpack.c.l.b16 %v10993
      %v11256 = vunpack.c.h.b16 %v10993
      %v11257 = vunpack.c.l.b16 %v10994
      %v11258 = vunpack.c.h.b16 %v10994
      %v11259 = vunpack.c.l.b16 %v10995
      %v11260 = vunpack.c.h.b16 %v10995
      %v11261 = vunpack.c.l.b16 %v10996
      %v11262 = vunpack.c.h.b16 %v10996
      %v11263 = vunpack.c.l.b16 %v10997
      %v11264 = vunpack.c.h.b16 %v10997
      %v11265 = vunpack.c.l.b16 %v10998
      %v11266 = vunpack.c.h.b16 %v10998
      %v11267 = vunpack.c.l.b16 %v10999
      %v11268 = vunpack.c.h.b16 %v10999
      %v11269 = vunpack.c.l.b16 %v11000
      %v11270 = vunpack.c.h.b16 %v11000
      %v11271 = vunpack.c.l.b16 %v11001
      %v11272 = vunpack.c.h.b16 %v11001
      %v11273 = vunpack.c.l.b16 %v11002
      %v11274 = vunpack.c.h.b16 %v11002
      %v11275 = vunpack.c.l.b16 %v11003
      %v11276 = vunpack.c.h.b16 %v11003
      %v11277 = vunpack.c.l.b16 %v11004
      %v11278 = vunpack.c.h.b16 %v11004
      %v11279 = vunpack.c.l.b16 %v11005
      %v11280 = vunpack.c.h.b16 %v11005
      %v11281 = vunpack.c.l.b16 %v11006
      %v11282 = vunpack.c.h.b16 %v11006
      %v11283 = vunpack.c.l.b16 %v11007
      %v11284 = vunpack.c.h.b16 %v11007
      %v11285 = vunpack.c.l.b16 %v11008
      %v11286 = vunpack.c.h.b16 %v11008
      %v11287 = vunpack.c.l.b16 %v11009
      %v11288 = vunpack.c.h.b16 %v11009
      %v11289 = vunpack.c.l.b16 %v11010
      %v11290 = vunpack.c.h.b16 %v11010
      %v11291 = vunpack.c.l.b16 %v11011
      %v11292 = vunpack.c.h.b16 %v11011
      %v11293 = vunpack.c.l.b16 %v11012
      %v11294 = vunpack.c.h.b16 %v11012
      %v11295 = vunpack.c.l.b16 %v11013
      %v11296 = vunpack.c.h.b16 %v11013
      %v11297 = vunpack.c.l.b16 %v11014
      %v11298 = vunpack.c.h.b16 %v11014
      %v11299 = vunpack.c.l.b16 %v11015
      %v11300 = vunpack.c.h.b16 %v11015
      %v11301 = vunpack.c.l.b16 %v11016
      %v11302 = vunpack.c.h.b16 %v11016
      %v11303 = vunpack.c.l.b16 %v11017
      %v11304 = vunpack.c.h.b16 %v11017
      %v11305 = vunpack.c.l.b16 %v11018
      %v11306 = vunpack.c.h.b16 %v11018
      %v11307 = vpack.c.b16 %v11117, %v11115
      %v11308 = vpack.c.b16 %v11118, %v11116
      %v11309 = vpack.c.b16 %v11121, %v11119
      %v11310 = vpack.c.b16 %v11122, %v11120
      %v11311 = vpack.c.b16 %v11125, %v11123
      %v11312 = vpack.c.b16 %v11126, %v11124
      %v11313 = vpack.c.b16 %v11129, %v11127
      %v11314 = vpack.c.b16 %v11130, %v11128
      %v11315 = vpack.c.b16 %v11133, %v11131
      %v11316 = vpack.c.b16 %v11134, %v11132
      %v11317 = vpack.c.b16 %v11137, %v11135
      %v11318 = vpack.c.b16 %v11138, %v11136
      %v11319 = vpack.c.b16 %v11141, %v11139
      %v11320 = vpack.c.b16 %v11142, %v11140
      %v11321 = vpack.c.b16 %v11145, %v11143
      %v11322 = vpack.c.b16 %v11146, %v11144
      %v11323 = vpack.c.b16 %v11149, %v11147
      %v11324 = vpack.c.b16 %v11150, %v11148
      %v11325 = vpack.c.b16 %v11153, %v11151
      %v11326 = vpack.c.b16 %v11154, %v11152
      %v11327 = vpack.c.b16 %v11157, %v11155
      %v11328 = vpack.c.b16 %v11158, %v11156
      %v11329 = vpack.c.b16 %v11161, %v11159
      %v11330 = vpack.c.b16 %v11162, %v11160
      %v11331 = vpack.c.b16 %v11165, %v11163
      %v11332 = vpack.c.b16 %v11166, %v11164
      %v11333 = vpack.c.b16 %v11169, %v11167
      %v11334 = vpack.c.b16 %v11170, %v11168
      %v11335 = vpack.c.b16 %v11173, %v11171
      %v11336 = vpack.c.b16 %v11174, %v11172
      %v11337 = vpack.c.b16 %v11177, %v11175
      %v11338 = vpack.c.b16 %v11178, %v11176
      %v11339 = vpack.c.b16 %v11181, %v11179
      %v11340 = vpack.c.b16 %v11182, %v11180
      %v11341 = vpack.c.b16 %v11185, %v11183
      %v11342 = vpack.c.b16 %v11186, %v11184
      %v11343 = vpack.c.b16 %v11189, %v11187
      %v11344 = vpack.c.b16 %v11190, %v11188
      %v11345 = vpack.c.b16 %v11193, %v11191
      %v11346 = vpack.c.b16 %v11194, %v11192
      %v11347 = vpack.c.b16 %v11197, %v11195
      %v11348 = vpack.c.b16 %v11198, %v11196
      %v11349 = vpack.c.b16 %v11201, %v11199
      %v11350 = vpack.c.b16 %v11202, %v11200
      %v11351 = vpack.c.b16 %v11205, %v11203
      %v11352 = vpack.c.b16 %v11206, %v11204
      %v11353 = vpack.c.b16 %v11209, %v11207
      %v11354 = vpack.c.b16 %v11210, %v11208
      %v11355 = vpack.c.b16 %v11213, %v11211
      %v11356 = vpack.c.b16 %v11214, %v11212
      %v11357 = vpack.c.b16 %v11217, %v11215
      %v11358 = vpack.c.b16 %v11218, %v11216
      %v11359 = vpack.c.b16 %v11221, %v11219
      %v11360 = vpack.c.b16 %v11222, %v11220
      %v11361 = vpack.c.b16 %v11225, %v11223
      %v11362 = vpack.c.b16 %v11226, %v11224
      %v11363 = vpack.c.b16 %v11229, %v11227
      %v11364 = vpack.c.b16 %v11230, %v11228
      %v11365 = vpack.c.b16 %v11233, %v11231
      %v11366 = vpack.c.b16 %v11234, %v11232
      %v11367 = vpack.c.b16 %v11237, %v11235
      %v11368 = vpack.c.b16 %v11238, %v11236
      %v11369 = vpack.c.b16 %v11241, %v11239
      %v11370 = vpack.c.b16 %v11242, %v11240
      %v11371 = vpack.c.b16 %v11245, %v11243
      %v11372 = vpack.c.b16 %v11246, %v11244
      %v11373 = vpack.c.b16 %v11249, %v11247
      %v11374 = vpack.c.b16 %v11250, %v11248
      %v11375 = vpack.c.b16 %v11253, %v11251
      %v11376 = vpack.c.b16 %v11254, %v11252
      %v11377 = vpack.c.b16 %v11257, %v11255
      %v11378 = vpack.c.b16 %v11258, %v11256
      %v11379 = vpack.c.b16 %v11261, %v11259
      %v11380 = vpack.c.b16 %v11262, %v11260
      %v11381 = vpack.c.b16 %v11265, %v11263
      %v11382 = vpack.c.b16 %v11266, %v11264
      %v11383 = vpack.c.b16 %v11269, %v11267
      %v11384 = vpack.c.b16 %v11270, %v11268
      %v11385 = vpack.c.b16 %v11273, %v11271
      %v11386 = vpack.c.b16 %v11274, %v11272
      %v11387 = vpack.c.b16 %v11277, %v11275
      %v11388 = vpack.c.b16 %v11278, %v11276
      %v11389 = vpack.c.b16 %v11281, %v11279
      %v11390 = vpack.c.b16 %v11282, %v11280
      %v11391 = vpack.c.b16 %v11285, %v11283
      %v11392 = vpack.c.b16 %v11286, %v11284
      %v11393 = vpack.c.b16 %v11289, %v11287
      %v11394 = vpack.c.b16 %v11290, %v11288
      %v11395 = vpack.c.b16 %v11293, %v11291
      %v11396 = vpack.c.b16 %v11294, %v11292
      %v11397 = vpack.c.b16 %v11297, %v11295
      %v11398 = vpack.c.b16 %v11298, %v11296
      %v11399 = vpack.c.b16 %v11301, %v11299
      %v11400 = vpack.c.b16 %v11302, %v11300
      %v11401 = vpack.c.b16 %v11305, %v11303
      %v11402 = vpack.c.b16 %v11306, %v11304
      %11499 = vmatprep.subr.bf16.mxu0 %v11322
      %11500 = vmatpush1.bf16.msra.mxu0 %v11321
      %11501 = vmatprep.subr.bf16.mxu0 %v11320
      %11502 = vmatpush1.bf16.msra.mxu0 %v11319
      %11503 = vmatprep.subr.bf16.mxu0 %v11318
      %11504 = vmatpush1.bf16.msra.mxu0 %v11317
      %11505 = vmatprep.subr.bf16.mxu0 %v11316
      %11506 = vmatpush1.bf16.msra.mxu0 %v11315
      %11507 = vmatprep.subr.bf16.mxu0 %v11314
      %11508 = vmatpush1.bf16.msra.mxu0 %v11313
      %11509 = vmatprep.subr.bf16.mxu0 %v11312
      %11510 = vmatpush1.bf16.msra.mxu0 %v11311
      %11511 = vmatprep.subr.bf16.mxu0 %v11310
      %11512 = vmatpush1.bf16.msra.mxu0 %v11309
      %11513 = vmatprep.subr.bf16.mxu0 %v11308
      %11514 = vmatpush1.bf16.msra.mxu0 %v11307
      %11515 = vmatprep.subr.bf16.mxu0 %v11338
      %11516 = vmatpush2.bf16.msra.mxu0 %v11337
      %11517 = vmatprep.subr.bf16.mxu0 %v11336
      %11518 = vmatpush2.bf16.msra.mxu0 %v11335
      %11519 = vmatprep.subr.bf16.mxu0 %v11334
      %11520 = vmatpush2.bf16.msra.mxu0 %v11333
      %11521 = vmatprep.subr.bf16.mxu0 %v11332
      %11522 = vmatpush2.bf16.msra.mxu0 %v11331
      %11523 = vmatprep.subr.bf16.mxu0 %v11330
      %11524 = vmatpush2.bf16.msra.mxu0 %v11329
      %11525 = vmatprep.subr.bf16.mxu0 %v11328
      %11526 = vmatpush2.bf16.msra.mxu0 %v11327
      %11527 = vmatprep.subr.bf16.mxu0 %v11326
      %11528 = vmatpush2.bf16.msra.mxu0 %v11325
      %11529 = vmatprep.subr.bf16.mxu0 %v11324
      %11530 = vmatpush2.bf16.msra.mxu0 %v11323
      %11531 = vmatprep.mubr.bf16.mxu0 %v9045
      %11532 = vmatmul.mubr.bf16.gmra.mxu0 %v9044
      %v11533 = vpop.f32.mrf.mxu0
      %v11534 = vadd.f32 0.0, %v11533
      %v11535 = vpop.f32.mrf.mxu0
      %v11536 = vadd.f32 0.0, %v11535
      %v11537 = vpop.f32.mrf.mxu0
      %v11538 = vadd.f32 0.0, %v11537
      %v11539 = vpop.f32.mrf.mxu0
      %v11540 = vadd.f32 0.0, %v11539
      %11541 = vmatprep.mubr.bf16.mxu0 %v9051
      %11542 = vmatmul.mubr.bf16.gmra.mxu0 %v9050
      %v11543 = vpop.f32.mrf.mxu0
      %v11544 = vadd.f32 0.0, %v11543
      %v11545 = vpop.f32.mrf.mxu0
      %v11546 = vadd.f32 0.0, %v11545
      %v11547 = vpop.f32.mrf.mxu0
      %v11548 = vadd.f32 0.0, %v11547
      %v11549 = vpop.f32.mrf.mxu0
      %v11550 = vadd.f32 0.0, %v11549
      %11551 = vmatprep.mubr.bf16.mxu0 %v9057
      %11552 = vmatmul.mubr.bf16.gmra.mxu0 %v9056
      %v11553 = vpop.f32.mrf.mxu0
      %v11554 = vadd.f32 0.0, %v11553
      %v11555 = vpop.f32.mrf.mxu0
      %v11556 = vadd.f32 0.0, %v11555
      %v11557 = vpop.f32.mrf.mxu0
      %v11558 = vadd.f32 0.0, %v11557
      %v11559 = vpop.f32.mrf.mxu0
      %v11560 = vadd.f32 0.0, %v11559
      %11561 = vmatprep.mubr.bf16.mxu0 %v9063
      %11562 = vmatmul.mubr.bf16.gmra.mxu0 %v9062
      %v11563 = vpop.f32.mrf.mxu0
      %v11564 = vadd.f32 0.0, %v11563
      %v11565 = vpop.f32.mrf.mxu0
      %v11566 = vadd.f32 0.0, %v11565
      %v11567 = vpop.f32.mrf.mxu0
      %v11568 = vadd.f32 0.0, %v11567
      %v11569 = vpop.f32.mrf.mxu0
      %v11570 = vadd.f32 0.0, %v11569
      %11571 = vmatprep.mubr.bf16.mxu0 %v9069
      %11572 = vmatmul.mubr.bf16.gmra.mxu0 %v9068
      %v11573 = vpop.f32.mrf.mxu0
      %v11574 = vadd.f32 0.0, %v11573
      %v11575 = vpop.f32.mrf.mxu0
      %v11576 = vadd.f32 0.0, %v11575
      %v11577 = vpop.f32.mrf.mxu0
      %v11578 = vadd.f32 0.0, %v11577
      %v11579 = vpop.f32.mrf.mxu0
      %v11580 = vadd.f32 0.0, %v11579
      %11581 = vmatprep.mubr.bf16.mxu0 %v9075
      %11582 = vmatmul.mubr.bf16.gmra.mxu0 %v9074
      %v11583 = vpop.f32.mrf.mxu0
      %v11584 = vadd.f32 0.0, %v11583
      %v11585 = vpop.f32.mrf.mxu0
      %v11586 = vadd.f32 0.0, %v11585
      %v11587 = vpop.f32.mrf.mxu0
      %v11588 = vadd.f32 0.0, %v11587
      %v11589 = vpop.f32.mrf.mxu0
      %v11590 = vadd.f32 0.0, %v11589
      %11591 = vdwg.mxu0
      %11592 = vmatprep.subr.bf16.mxu0 %v11354
      %11593 = vmatpush1.bf16.msra.mxu0 %v11353
      %11594 = vmatprep.subr.bf16.mxu0 %v11352
      %11595 = vmatpush1.bf16.msra.mxu0 %v11351
      %11596 = vmatprep.subr.bf16.mxu0 %v11350
      %11597 = vmatpush1.bf16.msra.mxu0 %v11349
      %11598 = vmatprep.subr.bf16.mxu0 %v11348
      %11599 = vmatpush1.bf16.msra.mxu0 %v11347
      %11600 = vmatprep.subr.bf16.mxu0 %v11346
      %11601 = vmatpush1.bf16.msra.mxu0 %v11345
      %11602 = vmatprep.subr.bf16.mxu0 %v11344
      %11603 = vmatpush1.bf16.msra.mxu0 %v11343
      %11604 = vmatprep.subr.bf16.mxu0 %v11342
      %11605 = vmatpush1.bf16.msra.mxu0 %v11341
      %11606 = vmatprep.subr.bf16.mxu0 %v11340
      %11607 = vmatpush1.bf16.msra.mxu0 %v11339
      %11608 = vmatprep.subr.bf16.mxu0 %v11370
      %11609 = vmatpush2.bf16.msra.mxu0 %v11369
      %11610 = vmatprep.subr.bf16.mxu0 %v11368
      %11611 = vmatpush2.bf16.msra.mxu0 %v11367
      %11612 = vmatprep.subr.bf16.mxu0 %v11366
      %11613 = vmatpush2.bf16.msra.mxu0 %v11365
      %11614 = vmatprep.subr.bf16.mxu0 %v11364
      %11615 = vmatpush2.bf16.msra.mxu0 %v11363
      %11616 = vmatprep.subr.bf16.mxu0 %v11362
      %11617 = vmatpush2.bf16.msra.mxu0 %v11361
      %11618 = vmatprep.subr.bf16.mxu0 %v11360
      %11619 = vmatpush2.bf16.msra.mxu0 %v11359
      %11620 = vmatprep.subr.bf16.mxu0 %v11358
      %11621 = vmatpush2.bf16.msra.mxu0 %v11357
      %11622 = vmatprep.subr.bf16.mxu0 %v11356
      %11623 = vmatpush2.bf16.msra.mxu0 %v11355
      %11624 = vmatprep.mubr.bf16.mxu0 %v9047
      %11625 = vmatmul.mubr.bf16.gmra.mxu0 %v9046
      %v11626 = vpop.f32.mrf.mxu0
      %v11627 = vadd.f32 %v11534, %v11626
      %v11628 = vpop.f32.mrf.mxu0
      %v11629 = vadd.f32 %v11536, %v11628
      %v11630 = vpop.f32.mrf.mxu0
      %v11631 = vadd.f32 %v11538, %v11630
      %v11632 = vpop.f32.mrf.mxu0
      %v11633 = vadd.f32 %v11540, %v11632
      %11634 = vmatprep.mubr.bf16.mxu0 %v9053
      %11635 = vmatmul.mubr.bf16.gmra.mxu0 %v9052
      %v11636 = vpop.f32.mrf.mxu0
      %v11637 = vadd.f32 %v11544, %v11636
      %v11638 = vpop.f32.mrf.mxu0
      %v11639 = vadd.f32 %v11546, %v11638
      %v11640 = vpop.f32.mrf.mxu0
      %v11641 = vadd.f32 %v11548, %v11640
      %v11642 = vpop.f32.mrf.mxu0
      %v11643 = vadd.f32 %v11550, %v11642
      %11644 = vmatprep.mubr.bf16.mxu0 %v9059
      %11645 = vmatmul.mubr.bf16.gmra.mxu0 %v9058
      %v11646 = vpop.f32.mrf.mxu0
      %v11647 = vadd.f32 %v11554, %v11646
      %v11648 = vpop.f32.mrf.mxu0
      %v11649 = vadd.f32 %v11556, %v11648
      %v11650 = vpop.f32.mrf.mxu0
      %v11651 = vadd.f32 %v11558, %v11650
      %v11652 = vpop.f32.mrf.mxu0
      %v11653 = vadd.f32 %v11560, %v11652
      %11654 = vmatprep.mubr.bf16.mxu0 %v9065
      %11655 = vmatmul.mubr.bf16.gmra.mxu0 %v9064
      %v11656 = vpop.f32.mrf.mxu0
      %v11657 = vadd.f32 %v11564, %v11656
      %v11658 = vpop.f32.mrf.mxu0
      %v11659 = vadd.f32 %v11566, %v11658
      %v11660 = vpop.f32.mrf.mxu0
      %v11661 = vadd.f32 %v11568, %v11660
      %v11662 = vpop.f32.mrf.mxu0
      %v11663 = vadd.f32 %v11570, %v11662
      %11664 = vmatprep.mubr.bf16.mxu0 %v9071
      %11665 = vmatmul.mubr.bf16.gmra.mxu0 %v9070
      %v11666 = vpop.f32.mrf.mxu0
      %v11667 = vadd.f32 %v11574, %v11666
      %v11668 = vpop.f32.mrf.mxu0
      %v11669 = vadd.f32 %v11576, %v11668
      %v11670 = vpop.f32.mrf.mxu0
      %v11671 = vadd.f32 %v11578, %v11670
      %v11672 = vpop.f32.mrf.mxu0
      %v11673 = vadd.f32 %v11580, %v11672
      %11674 = vmatprep.mubr.bf16.mxu0 %v9077
      %11675 = vmatmul.mubr.bf16.gmra.mxu0 %v9076
      %v11676 = vpop.f32.mrf.mxu0
      %v11677 = vadd.f32 %v11584, %v11676
      %v11678 = vpop.f32.mrf.mxu0
      %v11679 = vadd.f32 %v11586, %v11678
      %v11680 = vpop.f32.mrf.mxu0
      %v11681 = vadd.f32 %v11588, %v11680
      %v11682 = vpop.f32.mrf.mxu0
      %v11683 = vadd.f32 %v11590, %v11682
      %11684 = vdwg.mxu0
      %11685 = vmatprep.subr.bf16.mxu0 %v11386
      %11686 = vmatpush1.bf16.msra.mxu0 %v11385
      %11687 = vmatprep.subr.bf16.mxu0 %v11384
      %11688 = vmatpush1.bf16.msra.mxu0 %v11383
      %11689 = vmatprep.subr.bf16.mxu0 %v11382
      %11690 = vmatpush1.bf16.msra.mxu0 %v11381
      %11691 = vmatprep.subr.bf16.mxu0 %v11380
      %11692 = vmatpush1.bf16.msra.mxu0 %v11379
      %11693 = vmatprep.subr.bf16.mxu0 %v11378
      %11694 = vmatpush1.bf16.msra.mxu0 %v11377
      %11695 = vmatprep.subr.bf16.mxu0 %v11376
      %11696 = vmatpush1.bf16.msra.mxu0 %v11375
      %11697 = vmatprep.subr.bf16.mxu0 %v11374
      %11698 = vmatpush1.bf16.msra.mxu0 %v11373
      %11699 = vmatprep.subr.bf16.mxu0 %v11372
      %11700 = vmatpush1.bf16.msra.mxu0 %v11371
      %11701 = vmatprep.subr.bf16.mxu0 %v11402
      %11702 = vmatpush2.bf16.msra.mxu0 %v11401
      %11703 = vmatprep.subr.bf16.mxu0 %v11400
      %11704 = vmatpush2.bf16.msra.mxu0 %v11399
      %11705 = vmatprep.subr.bf16.mxu0 %v11398
      %11706 = vmatpush2.bf16.msra.mxu0 %v11397
      %11707 = vmatprep.subr.bf16.mxu0 %v11396
      %11708 = vmatpush2.bf16.msra.mxu0 %v11395
      %11709 = vmatprep.subr.bf16.mxu0 %v11394
      %11710 = vmatpush2.bf16.msra.mxu0 %v11393
      %11711 = vmatprep.subr.bf16.mxu0 %v11392
      %11712 = vmatpush2.bf16.msra.mxu0 %v11391
      %11713 = vmatprep.subr.bf16.mxu0 %v11390
      %11714 = vmatpush2.bf16.msra.mxu0 %v11389
      %11715 = vmatprep.subr.bf16.mxu0 %v11388
      %11716 = vmatpush2.bf16.msra.mxu0 %v11387
      %11717 = vmatprep.mubr.bf16.mxu0 %v9049
      %11718 = vmatmul.mubr.bf16.gmra.mxu0 %v9048
      %v11719 = vpop.f32.mrf.mxu0
      %v11720 = vadd.f32 %v11627, %v11719
      %v11721 = vpop.f32.mrf.mxu0
      %v11722 = vadd.f32 %v11629, %v11721
      %v11723 = vpop.f32.mrf.mxu0
      %v11724 = vadd.f32 %v11631, %v11723
      %v11725 = vpop.f32.mrf.mxu0
      %v11726 = vadd.f32 %v11633, %v11725
      %11727 = vmatprep.mubr.bf16.mxu0 %v9055
      %11728 = vmatmul.mubr.bf16.gmra.mxu0 %v9054
      %v11729 = vpop.f32.mrf.mxu0
      %v11730 = vadd.f32 %v11637, %v11729
      %v11731 = vpop.f32.mrf.mxu0
      %v11732 = vadd.f32 %v11639, %v11731
      %v11733 = vpop.f32.mrf.mxu0
      %v11734 = vadd.f32 %v11641, %v11733
      %v11735 = vpop.f32.mrf.mxu0
      %v11736 = vadd.f32 %v11643, %v11735
      %11737 = vmatprep.mubr.bf16.mxu0 %v9061
      %11738 = vmatmul.mubr.bf16.gmra.mxu0 %v9060
      %v11739 = vpop.f32.mrf.mxu0
      %v11740 = vadd.f32 %v11647, %v11739
      %v11741 = vpop.f32.mrf.mxu0
      %v11742 = vadd.f32 %v11649, %v11741
      %v11743 = vpop.f32.mrf.mxu0
      %v11744 = vadd.f32 %v11651, %v11743
      %v11745 = vpop.f32.mrf.mxu0
      %v11746 = vadd.f32 %v11653, %v11745
      %11747 = vmatprep.mubr.bf16.mxu0 %v9067
      %11748 = vmatmul.mubr.bf16.gmra.mxu0 %v9066
      %v11749 = vpop.f32.mrf.mxu0
      %v11750 = vadd.f32 %v11657, %v11749
      %v11751 = vpop.f32.mrf.mxu0
      %v11752 = vadd.f32 %v11659, %v11751
      %v11753 = vpop.f32.mrf.mxu0
      %v11754 = vadd.f32 %v11661, %v11753
      %v11755 = vpop.f32.mrf.mxu0
      %v11756 = vadd.f32 %v11663, %v11755
      %11757 = vmatprep.mubr.bf16.mxu0 %v9073
      %11758 = vmatmul.mubr.bf16.gmra.mxu0 %v9072
      %v11759 = vpop.f32.mrf.mxu0
      %v11760 = vadd.f32 %v11667, %v11759
      %v11761 = vpop.f32.mrf.mxu0
      %v11762 = vadd.f32 %v11669, %v11761
      %v11763 = vpop.f32.mrf.mxu0
      %v11764 = vadd.f32 %v11671, %v11763
      %v11765 = vpop.f32.mrf.mxu0
      %v11766 = vadd.f32 %v11673, %v11765
      %11767 = vmatprep.mubr.bf16.mxu0 %v9079
      %11768 = vmatmul.mubr.bf16.gmra.mxu0 %v9078
      %v11769 = vpop.f32.mrf.mxu0
      %v11770 = vadd.f32 %v11677, %v11769
      %v11771 = vpop.f32.mrf.mxu0
      %v11772 = vadd.f32 %v11679, %v11771
      %v11773 = vpop.f32.mrf.mxu0
      %v11774 = vadd.f32 %v11681, %v11773
      %v11775 = vpop.f32.mrf.mxu0
      %v11776 = vadd.f32 %v11683, %v11775
      %11777 = vdwg.mxu0
      %v11802 = vrot.slane %v11720, 2
      %v11803 = vrot.slane %v11724, 2
      %v11804 = vsel %vm3038, %v11802, %v11803
      %v11805 = vrot.slane %v11722, 2
      %v11806 = vrot.slane %v11726, 2
      %v11807 = vsel %vm3038, %v11805, %v11806
      %v11808 = vrot.slane %v11730, 2
      %v11809 = vsel %vm3038, %v11803, %v11808
      %v11810 = vrot.slane %v11732, 2
      %v11811 = vsel %vm3038, %v11806, %v11810
      %v11812 = vrot.slane %v11734, 2
      %v11813 = vsel %vm3038, %v11808, %v11812
      %v11814 = vrot.slane %v11736, 2
      %v11815 = vsel %vm3038, %v11810, %v11814
      %v11816 = vrot.slane %v11740, 2
      %v11817 = vsel %vm3038, %v11812, %v11816
      %v11818 = vrot.slane %v11742, 2
      %v11819 = vsel %vm3038, %v11814, %v11818
      %v11820 = vrot.slane %v11744, 2
      %v11821 = vsel %vm3038, %v11816, %v11820
      %v11822 = vrot.slane %v11746, 2
      %v11823 = vsel %vm3038, %v11818, %v11822
      %v11824 = vrot.slane %v11750, 2
      %v11825 = vsel %vm3038, %v11820, %v11824
      %v11826 = vrot.slane %v11752, 2
      %v11827 = vsel %vm3038, %v11822, %v11826
      %v11828 = vrot.slane %v11754, 2
      %v11829 = vsel %vm3038, %v11824, %v11828
      %v11830 = vrot.slane %v11756, 2
      %v11831 = vsel %vm3038, %v11826, %v11830
      %v11832 = vrot.slane %v11760, 2
      %v11833 = vsel %vm3038, %v11828, %v11832
      %v11834 = vrot.slane %v11762, 2
      %v11835 = vsel %vm3038, %v11830, %v11834
      %v11836 = vrot.slane %v11764, 2
      %v11837 = vsel %vm3038, %v11832, %v11836
      %v11838 = vrot.slane %v11766, 2
      %v11839 = vsel %vm3038, %v11834, %v11838
      %v11840 = vrot.slane %v11770, 2
      %v11841 = vsel %vm3038, %v11836, %v11840
      %v11842 = vrot.slane %v11772, 2
      %v11843 = vsel %vm3038, %v11838, %v11842
      %v11844 = vrot.slane %v11774, 2
      %v11845 = vsel %vm3038, %v11840, %v11844
      %v11846 = vrot.slane %v11776, 2
      %v11847 = vsel %vm3038, %v11842, %v11846
      %v11870 = vadd.f32 %v10900, %v11804
      %v11871 = vadd.f32 %v10901, %v11807
      %v11872 = vadd.f32 %v10902, %v11809
      %v11873 = vadd.f32 %v10903, %v11811
      %v11874 = vadd.f32 %v10904, %v11813
      %v11875 = vadd.f32 %v10905, %v11815
      %v11876 = vadd.f32 %v10906, %v11817
      %v11877 = vadd.f32 %v10907, %v11819
      %v11878 = vadd.f32 %v10908, %v11821
      %v11879 = vadd.f32 %v10909, %v11823
      %v11880 = vadd.f32 %v10910, %v11825
      %v11881 = vadd.f32 %v10911, %v11827
      %v11882 = vadd.f32 %v10912, %v11829
      %v11883 = vadd.f32 %v10913, %v11831
      %v11884 = vadd.f32 %v10914, %v11833
      %v11885 = vadd.f32 %v10915, %v11835
      %v11886 = vadd.f32 %v10916, %v11837
      %v11887 = vadd.f32 %v10917, %v11839
      %v11888 = vadd.f32 %v10918, %v11841
      %v11889 = vadd.f32 %v10919, %v11843
      %v11890 = vadd.f32 %v10920, %v11845
      %v11891 = vadd.f32 %v10921, %v11847
      %v11892 = vld [vmem:[%s202] sm:$0x3]
      %v11894 = vlaneseq
      %v11895 = vshrl.u32 %v11894, 7
      %v11896 = vsub.s32 0, %v11895
      %v11897 = vrot.slane %v11892, %v11896
      %v11898 = vlaneseq
      %v11899 = vshrl.u32 %v11898, 7
      %v11900 = vsub.s32 1, %v11899
      %v11901 = vrot.slane %v11892, %v11900
      %v11904 = vadd.f32 %v11870, %v11897
      %v11905 = vadd.f32 %v11871, %v11901
      %v11906 = vadd.f32 %v11872, %v11897
      %v11907 = vadd.f32 %v11873, %v11901
      %v11908 = vadd.f32 %v11874, %v11897
      %v11909 = vadd.f32 %v11875, %v11901
      %v11910 = vadd.f32 %v11876, %v11897
      %v11911 = vadd.f32 %v11877, %v11901
      %v11912 = vadd.f32 %v11878, %v11897
      %v11913 = vadd.f32 %v11879, %v11901
      %v11914 = vadd.f32 %v11880, %v11897
      %v11915 = vadd.f32 %v11881, %v11901
      %v11916 = vadd.f32 %v11882, %v11897
      %v11917 = vadd.f32 %v11883, %v11901
      %v11918 = vadd.f32 %v11884, %v11897
      %v11919 = vadd.f32 %v11885, %v11901
      %v11920 = vadd.f32 %v11886, %v11897
      %v11921 = vadd.f32 %v11887, %v11901
      %v11922 = vadd.f32 %v11888, %v11897
      %v11923 = vadd.f32 %v11889, %v11901
      %v11924 = vadd.f32 %v11890, %v11897
      %v11925 = vadd.f32 %v11891, %v11901
      %v11926 = vmax.f32 %v11904, 0.0
      %v11927 = vmax.f32 %v11905, 0.0
      %v11928 = vmax.f32 %v11906, 0.0
      %v11929 = vmax.f32 %v11907, 0.0
      %v11930 = vmax.f32 %v11908, 0.0
      %v11931 = vmax.f32 %v11909, 0.0
      %v11932 = vmax.f32 %v11910, 0.0
      %v11933 = vmax.f32 %v11911, 0.0
      %v11934 = vmax.f32 %v11912, 0.0
      %v11935 = vmax.f32 %v11913, 0.0
      %v11936 = vmax.f32 %v11914, 0.0
      %v11937 = vmax.f32 %v11915, 0.0
      %v11938 = vmax.f32 %v11916, 0.0
      %v11939 = vmax.f32 %v11917, 0.0
      %v11940 = vmax.f32 %v11918, 0.0
      %v11941 = vmax.f32 %v11919, 0.0
      %v11942 = vmax.f32 %v11920, 0.0
      %v11943 = vmax.f32 %v11921, 0.0
      %v11944 = vmax.f32 %v11922, 0.0
      %v11945 = vmax.f32 %v11923, 0.0
      %v11946 = vmax.f32 %v11924, 0.0
      %v11947 = vmax.f32 %v11925, 0.0
      %v11948 = vlaneseq
      %v11949 = vshrl.u32 %v11948, 7
      %v11950 = vadd.s32 %v11949, 8
      %v11951 = vadd.s32 %v11949, 16
      %v11952 = vadd.s32 %v11949, 24
      %v11953 = vadd.s32 %v11949, 32
      %v11954 = vadd.s32 %v11949, 40
      %v11955 = vadd.s32 %v11949, 48
      %v11956 = vadd.s32 %v11949, 56
      %v11957 = vadd.s32 %v11949, 64
      %v11958 = vadd.s32 %v11949, 72
      %v11959 = vadd.s32 %v11949, 80
      %vm11960 = vcmp.ge.s32.totalorder %v11949, 0
      %vm11961 = vcmp.ge.s32.totalorder %v11950, 0
      %vm11962 = vcmp.ge.s32.totalorder %v11951, 0
      %vm11963 = vcmp.ge.s32.totalorder %v11952, 0
      %vm11964 = vcmp.ge.s32.totalorder %v11953, 0
      %vm11965 = vcmp.ge.s32.totalorder %v11954, 0
      %vm11966 = vcmp.ge.s32.totalorder %v11955, 0
      %vm11967 = vcmp.ge.s32.totalorder %v11956, 0
      %vm11968 = vcmp.ge.s32.totalorder %v11957, 0
      %vm11969 = vcmp.ge.s32.totalorder %v11958, 0
      %vm11970 = vcmp.ge.s32.totalorder %v11959, 0
      %vm11971 = vcmp.lt.s32.totalorder %v11949, 43
      %vm11972 = vcmp.lt.s32.totalorder %v11950, 43
      %vm11973 = vcmp.lt.s32.totalorder %v11951, 43
      %vm11974 = vcmp.lt.s32.totalorder %v11952, 43
      %vm11975 = vcmp.lt.s32.totalorder %v11953, 43
      %vm11976 = vcmp.lt.s32.totalorder %v11954, 43
      %vm11977 = vcmp.lt.s32.totalorder %v11955, 43
      %vm11978 = vcmp.lt.s32.totalorder %v11956, 43
      %vm11979 = vcmp.lt.s32.totalorder %v11957, 43
      %vm11980 = vcmp.lt.s32.totalorder %v11958, 43
      %vm11981 = vcmp.lt.s32.totalorder %v11959, 43
      %vm11982 = vmand %vm11960, %vm11971
      %vm11983 = vmand %vm11961, %vm11972
      %vm11984 = vmand %vm11962, %vm11973
      %vm11985 = vmand %vm11963, %vm11974
      %vm11986 = vmand %vm11964, %vm11975
      %vm11987 = vmand %vm11965, %vm11976
      %vm11988 = vmand %vm11966, %vm11977
      %vm11989 = vmand %vm11967, %vm11978
      %vm11990 = vmand %vm11968, %vm11979
      %vm11991 = vmand %vm11969, %vm11980
      %vm11992 = vmand %vm11970, %vm11981
      %v11993 = vsel %vm11982, %v11926, 0.0
      %v11994 = vsel %vm11982, %v11927, 0.0
      %v11995 = vsel %vm11983, %v11928, 0.0
      %v11996 = vsel %vm11983, %v11929, 0.0
      %v11997 = vsel %vm11984, %v11930, 0.0
      %v11998 = vsel %vm11984, %v11931, 0.0
      %v11999 = vsel %vm11985, %v11932, 0.0
      %v12000 = vsel %vm11985, %v11933, 0.0
      %v12001 = vsel %vm11986, %v11934, 0.0
      %v12002 = vsel %vm11986, %v11935, 0.0
      %v12003 = vsel %vm11987, %v11936, 0.0
      %v12004 = vsel %vm11987, %v11937, 0.0
      %v12005 = vsel %vm11988, %v11938, 0.0
      %v12006 = vsel %vm11988, %v11939, 0.0
      %v12007 = vsel %vm11989, %v11940, 0.0
      %v12008 = vsel %vm11989, %v11941, 0.0
      %v12009 = vsel %vm11990, %v11942, 0.0
      %v12010 = vsel %vm11990, %v11943, 0.0
      %v12011 = vsel %vm11991, %v11944, 0.0
      %v12012 = vsel %vm11991, %v11945, 0.0
      %v12013 = vsel %vm11992, %v11946, 0.0
      %v12014 = vsel %vm11992, %v11947, 0.0
      %v12015 = vmax.f32 %v11993, %v11997
      %v12016 = vmax.f32 %v11995, %v11999
      %v12017 = vmax.f32 %v12015, %v12001
      %v12018 = vmax.f32 %v12016, %v12003
      %v12019 = vmax.f32 %v12017, %v12005
      %v12020 = vmax.f32 %v12018, %v12007
      %v12021 = vmax.f32 %v12019, %v12009
      %v12022 = vmax.f32 %v12020, %v12011
      %v12023 = vmax.f32 %v12021, %v12013
      %v12024 = vmax.f32 %v12023, %v12022
      %v12025 = vrot.slane %v12024, 4
      %v12026 = vmax.f32 %v12024, %v12025
      %v12027 = vrot.slane %v12026, 2
      %v12028 = vmax.f32 %v12026, %v12027
      %v12029 = vrot.slane %v12028, 1
      %v12030 = vmax.f32 %v12028, %v12029
      %v12031 = vmax.f32 %v11994, %v11998
      %v12032 = vmax.f32 %v11996, %v12000
      %v12033 = vmax.f32 %v12031, %v12002
      %v12034 = vmax.f32 %v12032, %v12004
      %v12035 = vmax.f32 %v12033, %v12006
      %v12036 = vmax.f32 %v12034, %v12008
      %v12037 = vmax.f32 %v12035, %v12010
      %v12038 = vmax.f32 %v12036, %v12012
      %v12039 = vmax.f32 %v12037, %v12014
      %v12040 = vmax.f32 %v12039, %v12038
      %v12041 = vrot.slane %v12040, 4
      %v12042 = vmax.f32 %v12040, %v12041
      %v12043 = vrot.slane %v12042, 2
      %v12044 = vmax.f32 %v12042, %v12043
      %v12045 = vrot.slane %v12044, 1
      %v12046 = vmax.f32 %v12044, %v12045
      %vm12047 = vcmp.ge.s32.totalorder %v11949, 45
      %vm12048 = vcmp.ge.s32.totalorder %v11950, 45
      %vm12049 = vcmp.ge.s32.totalorder %v11951, 45
      %vm12050 = vcmp.ge.s32.totalorder %v11952, 45
      %vm12051 = vcmp.ge.s32.totalorder %v11953, 45
      %vm12052 = vcmp.ge.s32.totalorder %v11954, 45
      %vm12053 = vcmp.ge.s32.totalorder %v11955, 45
      %vm12054 = vcmp.ge.s32.totalorder %v11956, 45
      %vm12055 = vcmp.ge.s32.totalorder %v11957, 45
      %vm12056 = vcmp.ge.s32.totalorder %v11958, 45
      %vm12057 = vcmp.ge.s32.totalorder %v11959, 45
      %vm12058 = vcmp.lt.s32.totalorder %v11949, 88
      %vm12059 = vcmp.lt.s32.totalorder %v11950, 88
      %vm12060 = vcmp.lt.s32.totalorder %v11951, 88
      %vm12061 = vcmp.lt.s32.totalorder %v11952, 88
      %vm12062 = vcmp.lt.s32.totalorder %v11953, 88
      %vm12063 = vcmp.lt.s32.totalorder %v11954, 88
      %vm12064 = vcmp.lt.s32.totalorder %v11955, 88
      %vm12065 = vcmp.lt.s32.totalorder %v11956, 88
      %vm12066 = vcmp.lt.s32.totalorder %v11957, 88
      %vm12067 = vcmp.lt.s32.totalorder %v11958, 88
      %vm12068 = vcmp.lt.s32.totalorder %v11959, 88
      %vm12069 = vmand %vm12047, %vm12058
      %vm12070 = vmand %vm12048, %vm12059
      %vm12071 = vmand %vm12049, %vm12060
      %vm12072 = vmand %vm12050, %vm12061
      %vm12073 = vmand %vm12051, %vm12062
      %vm12074 = vmand %vm12052, %vm12063
      %vm12075 = vmand %vm12053, %vm12064
      %vm12076 = vmand %vm12054, %vm12065
      %vm12077 = vmand %vm12055, %vm12066
      %vm12078 = vmand %vm12056, %vm12067
      %vm12079 = vmand %vm12057, %vm12068
      %v12080 = vsel %vm12069, %v11926, 0.0
      %v12081 = vsel %vm12069, %v11927, 0.0
      %v12082 = vsel %vm12070, %v11928, 0.0
      %v12083 = vsel %vm12070, %v11929, 0.0
      %v12084 = vsel %vm12071, %v11930, 0.0
      %v12085 = vsel %vm12071, %v11931, 0.0
      %v12086 = vsel %vm12072, %v11932, 0.0
      %v12087 = vsel %vm12072, %v11933, 0.0
      %v12088 = vsel %vm12073, %v11934, 0.0
      %v12089 = vsel %vm12073, %v11935, 0.0
      %v12090 = vsel %vm12074, %v11936, 0.0
      %v12091 = vsel %vm12074, %v11937, 0.0
      %v12092 = vsel %vm12075, %v11938, 0.0
      %v12093 = vsel %vm12075, %v11939, 0.0
      %v12094 = vsel %vm12076, %v11940, 0.0
      %v12095 = vsel %vm12076, %v11941, 0.0
      %v12096 = vsel %vm12077, %v11942, 0.0
      %v12097 = vsel %vm12077, %v11943, 0.0
      %v12098 = vsel %vm12078, %v11944, 0.0
      %v12099 = vsel %vm12078, %v11945, 0.0
      %v12100 = vsel %vm12079, %v11946, 0.0
      %v12101 = vsel %vm12079, %v11947, 0.0
      %v12102 = vmax.f32 %v12080, %v12084
      %v12103 = vmax.f32 %v12082, %v12086
      %v12104 = vmax.f32 %v12102, %v12088
      %v12105 = vmax.f32 %v12103, %v12090
      %v12106 = vmax.f32 %v12104, %v12092
      %v12107 = vmax.f32 %v12105, %v12094
      %v12108 = vmax.f32 %v12106, %v12096
      %v12109 = vmax.f32 %v12107, %v12098
      %v12110 = vmax.f32 %v12108, %v12100
      %v12111 = vmax.f32 %v12110, %v12109
      %v12112 = vrot.slane %v12111, 4
      %v12113 = vmax.f32 %v12111, %v12112
      %v12114 = vrot.slane %v12113, 2
      %v12115 = vmax.f32 %v12113, %v12114
      %v12116 = vrot.slane %v12115, 1
      %v12117 = vmax.f32 %v12115, %v12116
      %v12118 = vmax.f32 %v12081, %v12085
      %v12119 = vmax.f32 %v12083, %v12087
      %v12120 = vmax.f32 %v12118, %v12089
      %v12121 = vmax.f32 %v12119, %v12091
      %v12122 = vmax.f32 %v12120, %v12093
      %v12123 = vmax.f32 %v12121, %v12095
      %v12124 = vmax.f32 %v12122, %v12097
      %v12125 = vmax.f32 %v12123, %v12099
      %v12126 = vmax.f32 %v12124, %v12101
      %v12127 = vmax.f32 %v12126, %v12125
      %v12128 = vrot.slane %v12127, 4
      %v12129 = vmax.f32 %v12127, %v12128
      %v12130 = vrot.slane %v12129, 2
      %v12131 = vmax.f32 %v12129, %v12130
      %v12132 = vrot.slane %v12131, 1
      %v12133 = vmax.f32 %v12131, %v12132
      %vm12134 = vcmask 1040384
      %v12135 = vsel %vm12134, %v12030, %v12117
      %v12136 = vsel %vm12134, %v12046, %v12133
      %v12139 = vcombine.low %v12135, %v12136
      %v12141 = vunpack.c.l.s4 1983009808
      %v12142 = vunpack.c.0.s8 %v12141
      %v12143 = vlaneseq
      %v12144 = vshrl.u32 %v12143, 7
      %v12145 = vsub.s32 %v12142, %v12144
      %v12146 = vrot.slane %v12139, %v12145
      %12148 = vst [vmem:[%s207] sm:$0xf] %v12146
      %p12149 = scmp.lt.s32.totalorder %s14, 1
      %s12150 = scalar_select %p12149, %s14, 1
      %s12151 = smul.addr %s12150, 2
      %s12152 = smul.addr %s12151, 2
      %s12153 = scalar_lea.vmem %s3, %s12152
      // Predicated region
      $region33: #{forward.1} parent=31 // pred_check
        %p12154 = pneg %p110
      $region34: #{forward.1} parent=31 // pred_check_branch
        %12156 = sbr.rel (%p12154) target = $region36
      $region35: #{forward.1} parent=31 // pred_region
        _
      $region36: #{forward.1} parent=31 // pred_fallthru
        _
    $region32: #{forward.1} parent=5 // pred_fallthru
      _
    %p12157 = scmp.le.s32.totalorder 2, %s9
    // Predicated region
    $region37: #{forward.1} parent=5 // pred_check
      %p12158 = pneg %p12157
    $region38: #{forward.1} parent=5 // pred_check_branch
      %12160 = sbr.rel (%p12158) target = $region40
    $region39: #{forward.1} parent=5 // pred_region
      %s12161 = ssub.s32 %s9, 2
      // Predicated region
      $region41: #{forward.1} parent=39 // pred_check
        %p12162 = pneg %p116
      $region42: #{forward.1} parent=39 // pred_check_branch
        %12164 = sbr.rel (%p12162) target = $region44
      $region43: #{forward.1} parent=39 // pred_region
        %p12165 = scmp.lt.s32.totalorder %s15, 1
        %s12166 = scalar_select %p12165, %s15, 1
        %s12167 = smul.addr %s12166, 2
        %s12168 = smul.addr %s12167, 2
        %s12169 = scalar_lea.vmem %s3, %s12168
      $region44: #{forward.1} parent=39 // pred_fallthru
        _
    $region40: #{forward.1} parent=5 // pred_fallthru
      _
  $region6: #{forward.1} parent=0 // loop_footer
    %s13 = sadd.s32 1, %s9
  $region7: #{forward.1} parent=0 // loop_footer_branch
    %8 = sbr.rel target = $region3
  $region8: #{forward.1} parent=0 // loop_exit
    _

</llo_original>
